<compile_context>
chip_gen: v7x
topology: tpu7x:2x2x1
jax: 0.10.0
libtpu: 0.0.40
codegen_flags: <defaults>
</compile_context>

<pallas_src>
import numpy as np

import jax
import jax.numpy as jnp
from jax import lax
from jax.experimental import pallas as pl
from jax.experimental.pallas import tpu as pltpu

_BN_EPS = 1e-5


# ----------------------------------------------------------------------------
# In-kernel helpers (traced inside the kernel body)
# ----------------------------------------------------------------------------
def _shift_mats(h):
    """Row-shift matrices built in-kernel from iota (no HBM inputs / DMA).

    (sd @ x)[r] = x[r-1] with a zero top row; (su @ x)[r] = x[r+1] with a zero
    bottom row -- i.e. the H-direction zero padding of a 3x3 conv as matmuls.
    """
    r = lax.broadcasted_iota(jnp.int32, (h, h), 0)
    c = lax.broadcasted_iota(jnp.int32, (h, h), 1)
    sd = (r == c + 1).astype(jnp.float32)
    su = (c == r + 1).astype(jnp.float32)
    return sd, su


def _conv3x3_banded(x, sd, su, w_ref):
    """3x3 conv (stride 1, pad 1) on a lane-dense (H, W*Cin) activation.

    w_ref: (3, W*Cin, W*Cout) banded weights; horizontal taps + width padding
    are folded into the band structure.  Returns the (H, W*Cout) accumulator
    (bias / ReLU applied by the caller).
    """
    xd = jnp.dot(sd, x, preferred_element_type=jnp.float32)
    xu = jnp.dot(su, x, preferred_element_type=jnp.float32)
    acc = jnp.dot(xd, w_ref[0], preferred_element_type=jnp.float32)
    acc = acc + jnp.dot(x, w_ref[1], preferred_element_type=jnp.float32)
    acc = acc + jnp.dot(xu, w_ref[2], preferred_element_type=jnp.float32)
    return acc


# ----------------------------------------------------------------------------
# The fused kernel: 3 pyramid levels + output head, one batch element per step
# ----------------------------------------------------------------------------
def _concat_output_kernel(
        f4_ref, f3_ref, f2_ref, f1_ref,
        # level producing y3 (conv_upsample1 / conv_cat1)
        rt1_ref, rw1_ref, wup1_ref, bup1_ref, wcs1_ref, wcu1_ref, bcat1_ref,
        # level producing y2 (conv_upsample2 / conv_cat2)
        rt2_ref, rw2_ref, wup2_ref, bup2_ref, wcs2_ref, wcu2_ref, bcat2_ref,
        # level producing y1 (conv_upsample3 / conv_cat3)
        rt3_ref, rw3_ref, wup3_ref, bup3_ref, wcs3_ref, wcu3_ref, bcat3_ref,
        # output head
        w0_ref, b0_ref, w1_ref, b1_ref,
        o_ref):
    h3 = f3_ref.shape[1]
    h2 = f2_ref.shape[1]
    h1 = f1_ref.shape[1]
    sd3, su3 = _shift_mats(h3)
    sd2, su2 = _shift_mats(h2)
    sd1, su1 = _shift_mats(h1)

    def level(xc, xs, sd, su, rt_ref, rw_ref, wup_ref, bup_ref,
              wcs_ref, wcu_ref, bcat_ref):
        # Bilinear upsample (align_corners=True) of the coarse branch, with the
        # conv_upsample row taps folded into the H-resize matrices:
        #   up = rh @ xc @ rw ;  row-tap ky of up = rt[ky] @ (xc @ rw)
        t = jnp.dot(xc, rw_ref[...], preferred_element_type=jnp.float32)
        acc = jnp.dot(jnp.dot(rt_ref[0], t, preferred_element_type=jnp.float32),
                      wup_ref[0], preferred_element_type=jnp.float32)
        acc = acc + jnp.dot(jnp.dot(rt_ref[1], t, preferred_element_type=jnp.float32),
                            wup_ref[1], preferred_element_type=jnp.float32)
        acc = acc + jnp.dot(jnp.dot(rt_ref[2], t, preferred_element_type=jnp.float32),
                            wup_ref[2], preferred_element_type=jnp.float32)
        u = jnp.maximum(acc + bup_ref[...], 0.0)          # conv_upsample + BN + ReLU
        # conv_cat on concat(skip, u): channel concat fused as split-K.
        acc2 = _conv3x3_banded(xs, sd, su, wcs_ref)
        acc2 = acc2 + _conv3x3_banded(u, sd, su, wcu_ref)
        return jnp.maximum(acc2 + bcat_ref[...], 0.0)

    y3 = level(f4_ref[0], f3_ref[0], sd3, su3,
               rt1_ref, rw1_ref, wup1_ref, bup1_ref, wcs1_ref, wcu1_ref, bcat1_ref)
    y2 = level(y3, f2_ref[0], sd2, su2,
               rt2_ref, rw2_ref, wup2_ref, bup2_ref, wcs2_ref, wcu2_ref, bcat2_ref)
    y1 = level(y2, f1_ref[0], sd1, su1,
               rt3_ref, rw3_ref, wup3_ref, bup3_ref, wcs3_ref, wcu3_ref, bcat3_ref)

    # Output head: BasicConv2d(C, C, 3, pad=1) -> ReLU -> Conv2d(C, 1, 1) + bias.
    feat = jnp.maximum(_conv3x3_banded(y1, sd1, su1, w0_ref) + b0_ref[...], 0.0)
    # w1_ref is (W*C, W_pad) block-diagonal, zero-padded to >=128 lanes so the
    # store is full-width / unmasked; the wrapper slices the valid W columns.
    o_ref[0] = (jnp.dot(feat, w1_ref[...], preferred_element_type=jnp.float32)
                + b1_ref[...])


# ----------------------------------------------------------------------------
# Host-side, one-time operator preparation (hoisted out of the jitted forward)
# ----------------------------------------------------------------------------
def _bilinear_matrix(out_size, in_size):
    """(out, in) matrix reproducing F.interpolate bilinear, align_corners=True."""
    m = np.zeros((out_size, in_size), np.float32)
    if out_size == 1:
        m[:, 0] = 1.0
        return m
    scale = (in_size - 1) / (out_size - 1)
    for o in range(out_size):
        s = o * scale
        i0 = min(int(np.floor(s)), in_size - 1)
        i1 = min(i0 + 1, in_size - 1)
        f = s - i0
        m[o, i0] += 1.0 - f
        m[o, i1] += f
    return m


def _banded_conv3x3(w, width):
    """Fold a (3,3,Cin,Cout) HWIO conv weight into 3 banded lane-space matrices
    of shape (width*Cin, width*Cout); horizontal taps + width zero-padding live
    in the band structure (out-of-range taps dropped)."""
    _, _, cin, cout = w.shape
    wo = np.arange(width)
    mats = []
    for ky in range(3):
        b = jnp.zeros((width * cin, width * cout), jnp.float32)
        for kx in range(3):
            wi = wo + kx - 1
            ok = (wi >= 0) & (wi < width)
            p = np.zeros((width, width), np.float32)
            p[wi[ok], wo[ok]] = 1.0
            b = b + jnp.kron(jnp.asarray(p), w[ky, kx].astype(jnp.float32))
        mats.append(b)
    return jnp.stack(mats, axis=0)


def prepare_concat_output_params(params, channel, sizes):
    """One-time parameter prep.  sizes = ((H1,W1),(H2,W2),(H3,W3),(H4,W4))."""
    c = channel
    levels = []
    for upk, catk, fi, ci in (("up1", "cat1", 2, 3),
                              ("up2", "cat2", 1, 2),
                              ("up3", "cat3", 0, 1)):
        h, w = sizes[fi]
        hc, wc = sizes[ci]
        w_up, b_up = params[upk]
        w_cat, b_cat = params[catk]
        rh = _bilinear_matrix(h, hc)
        sd = np.eye(h, k=-1, dtype=np.float32)
        su = np.eye(h, k=1, dtype=np.float32)
        levels.append(dict(
            rt=jnp.asarray(np.stack([sd @ rh, rh, su @ rh], axis=0)),   # (3,H,Hc)
            rw=jnp.asarray(np.kron(_bilinear_matrix(w, wc).T,
                                   np.eye(c, dtype=np.float32))),       # (Wc*C,W*C)
            wup=_banded_conv3x3(w_up, w),
            bup=jnp.tile(b_up, w)[None, :],
            wcs=_banded_conv3x3(w_cat[:, :, :c, :], w),    # skip half of K
            wcu=_banded_conv3x3(w_cat[:, :, c:, :], w),    # upsampled half of K
            bcat=jnp.tile(b_cat, w)[None, :],
        ))

    h1, w1 = sizes[0]
    w0, b0 = params["out0"]
    w_pad = max(128, -(-w1 // 128) * 128)                  # lane-dense output width
    w1_blk = jnp.kron(jnp.eye(w1, dtype=jnp.float32),
                      params["out1_w"].reshape(c, 1).astype(jnp.float32))
    w1_blk = jnp.pad(w1_blk, ((0, 0), (0, w_pad - w1)))
    head = dict(
        w0=_banded_conv3x3(w0, w1),
        b0=jnp.tile(b0, w1)[None, :],
        w1=w1_blk,
        b1=params["out1_b"].reshape(1, 1).astype(jnp.float32),
    )
    return {"levels": tuple(levels), "head": head}


# ----------------------------------------------------------------------------
# pallas_call wrapper
# ----------------------------------------------------------------------------
def _batch_spec(shape):
    blk = (1,) + tuple(shape[1:])
    return pl.BlockSpec(blk, lambda i: (i, 0, 0))


def _const_spec(arr):
    if arr.ndim == 2:
        return pl.BlockSpec(tuple(arr.shape), lambda i: (0, 0))
    return pl.BlockSpec(tuple(arr.shape), lambda i: (0, 0, 0))


def _estimate_cost(n, c, sizes, w_pad, operands):
    flops = 0
    for fine, coarse in ((2, 3), (1, 2), (0, 1)):
        h, w = sizes[fine]
        hc, wc = sizes[coarse]
        wcf, wcc = w * c, wc * c
        macs = (hc * wcc * wcf          # width-resize matmul
                + 3 * h * hc * wcf      # folded row-tap x H-resize matmuls
                + 9 * h * wcf * wcf     # conv_upsample + conv_cat band matmuls
                + 4 * h * h * wcf)      # row-shift matmuls (skip + up branches)
        flops += 2 * macs
    h, w = sizes[0]
    wcf = w * c
    flops += 2 * (2 * h * h * wcf + 3 * h * wcf * wcf + h * wcf * w_pad)
    flops *= n
    bytes_accessed = 4 * (sum(int(np.prod(a.shape)) for a in operands)
                          + n * sizes[0][0] * w_pad)
    return pl.CostEstimate(flops=flops, transcendentals=0,
                           bytes_accessed=bytes_accessed)


def _to_lane_dense(x_nchw):
    """NCHW -> (N, H, W*C) with channels innermost on the lane axis."""
    n, c, h, w = x_nchw.shape
    return jnp.transpose(x_nchw, (0, 2, 3, 1)).reshape(n, h, w * c)


@jax.jit
def concat_output_forward(prep, x1, x2, x3, x4):
    """x1..x4: NCHW float32 (finest -> coarsest). Returns NCHW (N, 1, H1, W1)."""
    n, c, h1, w1 = x1.shape
    f1, f2, f3, f4 = (_to_lane_dense(t) for t in (x1, x2, x3, x4))
    lv = prep["levels"]
    hd = prep["head"]
    w_pad = hd["w1"].shape[1]

    operands = [f4, f3, f2, f1]
    in_specs = [_batch_spec(f4.shape), _batch_spec(f3.shape),
                _batch_spec(f2.shape), _batch_spec(f1.shape)]
    for d in lv:
        for k in ("rt", "rw", "wup", "bup", "wcs", "wcu", "bcat"):
            operands.append(d[k])
            in_specs.append(_const_spec(d[k]))
    for k in ("w0", "b0", "w1", "b1"):
        operands.append(hd[k])
        in_specs.append(_const_spec(hd[k]))

    sizes = (tuple(x1.shape[2:]), tuple(x2.shape[2:]),
             tuple(x3.shape[2:]), tuple(x4.shape[2:]))
    cost = _estimate_cost(n, c, sizes, w_pad, operands)

    out = pl.pallas_call(
        _concat_output_kernel,
        out_shape=jax.ShapeDtypeStruct((n, h1, w_pad), jnp.float32),
        grid=(n,),
        in_specs=in_specs,
        out_specs=pl.BlockSpec((1, h1, w_pad), lambda i: (i, 0, 0)),
        compiler_params=pltpu.CompilerParams(
            dimension_semantics=("parallel",),      # batch across TCs on v7x
            vmem_limit_bytes=32 * 1024 * 1024),
        cost_estimate=cost,
    )(*operands)

    return out[:, :, :w1].reshape(n, 1, h1, w1)


# ----------------------------------------------------------------------------
# Parameters (deterministic synthetic init, BN folded in eval mode)
# ----------------------------------------------------------------------------
def _basic_conv2d_params(key, cin, cout):
    """Conv2d(cin, cout, 3, pad=1, bias=False).weight ~ N(0, 0.01) in HWIO, with
    BatchNorm2d(cout) (gamma=1, beta=0, running_mean=0, running_var=1) folded."""
    w = 0.01 * jax.random.normal(key, (3, 3, cin, cout), dtype=jnp.float32)
    scale = 1.0 / jnp.sqrt(1.0 + _BN_EPS)
    return w * scale, jnp.zeros((cout,), jnp.float32)


def make_concat_output_params(key, channel):
    keys = jax.random.split(key, 9)
    return {
        "up1": _basic_conv2d_params(keys[0], channel, channel),
        "up2": _basic_conv2d_params(keys[1], channel, channel),
        "up3": _basic_conv2d_params(keys[2], channel, channel),
        "cat1": _basic_conv2d_params(keys[3], 2 * channel, channel),
        "cat2": _basic_conv2d_params(keys[4], 2 * channel, channel),
        "cat3": _basic_conv2d_params(keys[5], 2 * channel, channel),
        "out0": _basic_conv2d_params(keys[6], channel, channel),
        "out1_w": 0.05 * jax.random.normal(keys[7], (channel, 1), dtype=jnp.float32),
        "out1_b": 0.01 * jax.random.normal(keys[8], (1,), dtype=jnp.float32),
    }


# ----------------------------------------------------------------------------
# Demo
# ----------------------------------------------------------------------------
if __name__ == "__main__":
    key = jax.random.PRNGKey(0)
    k_params, k1, k2, k3, k4 = jax.random.split(key, 5)

    N, C = 2, 16
    H1 = W1 = 16  # x1 is the finest scale; x2/x3/x4 are /2, /4, /8
    sizes = ((H1, W1), (H1 // 2, W1 // 2), (H1 // 4, W1 // 4), (H1 // 8, W1 // 8))

    params = make_concat_output_params(k_params, C)
    prep = prepare_concat_output_params(params, C, sizes)   # one-time weight prep

    x1 = jax.random.normal(k1, (N, C) + sizes[0], dtype=jnp.float32)
    x2 = jax.random.normal(k2, (N, C) + sizes[1], dtype=jnp.float32)
    x3 = jax.random.normal(k3, (N, C) + sizes[2], dtype=jnp.float32)
    x4 = jax.random.normal(k4, (N, C) + sizes[3], dtype=jnp.float32)

    out = concat_output_forward(prep, x1, x2, x3, x4)
    out = jax.block_until_ready(out)

    assert out.shape == (N, 1, H1, W1), out.shape
    assert out.dtype == jnp.float32
    assert bool(jnp.all(jnp.isfinite(out)))
    print("KERNEL_OK")
</pallas_src>

<mosaic_0001>
module attributes {stable_mosaic.version = 11 : i64} {
  func.func @_concat_output_kernel(%arg0: i32, %arg1: memref<1x2x32xf32, #tpu.memory_space<vmem>>, %arg2: memref<1x4x64xf32, #tpu.memory_space<vmem>>, %arg3: memref<1x8x128xf32, #tpu.memory_space<vmem>>, %arg4: memref<1x16x256xf32, #tpu.memory_space<vmem>>, %arg5: memref<3x4x2xf32, #tpu.memory_space<vmem>>, %arg6: memref<32x64xf32, #tpu.memory_space<vmem>>, %arg7: memref<3x64x64xf32, #tpu.memory_space<vmem>>, %arg8: memref<1x64xf32, #tpu.memory_space<vmem>>, %arg9: memref<3x64x64xf32, #tpu.memory_space<vmem>>, %arg10: memref<3x64x64xf32, #tpu.memory_space<vmem>>, %arg11: memref<1x64xf32, #tpu.memory_space<vmem>>, %arg12: memref<3x8x4xf32, #tpu.memory_space<vmem>>, %arg13: memref<64x128xf32, #tpu.memory_space<vmem>>, %arg14: memref<3x128x128xf32, #tpu.memory_space<vmem>>, %arg15: memref<1x128xf32, #tpu.memory_space<vmem>>, %arg16: memref<3x128x128xf32, #tpu.memory_space<vmem>>, %arg17: memref<3x128x128xf32, #tpu.memory_space<vmem>>, %arg18: memref<1x128xf32, #tpu.memory_space<vmem>>, %arg19: memref<3x16x8xf32, #tpu.memory_space<vmem>>, %arg20: memref<128x256xf32, #tpu.memory_space<vmem>>, %arg21: memref<3x256x256xf32, #tpu.memory_space<vmem>>, %arg22: memref<1x256xf32, #tpu.memory_space<vmem>>, %arg23: memref<3x256x256xf32, #tpu.memory_space<vmem>>, %arg24: memref<3x256x256xf32, #tpu.memory_space<vmem>>, %arg25: memref<1x256xf32, #tpu.memory_space<vmem>>, %arg26: memref<3x256x256xf32, #tpu.memory_space<vmem>>, %arg27: memref<1x256xf32, #tpu.memory_space<vmem>>, %arg28: memref<256x128xf32, #tpu.memory_space<vmem>>, %arg29: memref<1x1xf32, #tpu.memory_space<vmem>>, %arg30: memref<1x16x128xf32, #tpu.memory_space<vmem>>) attributes {dimension_semantics = [#tpu.dimension_semantics<parallel>], iteration_bounds = array<i64: 2>, scalar_prefetch = 0 : i64, scratch_operands = 0 : i64, tpu.core_type = #tpu.core_type<tc>, window_params = [{transform_indices = @transform_0, window_bounds = array<i64: 1, 2, 32>}, {transform_indices = @transform_1, window_bounds = array<i64: 1, 4, 64>}, {transform_indices = @transform_2, window_bounds = array<i64: 1, 8, 128>}, {transform_indices = @transform_3, window_bounds = array<i64: 1, 16, 256>}, {pipeline_mode = #tpu.pipeline_mode<synchronous>, transform_indices = @transform_4, window_bounds = array<i64: 3, 4, 2>}, {pipeline_mode = #tpu.pipeline_mode<synchronous>, transform_indices = @transform_5, window_bounds = array<i64: 32, 64>}, {pipeline_mode = #tpu.pipeline_mode<synchronous>, transform_indices = @transform_6, window_bounds = array<i64: 3, 64, 64>}, {pipeline_mode = #tpu.pipeline_mode<synchronous>, transform_indices = @transform_7, window_bounds = array<i64: 1, 64>}, {pipeline_mode = #tpu.pipeline_mode<synchronous>, transform_indices = @transform_8, window_bounds = array<i64: 3, 64, 64>}, {pipeline_mode = #tpu.pipeline_mode<synchronous>, transform_indices = @transform_9, window_bounds = array<i64: 3, 64, 64>}, {pipeline_mode = #tpu.pipeline_mode<synchronous>, transform_indices = @transform_10, window_bounds = array<i64: 1, 64>}, {pipeline_mode = #tpu.pipeline_mode<synchronous>, transform_indices = @transform_11, window_bounds = array<i64: 3, 8, 4>}, {pipeline_mode = #tpu.pipeline_mode<synchronous>, transform_indices = @transform_12, window_bounds = array<i64: 64, 128>}, {pipeline_mode = #tpu.pipeline_mode<synchronous>, transform_indices = @transform_13, window_bounds = array<i64: 3, 128, 128>}, {pipeline_mode = #tpu.pipeline_mode<synchronous>, transform_indices = @transform_14, window_bounds = array<i64: 1, 128>}, {pipeline_mode = #tpu.pipeline_mode<synchronous>, transform_indices = @transform_15, window_bounds = array<i64: 3, 128, 128>}, {pipeline_mode = #tpu.pipeline_mode<synchronous>, transform_indices = @transform_16, window_bounds = array<i64: 3, 128, 128>}, {pipeline_mode = #tpu.pipeline_mode<synchronous>, transform_indices = @transform_17, window_bounds = array<i64: 1, 128>}, {pipeline_mode = #tpu.pipeline_mode<synchronous>, transform_indices = @transform_18, window_bounds = array<i64: 3, 16, 8>}, {pipeline_mode = #tpu.pipeline_mode<synchronous>, transform_indices = @transform_19, window_bounds = array<i64: 128, 256>}, {pipeline_mode = #tpu.pipeline_mode<synchronous>, transform_indices = @transform_20, window_bounds = array<i64: 3, 256, 256>}, {pipeline_mode = #tpu.pipeline_mode<synchronous>, transform_indices = @transform_21, window_bounds = array<i64: 1, 256>}, {pipeline_mode = #tpu.pipeline_mode<synchronous>, transform_indices = @transform_22, window_bounds = array<i64: 3, 256, 256>}, {pipeline_mode = #tpu.pipeline_mode<synchronous>, transform_indices = @transform_23, window_bounds = array<i64: 3, 256, 256>}, {pipeline_mode = #tpu.pipeline_mode<synchronous>, transform_indices = @transform_24, window_bounds = array<i64: 1, 256>}, {pipeline_mode = #tpu.pipeline_mode<synchronous>, transform_indices = @transform_25, window_bounds = array<i64: 3, 256, 256>}, {pipeline_mode = #tpu.pipeline_mode<synchronous>, transform_indices = @transform_26, window_bounds = array<i64: 1, 256>}, {pipeline_mode = #tpu.pipeline_mode<synchronous>, transform_indices = @transform_27, window_bounds = array<i64: 256, 128>}, {pipeline_mode = #tpu.pipeline_mode<synchronous>, transform_indices = @transform_28, window_bounds = array<i64: 1, 1>}, {transform_indices = @transform_29, window_bounds = array<i64: 1, 16, 128>}]} {
    %0 = tpu.iota {dimensions = array<i32: 0>} : vector<4x4xi32>
    %1 = tpu.iota {dimensions = array<i32: 1>} : vector<4x4xi32>
    %c1_i32 = arith.constant 1 : i32
    %2 = vector.broadcast %c1_i32 : i32 to vector<4x4xi32>
    %3 = arith.addi %1, %2 : vector<4x4xi32>
    %4 = arith.cmpi eq, %0, %3 : vector<4x4xi32>
    %5 = arith.extui %4 : vector<4x4xi1> to vector<4x4xi32>
    %6 = arith.sitofp %5 : vector<4x4xi32> to vector<4x4xf32>
    %c1_i32_0 = arith.constant 1 : i32
    %7 = vector.broadcast %c1_i32_0 : i32 to vector<4x4xi32>
    %8 = arith.addi %0, %7 : vector<4x4xi32>
    %9 = arith.cmpi eq, %1, %8 : vector<4x4xi32>
    %10 = arith.extui %9 : vector<4x4xi1> to vector<4x4xi32>
    %11 = arith.sitofp %10 : vector<4x4xi32> to vector<4x4xf32>
    %12 = tpu.iota {dimensions = array<i32: 0>} : vector<8x8xi32>
    %13 = tpu.iota {dimensions = array<i32: 1>} : vector<8x8xi32>
    %c1_i32_1 = arith.constant 1 : i32
    %14 = vector.broadcast %c1_i32_1 : i32 to vector<8x8xi32>
    %15 = arith.addi %13, %14 : vector<8x8xi32>
    %16 = arith.cmpi eq, %12, %15 : vector<8x8xi32>
    %17 = arith.extui %16 : vector<8x8xi1> to vector<8x8xi32>
    %18 = arith.sitofp %17 : vector<8x8xi32> to vector<8x8xf32>
    %c1_i32_2 = arith.constant 1 : i32
    %19 = vector.broadcast %c1_i32_2 : i32 to vector<8x8xi32>
    %20 = arith.addi %12, %19 : vector<8x8xi32>
    %21 = arith.cmpi eq, %13, %20 : vector<8x8xi32>
    %22 = arith.extui %21 : vector<8x8xi1> to vector<8x8xi32>
    %23 = arith.sitofp %22 : vector<8x8xi32> to vector<8x8xf32>
    %24 = tpu.iota {dimensions = array<i32: 0>} : vector<16x16xi32>
    %25 = tpu.iota {dimensions = array<i32: 1>} : vector<16x16xi32>
    %c1_i32_3 = arith.constant 1 : i32
    %26 = vector.broadcast %c1_i32_3 : i32 to vector<16x16xi32>
    %27 = arith.addi %25, %26 : vector<16x16xi32>
    %28 = arith.cmpi eq, %24, %27 : vector<16x16xi32>
    %29 = arith.extui %28 : vector<16x16xi1> to vector<16x16xi32>
    %30 = arith.sitofp %29 : vector<16x16xi32> to vector<16x16xf32>
    %c1_i32_4 = arith.constant 1 : i32
    %31 = vector.broadcast %c1_i32_4 : i32 to vector<16x16xi32>
    %32 = arith.addi %24, %31 : vector<16x16xi32>
    %33 = arith.cmpi eq, %25, %32 : vector<16x16xi32>
    %34 = arith.extui %33 : vector<16x16xi1> to vector<16x16xi32>
    %35 = arith.sitofp %34 : vector<16x16xi32> to vector<16x16xf32>
    %c0 = arith.constant 0 : index
    %c0_5 = arith.constant 0 : index
    %c0_6 = arith.constant 0 : index
    %36 = vector.load %arg1[%c0, %c0_5, %c0_6] : memref<1x2x32xf32, #tpu.memory_space<vmem>>, vector<1x2x32xf32>
    %37 = vector.shape_cast %36 : vector<1x2x32xf32> to vector<2x32xf32>
    %c0_7 = arith.constant 0 : index
    %c0_8 = arith.constant 0 : index
    %c0_9 = arith.constant 0 : index
    %38 = vector.load %arg2[%c0_7, %c0_8, %c0_9] : memref<1x4x64xf32, #tpu.memory_space<vmem>>, vector<1x4x64xf32>
    %39 = vector.shape_cast %38 : vector<1x4x64xf32> to vector<4x64xf32>
    %c0_10 = arith.constant 0 : index
    %c0_11 = arith.constant 0 : index
    %40 = vector.load %arg6[%c0_10, %c0_11] : memref<32x64xf32, #tpu.memory_space<vmem>>, vector<32x64xf32>
    %cst = arith.constant dense<0.000000e+00> : vector<2x64xf32>
    %41 = tpu.matmul %37, %40, %cst {dimension_numbers = #tpu.dot_dimension_numbers<[1], [0], [0], [1], [0, 0, 1, 1], [], []>} : vector<2x32xf32>, vector<32x64xf32>, vector<2x64xf32> -> vector<2x64xf32>
    %c0_12 = arith.constant 0 : index
    %c0_13 = arith.constant 0 : index
    %c0_14 = arith.constant 0 : index
    %42 = vector.load %arg5[%c0_12, %c0_13, %c0_14] : memref<3x4x2xf32, #tpu.memory_space<vmem>>, vector<1x4x2xf32>
    %43 = vector.shape_cast %42 : vector<1x4x2xf32> to vector<4x2xf32>
    %cst_15 = arith.constant dense<0.000000e+00> : vector<4x64xf32>
    %44 = tpu.matmul %43, %41, %cst_15 {dimension_numbers = #tpu.dot_dimension_numbers<[1], [0], [0], [1], [0, 0, 1, 1], [], []>} : vector<4x2xf32>, vector<2x64xf32>, vector<4x64xf32> -> vector<4x64xf32>
    %c0_16 = arith.constant 0 : index
    %c0_17 = arith.constant 0 : index
    %c0_18 = arith.constant 0 : index
    %45 = vector.load %arg7[%c0_16, %c0_17, %c0_18] : memref<3x64x64xf32, #tpu.memory_space<vmem>>, vector<1x64x64xf32>
    %46 = vector.shape_cast %45 : vector<1x64x64xf32> to vector<64x64xf32>
    %cst_19 = arith.constant dense<0.000000e+00> : vector<4x64xf32>
    %47 = tpu.matmul %44, %46, %cst_19 {dimension_numbers = #tpu.dot_dimension_numbers<[1], [0], [0], [1], [0, 0, 1, 1], [], []>} : vector<4x64xf32>, vector<64x64xf32>, vector<4x64xf32> -> vector<4x64xf32>
    %c1 = arith.constant 1 : index
    %c0_20 = arith.constant 0 : index
    %c0_21 = arith.constant 0 : index
    %48 = vector.load %arg5[%c1, %c0_20, %c0_21] : memref<3x4x2xf32, #tpu.memory_space<vmem>>, vector<1x4x2xf32>
    %49 = vector.shape_cast %48 : vector<1x4x2xf32> to vector<4x2xf32>
    %cst_22 = arith.constant dense<0.000000e+00> : vector<4x64xf32>
    %50 = tpu.matmul %49, %41, %cst_22 {dimension_numbers = #tpu.dot_dimension_numbers<[1], [0], [0], [1], [0, 0, 1, 1], [], []>} : vector<4x2xf32>, vector<2x64xf32>, vector<4x64xf32> -> vector<4x64xf32>
    %c1_23 = arith.constant 1 : index
    %c0_24 = arith.constant 0 : index
    %c0_25 = arith.constant 0 : index
    %51 = vector.load %arg7[%c1_23, %c0_24, %c0_25] : memref<3x64x64xf32, #tpu.memory_space<vmem>>, vector<1x64x64xf32>
    %52 = vector.shape_cast %51 : vector<1x64x64xf32> to vector<64x64xf32>
    %cst_26 = arith.constant dense<0.000000e+00> : vector<4x64xf32>
    %53 = tpu.matmul %50, %52, %cst_26 {dimension_numbers = #tpu.dot_dimension_numbers<[1], [0], [0], [1], [0, 0, 1, 1], [], []>} : vector<4x64xf32>, vector<64x64xf32>, vector<4x64xf32> -> vector<4x64xf32>
    %54 = arith.addf %47, %53 : vector<4x64xf32>
    %c2 = arith.constant 2 : index
    %c0_27 = arith.constant 0 : index
    %c0_28 = arith.constant 0 : index
    %55 = vector.load %arg5[%c2, %c0_27, %c0_28] : memref<3x4x2xf32, #tpu.memory_space<vmem>>, vector<1x4x2xf32>
    %56 = vector.shape_cast %55 : vector<1x4x2xf32> to vector<4x2xf32>
    %cst_29 = arith.constant dense<0.000000e+00> : vector<4x64xf32>
    %57 = tpu.matmul %56, %41, %cst_29 {dimension_numbers = #tpu.dot_dimension_numbers<[1], [0], [0], [1], [0, 0, 1, 1], [], []>} : vector<4x2xf32>, vector<2x64xf32>, vector<4x64xf32> -> vector<4x64xf32>
    %c2_30 = arith.constant 2 : index
    %c0_31 = arith.constant 0 : index
    %c0_32 = arith.constant 0 : index
    %58 = vector.load %arg7[%c2_30, %c0_31, %c0_32] : memref<3x64x64xf32, #tpu.memory_space<vmem>>, vector<1x64x64xf32>
    %59 = vector.shape_cast %58 : vector<1x64x64xf32> to vector<64x64xf32>
    %cst_33 = arith.constant dense<0.000000e+00> : vector<4x64xf32>
    %60 = tpu.matmul %57, %59, %cst_33 {dimension_numbers = #tpu.dot_dimension_numbers<[1], [0], [0], [1], [0, 0, 1, 1], [], []>} : vector<4x64xf32>, vector<64x64xf32>, vector<4x64xf32> -> vector<4x64xf32>
    %61 = arith.addf %54, %60 : vector<4x64xf32>
    %c0_34 = arith.constant 0 : index
    %c0_35 = arith.constant 0 : index
    %62 = vector.load %arg8[%c0_34, %c0_35] : memref<1x64xf32, #tpu.memory_space<vmem>>, vector<1x64xf32>
    %63 = vector.broadcast %62 : vector<1x64xf32> to vector<4x64xf32>
    %64 = arith.addf %61, %63 : vector<4x64xf32>
    %cst_36 = arith.constant 0.000000e+00 : f32
    %65 = vector.broadcast %cst_36 : f32 to vector<4x64xf32>
    %66 = arith.maximumf %64, %65 : vector<4x64xf32>
    %cst_37 = arith.constant dense<0.000000e+00> : vector<4x64xf32>
    %67 = tpu.matmul %6, %39, %cst_37 {dimension_numbers = #tpu.dot_dimension_numbers<[1], [0], [0], [1], [0, 0, 1, 1], [], []>} : vector<4x4xf32>, vector<4x64xf32>, vector<4x64xf32> -> vector<4x64xf32>
    %cst_38 = arith.constant dense<0.000000e+00> : vector<4x64xf32>
    %68 = tpu.matmul %11, %39, %cst_38 {dimension_numbers = #tpu.dot_dimension_numbers<[1], [0], [0], [1], [0, 0, 1, 1], [], []>} : vector<4x4xf32>, vector<4x64xf32>, vector<4x64xf32> -> vector<4x64xf32>
    %c0_39 = arith.constant 0 : index
    %c0_40 = arith.constant 0 : index
    %c0_41 = arith.constant 0 : index
    %69 = vector.load %arg9[%c0_39, %c0_40, %c0_41] : memref<3x64x64xf32, #tpu.memory_space<vmem>>, vector<1x64x64xf32>
    %70 = vector.shape_cast %69 : vector<1x64x64xf32> to vector<64x64xf32>
    %cst_42 = arith.constant dense<0.000000e+00> : vector<4x64xf32>
    %71 = tpu.matmul %67, %70, %cst_42 {dimension_numbers = #tpu.dot_dimension_numbers<[1], [0], [0], [1], [0, 0, 1, 1], [], []>} : vector<4x64xf32>, vector<64x64xf32>, vector<4x64xf32> -> vector<4x64xf32>
    %c1_43 = arith.constant 1 : index
    %c0_44 = arith.constant 0 : index
    %c0_45 = arith.constant 0 : index
    %72 = vector.load %arg9[%c1_43, %c0_44, %c0_45] : memref<3x64x64xf32, #tpu.memory_space<vmem>>, vector<1x64x64xf32>
    %73 = vector.shape_cast %72 : vector<1x64x64xf32> to vector<64x64xf32>
    %cst_46 = arith.constant dense<0.000000e+00> : vector<4x64xf32>
    %74 = tpu.matmul %39, %73, %cst_46 {dimension_numbers = #tpu.dot_dimension_numbers<[1], [0], [0], [1], [0, 0, 1, 1], [], []>} : vector<4x64xf32>, vector<64x64xf32>, vector<4x64xf32> -> vector<4x64xf32>
    %75 = arith.addf %71, %74 : vector<4x64xf32>
    %c2_47 = arith.constant 2 : index
    %c0_48 = arith.constant 0 : index
    %c0_49 = arith.constant 0 : index
    %76 = vector.load %arg9[%c2_47, %c0_48, %c0_49] : memref<3x64x64xf32, #tpu.memory_space<vmem>>, vector<1x64x64xf32>
    %77 = vector.shape_cast %76 : vector<1x64x64xf32> to vector<64x64xf32>
    %cst_50 = arith.constant dense<0.000000e+00> : vector<4x64xf32>
    %78 = tpu.matmul %68, %77, %cst_50 {dimension_numbers = #tpu.dot_dimension_numbers<[1], [0], [0], [1], [0, 0, 1, 1], [], []>} : vector<4x64xf32>, vector<64x64xf32>, vector<4x64xf32> -> vector<4x64xf32>
    %79 = arith.addf %75, %78 : vector<4x64xf32>
    %cst_51 = arith.constant dense<0.000000e+00> : vector<4x64xf32>
    %80 = tpu.matmul %6, %66, %cst_51 {dimension_numbers = #tpu.dot_dimension_numbers<[1], [0], [0], [1], [0, 0, 1, 1], [], []>} : vector<4x4xf32>, vector<4x64xf32>, vector<4x64xf32> -> vector<4x64xf32>
    %cst_52 = arith.constant dense<0.000000e+00> : vector<4x64xf32>
    %81 = tpu.matmul %11, %66, %cst_52 {dimension_numbers = #tpu.dot_dimension_numbers<[1], [0], [0], [1], [0, 0, 1, 1], [], []>} : vector<4x4xf32>, vector<4x64xf32>, vector<4x64xf32> -> vector<4x64xf32>
    %c0_53 = arith.constant 0 : index
    %c0_54 = arith.constant 0 : index
    %c0_55 = arith.constant 0 : index
    %82 = vector.load %arg10[%c0_53, %c0_54, %c0_55] : memref<3x64x64xf32, #tpu.memory_space<vmem>>, vector<1x64x64xf32>
    %83 = vector.shape_cast %82 : vector<1x64x64xf32> to vector<64x64xf32>
    %cst_56 = arith.constant dense<0.000000e+00> : vector<4x64xf32>
    %84 = tpu.matmul %80, %83, %cst_56 {dimension_numbers = #tpu.dot_dimension_numbers<[1], [0], [0], [1], [0, 0, 1, 1], [], []>} : vector<4x64xf32>, vector<64x64xf32>, vector<4x64xf32> -> vector<4x64xf32>
    %c1_57 = arith.constant 1 : index
    %c0_58 = arith.constant 0 : index
    %c0_59 = arith.constant 0 : index
    %85 = vector.load %arg10[%c1_57, %c0_58, %c0_59] : memref<3x64x64xf32, #tpu.memory_space<vmem>>, vector<1x64x64xf32>
    %86 = vector.shape_cast %85 : vector<1x64x64xf32> to vector<64x64xf32>
    %cst_60 = arith.constant dense<0.000000e+00> : vector<4x64xf32>
    %87 = tpu.matmul %66, %86, %cst_60 {dimension_numbers = #tpu.dot_dimension_numbers<[1], [0], [0], [1], [0, 0, 1, 1], [], []>} : vector<4x64xf32>, vector<64x64xf32>, vector<4x64xf32> -> vector<4x64xf32>
    %88 = arith.addf %84, %87 : vector<4x64xf32>
    %c2_61 = arith.constant 2 : index
    %c0_62 = arith.constant 0 : index
    %c0_63 = arith.constant 0 : index
    %89 = vector.load %arg10[%c2_61, %c0_62, %c0_63] : memref<3x64x64xf32, #tpu.memory_space<vmem>>, vector<1x64x64xf32>
    %90 = vector.shape_cast %89 : vector<1x64x64xf32> to vector<64x64xf32>
    %cst_64 = arith.constant dense<0.000000e+00> : vector<4x64xf32>
    %91 = tpu.matmul %81, %90, %cst_64 {dimension_numbers = #tpu.dot_dimension_numbers<[1], [0], [0], [1], [0, 0, 1, 1], [], []>} : vector<4x64xf32>, vector<64x64xf32>, vector<4x64xf32> -> vector<4x64xf32>
    %92 = arith.addf %88, %91 : vector<4x64xf32>
    %93 = arith.addf %79, %92 : vector<4x64xf32>
    %c0_65 = arith.constant 0 : index
    %c0_66 = arith.constant 0 : index
    %94 = vector.load %arg11[%c0_65, %c0_66] : memref<1x64xf32, #tpu.memory_space<vmem>>, vector<1x64xf32>
    %95 = vector.broadcast %94 : vector<1x64xf32> to vector<4x64xf32>
    %96 = arith.addf %93, %95 : vector<4x64xf32>
    %cst_67 = arith.constant 0.000000e+00 : f32
    %97 = vector.broadcast %cst_67 : f32 to vector<4x64xf32>
    %98 = arith.maximumf %96, %97 : vector<4x64xf32>
    %c0_68 = arith.constant 0 : index
    %c0_69 = arith.constant 0 : index
    %c0_70 = arith.constant 0 : index
    %99 = vector.load %arg3[%c0_68, %c0_69, %c0_70] : memref<1x8x128xf32, #tpu.memory_space<vmem>>, vector<1x8x128xf32>
    %100 = vector.shape_cast %99 : vector<1x8x128xf32> to vector<8x128xf32>
    %c0_71 = arith.constant 0 : index
    %c0_72 = arith.constant 0 : index
    %101 = vector.load %arg13[%c0_71, %c0_72] : memref<64x128xf32, #tpu.memory_space<vmem>>, vector<64x128xf32>
    %cst_73 = arith.constant dense<0.000000e+00> : vector<4x128xf32>
    %102 = tpu.matmul %98, %101, %cst_73 {dimension_numbers = #tpu.dot_dimension_numbers<[1], [0], [0], [1], [0, 0, 1, 1], [], []>} : vector<4x64xf32>, vector<64x128xf32>, vector<4x128xf32> -> vector<4x128xf32>
    %c0_74 = arith.constant 0 : index
    %c0_75 = arith.constant 0 : index
    %c0_76 = arith.constant 0 : index
    %103 = vector.load %arg12[%c0_74, %c0_75, %c0_76] : memref<3x8x4xf32, #tpu.memory_space<vmem>>, vector<1x8x4xf32>
    %104 = vector.shape_cast %103 : vector<1x8x4xf32> to vector<8x4xf32>
    %cst_77 = arith.constant dense<0.000000e+00> : vector<8x128xf32>
    %105 = tpu.matmul %104, %102, %cst_77 {dimension_numbers = #tpu.dot_dimension_numbers<[1], [0], [0], [1], [0, 0, 1, 1], [], []>} : vector<8x4xf32>, vector<4x128xf32>, vector<8x128xf32> -> vector<8x128xf32>
    %c0_78 = arith.constant 0 : index
    %c0_79 = arith.constant 0 : index
    %c0_80 = arith.constant 0 : index
    %106 = vector.load %arg14[%c0_78, %c0_79, %c0_80] : memref<3x128x128xf32, #tpu.memory_space<vmem>>, vector<1x128x128xf32>
    %107 = vector.shape_cast %106 : vector<1x128x128xf32> to vector<128x128xf32>
    %cst_81 = arith.constant dense<0.000000e+00> : vector<8x128xf32>
    %108 = tpu.matmul %105, %107, %cst_81 {dimension_numbers = #tpu.dot_dimension_numbers<[1], [0], [0], [1], [0, 0, 1, 1], [], []>} : vector<8x128xf32>, vector<128x128xf32>, vector<8x128xf32> -> vector<8x128xf32>
    %c1_82 = arith.constant 1 : index
    %c0_83 = arith.constant 0 : index
    %c0_84 = arith.constant 0 : index
    %109 = vector.load %arg12[%c1_82, %c0_83, %c0_84] : memref<3x8x4xf32, #tpu.memory_space<vmem>>, vector<1x8x4xf32>
    %110 = vector.shape_cast %109 : vector<1x8x4xf32> to vector<8x4xf32>
    %cst_85 = arith.constant dense<0.000000e+00> : vector<8x128xf32>
    %111 = tpu.matmul %110, %102, %cst_85 {dimension_numbers = #tpu.dot_dimension_numbers<[1], [0], [0], [1], [0, 0, 1, 1], [], []>} : vector<8x4xf32>, vector<4x128xf32>, vector<8x128xf32> -> vector<8x128xf32>
    %c1_86 = arith.constant 1 : index
    %c0_87 = arith.constant 0 : index
    %c0_88 = arith.constant 0 : index
    %112 = vector.load %arg14[%c1_86, %c0_87, %c0_88] : memref<3x128x128xf32, #tpu.memory_space<vmem>>, vector<1x128x128xf32>
    %113 = vector.shape_cast %112 : vector<1x128x128xf32> to vector<128x128xf32>
    %cst_89 = arith.constant dense<0.000000e+00> : vector<8x128xf32>
    %114 = tpu.matmul %111, %113, %cst_89 {dimension_numbers = #tpu.dot_dimension_numbers<[1], [0], [0], [1], [0, 0, 1, 1], [], []>} : vector<8x128xf32>, vector<128x128xf32>, vector<8x128xf32> -> vector<8x128xf32>
    %115 = arith.addf %108, %114 : vector<8x128xf32>
    %c2_90 = arith.constant 2 : index
    %c0_91 = arith.constant 0 : index
    %c0_92 = arith.constant 0 : index
    %116 = vector.load %arg12[%c2_90, %c0_91, %c0_92] : memref<3x8x4xf32, #tpu.memory_space<vmem>>, vector<1x8x4xf32>
    %117 = vector.shape_cast %116 : vector<1x8x4xf32> to vector<8x4xf32>
    %cst_93 = arith.constant dense<0.000000e+00> : vector<8x128xf32>
    %118 = tpu.matmul %117, %102, %cst_93 {dimension_numbers = #tpu.dot_dimension_numbers<[1], [0], [0], [1], [0, 0, 1, 1], [], []>} : vector<8x4xf32>, vector<4x128xf32>, vector<8x128xf32> -> vector<8x128xf32>
    %c2_94 = arith.constant 2 : index
    %c0_95 = arith.constant 0 : index
    %c0_96 = arith.constant 0 : index
    %119 = vector.load %arg14[%c2_94, %c0_95, %c0_96] : memref<3x128x128xf32, #tpu.memory_space<vmem>>, vector<1x128x128xf32>
    %120 = vector.shape_cast %119 : vector<1x128x128xf32> to vector<128x128xf32>
    %cst_97 = arith.constant dense<0.000000e+00> : vector<8x128xf32>
    %121 = tpu.matmul %118, %120, %cst_97 {dimension_numbers = #tpu.dot_dimension_numbers<[1], [0], [0], [1], [0, 0, 1, 1], [], []>} : vector<8x128xf32>, vector<128x128xf32>, vector<8x128xf32> -> vector<8x128xf32>
    %122 = arith.addf %115, %121 : vector<8x128xf32>
    %c0_98 = arith.constant 0 : index
    %c0_99 = arith.constant 0 : index
    %123 = vector.load %arg15[%c0_98, %c0_99] : memref<1x128xf32, #tpu.memory_space<vmem>>, vector<1x128xf32>
    %124 = vector.broadcast %123 : vector<1x128xf32> to vector<8x128xf32>
    %125 = arith.addf %122, %124 : vector<8x128xf32>
    %cst_100 = arith.constant 0.000000e+00 : f32
    %126 = vector.broadcast %cst_100 : f32 to vector<8x128xf32>
    %127 = arith.maximumf %125, %126 : vector<8x128xf32>
    %cst_101 = arith.constant dense<0.000000e+00> : vector<8x128xf32>
    %128 = tpu.matmul %18, %100, %cst_101 {dimension_numbers = #tpu.dot_dimension_numbers<[1], [0], [0], [1], [0, 0, 1, 1], [], []>} : vector<8x8xf32>, vector<8x128xf32>, vector<8x128xf32> -> vector<8x128xf32>
    %cst_102 = arith.constant dense<0.000000e+00> : vector<8x128xf32>
    %129 = tpu.matmul %23, %100, %cst_102 {dimension_numbers = #tpu.dot_dimension_numbers<[1], [0], [0], [1], [0, 0, 1, 1], [], []>} : vector<8x8xf32>, vector<8x128xf32>, vector<8x128xf32> -> vector<8x128xf32>
    %c0_103 = arith.constant 0 : index
    %c0_104 = arith.constant 0 : index
    %c0_105 = arith.constant 0 : index
    %130 = vector.load %arg16[%c0_103, %c0_104, %c0_105] : memref<3x128x128xf32, #tpu.memory_space<vmem>>, vector<1x128x128xf32>
    %131 = vector.shape_cast %130 : vector<1x128x128xf32> to vector<128x128xf32>
    %cst_106 = arith.constant dense<0.000000e+00> : vector<8x128xf32>
    %132 = tpu.matmul %128, %131, %cst_106 {dimension_numbers = #tpu.dot_dimension_numbers<[1], [0], [0], [1], [0, 0, 1, 1], [], []>} : vector<8x128xf32>, vector<128x128xf32>, vector<8x128xf32> -> vector<8x128xf32>
    %c1_107 = arith.constant 1 : index
    %c0_108 = arith.constant 0 : index
    %c0_109 = arith.constant 0 : index
    %133 = vector.load %arg16[%c1_107, %c0_108, %c0_109] : memref<3x128x128xf32, #tpu.memory_space<vmem>>, vector<1x128x128xf32>
    %134 = vector.shape_cast %133 : vector<1x128x128xf32> to vector<128x128xf32>
    %cst_110 = arith.constant dense<0.000000e+00> : vector<8x128xf32>
    %135 = tpu.matmul %100, %134, %cst_110 {dimension_numbers = #tpu.dot_dimension_numbers<[1], [0], [0], [1], [0, 0, 1, 1], [], []>} : vector<8x128xf32>, vector<128x128xf32>, vector<8x128xf32> -> vector<8x128xf32>
    %136 = arith.addf %132, %135 : vector<8x128xf32>
    %c2_111 = arith.constant 2 : index
    %c0_112 = arith.constant 0 : index
    %c0_113 = arith.constant 0 : index
    %137 = vector.load %arg16[%c2_111, %c0_112, %c0_113] : memref<3x128x128xf32, #tpu.memory_space<vmem>>, vector<1x128x128xf32>
    %138 = vector.shape_cast %137 : vector<1x128x128xf32> to vector<128x128xf32>
    %cst_114 = arith.constant dense<0.000000e+00> : vector<8x128xf32>
    %139 = tpu.matmul %129, %138, %cst_114 {dimension_numbers = #tpu.dot_dimension_numbers<[1], [0], [0], [1], [0, 0, 1, 1], [], []>} : vector<8x128xf32>, vector<128x128xf32>, vector<8x128xf32> -> vector<8x128xf32>
    %140 = arith.addf %136, %139 : vector<8x128xf32>
    %cst_115 = arith.constant dense<0.000000e+00> : vector<8x128xf32>
    %141 = tpu.matmul %18, %127, %cst_115 {dimension_numbers = #tpu.dot_dimension_numbers<[1], [0], [0], [1], [0, 0, 1, 1], [], []>} : vector<8x8xf32>, vector<8x128xf32>, vector<8x128xf32> -> vector<8x128xf32>
    %cst_116 = arith.constant dense<0.000000e+00> : vector<8x128xf32>
    %142 = tpu.matmul %23, %127, %cst_116 {dimension_numbers = #tpu.dot_dimension_numbers<[1], [0], [0], [1], [0, 0, 1, 1], [], []>} : vector<8x8xf32>, vector<8x128xf32>, vector<8x128xf32> -> vector<8x128xf32>
    %c0_117 = arith.constant 0 : index
    %c0_118 = arith.constant 0 : index
    %c0_119 = arith.constant 0 : index
    %143 = vector.load %arg17[%c0_117, %c0_118, %c0_119] : memref<3x128x128xf32, #tpu.memory_space<vmem>>, vector<1x128x128xf32>
    %144 = vector.shape_cast %143 : vector<1x128x128xf32> to vector<128x128xf32>
    %cst_120 = arith.constant dense<0.000000e+00> : vector<8x128xf32>
    %145 = tpu.matmul %141, %144, %cst_120 {dimension_numbers = #tpu.dot_dimension_numbers<[1], [0], [0], [1], [0, 0, 1, 1], [], []>} : vector<8x128xf32>, vector<128x128xf32>, vector<8x128xf32> -> vector<8x128xf32>
    %c1_121 = arith.constant 1 : index
    %c0_122 = arith.constant 0 : index
    %c0_123 = arith.constant 0 : index
    %146 = vector.load %arg17[%c1_121, %c0_122, %c0_123] : memref<3x128x128xf32, #tpu.memory_space<vmem>>, vector<1x128x128xf32>
    %147 = vector.shape_cast %146 : vector<1x128x128xf32> to vector<128x128xf32>
    %cst_124 = arith.constant dense<0.000000e+00> : vector<8x128xf32>
    %148 = tpu.matmul %127, %147, %cst_124 {dimension_numbers = #tpu.dot_dimension_numbers<[1], [0], [0], [1], [0, 0, 1, 1], [], []>} : vector<8x128xf32>, vector<128x128xf32>, vector<8x128xf32> -> vector<8x128xf32>
    %149 = arith.addf %145, %148 : vector<8x128xf32>
    %c2_125 = arith.constant 2 : index
    %c0_126 = arith.constant 0 : index
    %c0_127 = arith.constant 0 : index
    %150 = vector.load %arg17[%c2_125, %c0_126, %c0_127] : memref<3x128x128xf32, #tpu.memory_space<vmem>>, vector<1x128x128xf32>
    %151 = vector.shape_cast %150 : vector<1x128x128xf32> to vector<128x128xf32>
    %cst_128 = arith.constant dense<0.000000e+00> : vector<8x128xf32>
    %152 = tpu.matmul %142, %151, %cst_128 {dimension_numbers = #tpu.dot_dimension_numbers<[1], [0], [0], [1], [0, 0, 1, 1], [], []>} : vector<8x128xf32>, vector<128x128xf32>, vector<8x128xf32> -> vector<8x128xf32>
    %153 = arith.addf %149, %152 : vector<8x128xf32>
    %154 = arith.addf %140, %153 : vector<8x128xf32>
    %c0_129 = arith.constant 0 : index
    %c0_130 = arith.constant 0 : index
    %155 = vector.load %arg18[%c0_129, %c0_130] : memref<1x128xf32, #tpu.memory_space<vmem>>, vector<1x128xf32>
    %156 = vector.broadcast %155 : vector<1x128xf32> to vector<8x128xf32>
    %157 = arith.addf %154, %156 : vector<8x128xf32>
    %cst_131 = arith.constant 0.000000e+00 : f32
    %158 = vector.broadcast %cst_131 : f32 to vector<8x128xf32>
    %159 = arith.maximumf %157, %158 : vector<8x128xf32>
    %c0_132 = arith.constant 0 : index
    %c0_133 = arith.constant 0 : index
    %c0_134 = arith.constant 0 : index
    %160 = vector.load %arg4[%c0_132, %c0_133, %c0_134] : memref<1x16x256xf32, #tpu.memory_space<vmem>>, vector<1x16x256xf32>
    %161 = vector.shape_cast %160 : vector<1x16x256xf32> to vector<16x256xf32>
    %c0_135 = arith.constant 0 : index
    %c0_136 = arith.constant 0 : index
    %162 = vector.load %arg20[%c0_135, %c0_136] : memref<128x256xf32, #tpu.memory_space<vmem>>, vector<128x256xf32>
    %cst_137 = arith.constant dense<0.000000e+00> : vector<8x256xf32>
    %163 = tpu.matmul %159, %162, %cst_137 {dimension_numbers = #tpu.dot_dimension_numbers<[1], [0], [0], [1], [0, 0, 1, 1], [], []>} : vector<8x128xf32>, vector<128x256xf32>, vector<8x256xf32> -> vector<8x256xf32>
    %c0_138 = arith.constant 0 : index
    %c0_139 = arith.constant 0 : index
    %c0_140 = arith.constant 0 : index
    %164 = vector.load %arg19[%c0_138, %c0_139, %c0_140] : memref<3x16x8xf32, #tpu.memory_space<vmem>>, vector<1x16x8xf32>
    %165 = vector.shape_cast %164 : vector<1x16x8xf32> to vector<16x8xf32>
    %cst_141 = arith.constant dense<0.000000e+00> : vector<16x256xf32>
    %166 = tpu.matmul %165, %163, %cst_141 {dimension_numbers = #tpu.dot_dimension_numbers<[1], [0], [0], [1], [0, 0, 1, 1], [], []>} : vector<16x8xf32>, vector<8x256xf32>, vector<16x256xf32> -> vector<16x256xf32>
    %c0_142 = arith.constant 0 : index
    %c0_143 = arith.constant 0 : index
    %c0_144 = arith.constant 0 : index
    %167 = vector.load %arg21[%c0_142, %c0_143, %c0_144] : memref<3x256x256xf32, #tpu.memory_space<vmem>>, vector<1x256x256xf32>
    %168 = vector.shape_cast %167 : vector<1x256x256xf32> to vector<256x256xf32>
    %cst_145 = arith.constant dense<0.000000e+00> : vector<16x256xf32>
    %169 = tpu.matmul %166, %168, %cst_145 {dimension_numbers = #tpu.dot_dimension_numbers<[1], [0], [0], [1], [0, 0, 1, 1], [], []>} : vector<16x256xf32>, vector<256x256xf32>, vector<16x256xf32> -> vector<16x256xf32>
    %c1_146 = arith.constant 1 : index
    %c0_147 = arith.constant 0 : index
    %c0_148 = arith.constant 0 : index
    %170 = vector.load %arg19[%c1_146, %c0_147, %c0_148] : memref<3x16x8xf32, #tpu.memory_space<vmem>>, vector<1x16x8xf32>
    %171 = vector.shape_cast %170 : vector<1x16x8xf32> to vector<16x8xf32>
    %cst_149 = arith.constant dense<0.000000e+00> : vector<16x256xf32>
    %172 = tpu.matmul %171, %163, %cst_149 {dimension_numbers = #tpu.dot_dimension_numbers<[1], [0], [0], [1], [0, 0, 1, 1], [], []>} : vector<16x8xf32>, vector<8x256xf32>, vector<16x256xf32> -> vector<16x256xf32>
    %c1_150 = arith.constant 1 : index
    %c0_151 = arith.constant 0 : index
    %c0_152 = arith.constant 0 : index
    %173 = vector.load %arg21[%c1_150, %c0_151, %c0_152] : memref<3x256x256xf32, #tpu.memory_space<vmem>>, vector<1x256x256xf32>
    %174 = vector.shape_cast %173 : vector<1x256x256xf32> to vector<256x256xf32>
    %cst_153 = arith.constant dense<0.000000e+00> : vector<16x256xf32>
    %175 = tpu.matmul %172, %174, %cst_153 {dimension_numbers = #tpu.dot_dimension_numbers<[1], [0], [0], [1], [0, 0, 1, 1], [], []>} : vector<16x256xf32>, vector<256x256xf32>, vector<16x256xf32> -> vector<16x256xf32>
    %176 = arith.addf %169, %175 : vector<16x256xf32>
    %c2_154 = arith.constant 2 : index
    %c0_155 = arith.constant 0 : index
    %c0_156 = arith.constant 0 : index
    %177 = vector.load %arg19[%c2_154, %c0_155, %c0_156] : memref<3x16x8xf32, #tpu.memory_space<vmem>>, vector<1x16x8xf32>
    %178 = vector.shape_cast %177 : vector<1x16x8xf32> to vector<16x8xf32>
    %cst_157 = arith.constant dense<0.000000e+00> : vector<16x256xf32>
    %179 = tpu.matmul %178, %163, %cst_157 {dimension_numbers = #tpu.dot_dimension_numbers<[1], [0], [0], [1], [0, 0, 1, 1], [], []>} : vector<16x8xf32>, vector<8x256xf32>, vector<16x256xf32> -> vector<16x256xf32>
    %c2_158 = arith.constant 2 : index
    %c0_159 = arith.constant 0 : index
    %c0_160 = arith.constant 0 : index
    %180 = vector.load %arg21[%c2_158, %c0_159, %c0_160] : memref<3x256x256xf32, #tpu.memory_space<vmem>>, vector<1x256x256xf32>
    %181 = vector.shape_cast %180 : vector<1x256x256xf32> to vector<256x256xf32>
    %cst_161 = arith.constant dense<0.000000e+00> : vector<16x256xf32>
    %182 = tpu.matmul %179, %181, %cst_161 {dimension_numbers = #tpu.dot_dimension_numbers<[1], [0], [0], [1], [0, 0, 1, 1], [], []>} : vector<16x256xf32>, vector<256x256xf32>, vector<16x256xf32> -> vector<16x256xf32>
    %183 = arith.addf %176, %182 : vector<16x256xf32>
    %c0_162 = arith.constant 0 : index
    %c0_163 = arith.constant 0 : index
    %184 = vector.load %arg22[%c0_162, %c0_163] : memref<1x256xf32, #tpu.memory_space<vmem>>, vector<1x256xf32>
    %185 = vector.broadcast %184 : vector<1x256xf32> to vector<16x256xf32>
    %186 = arith.addf %183, %185 : vector<16x256xf32>
    %cst_164 = arith.constant 0.000000e+00 : f32
    %187 = vector.broadcast %cst_164 : f32 to vector<16x256xf32>
    %188 = arith.maximumf %186, %187 : vector<16x256xf32>
    %cst_165 = arith.constant dense<0.000000e+00> : vector<16x256xf32>
    %189 = tpu.matmul %30, %161, %cst_165 {dimension_numbers = #tpu.dot_dimension_numbers<[1], [0], [0], [1], [0, 0, 1, 1], [], []>} : vector<16x16xf32>, vector<16x256xf32>, vector<16x256xf32> -> vector<16x256xf32>
    %cst_166 = arith.constant dense<0.000000e+00> : vector<16x256xf32>
    %190 = tpu.matmul %35, %161, %cst_166 {dimension_numbers = #tpu.dot_dimension_numbers<[1], [0], [0], [1], [0, 0, 1, 1], [], []>} : vector<16x16xf32>, vector<16x256xf32>, vector<16x256xf32> -> vector<16x256xf32>
    %c0_167 = arith.constant 0 : index
    %c0_168 = arith.constant 0 : index
    %c0_169 = arith.constant 0 : index
    %191 = vector.load %arg23[%c0_167, %c0_168, %c0_169] : memref<3x256x256xf32, #tpu.memory_space<vmem>>, vector<1x256x256xf32>
    %192 = vector.shape_cast %191 : vector<1x256x256xf32> to vector<256x256xf32>
    %cst_170 = arith.constant dense<0.000000e+00> : vector<16x256xf32>
    %193 = tpu.matmul %189, %192, %cst_170 {dimension_numbers = #tpu.dot_dimension_numbers<[1], [0], [0], [1], [0, 0, 1, 1], [], []>} : vector<16x256xf32>, vector<256x256xf32>, vector<16x256xf32> -> vector<16x256xf32>
    %c1_171 = arith.constant 1 : index
    %c0_172 = arith.constant 0 : index
    %c0_173 = arith.constant 0 : index
    %194 = vector.load %arg23[%c1_171, %c0_172, %c0_173] : memref<3x256x256xf32, #tpu.memory_space<vmem>>, vector<1x256x256xf32>
    %195 = vector.shape_cast %194 : vector<1x256x256xf32> to vector<256x256xf32>
    %cst_174 = arith.constant dense<0.000000e+00> : vector<16x256xf32>
    %196 = tpu.matmul %161, %195, %cst_174 {dimension_numbers = #tpu.dot_dimension_numbers<[1], [0], [0], [1], [0, 0, 1, 1], [], []>} : vector<16x256xf32>, vector<256x256xf32>, vector<16x256xf32> -> vector<16x256xf32>
    %197 = arith.addf %193, %196 : vector<16x256xf32>
    %c2_175 = arith.constant 2 : index
    %c0_176 = arith.constant 0 : index
    %c0_177 = arith.constant 0 : index
    %198 = vector.load %arg23[%c2_175, %c0_176, %c0_177] : memref<3x256x256xf32, #tpu.memory_space<vmem>>, vector<1x256x256xf32>
    %199 = vector.shape_cast %198 : vector<1x256x256xf32> to vector<256x256xf32>
    %cst_178 = arith.constant dense<0.000000e+00> : vector<16x256xf32>
    %200 = tpu.matmul %190, %199, %cst_178 {dimension_numbers = #tpu.dot_dimension_numbers<[1], [0], [0], [1], [0, 0, 1, 1], [], []>} : vector<16x256xf32>, vector<256x256xf32>, vector<16x256xf32> -> vector<16x256xf32>
    %201 = arith.addf %197, %200 : vector<16x256xf32>
    %cst_179 = arith.constant dense<0.000000e+00> : vector<16x256xf32>
    %202 = tpu.matmul %30, %188, %cst_179 {dimension_numbers = #tpu.dot_dimension_numbers<[1], [0], [0], [1], [0, 0, 1, 1], [], []>} : vector<16x16xf32>, vector<16x256xf32>, vector<16x256xf32> -> vector<16x256xf32>
    %cst_180 = arith.constant dense<0.000000e+00> : vector<16x256xf32>
    %203 = tpu.matmul %35, %188, %cst_180 {dimension_numbers = #tpu.dot_dimension_numbers<[1], [0], [0], [1], [0, 0, 1, 1], [], []>} : vector<16x16xf32>, vector<16x256xf32>, vector<16x256xf32> -> vector<16x256xf32>
    %c0_181 = arith.constant 0 : index
    %c0_182 = arith.constant 0 : index
    %c0_183 = arith.constant 0 : index
    %204 = vector.load %arg24[%c0_181, %c0_182, %c0_183] : memref<3x256x256xf32, #tpu.memory_space<vmem>>, vector<1x256x256xf32>
    %205 = vector.shape_cast %204 : vector<1x256x256xf32> to vector<256x256xf32>
    %cst_184 = arith.constant dense<0.000000e+00> : vector<16x256xf32>
    %206 = tpu.matmul %202, %205, %cst_184 {dimension_numbers = #tpu.dot_dimension_numbers<[1], [0], [0], [1], [0, 0, 1, 1], [], []>} : vector<16x256xf32>, vector<256x256xf32>, vector<16x256xf32> -> vector<16x256xf32>
    %c1_185 = arith.constant 1 : index
    %c0_186 = arith.constant 0 : index
    %c0_187 = arith.constant 0 : index
    %207 = vector.load %arg24[%c1_185, %c0_186, %c0_187] : memref<3x256x256xf32, #tpu.memory_space<vmem>>, vector<1x256x256xf32>
    %208 = vector.shape_cast %207 : vector<1x256x256xf32> to vector<256x256xf32>
    %cst_188 = arith.constant dense<0.000000e+00> : vector<16x256xf32>
    %209 = tpu.matmul %188, %208, %cst_188 {dimension_numbers = #tpu.dot_dimension_numbers<[1], [0], [0], [1], [0, 0, 1, 1], [], []>} : vector<16x256xf32>, vector<256x256xf32>, vector<16x256xf32> -> vector<16x256xf32>
    %210 = arith.addf %206, %209 : vector<16x256xf32>
    %c2_189 = arith.constant 2 : index
    %c0_190 = arith.constant 0 : index
    %c0_191 = arith.constant 0 : index
    %211 = vector.load %arg24[%c2_189, %c0_190, %c0_191] : memref<3x256x256xf32, #tpu.memory_space<vmem>>, vector<1x256x256xf32>
    %212 = vector.shape_cast %211 : vector<1x256x256xf32> to vector<256x256xf32>
    %cst_192 = arith.constant dense<0.000000e+00> : vector<16x256xf32>
    %213 = tpu.matmul %203, %212, %cst_192 {dimension_numbers = #tpu.dot_dimension_numbers<[1], [0], [0], [1], [0, 0, 1, 1], [], []>} : vector<16x256xf32>, vector<256x256xf32>, vector<16x256xf32> -> vector<16x256xf32>
    %214 = arith.addf %210, %213 : vector<16x256xf32>
    %215 = arith.addf %201, %214 : vector<16x256xf32>
    %c0_193 = arith.constant 0 : index
    %c0_194 = arith.constant 0 : index
    %216 = vector.load %arg25[%c0_193, %c0_194] : memref<1x256xf32, #tpu.memory_space<vmem>>, vector<1x256xf32>
    %217 = vector.broadcast %216 : vector<1x256xf32> to vector<16x256xf32>
    %218 = arith.addf %215, %217 : vector<16x256xf32>
    %cst_195 = arith.constant 0.000000e+00 : f32
    %219 = vector.broadcast %cst_195 : f32 to vector<16x256xf32>
    %220 = arith.maximumf %218, %219 : vector<16x256xf32>
    %cst_196 = arith.constant dense<0.000000e+00> : vector<16x256xf32>
    %221 = tpu.matmul %30, %220, %cst_196 {dimension_numbers = #tpu.dot_dimension_numbers<[1], [0], [0], [1], [0, 0, 1, 1], [], []>} : vector<16x16xf32>, vector<16x256xf32>, vector<16x256xf32> -> vector<16x256xf32>
    %cst_197 = arith.constant dense<0.000000e+00> : vector<16x256xf32>
    %222 = tpu.matmul %35, %220, %cst_197 {dimension_numbers = #tpu.dot_dimension_numbers<[1], [0], [0], [1], [0, 0, 1, 1], [], []>} : vector<16x16xf32>, vector<16x256xf32>, vector<16x256xf32> -> vector<16x256xf32>
    %c0_198 = arith.constant 0 : index
    %c0_199 = arith.constant 0 : index
    %c0_200 = arith.constant 0 : index
    %223 = vector.load %arg26[%c0_198, %c0_199, %c0_200] : memref<3x256x256xf32, #tpu.memory_space<vmem>>, vector<1x256x256xf32>
    %224 = vector.shape_cast %223 : vector<1x256x256xf32> to vector<256x256xf32>
    %cst_201 = arith.constant dense<0.000000e+00> : vector<16x256xf32>
    %225 = tpu.matmul %221, %224, %cst_201 {dimension_numbers = #tpu.dot_dimension_numbers<[1], [0], [0], [1], [0, 0, 1, 1], [], []>} : vector<16x256xf32>, vector<256x256xf32>, vector<16x256xf32> -> vector<16x256xf32>
    %c1_202 = arith.constant 1 : index
    %c0_203 = arith.constant 0 : index
    %c0_204 = arith.constant 0 : index
    %226 = vector.load %arg26[%c1_202, %c0_203, %c0_204] : memref<3x256x256xf32, #tpu.memory_space<vmem>>, vector<1x256x256xf32>
    %227 = vector.shape_cast %226 : vector<1x256x256xf32> to vector<256x256xf32>
    %cst_205 = arith.constant dense<0.000000e+00> : vector<16x256xf32>
    %228 = tpu.matmul %220, %227, %cst_205 {dimension_numbers = #tpu.dot_dimension_numbers<[1], [0], [0], [1], [0, 0, 1, 1], [], []>} : vector<16x256xf32>, vector<256x256xf32>, vector<16x256xf32> -> vector<16x256xf32>
    %229 = arith.addf %225, %228 : vector<16x256xf32>
    %c2_206 = arith.constant 2 : index
    %c0_207 = arith.constant 0 : index
    %c0_208 = arith.constant 0 : index
    %230 = vector.load %arg26[%c2_206, %c0_207, %c0_208] : memref<3x256x256xf32, #tpu.memory_space<vmem>>, vector<1x256x256xf32>
    %231 = vector.shape_cast %230 : vector<1x256x256xf32> to vector<256x256xf32>
    %cst_209 = arith.constant dense<0.000000e+00> : vector<16x256xf32>
    %232 = tpu.matmul %222, %231, %cst_209 {dimension_numbers = #tpu.dot_dimension_numbers<[1], [0], [0], [1], [0, 0, 1, 1], [], []>} : vector<16x256xf32>, vector<256x256xf32>, vector<16x256xf32> -> vector<16x256xf32>
    %233 = arith.addf %229, %232 : vector<16x256xf32>
    %c0_210 = arith.constant 0 : index
    %c0_211 = arith.constant 0 : index
    %234 = vector.load %arg27[%c0_210, %c0_211] : memref<1x256xf32, #tpu.memory_space<vmem>>, vector<1x256xf32>
    %235 = vector.broadcast %234 : vector<1x256xf32> to vector<16x256xf32>
    %236 = arith.addf %233, %235 : vector<16x256xf32>
    %cst_212 = arith.constant 0.000000e+00 : f32
    %237 = vector.broadcast %cst_212 : f32 to vector<16x256xf32>
    %238 = arith.maximumf %236, %237 : vector<16x256xf32>
    %c0_213 = arith.constant 0 : index
    %c0_214 = arith.constant 0 : index
    %239 = vector.load %arg28[%c0_213, %c0_214] : memref<256x128xf32, #tpu.memory_space<vmem>>, vector<256x128xf32>
    %cst_215 = arith.constant dense<0.000000e+00> : vector<16x128xf32>
    %240 = tpu.matmul %238, %239, %cst_215 {dimension_numbers = #tpu.dot_dimension_numbers<[1], [0], [0], [1], [0, 0, 1, 1], [], []>} : vector<16x256xf32>, vector<256x128xf32>, vector<16x128xf32> -> vector<16x128xf32>
    %c0_216 = arith.constant 0 : index
    %c0_217 = arith.constant 0 : index
    %241 = vector.load %arg29[%c0_216, %c0_217] : memref<1x1xf32, #tpu.memory_space<vmem>>, vector<1x1xf32>
    %242 = vector.broadcast %241 : vector<1x1xf32> to vector<16x128xf32>
    %243 = arith.addf %240, %242 : vector<16x128xf32>
    %c0_218 = arith.constant 0 : index
    %c0_219 = arith.constant 0 : index
    %c0_220 = arith.constant 0 : index
    %244 = vector.load %arg30[%c0_218, %c0_219, %c0_220] : memref<1x16x128xf32, #tpu.memory_space<vmem>>, vector<1x16x128xf32>
    %245 = vector.shape_cast %244 : vector<1x16x128xf32> to vector<16x128xf32>
    %246 = vector.shape_cast %243 : vector<16x128xf32> to vector<1x16x128xf32>
    tpu.vector_store %arg30[%c0_218, %c0_219, %c0_220], %246 {strides = array<i32>} : memref<1x16x128xf32, #tpu.memory_space<vmem>>, vector<1x16x128xf32>,
    return
  }
  func.func @transform_0(%arg0: i32) -> (i32, i32, i32) {
    %c0_i32 = arith.constant 0 : i32
    %c0_i32_0 = arith.constant 0 : i32
    %c0_i32_1 = arith.constant 0 : i32
    return %arg0, %c0_i32, %c0_i32_0 : i32, i32, i32
  }
  func.func @transform_1(%arg0: i32) -> (i32, i32, i32) {
    %c0_i32 = arith.constant 0 : i32
    %c0_i32_0 = arith.constant 0 : i32
    %c0_i32_1 = arith.constant 0 : i32
    return %arg0, %c0_i32, %c0_i32_0 : i32, i32, i32
  }
  func.func @transform_2(%arg0: i32) -> (i32, i32, i32) {
    %c0_i32 = arith.constant 0 : i32
    %c0_i32_0 = arith.constant 0 : i32
    %c0_i32_1 = arith.constant 0 : i32
    return %arg0, %c0_i32, %c0_i32_0 : i32, i32, i32
  }
  func.func @transform_3(%arg0: i32) -> (i32, i32, i32) {
    %c0_i32 = arith.constant 0 : i32
    %c0_i32_0 = arith.constant 0 : i32
    %c0_i32_1 = arith.constant 0 : i32
    return %arg0, %c0_i32, %c0_i32_0 : i32, i32, i32
  }
  func.func @transform_4(%arg0: i32) -> (i32, i32, i32) {
    %c0_i32 = arith.constant 0 : i32
    %c0_i32_0 = arith.constant 0 : i32
    %c0_i32_1 = arith.constant 0 : i32
    %c0_i32_2 = arith.constant 0 : i32
    return %c0_i32, %c0_i32_0, %c0_i32_1 : i32, i32, i32
  }
  func.func @transform_5(%arg0: i32) -> (i32, i32) {
    %c0_i32 = arith.constant 0 : i32
    %c0_i32_0 = arith.constant 0 : i32
    %c0_i32_1 = arith.constant 0 : i32
    return %c0_i32, %c0_i32_0 : i32, i32
  }
  func.func @transform_6(%arg0: i32) -> (i32, i32, i32) {
    %c0_i32 = arith.constant 0 : i32
    %c0_i32_0 = arith.constant 0 : i32
    %c0_i32_1 = arith.constant 0 : i32
    %c0_i32_2 = arith.constant 0 : i32
    return %c0_i32, %c0_i32_0, %c0_i32_1 : i32, i32, i32
  }
  func.func @transform_7(%arg0: i32) -> (i32, i32) {
    %c0_i32 = arith.constant 0 : i32
    %c0_i32_0 = arith.constant 0 : i32
    %c0_i32_1 = arith.constant 0 : i32
    return %c0_i32, %c0_i32_0 : i32, i32
  }
  func.func @transform_8(%arg0: i32) -> (i32, i32, i32) {
    %c0_i32 = arith.constant 0 : i32
    %c0_i32_0 = arith.constant 0 : i32
    %c0_i32_1 = arith.constant 0 : i32
    %c0_i32_2 = arith.constant 0 : i32
    return %c0_i32, %c0_i32_0, %c0_i32_1 : i32, i32, i32
  }
  func.func @transform_9(%arg0: i32) -> (i32, i32, i32) {
    %c0_i32 = arith.constant 0 : i32
    %c0_i32_0 = arith.constant 0 : i32
    %c0_i32_1 = arith.constant 0 : i32
    %c0_i32_2 = arith.constant 0 : i32
    return %c0_i32, %c0_i32_0, %c0_i32_1 : i32, i32, i32
  }
  func.func @transform_10(%arg0: i32) -> (i32, i32) {
    %c0_i32 = arith.constant 0 : i32
    %c0_i32_0 = arith.constant 0 : i32
    %c0_i32_1 = arith.constant 0 : i32
    return %c0_i32, %c0_i32_0 : i32, i32
  }
  func.func @transform_11(%arg0: i32) -> (i32, i32, i32) {
    %c0_i32 = arith.constant 0 : i32
    %c0_i32_0 = arith.constant 0 : i32
    %c0_i32_1 = arith.constant 0 : i32
    %c0_i32_2 = arith.constant 0 : i32
    return %c0_i32, %c0_i32_0, %c0_i32_1 : i32, i32, i32
  }
  func.func @transform_12(%arg0: i32) -> (i32, i32) {
    %c0_i32 = arith.constant 0 : i32
    %c0_i32_0 = arith.constant 0 : i32
    %c0_i32_1 = arith.constant 0 : i32
    return %c0_i32, %c0_i32_0 : i32, i32
  }
  func.func @transform_13(%arg0: i32) -> (i32, i32, i32) {
    %c0_i32 = arith.constant 0 : i32
    %c0_i32_0 = arith.constant 0 : i32
    %c0_i32_1 = arith.constant 0 : i32
    %c0_i32_2 = arith.constant 0 : i32
    return %c0_i32, %c0_i32_0, %c0_i32_1 : i32, i32, i32
  }
  func.func @transform_14(%arg0: i32) -> (i32, i32) {
    %c0_i32 = arith.constant 0 : i32
    %c0_i32_0 = arith.constant 0 : i32
    %c0_i32_1 = arith.constant 0 : i32
    return %c0_i32, %c0_i32_0 : i32, i32
  }
  func.func @transform_15(%arg0: i32) -> (i32, i32, i32) {
    %c0_i32 = arith.constant 0 : i32
    %c0_i32_0 = arith.constant 0 : i32
    %c0_i32_1 = arith.constant 0 : i32
    %c0_i32_2 = arith.constant 0 : i32
    return %c0_i32, %c0_i32_0, %c0_i32_1 : i32, i32, i32
  }
  func.func @transform_16(%arg0: i32) -> (i32, i32, i32) {
    %c0_i32 = arith.constant 0 : i32
    %c0_i32_0 = arith.constant 0 : i32
    %c0_i32_1 = arith.constant 0 : i32
    %c0_i32_2 = arith.constant 0 : i32
    return %c0_i32, %c0_i32_0, %c0_i32_1 : i32, i32, i32
  }
  func.func @transform_17(%arg0: i32) -> (i32, i32) {
    %c0_i32 = arith.constant 0 : i32
    %c0_i32_0 = arith.constant 0 : i32
    %c0_i32_1 = arith.constant 0 : i32
    return %c0_i32, %c0_i32_0 : i32, i32
  }
  func.func @transform_18(%arg0: i32) -> (i32, i32, i32) {
    %c0_i32 = arith.constant 0 : i32
    %c0_i32_0 = arith.constant 0 : i32
    %c0_i32_1 = arith.constant 0 : i32
    %c0_i32_2 = arith.constant 0 : i32
    return %c0_i32, %c0_i32_0, %c0_i32_1 : i32, i32, i32
  }
  func.func @transform_19(%arg0: i32) -> (i32, i32) {
    %c0_i32 = arith.constant 0 : i32
    %c0_i32_0 = arith.constant 0 : i32
    %c0_i32_1 = arith.constant 0 : i32
    return %c0_i32, %c0_i32_0 : i32, i32
  }
  func.func @transform_20(%arg0: i32) -> (i32, i32, i32) {
    %c0_i32 = arith.constant 0 : i32
    %c0_i32_0 = arith.constant 0 : i32
    %c0_i32_1 = arith.constant 0 : i32
    %c0_i32_2 = arith.constant 0 : i32
    return %c0_i32, %c0_i32_0, %c0_i32_1 : i32, i32, i32
  }
  func.func @transform_21(%arg0: i32) -> (i32, i32) {
    %c0_i32 = arith.constant 0 : i32
    %c0_i32_0 = arith.constant 0 : i32
    %c0_i32_1 = arith.constant 0 : i32
    return %c0_i32, %c0_i32_0 : i32, i32
  }
  func.func @transform_22(%arg0: i32) -> (i32, i32, i32) {
    %c0_i32 = arith.constant 0 : i32
    %c0_i32_0 = arith.constant 0 : i32
    %c0_i32_1 = arith.constant 0 : i32
    %c0_i32_2 = arith.constant 0 : i32
    return %c0_i32, %c0_i32_0, %c0_i32_1 : i32, i32, i32
  }
  func.func @transform_23(%arg0: i32) -> (i32, i32, i32) {
    %c0_i32 = arith.constant 0 : i32
    %c0_i32_0 = arith.constant 0 : i32
    %c0_i32_1 = arith.constant 0 : i32
    %c0_i32_2 = arith.constant 0 : i32
    return %c0_i32, %c0_i32_0, %c0_i32_1 : i32, i32, i32
  }
  func.func @transform_24(%arg0: i32) -> (i32, i32) {
    %c0_i32 = arith.constant 0 : i32
    %c0_i32_0 = arith.constant 0 : i32
    %c0_i32_1 = arith.constant 0 : i32
    return %c0_i32, %c0_i32_0 : i32, i32
  }
  func.func @transform_25(%arg0: i32) -> (i32, i32, i32) {
    %c0_i32 = arith.constant 0 : i32
    %c0_i32_0 = arith.constant 0 : i32
    %c0_i32_1 = arith.constant 0 : i32
    %c0_i32_2 = arith.constant 0 : i32
    return %c0_i32, %c0_i32_0, %c0_i32_1 : i32, i32, i32
  }
  func.func @transform_26(%arg0: i32) -> (i32, i32) {
    %c0_i32 = arith.constant 0 : i32
    %c0_i32_0 = arith.constant 0 : i32
    %c0_i32_1 = arith.constant 0 : i32
    return %c0_i32, %c0_i32_0 : i32, i32
  }
  func.func @transform_27(%arg0: i32) -> (i32, i32) {
    %c0_i32 = arith.constant 0 : i32
    %c0_i32_0 = arith.constant 0 : i32
    %c0_i32_1 = arith.constant 0 : i32
    return %c0_i32, %c0_i32_0 : i32, i32
  }
  func.func @transform_28(%arg0: i32) -> (i32, i32) {
    %c0_i32 = arith.constant 0 : i32
    %c0_i32_0 = arith.constant 0 : i32
    %c0_i32_1 = arith.constant 0 : i32
    return %c0_i32, %c0_i32_0 : i32, i32
  }
  func.func @transform_29(%arg0: i32) -> (i32, i32, i32) {
    %c0_i32 = arith.constant 0 : i32
    %c0_i32_0 = arith.constant 0 : i32
    %c0_i32_1 = arith.constant 0 : i32
    return %arg0, %c0_i32, %c0_i32_0 : i32, i32, i32
  }
}

</mosaic_0001>

<llo_original>
// kernel: concat_output_forward.1
$region0: #{concat_output_forward.1}
  #allocation0 [shape = 'u32[]', space=smem, size = 0x4, offset = 0x4, fixed_abs, tag = 'smem constant byte address 0x4 - core index']
  #allocation1 [shape = 'u32[144,128]{1,0:T(1,128)}', space=vmem, size = 0x12000, scoped, tag = 'internal scratch']
  #allocation2 [shape = 'f32[1,1]{1,0:T(1,128)S(1)}', space=vmem, size = 0x200, scoped, tag = 'scoped memory for concat_output_forward.1']
  %s0 = inlined_call_operand.smem [shape: u32[30], index: -1, kind: input, shape index: {}]
  %s1 = sld [smem:[%s0]]
  %s2 = scalar_lea.smem %s0, 1
  %s3 = sld [smem:[%s2]]
  %s4 = scalar_lea.smem %s0, 2
  %s5 = sld [smem:[%s4]]
  %s6 = scalar_lea.smem %s0, 3
  %s7 = sld [smem:[%s6]]
  %s8 = scalar_lea.smem %s0, 4
  %s9 = sld [smem:[%s8]]
  %s10 = scalar_lea.smem %s0, 5
  %s11 = sld [smem:[%s10]]
  %s12 = scalar_lea.smem %s0, 6
  %s13 = sld [smem:[%s12]]
  %s14 = scalar_lea.smem %s0, 7
  %s15 = sld [smem:[%s14]]
  %s16 = scalar_lea.smem %s0, 8
  %s17 = sld [smem:[%s16]]
  %s18 = scalar_lea.smem %s0, 9
  %s19 = sld [smem:[%s18]]
  %s20 = scalar_lea.smem %s0, 10
  %s21 = sld [smem:[%s20]]
  %s22 = scalar_lea.smem %s0, 11
  %s23 = sld [smem:[%s22]]
  %s24 = scalar_lea.smem %s0, 12
  %s25 = sld [smem:[%s24]]
  %s26 = scalar_lea.smem %s0, 13
  %s27 = sld [smem:[%s26]]
  %s28 = scalar_lea.smem %s0, 14
  %s29 = sld [smem:[%s28]]
  %s30 = scalar_lea.smem %s0, 15
  %s31 = sld [smem:[%s30]]
  %s32 = scalar_lea.smem %s0, 16
  %s33 = sld [smem:[%s32]]
  %s34 = scalar_lea.smem %s0, 17
  %s35 = sld [smem:[%s34]]
  %s36 = scalar_lea.smem %s0, 18
  %s37 = sld [smem:[%s36]]
  %s38 = scalar_lea.smem %s0, 19
  %s39 = sld [smem:[%s38]]
  %s40 = scalar_lea.smem %s0, 20
  %s41 = sld [smem:[%s40]]
  %s42 = scalar_lea.smem %s0, 21
  %s43 = sld [smem:[%s42]]
  %s44 = scalar_lea.smem %s0, 22
  %s45 = sld [smem:[%s44]]
  %s46 = scalar_lea.smem %s0, 23
  %s47 = sld [smem:[%s46]]
  %s48 = scalar_lea.smem %s0, 24
  %s49 = sld [smem:[%s48]]
  %s50 = scalar_lea.smem %s0, 25
  %s51 = sld [smem:[%s50]]
  %s52 = scalar_lea.smem %s0, 26
  %s53 = sld [smem:[%s52]]
  %s54 = scalar_lea.smem %s0, 27
  %s55 = sld [smem:[%s54]]
  %s56 = scalar_lea.smem %s0, 28
  %s57 = sld [smem:[%s56]]
  %s58 = scalar_lea.smem %s0, 29
  %s59 = sld [smem:[%s58]]
  %s60 = sld [smem:[#allocation0]]
  $region213: #{concat_output_forward.1} parent=0
    _
  %s62 = ssub.s32 1, %s60
  %s63 = scalar_select 0, %s62, %s60
  %v64 = vstv %s57
  %65 = vst [vmem:[#allocation2] sm:$0x1] %v64
  $region1: #{concat_output_forward.1} parent=0
    #allocation3 [shape = 'u8[98304]{0}', space=vmem, size = 0x18000, scoped, tag = 'input window, operand 6, single buffered']
    #allocation4 [shape = 's32[2]{0}', space=sflag, size = 0x8, scoped, tag = 'scoped memory for concat_output_forward.1']
    #allocation5 [shape = 'u8[512]{0}', space=vmem, size = 0x400, scoped, tag = 'input window, operand 7, single buffered']
    #allocation6 [shape = 's32[1]{0}', space=sflag, size = 0x4, scoped, tag = 'scoped memory for concat_output_forward.1']
    #allocation7 [shape = 'u8[98304]{0}', space=vmem, size = 0x18000, scoped, tag = 'input window, operand 8, single buffered']
    #allocation8 [shape = 'u8[98304]{0}', space=vmem, size = 0x18000, scoped, tag = 'input window, operand 9, single buffered']
    #allocation9 [shape = 's32[1]{0}', space=sflag, size = 0x4, scoped, tag = 'scoped memory for concat_output_forward.1']
    #allocation10 [shape = 'u8[512]{0}', space=vmem, size = 0x400, scoped, tag = 'input window, operand 10, single buffered']
    #allocation11 [shape = 'u8[32768]{0}', space=vmem, size = 0x8000, scoped, tag = 'input window, operand 12, single buffered']
    #allocation12 [shape = 's32[1]{0}', space=sflag, size = 0x4, scoped, tag = 'scoped memory for concat_output_forward.1']
    #allocation13 [shape = 'u8[512]{0}', space=vmem, size = 0x400, scoped, tag = 'input window, operand 14, single buffered']
    #allocation14 [shape = 'u8[196608]{0}', space=vmem, size = 0x30000, scoped, tag = 'input window, operand 15, single buffered']
    #allocation15 [shape = 's32[1]{0}', space=sflag, size = 0x4, scoped, tag = 'scoped memory for concat_output_forward.1']
    #allocation16 [shape = 'u8[196608]{0}', space=vmem, size = 0x30000, scoped, tag = 'input window, operand 16, single buffered']
    #allocation17 [shape = 'u8[512]{0}', space=vmem, size = 0x400, scoped, tag = 'input window, operand 17, single buffered']
    #allocation18 [shape = 's32[1]{0}', space=sflag, size = 0x4, scoped, tag = 'scoped memory for concat_output_forward.1']
    #allocation19 [shape = 'u8[131072]{0}', space=vmem, size = 0x20000, scoped, tag = 'input window, operand 19, single buffered']
    #allocation20 [shape = 'u8[786432]{0}', space=vmem, size = 0xc0000, scoped, tag = 'input window, operand 22, single buffered']
    #allocation21 [shape = 's32[1]{0}', space=sflag, size = 0x4, scoped, tag = 'scoped memory for concat_output_forward.1']
    #allocation22 [shape = 'u8[786432]{0}', space=vmem, size = 0xc0000, scoped, tag = 'input window, operand 23, single buffered']
    #allocation23 [shape = 'u8[786432]{0}', space=vmem, size = 0xc0000, scoped, tag = 'input window, operand 25, single buffered']
    #allocation24 [shape = 's32[1]{0}', space=sflag, size = 0x4, scoped, tag = 'scoped memory for concat_output_forward.1']
    #allocation25 [shape = 'u8[1024]{0}', space=vmem, size = 0x400, scoped, tag = 'input window, operand 26, single buffered']
    #allocation26 [shape = 'u8[131072]{0}', space=vmem, size = 0x20000, scoped, tag = 'input window, operand 27, single buffered']
    #allocation27 [shape = 's32[1]{0}', space=sflag, size = 0x4, scoped, tag = 'scoped memory for concat_output_forward.1']
    %66 = vsyncpa [#allocation4], 0
    %67 = vsyncpa [#allocation6], 0
    %68 = vsyncpa [#allocation9], 0
    %69 = vsyncpa [#allocation12], 0
    %70 = vsyncpa [#allocation15], 0
    %71 = vsyncpa [#allocation18], 0
    %72 = vsyncpa [#allocation21], 0
    %73 = vsyncpa [#allocation24], 0
    %74 = vsyncpa [#allocation27], 0
    loop: start=0, step=1, limit=4
    $region2: #{concat_output_forward.1} parent=1 // loop_pre_header
      _
    $region3: #{concat_output_forward.1} parent=1 // loop_header
      %s76 = sphi 0, %s80
      %p77 = scmp.ge.s32.totalorder %s76, 4
      %s86 = sphi 0, %s88
      %s89 = sphi 0, %s86
      %s90 = sphi 0, %s89
      %s106 = sphi 0, %s90
      %s112 = sphi 0, %s114
      %s115 = sphi 0, %s112
      %s116 = sphi 0, %s115
      %s132 = sphi 0, %s116
      %s138 = sphi 0, %s140
      %s141 = sphi 0, %s138
      %s142 = sphi 0, %s141
      %s158 = sphi 0, %s142
      %s164 = sphi 0, %s166
      %s167 = sphi 0, %s164
      %s168 = sphi 0, %s167
      %s184 = sphi 0, %s168
      %s188 = sphi 0, %s188
      %s190 = sphi 0, %s188
      %s191 = sphi 0, %s190
      %s205 = sphi 0, %s191
      %s209 = sphi 0, %s209
      %s211 = sphi 0, %s209
      %s212 = sphi 0, %s211
      %s226 = sphi 0, %s212
      %s230 = sphi 0, %s230
      %s232 = sphi 0, %s230
      %s233 = sphi 0, %s232
      %s247 = sphi 0, %s233
      %s251 = sphi 0, %s251
      %s253 = sphi 0, %s251
      %s254 = sphi 0, %s253
      %s268 = sphi 0, %s254
      %s272 = sphi 0, %s272
      %s274 = sphi 0, %s272
      %s275 = sphi 0, %s274
      %s289 = sphi 0, %s275
      %s293 = sphi 0, %s293
      %s295 = sphi 0, %s293
      %s296 = sphi 0, %s295
      %s310 = sphi 0, %s296
      %s314 = sphi 0, %s314
      %s316 = sphi 0, %s314
      %s317 = sphi 0, %s316
      %s331 = sphi 0, %s317
      %s335 = sphi 0, %s335
      %s337 = sphi 0, %s335
      %s338 = sphi 0, %s337
      %s352 = sphi 0, %s338
      %s356 = sphi 0, %s356
      %s358 = sphi 0, %s356
      %s359 = sphi 0, %s358
      %s373 = sphi 0, %s359
      %s377 = sphi 0, %s377
      %s379 = sphi 0, %s377
      %s380 = sphi 0, %s379
      %s394 = sphi 0, %s380
      %s398 = sphi 0, %s398
      %s400 = sphi 0, %s398
      %s401 = sphi 0, %s400
      %s415 = sphi 0, %s401
      %s419 = sphi 0, %s419
      %s421 = sphi 0, %s419
      %s422 = sphi 0, %s421
      %s436 = sphi 0, %s422
      %s440 = sphi 0, %s440
      %s442 = sphi 0, %s440
      %s443 = sphi 0, %s442
      %s457 = sphi 0, %s443
      %s461 = sphi 0, %s461
      %s463 = sphi 0, %s461
      %s464 = sphi 0, %s463
      %s478 = sphi 0, %s464
      %s482 = sphi 0, %s482
      %s484 = sphi 0, %s482
      %s485 = sphi 0, %s484
      %s499 = sphi 0, %s485
      %s503 = sphi 0, %s503
      %s505 = sphi 0, %s503
      %s506 = sphi 0, %s505
      %s520 = sphi 0, %s506
      %s524 = sphi 0, %s524
      %s526 = sphi 0, %s524
      %s527 = sphi 0, %s526
      %s541 = sphi 0, %s527
      %s545 = sphi 0, %s545
      %s547 = sphi 0, %s545
      %s548 = sphi 0, %s547
      %s562 = sphi 0, %s548
      %s566 = sphi 0, %s566
      %s568 = sphi 0, %s566
      %s569 = sphi 0, %s568
      %s583 = sphi 0, %s569
      %s587 = sphi 0, %s587
      %s589 = sphi 0, %s587
      %s590 = sphi 0, %s589
      %s604 = sphi 0, %s590
      %s608 = sphi 0, %s608
      %s610 = sphi 0, %s608
      %s611 = sphi 0, %s610
      %s625 = sphi 0, %s611
      %s629 = sphi 0, %s629
      %s631 = sphi 0, %s629
      %s632 = sphi 0, %s631
      %s646 = sphi 0, %s632
      %s650 = sphi 0, %s650
      %s652 = sphi 0, %s650
      %s653 = sphi 0, %s652
      %s667 = sphi 0, %s653
      %s671 = sphi 0, %s671
      %s673 = sphi 0, %s671
      %s674 = sphi 0, %s673
      %s688 = sphi 0, %s674
      %s692 = sphi 0, %s692
      %s694 = sphi 0, %s692
      %s695 = sphi 0, %s694
      %s709 = sphi 0, %s695
      %s715 = sphi 0, %s717
      %s718 = sphi 0, %s715
      %s719 = sphi 0, %s718
      %s735 = sphi 0, %s719
    $region4: #{concat_output_forward.1} parent=1 // loop_header_branch
      %79 = sbr.rel (%p77) target = $region8
    $region5: #{concat_output_forward.1} parent=1 // loop_body
      %s81 = ssub.s32 %s76, 1
      %s82 = ssub.s32 %s76, 2
      %s83 = sadd.s32 %s76, 1
      %s84 = ssub.s32 %s76, %s83
      %p85 = scmp.eq.s32.totalorder %s84, 0
      %s87 = sadd.s32 %s86, 1
      %s88 = scalar_select %p85, %s86, %s87
      %p91 = pneg %p85
      %p92 = scmp.eq.s32.totalorder %s76, 1
      %p93 = por %p91, %p92
      %p94 = scmp.ne.s32.totalorder %s86, %s89
      %p95 = scmp.eq.s32.totalorder %s76, 0
      %p96 = por %p94, %p95
      %p97 = scmp.ne.s32.totalorder %s86, %s89
      %p98 = scmp.eq.s32.totalorder %s81, 1
      %p99 = por %p97, %p98
      %p100 = scmp.ne.s32.totalorder %s89, %s90
      %p101 = scmp.eq.s32.totalorder %s81, 0
      %p102 = por %p100, %p101
      %p103 = scmp.ne.s32.totalorder %s89, %s90
      %p104 = scmp.eq.s32.totalorder %s82, 1
      %p105 = por %p103, %p104
      %p107 = scmp.ne.s32.totalorder %s90, %s106
      %p108 = scmp.eq.s32.totalorder %s82, 0
      %p109 = por %p107, %p108
      %s110 = ssub.s32 %s76, %s83
      %p111 = scmp.eq.s32.totalorder %s110, 0
      %s113 = sadd.s32 %s112, 1
      %s114 = scalar_select %p111, %s112, %s113
      %p117 = pneg %p111
      %p118 = scmp.eq.s32.totalorder %s76, 1
      %p119 = por %p117, %p118
      %p120 = scmp.ne.s32.totalorder %s112, %s115
      %p121 = scmp.eq.s32.totalorder %s76, 0
      %p122 = por %p120, %p121
      %p123 = scmp.ne.s32.totalorder %s112, %s115
      %p124 = scmp.eq.s32.totalorder %s81, 1
      %p125 = por %p123, %p124
      %p126 = scmp.ne.s32.totalorder %s115, %s116
      %p127 = scmp.eq.s32.totalorder %s81, 0
      %p128 = por %p126, %p127
      %p129 = scmp.ne.s32.totalorder %s115, %s116
      %p130 = scmp.eq.s32.totalorder %s82, 1
      %p131 = por %p129, %p130
      %p133 = scmp.ne.s32.totalorder %s116, %s132
      %p134 = scmp.eq.s32.totalorder %s82, 0
      %p135 = por %p133, %p134
      %s136 = ssub.s32 %s76, %s83
      %p137 = scmp.eq.s32.totalorder %s136, 0
      %s139 = sadd.s32 %s138, 1
      %s140 = scalar_select %p137, %s138, %s139
      %p143 = pneg %p137
      %p144 = scmp.eq.s32.totalorder %s76, 1
      %p145 = por %p143, %p144
      %p146 = scmp.ne.s32.totalorder %s138, %s141
      %p147 = scmp.eq.s32.totalorder %s76, 0
      %p148 = por %p146, %p147
      %p149 = scmp.ne.s32.totalorder %s138, %s141
      %p150 = scmp.eq.s32.totalorder %s81, 1
      %p151 = por %p149, %p150
      %p152 = scmp.ne.s32.totalorder %s141, %s142
      %p153 = scmp.eq.s32.totalorder %s81, 0
      %p154 = por %p152, %p153
      %p155 = scmp.ne.s32.totalorder %s141, %s142
      %p156 = scmp.eq.s32.totalorder %s82, 1
      %p157 = por %p155, %p156
      %p159 = scmp.ne.s32.totalorder %s142, %s158
      %p160 = scmp.eq.s32.totalorder %s82, 0
      %p161 = por %p159, %p160
      %s162 = ssub.s32 %s76, %s83
      %p163 = scmp.eq.s32.totalorder %s162, 0
      %s165 = sadd.s32 %s164, 1
      %s166 = scalar_select %p163, %s164, %s165
      %p169 = pneg %p163
      %p170 = scmp.eq.s32.totalorder %s76, 1
      %p171 = por %p169, %p170
      %p172 = scmp.ne.s32.totalorder %s164, %s167
      %p173 = scmp.eq.s32.totalorder %s76, 0
      %p174 = por %p172, %p173
      %p175 = scmp.ne.s32.totalorder %s164, %s167
      %p176 = scmp.eq.s32.totalorder %s81, 1
      %p177 = por %p175, %p176
      %p178 = scmp.ne.s32.totalorder %s167, %s168
      %p179 = scmp.eq.s32.totalorder %s81, 0
      %p180 = por %p178, %p179
      %p181 = scmp.ne.s32.totalorder %s167, %s168
      %p182 = scmp.eq.s32.totalorder %s82, 1
      %p183 = por %p181, %p182
      %p185 = scmp.ne.s32.totalorder %s168, %s184
      %p186 = scmp.eq.s32.totalorder %s82, 0
      %p187 = por %p185, %p186
      %s189 = sadd.s32 %s188, 1
      %p192 = scmp.eq.s32.totalorder %s76, 1
      %p193 = scmp.ne.s32.totalorder %s188, %s190
      %p194 = scmp.eq.s32.totalorder %s76, 0
      %p195 = por %p193, %p194
      %p196 = scmp.ne.s32.totalorder %s188, %s190
      %p197 = scmp.eq.s32.totalorder %s81, 1
      %p198 = por %p196, %p197
      %p199 = scmp.ne.s32.totalorder %s190, %s191
      %p200 = scmp.eq.s32.totalorder %s81, 0
      %p201 = por %p199, %p200
      %p202 = scmp.ne.s32.totalorder %s190, %s191
      %p203 = scmp.eq.s32.totalorder %s82, 1
      %p204 = por %p202, %p203
      %p206 = scmp.ne.s32.totalorder %s191, %s205
      %p207 = scmp.eq.s32.totalorder %s82, 0
      %p208 = por %p206, %p207
      %s210 = sadd.s32 %s209, 1
      %p213 = scmp.eq.s32.totalorder %s76, 1
      %p214 = scmp.ne.s32.totalorder %s209, %s211
      %p215 = scmp.eq.s32.totalorder %s76, 0
      %p216 = por %p214, %p215
      %p217 = scmp.ne.s32.totalorder %s209, %s211
      %p218 = scmp.eq.s32.totalorder %s81, 1
      %p219 = por %p217, %p218
      %p220 = scmp.ne.s32.totalorder %s211, %s212
      %p221 = scmp.eq.s32.totalorder %s81, 0
      %p222 = por %p220, %p221
      %p223 = scmp.ne.s32.totalorder %s211, %s212
      %p224 = scmp.eq.s32.totalorder %s82, 1
      %p225 = por %p223, %p224
      %p227 = scmp.ne.s32.totalorder %s212, %s226
      %p228 = scmp.eq.s32.totalorder %s82, 0
      %p229 = por %p227, %p228
      %s231 = sadd.s32 %s230, 1
      %p234 = scmp.eq.s32.totalorder %s76, 1
      %p235 = scmp.ne.s32.totalorder %s230, %s232
      %p236 = scmp.eq.s32.totalorder %s76, 0
      %p237 = por %p235, %p236
      %p238 = scmp.ne.s32.totalorder %s230, %s232
      %p239 = scmp.eq.s32.totalorder %s81, 1
      %p240 = por %p238, %p239
      %p241 = scmp.ne.s32.totalorder %s232, %s233
      %p242 = scmp.eq.s32.totalorder %s81, 0
      %p243 = por %p241, %p242
      %p244 = scmp.ne.s32.totalorder %s232, %s233
      %p245 = scmp.eq.s32.totalorder %s82, 1
      %p246 = por %p244, %p245
      %p248 = scmp.ne.s32.totalorder %s233, %s247
      %p249 = scmp.eq.s32.totalorder %s82, 0
      %p250 = por %p248, %p249
      %s252 = sadd.s32 %s251, 1
      %p255 = scmp.eq.s32.totalorder %s76, 1
      %p256 = scmp.ne.s32.totalorder %s251, %s253
      %p257 = scmp.eq.s32.totalorder %s76, 0
      %p258 = por %p256, %p257
      %p259 = scmp.ne.s32.totalorder %s251, %s253
      %p260 = scmp.eq.s32.totalorder %s81, 1
      %p261 = por %p259, %p260
      %p262 = scmp.ne.s32.totalorder %s253, %s254
      %p263 = scmp.eq.s32.totalorder %s81, 0
      %p264 = por %p262, %p263
      %p265 = scmp.ne.s32.totalorder %s253, %s254
      %p266 = scmp.eq.s32.totalorder %s82, 1
      %p267 = por %p265, %p266
      %p269 = scmp.ne.s32.totalorder %s254, %s268
      %p270 = scmp.eq.s32.totalorder %s82, 0
      %p271 = por %p269, %p270
      %s273 = sadd.s32 %s272, 1
      %p276 = scmp.eq.s32.totalorder %s76, 1
      %p277 = scmp.ne.s32.totalorder %s272, %s274
      %p278 = scmp.eq.s32.totalorder %s76, 0
      %p279 = por %p277, %p278
      %p280 = scmp.ne.s32.totalorder %s272, %s274
      %p281 = scmp.eq.s32.totalorder %s81, 1
      %p282 = por %p280, %p281
      %p283 = scmp.ne.s32.totalorder %s274, %s275
      %p284 = scmp.eq.s32.totalorder %s81, 0
      %p285 = por %p283, %p284
      %p286 = scmp.ne.s32.totalorder %s274, %s275
      %p287 = scmp.eq.s32.totalorder %s82, 1
      %p288 = por %p286, %p287
      %p290 = scmp.ne.s32.totalorder %s275, %s289
      %p291 = scmp.eq.s32.totalorder %s82, 0
      %p292 = por %p290, %p291
      %s294 = sadd.s32 %s293, 1
      %p297 = scmp.eq.s32.totalorder %s76, 1
      %p298 = scmp.ne.s32.totalorder %s293, %s295
      %p299 = scmp.eq.s32.totalorder %s76, 0
      %p300 = por %p298, %p299
      %p301 = scmp.ne.s32.totalorder %s293, %s295
      %p302 = scmp.eq.s32.totalorder %s81, 1
      %p303 = por %p301, %p302
      %p304 = scmp.ne.s32.totalorder %s295, %s296
      %p305 = scmp.eq.s32.totalorder %s81, 0
      %p306 = por %p304, %p305
      %p307 = scmp.ne.s32.totalorder %s295, %s296
      %p308 = scmp.eq.s32.totalorder %s82, 1
      %p309 = por %p307, %p308
      %p311 = scmp.ne.s32.totalorder %s296, %s310
      %p312 = scmp.eq.s32.totalorder %s82, 0
      %p313 = por %p311, %p312
      %s315 = sadd.s32 %s314, 1
      %p318 = scmp.eq.s32.totalorder %s76, 1
      %p319 = scmp.ne.s32.totalorder %s314, %s316
      %p320 = scmp.eq.s32.totalorder %s76, 0
      %p321 = por %p319, %p320
      %p322 = scmp.ne.s32.totalorder %s314, %s316
      %p323 = scmp.eq.s32.totalorder %s81, 1
      %p324 = por %p322, %p323
      %p325 = scmp.ne.s32.totalorder %s316, %s317
      %p326 = scmp.eq.s32.totalorder %s81, 0
      %p327 = por %p325, %p326
      %p328 = scmp.ne.s32.totalorder %s316, %s317
      %p329 = scmp.eq.s32.totalorder %s82, 1
      %p330 = por %p328, %p329
      %p332 = scmp.ne.s32.totalorder %s317, %s331
      %p333 = scmp.eq.s32.totalorder %s82, 0
      %p334 = por %p332, %p333
      %s336 = sadd.s32 %s335, 1
      %p339 = scmp.eq.s32.totalorder %s76, 1
      %p340 = scmp.ne.s32.totalorder %s335, %s337
      %p341 = scmp.eq.s32.totalorder %s76, 0
      %p342 = por %p340, %p341
      %p343 = scmp.ne.s32.totalorder %s335, %s337
      %p344 = scmp.eq.s32.totalorder %s81, 1
      %p345 = por %p343, %p344
      %p346 = scmp.ne.s32.totalorder %s337, %s338
      %p347 = scmp.eq.s32.totalorder %s81, 0
      %p348 = por %p346, %p347
      %p349 = scmp.ne.s32.totalorder %s337, %s338
      %p350 = scmp.eq.s32.totalorder %s82, 1
      %p351 = por %p349, %p350
      %p353 = scmp.ne.s32.totalorder %s338, %s352
      %p354 = scmp.eq.s32.totalorder %s82, 0
      %p355 = por %p353, %p354
      %s357 = sadd.s32 %s356, 1
      %p360 = scmp.eq.s32.totalorder %s76, 1
      %p361 = scmp.ne.s32.totalorder %s356, %s358
      %p362 = scmp.eq.s32.totalorder %s76, 0
      %p363 = por %p361, %p362
      %p364 = scmp.ne.s32.totalorder %s356, %s358
      %p365 = scmp.eq.s32.totalorder %s81, 1
      %p366 = por %p364, %p365
      %p367 = scmp.ne.s32.totalorder %s358, %s359
      %p368 = scmp.eq.s32.totalorder %s81, 0
      %p369 = por %p367, %p368
      %p370 = scmp.ne.s32.totalorder %s358, %s359
      %p371 = scmp.eq.s32.totalorder %s82, 1
      %p372 = por %p370, %p371
      %p374 = scmp.ne.s32.totalorder %s359, %s373
      %p375 = scmp.eq.s32.totalorder %s82, 0
      %p376 = por %p374, %p375
      %s378 = sadd.s32 %s377, 1
      %p381 = scmp.eq.s32.totalorder %s76, 1
      %p382 = scmp.ne.s32.totalorder %s377, %s379
      %p383 = scmp.eq.s32.totalorder %s76, 0
      %p384 = por %p382, %p383
      %p385 = scmp.ne.s32.totalorder %s377, %s379
      %p386 = scmp.eq.s32.totalorder %s81, 1
      %p387 = por %p385, %p386
      %p388 = scmp.ne.s32.totalorder %s379, %s380
      %p389 = scmp.eq.s32.totalorder %s81, 0
      %p390 = por %p388, %p389
      %p391 = scmp.ne.s32.totalorder %s379, %s380
      %p392 = scmp.eq.s32.totalorder %s82, 1
      %p393 = por %p391, %p392
      %p395 = scmp.ne.s32.totalorder %s380, %s394
      %p396 = scmp.eq.s32.totalorder %s82, 0
      %p397 = por %p395, %p396
      %s399 = sadd.s32 %s398, 1
      %p402 = scmp.eq.s32.totalorder %s76, 1
      %p403 = scmp.ne.s32.totalorder %s398, %s400
      %p404 = scmp.eq.s32.totalorder %s76, 0
      %p405 = por %p403, %p404
      %p406 = scmp.ne.s32.totalorder %s398, %s400
      %p407 = scmp.eq.s32.totalorder %s81, 1
      %p408 = por %p406, %p407
      %p409 = scmp.ne.s32.totalorder %s400, %s401
      %p410 = scmp.eq.s32.totalorder %s81, 0
      %p411 = por %p409, %p410
      %p412 = scmp.ne.s32.totalorder %s400, %s401
      %p413 = scmp.eq.s32.totalorder %s82, 1
      %p414 = por %p412, %p413
      %p416 = scmp.ne.s32.totalorder %s401, %s415
      %p417 = scmp.eq.s32.totalorder %s82, 0
      %p418 = por %p416, %p417
      %s420 = sadd.s32 %s419, 1
      %p423 = scmp.eq.s32.totalorder %s76, 1
      %p424 = scmp.ne.s32.totalorder %s419, %s421
      %p425 = scmp.eq.s32.totalorder %s76, 0
      %p426 = por %p424, %p425
      %p427 = scmp.ne.s32.totalorder %s419, %s421
      %p428 = scmp.eq.s32.totalorder %s81, 1
      %p429 = por %p427, %p428
      %p430 = scmp.ne.s32.totalorder %s421, %s422
      %p431 = scmp.eq.s32.totalorder %s81, 0
      %p432 = por %p430, %p431
      %p433 = scmp.ne.s32.totalorder %s421, %s422
      %p434 = scmp.eq.s32.totalorder %s82, 1
      %p435 = por %p433, %p434
      %p437 = scmp.ne.s32.totalorder %s422, %s436
      %p438 = scmp.eq.s32.totalorder %s82, 0
      %p439 = por %p437, %p438
      %s441 = sadd.s32 %s440, 1
      %p444 = scmp.eq.s32.totalorder %s76, 1
      %p445 = scmp.ne.s32.totalorder %s440, %s442
      %p446 = scmp.eq.s32.totalorder %s76, 0
      %p447 = por %p445, %p446
      %p448 = scmp.ne.s32.totalorder %s440, %s442
      %p449 = scmp.eq.s32.totalorder %s81, 1
      %p450 = por %p448, %p449
      %p451 = scmp.ne.s32.totalorder %s442, %s443
      %p452 = scmp.eq.s32.totalorder %s81, 0
      %p453 = por %p451, %p452
      %p454 = scmp.ne.s32.totalorder %s442, %s443
      %p455 = scmp.eq.s32.totalorder %s82, 1
      %p456 = por %p454, %p455
      %p458 = scmp.ne.s32.totalorder %s443, %s457
      %p459 = scmp.eq.s32.totalorder %s82, 0
      %p460 = por %p458, %p459
      %s462 = sadd.s32 %s461, 1
      %p465 = scmp.eq.s32.totalorder %s76, 1
      %p466 = scmp.ne.s32.totalorder %s461, %s463
      %p467 = scmp.eq.s32.totalorder %s76, 0
      %p468 = por %p466, %p467
      %p469 = scmp.ne.s32.totalorder %s461, %s463
      %p470 = scmp.eq.s32.totalorder %s81, 1
      %p471 = por %p469, %p470
      %p472 = scmp.ne.s32.totalorder %s463, %s464
      %p473 = scmp.eq.s32.totalorder %s81, 0
      %p474 = por %p472, %p473
      %p475 = scmp.ne.s32.totalorder %s463, %s464
      %p476 = scmp.eq.s32.totalorder %s82, 1
      %p477 = por %p475, %p476
      %p479 = scmp.ne.s32.totalorder %s464, %s478
      %p480 = scmp.eq.s32.totalorder %s82, 0
      %p481 = por %p479, %p480
      %s483 = sadd.s32 %s482, 1
      %p486 = scmp.eq.s32.totalorder %s76, 1
      %p487 = scmp.ne.s32.totalorder %s482, %s484
      %p488 = scmp.eq.s32.totalorder %s76, 0
      %p489 = por %p487, %p488
      %p490 = scmp.ne.s32.totalorder %s482, %s484
      %p491 = scmp.eq.s32.totalorder %s81, 1
      %p492 = por %p490, %p491
      %p493 = scmp.ne.s32.totalorder %s484, %s485
      %p494 = scmp.eq.s32.totalorder %s81, 0
      %p495 = por %p493, %p494
      %p496 = scmp.ne.s32.totalorder %s484, %s485
      %p497 = scmp.eq.s32.totalorder %s82, 1
      %p498 = por %p496, %p497
      %p500 = scmp.ne.s32.totalorder %s485, %s499
      %p501 = scmp.eq.s32.totalorder %s82, 0
      %p502 = por %p500, %p501
      %s504 = sadd.s32 %s503, 1
      %p507 = scmp.eq.s32.totalorder %s76, 1
      %p508 = scmp.ne.s32.totalorder %s503, %s505
      %p509 = scmp.eq.s32.totalorder %s76, 0
      %p510 = por %p508, %p509
      %p511 = scmp.ne.s32.totalorder %s503, %s505
      %p512 = scmp.eq.s32.totalorder %s81, 1
      %p513 = por %p511, %p512
      %p514 = scmp.ne.s32.totalorder %s505, %s506
      %p515 = scmp.eq.s32.totalorder %s81, 0
      %p516 = por %p514, %p515
      %p517 = scmp.ne.s32.totalorder %s505, %s506
      %p518 = scmp.eq.s32.totalorder %s82, 1
      %p519 = por %p517, %p518
      %p521 = scmp.ne.s32.totalorder %s506, %s520
      %p522 = scmp.eq.s32.totalorder %s82, 0
      %p523 = por %p521, %p522
      %s525 = sadd.s32 %s524, 1
      %p528 = scmp.eq.s32.totalorder %s76, 1
      %p529 = scmp.ne.s32.totalorder %s524, %s526
      %p530 = scmp.eq.s32.totalorder %s76, 0
      %p531 = por %p529, %p530
      %p532 = scmp.ne.s32.totalorder %s524, %s526
      %p533 = scmp.eq.s32.totalorder %s81, 1
      %p534 = por %p532, %p533
      %p535 = scmp.ne.s32.totalorder %s526, %s527
      %p536 = scmp.eq.s32.totalorder %s81, 0
      %p537 = por %p535, %p536
      %p538 = scmp.ne.s32.totalorder %s526, %s527
      %p539 = scmp.eq.s32.totalorder %s82, 1
      %p540 = por %p538, %p539
      %p542 = scmp.ne.s32.totalorder %s527, %s541
      %p543 = scmp.eq.s32.totalorder %s82, 0
      %p544 = por %p542, %p543
      %s546 = sadd.s32 %s545, 1
      %p549 = scmp.eq.s32.totalorder %s76, 1
      %p550 = scmp.ne.s32.totalorder %s545, %s547
      %p551 = scmp.eq.s32.totalorder %s76, 0
      %p552 = por %p550, %p551
      %p553 = scmp.ne.s32.totalorder %s545, %s547
      %p554 = scmp.eq.s32.totalorder %s81, 1
      %p555 = por %p553, %p554
      %p556 = scmp.ne.s32.totalorder %s547, %s548
      %p557 = scmp.eq.s32.totalorder %s81, 0
      %p558 = por %p556, %p557
      %p559 = scmp.ne.s32.totalorder %s547, %s548
      %p560 = scmp.eq.s32.totalorder %s82, 1
      %p561 = por %p559, %p560
      %p563 = scmp.ne.s32.totalorder %s548, %s562
      %p564 = scmp.eq.s32.totalorder %s82, 0
      %p565 = por %p563, %p564
      %s567 = sadd.s32 %s566, 1
      %p570 = scmp.eq.s32.totalorder %s76, 1
      %p571 = scmp.ne.s32.totalorder %s566, %s568
      %p572 = scmp.eq.s32.totalorder %s76, 0
      %p573 = por %p571, %p572
      %p574 = scmp.ne.s32.totalorder %s566, %s568
      %p575 = scmp.eq.s32.totalorder %s81, 1
      %p576 = por %p574, %p575
      %p577 = scmp.ne.s32.totalorder %s568, %s569
      %p578 = scmp.eq.s32.totalorder %s81, 0
      %p579 = por %p577, %p578
      %p580 = scmp.ne.s32.totalorder %s568, %s569
      %p581 = scmp.eq.s32.totalorder %s82, 1
      %p582 = por %p580, %p581
      %p584 = scmp.ne.s32.totalorder %s569, %s583
      %p585 = scmp.eq.s32.totalorder %s82, 0
      %p586 = por %p584, %p585
      %s588 = sadd.s32 %s587, 1
      %p591 = scmp.eq.s32.totalorder %s76, 1
      %p592 = scmp.ne.s32.totalorder %s587, %s589
      %p593 = scmp.eq.s32.totalorder %s76, 0
      %p594 = por %p592, %p593
      %p595 = scmp.ne.s32.totalorder %s587, %s589
      %p596 = scmp.eq.s32.totalorder %s81, 1
      %p597 = por %p595, %p596
      %p598 = scmp.ne.s32.totalorder %s589, %s590
      %p599 = scmp.eq.s32.totalorder %s81, 0
      %p600 = por %p598, %p599
      %p601 = scmp.ne.s32.totalorder %s589, %s590
      %p602 = scmp.eq.s32.totalorder %s82, 1
      %p603 = por %p601, %p602
      %p605 = scmp.ne.s32.totalorder %s590, %s604
      %p606 = scmp.eq.s32.totalorder %s82, 0
      %p607 = por %p605, %p606
      %s609 = sadd.s32 %s608, 1
      %p612 = scmp.eq.s32.totalorder %s76, 1
      %p613 = scmp.ne.s32.totalorder %s608, %s610
      %p614 = scmp.eq.s32.totalorder %s76, 0
      %p615 = por %p613, %p614
      %p616 = scmp.ne.s32.totalorder %s608, %s610
      %p617 = scmp.eq.s32.totalorder %s81, 1
      %p618 = por %p616, %p617
      %p619 = scmp.ne.s32.totalorder %s610, %s611
      %p620 = scmp.eq.s32.totalorder %s81, 0
      %p621 = por %p619, %p620
      %p622 = scmp.ne.s32.totalorder %s610, %s611
      %p623 = scmp.eq.s32.totalorder %s82, 1
      %p624 = por %p622, %p623
      %p626 = scmp.ne.s32.totalorder %s611, %s625
      %p627 = scmp.eq.s32.totalorder %s82, 0
      %p628 = por %p626, %p627
      %s630 = sadd.s32 %s629, 1
      %p633 = scmp.eq.s32.totalorder %s76, 1
      %p634 = scmp.ne.s32.totalorder %s629, %s631
      %p635 = scmp.eq.s32.totalorder %s76, 0
      %p636 = por %p634, %p635
      %p637 = scmp.ne.s32.totalorder %s629, %s631
      %p638 = scmp.eq.s32.totalorder %s81, 1
      %p639 = por %p637, %p638
      %p640 = scmp.ne.s32.totalorder %s631, %s632
      %p641 = scmp.eq.s32.totalorder %s81, 0
      %p642 = por %p640, %p641
      %p643 = scmp.ne.s32.totalorder %s631, %s632
      %p644 = scmp.eq.s32.totalorder %s82, 1
      %p645 = por %p643, %p644
      %p647 = scmp.ne.s32.totalorder %s632, %s646
      %p648 = scmp.eq.s32.totalorder %s82, 0
      %p649 = por %p647, %p648
      %s651 = sadd.s32 %s650, 1
      %p654 = scmp.eq.s32.totalorder %s76, 1
      %p655 = scmp.ne.s32.totalorder %s650, %s652
      %p656 = scmp.eq.s32.totalorder %s76, 0
      %p657 = por %p655, %p656
      %p658 = scmp.ne.s32.totalorder %s650, %s652
      %p659 = scmp.eq.s32.totalorder %s81, 1
      %p660 = por %p658, %p659
      %p661 = scmp.ne.s32.totalorder %s652, %s653
      %p662 = scmp.eq.s32.totalorder %s81, 0
      %p663 = por %p661, %p662
      %p664 = scmp.ne.s32.totalorder %s652, %s653
      %p665 = scmp.eq.s32.totalorder %s82, 1
      %p666 = por %p664, %p665
      %p668 = scmp.ne.s32.totalorder %s653, %s667
      %p669 = scmp.eq.s32.totalorder %s82, 0
      %p670 = por %p668, %p669
      %s672 = sadd.s32 %s671, 1
      %p675 = scmp.eq.s32.totalorder %s76, 1
      %p676 = scmp.ne.s32.totalorder %s671, %s673
      %p677 = scmp.eq.s32.totalorder %s76, 0
      %p678 = por %p676, %p677
      %p679 = scmp.ne.s32.totalorder %s671, %s673
      %p680 = scmp.eq.s32.totalorder %s81, 1
      %p681 = por %p679, %p680
      %p682 = scmp.ne.s32.totalorder %s673, %s674
      %p683 = scmp.eq.s32.totalorder %s81, 0
      %p684 = por %p682, %p683
      %p685 = scmp.ne.s32.totalorder %s673, %s674
      %p686 = scmp.eq.s32.totalorder %s82, 1
      %p687 = por %p685, %p686
      %p689 = scmp.ne.s32.totalorder %s674, %s688
      %p690 = scmp.eq.s32.totalorder %s82, 0
      %p691 = por %p689, %p690
      %s693 = sadd.s32 %s692, 1
      %p696 = scmp.eq.s32.totalorder %s76, 1
      %p697 = scmp.ne.s32.totalorder %s692, %s694
      %p698 = scmp.eq.s32.totalorder %s76, 0
      %p699 = por %p697, %p698
      %p700 = scmp.ne.s32.totalorder %s692, %s694
      %p701 = scmp.eq.s32.totalorder %s81, 1
      %p702 = por %p700, %p701
      %p703 = scmp.ne.s32.totalorder %s694, %s695
      %p704 = scmp.eq.s32.totalorder %s81, 0
      %p705 = por %p703, %p704
      %p706 = scmp.ne.s32.totalorder %s694, %s695
      %p707 = scmp.eq.s32.totalorder %s82, 1
      %p708 = por %p706, %p707
      %p710 = scmp.ne.s32.totalorder %s695, %s709
      %p711 = scmp.eq.s32.totalorder %s82, 0
      %p712 = por %p710, %p711
      %s713 = ssub.s32 %s76, %s83
      %p714 = scmp.eq.s32.totalorder %s713, 0
      %s716 = sadd.s32 %s715, 1
      %s717 = scalar_select %p714, %s715, %s716
      %p720 = pneg %p714
      %p721 = scmp.eq.s32.totalorder %s76, 1
      %p722 = por %p720, %p721
      %p723 = scmp.ne.s32.totalorder %s715, %s718
      %p724 = scmp.eq.s32.totalorder %s76, 0
      %p725 = por %p723, %p724
      %p726 = scmp.ne.s32.totalorder %s715, %s718
      %p727 = scmp.eq.s32.totalorder %s81, 1
      %p728 = por %p726, %p727
      %p729 = scmp.ne.s32.totalorder %s718, %s719
      %p730 = scmp.eq.s32.totalorder %s81, 0
      %p731 = por %p729, %p730
      %p732 = scmp.ne.s32.totalorder %s718, %s719
      %p733 = scmp.eq.s32.totalorder %s82, 1
      %p734 = por %p732, %p733
      %p736 = scmp.ne.s32.totalorder %s719, %s735
      %p737 = scmp.eq.s32.totalorder %s82, 0
      %p738 = por %p736, %p737
      %p739 = scmp.le.s32.totalorder 1, %s76
      %p740 = scmp.lt.s32.totalorder %s76, 3
      %p741 = pnand %p739, %p740
      %p742 = pneg %p741
      // Predicated region
      $region9: #{concat_output_forward.1} parent=5 // pred_check
        _
      $region10: #{concat_output_forward.1} parent=5 // pred_check_branch
        %744 = sbr.rel (%p741) target = $region12
      $region11: #{concat_output_forward.1} parent=5 // pred_region
        %s745 = ssub.s32 %s76, 1
        // Predicated region
        $region13: #{concat_output_forward.1} parent=11 // pred_check
          %p746 = pneg %p201
        $region14: #{concat_output_forward.1} parent=11 // pred_check_branch
          %748 = sbr.rel (%p746) target = $region16
        $region15: #{concat_output_forward.1} parent=11 // pred_region
          _
        $region16: #{concat_output_forward.1} parent=11 // pred_fallthru
          _
        // Predicated region
        $region17: #{concat_output_forward.1} parent=11 // pred_check
          %p749 = pneg %p222
        $region18: #{concat_output_forward.1} parent=11 // pred_check_branch
          %751 = sbr.rel (%p749) target = $region20
        $region19: #{concat_output_forward.1} parent=11 // pred_region
          _
        $region20: #{concat_output_forward.1} parent=11 // pred_fallthru
          _
        // Predicated region
        $region21: #{concat_output_forward.1} parent=11 // pred_check
          %p752 = pneg %p243
        $region22: #{concat_output_forward.1} parent=11 // pred_check_branch
          %754 = sbr.rel (%p752) target = $region24
        $region23: #{concat_output_forward.1} parent=11 // pred_region
          %s756 = ssub.s32 3072, 3072
          %757 = vsyncadd [#allocation4], %s756
          %s758 = sshll.u32 [#allocation3], 4
          %s759 = int_to_ptr.vmem [resolvable:$true] %s758
          %764 = dma.hbm_to_vmem [thread:$0]  %s13, 3072, %s759, [#allocation4], 128, 128, 8
        $region24: #{concat_output_forward.1} parent=11 // pred_fallthru
          _
        // Predicated region
        $region25: #{concat_output_forward.1} parent=11 // pred_check
          %p765 = pneg %p264
        $region26: #{concat_output_forward.1} parent=11 // pred_check_branch
          %767 = sbr.rel (%p765) target = $region28
        $region27: #{concat_output_forward.1} parent=11 // pred_region
          %s769 = ssub.s32 16, 16
          %770 = vsyncadd [#allocation6], %s769
          %s772 = sshll.u32 [#allocation5], 4
          %s773 = int_to_ptr.vmem [resolvable:$true] %s772
          %775 = dma.hbm_to_vmem [thread:$0]  %s15, 16, %s773, [#allocation6]
        $region28: #{concat_output_forward.1} parent=11 // pred_fallthru
          _
        // Predicated region
        $region29: #{concat_output_forward.1} parent=11 // pred_check
          %p776 = pneg %p285
        $region30: #{concat_output_forward.1} parent=11 // pred_check_branch
          %778 = sbr.rel (%p776) target = $region32
        $region31: #{concat_output_forward.1} parent=11 // pred_region
          %s780 = ssub.s32 3072, 3072
          %781 = vsyncadd [#allocation6], %s780
          %s782 = sshll.u32 [#allocation7], 4
          %s783 = int_to_ptr.vmem [resolvable:$true] %s782
          %788 = dma.hbm_to_vmem [thread:$0]  %s17, 3072, %s783, [#allocation6], 128, 128, 8
        $region32: #{concat_output_forward.1} parent=11 // pred_fallthru
          _
        // Predicated region
        $region33: #{concat_output_forward.1} parent=11 // pred_check
          %p789 = pneg %p306
        $region34: #{concat_output_forward.1} parent=11 // pred_check_branch
          %791 = sbr.rel (%p789) target = $region36
        $region35: #{concat_output_forward.1} parent=11 // pred_region
          %s793 = ssub.s32 3072, 3072
          %794 = vsyncadd [#allocation9], %s793
          %s795 = sshll.u32 [#allocation8], 4
          %s796 = int_to_ptr.vmem [resolvable:$true] %s795
          %801 = dma.hbm_to_vmem [thread:$0]  %s19, 3072, %s796, [#allocation9], 128, 128, 8
        $region36: #{concat_output_forward.1} parent=11 // pred_fallthru
          _
        // Predicated region
        $region37: #{concat_output_forward.1} parent=11 // pred_check
          %p802 = pneg %p327
        $region38: #{concat_output_forward.1} parent=11 // pred_check_branch
          %804 = sbr.rel (%p802) target = $region40
        $region39: #{concat_output_forward.1} parent=11 // pred_region
          %s806 = ssub.s32 16, 16
          %807 = vsyncadd [#allocation9], %s806
          %s809 = sshll.u32 [#allocation10], 4
          %s810 = int_to_ptr.vmem [resolvable:$true] %s809
          %812 = dma.hbm_to_vmem [thread:$0]  %s21, 16, %s810, [#allocation9]
        $region40: #{concat_output_forward.1} parent=11 // pred_fallthru
          _
        // Predicated region
        $region41: #{concat_output_forward.1} parent=11 // pred_check
          %p813 = pneg %p348
        $region42: #{concat_output_forward.1} parent=11 // pred_check_branch
          %815 = sbr.rel (%p813) target = $region44
        $region43: #{concat_output_forward.1} parent=11 // pred_region
          _
        $region44: #{concat_output_forward.1} parent=11 // pred_fallthru
          _
        // Predicated region
        $region45: #{concat_output_forward.1} parent=11 // pred_check
          %p816 = pneg %p369
        $region46: #{concat_output_forward.1} parent=11 // pred_check_branch
          %818 = sbr.rel (%p816) target = $region48
        $region47: #{concat_output_forward.1} parent=11 // pred_region
          %s820 = ssub.s32 1024, 1024
          %821 = vsyncadd [#allocation12], %s820
          %s822 = sshll.u32 [#allocation11], 4
          %s823 = int_to_ptr.vmem [resolvable:$true] %s822
          %828 = dma.hbm_to_vmem [thread:$0]  %s25, 1024, %s823, [#allocation12], 128, 128, 8
        $region48: #{concat_output_forward.1} parent=11 // pred_fallthru
          _
        // Predicated region
        $region49: #{concat_output_forward.1} parent=11 // pred_check
          %p829 = pneg %p390
        $region50: #{concat_output_forward.1} parent=11 // pred_check_branch
          %831 = sbr.rel (%p829) target = $region52
        $region51: #{concat_output_forward.1} parent=11 // pred_region
          _
        $region52: #{concat_output_forward.1} parent=11 // pred_fallthru
          _
        // Predicated region
        $region53: #{concat_output_forward.1} parent=11 // pred_check
          %p832 = pneg %p411
        $region54: #{concat_output_forward.1} parent=11 // pred_check_branch
          %834 = sbr.rel (%p832) target = $region56
        $region55: #{concat_output_forward.1} parent=11 // pred_region
          %s836 = ssub.s32 16, 16
          %837 = vsyncadd [#allocation12], %s836
          %s839 = sshll.u32 [#allocation13], 4
          %s840 = int_to_ptr.vmem [resolvable:$true] %s839
          %842 = dma.hbm_to_vmem [thread:$0]  %s29, 16, %s840, [#allocation12]
        $region56: #{concat_output_forward.1} parent=11 // pred_fallthru
          _
        // Predicated region
        $region57: #{concat_output_forward.1} parent=11 // pred_check
          %p843 = pneg %p432
        $region58: #{concat_output_forward.1} parent=11 // pred_check_branch
          %845 = sbr.rel (%p843) target = $region60
        $region59: #{concat_output_forward.1} parent=11 // pred_region
          %s847 = ssub.s32 6144, 6144
          %848 = vsyncadd [#allocation15], %s847
          %s849 = sshll.u32 [#allocation14], 4
          %s850 = int_to_ptr.vmem [resolvable:$true] %s849
          %855 = dma.hbm_to_vmem [thread:$0]  %s31, 6144, %s850, [#allocation15], 128, 128, 8
        $region60: #{concat_output_forward.1} parent=11 // pred_fallthru
          _
        // Predicated region
        $region61: #{concat_output_forward.1} parent=11 // pred_check
          %p856 = pneg %p453
        $region62: #{concat_output_forward.1} parent=11 // pred_check_branch
          %858 = sbr.rel (%p856) target = $region64
        $region63: #{concat_output_forward.1} parent=11 // pred_region
          %s860 = ssub.s32 6144, 6144
          %861 = vsyncadd [#allocation15], %s860
          %s862 = sshll.u32 [#allocation16], 4
          %s863 = int_to_ptr.vmem [resolvable:$true] %s862
          %868 = dma.hbm_to_vmem [thread:$0]  %s33, 6144, %s863, [#allocation15], 128, 128, 8
        $region64: #{concat_output_forward.1} parent=11 // pred_fallthru
          _
        // Predicated region
        $region65: #{concat_output_forward.1} parent=11 // pred_check
          %p869 = pneg %p474
        $region66: #{concat_output_forward.1} parent=11 // pred_check_branch
          %871 = sbr.rel (%p869) target = $region68
        $region67: #{concat_output_forward.1} parent=11 // pred_region
          %s873 = ssub.s32 16, 16
          %874 = vsyncadd [#allocation18], %s873
          %s876 = sshll.u32 [#allocation17], 4
          %s877 = int_to_ptr.vmem [resolvable:$true] %s876
          %879 = dma.hbm_to_vmem [thread:$0]  %s35, 16, %s877, [#allocation18]
        $region68: #{concat_output_forward.1} parent=11 // pred_fallthru
          _
        // Predicated region
        $region69: #{concat_output_forward.1} parent=11 // pred_check
          %p880 = pneg %p495
        $region70: #{concat_output_forward.1} parent=11 // pred_check_branch
          %882 = sbr.rel (%p880) target = $region72
        $region71: #{concat_output_forward.1} parent=11 // pred_region
          _
        $region72: #{concat_output_forward.1} parent=11 // pred_fallthru
          _
        // Predicated region
        $region73: #{concat_output_forward.1} parent=11 // pred_check
          %p883 = pneg %p516
        $region74: #{concat_output_forward.1} parent=11 // pred_check_branch
          %885 = sbr.rel (%p883) target = $region76
        $region75: #{concat_output_forward.1} parent=11 // pred_region
          %s887 = ssub.s32 4096, 4096
          %888 = vsyncadd [#allocation18], %s887
          %s889 = sshll.u32 [#allocation19], 4
          %s890 = int_to_ptr.vmem [resolvable:$true] %s889
          %895 = dma.hbm_to_vmem [thread:$0]  %s39, 4096, %s890, [#allocation18], 256, 256, 16
        $region76: #{concat_output_forward.1} parent=11 // pred_fallthru
          _
        // Predicated region
        $region77: #{concat_output_forward.1} parent=11 // pred_check
          %p896 = pneg %p537
        $region78: #{concat_output_forward.1} parent=11 // pred_check_branch
          %898 = sbr.rel (%p896) target = $region80
        $region79: #{concat_output_forward.1} parent=11 // pred_region
          _
        $region80: #{concat_output_forward.1} parent=11 // pred_fallthru
          _
        // Predicated region
        $region81: #{concat_output_forward.1} parent=11 // pred_check
          %p899 = pneg %p558
        $region82: #{concat_output_forward.1} parent=11 // pred_check_branch
          %901 = sbr.rel (%p899) target = $region84
        $region83: #{concat_output_forward.1} parent=11 // pred_region
          _
        $region84: #{concat_output_forward.1} parent=11 // pred_fallthru
          _
        // Predicated region
        $region85: #{concat_output_forward.1} parent=11 // pred_check
          %p902 = pneg %p579
        $region86: #{concat_output_forward.1} parent=11 // pred_check_branch
          %904 = sbr.rel (%p902) target = $region88
        $region87: #{concat_output_forward.1} parent=11 // pred_region
          %s906 = ssub.s32 24576, 24576
          %907 = vsyncadd [#allocation21], %s906
          %s908 = sshll.u32 [#allocation20], 4
          %s909 = int_to_ptr.vmem [resolvable:$true] %s908
          %914 = dma.hbm_to_vmem [thread:$0]  %s45, 24576, %s909, [#allocation21], 256, 256, 16
        $region88: #{concat_output_forward.1} parent=11 // pred_fallthru
          _
        // Predicated region
        $region89: #{concat_output_forward.1} parent=11 // pred_check
          %p915 = pneg %p600
        $region90: #{concat_output_forward.1} parent=11 // pred_check_branch
          %917 = sbr.rel (%p915) target = $region92
        $region91: #{concat_output_forward.1} parent=11 // pred_region
          %s919 = ssub.s32 24576, 24576
          %920 = vsyncadd [#allocation21], %s919
          %s921 = sshll.u32 [#allocation22], 4
          %s922 = int_to_ptr.vmem [resolvable:$true] %s921
          %927 = dma.hbm_to_vmem [thread:$0]  %s47, 24576, %s922, [#allocation21], 256, 256, 16
        $region92: #{concat_output_forward.1} parent=11 // pred_fallthru
          _
        // Predicated region
        $region93: #{concat_output_forward.1} parent=11 // pred_check
          %p928 = pneg %p621
        $region94: #{concat_output_forward.1} parent=11 // pred_check_branch
          %930 = sbr.rel (%p928) target = $region96
        $region95: #{concat_output_forward.1} parent=11 // pred_region
          _
        $region96: #{concat_output_forward.1} parent=11 // pred_fallthru
          _
        // Predicated region
        $region97: #{concat_output_forward.1} parent=11 // pred_check
          %p931 = pneg %p642
        $region98: #{concat_output_forward.1} parent=11 // pred_check_branch
          %933 = sbr.rel (%p931) target = $region100
        $region99: #{concat_output_forward.1} parent=11 // pred_region
          %s935 = ssub.s32 24576, 24576
          %936 = vsyncadd [#allocation24], %s935
          %s937 = sshll.u32 [#allocation23], 4
          %s938 = int_to_ptr.vmem [resolvable:$true] %s937
          %943 = dma.hbm_to_vmem [thread:$0]  %s51, 24576, %s938, [#allocation24], 256, 256, 16
        $region100: #{concat_output_forward.1} parent=11 // pred_fallthru
          _
        // Predicated region
        $region101: #{concat_output_forward.1} parent=11 // pred_check
          %p944 = pneg %p663
        $region102: #{concat_output_forward.1} parent=11 // pred_check_branch
          %946 = sbr.rel (%p944) target = $region104
        $region103: #{concat_output_forward.1} parent=11 // pred_region
          %s948 = ssub.s32 32, 32
          %949 = vsyncadd [#allocation24], %s948
          %s951 = sshll.u32 [#allocation25], 4
          %s952 = int_to_ptr.vmem [resolvable:$true] %s951
          %954 = dma.hbm_to_vmem [thread:$0]  %s53, 32, %s952, [#allocation24]
        $region104: #{concat_output_forward.1} parent=11 // pred_fallthru
          _
        // Predicated region
        $region105: #{concat_output_forward.1} parent=11 // pred_check
          %p955 = pneg %p684
        $region106: #{concat_output_forward.1} parent=11 // pred_check_branch
          %957 = sbr.rel (%p955) target = $region108
        $region107: #{concat_output_forward.1} parent=11 // pred_region
          %s959 = ssub.s32 4096, 4096
          %960 = vsyncadd [#allocation27], %s959
          %s961 = sshll.u32 [#allocation26], 4
          %s962 = int_to_ptr.vmem [resolvable:$true] %s961
          %967 = dma.hbm_to_vmem [thread:$0]  %s55, 4096, %s962, [#allocation27], 128, 128, 8
        $region108: #{concat_output_forward.1} parent=11 // pred_fallthru
          _
        // Predicated region
        $region109: #{concat_output_forward.1} parent=11 // pred_check
          %p968 = pneg %p705
        $region110: #{concat_output_forward.1} parent=11 // pred_check_branch
          %970 = sbr.rel (%p968) target = $region112
        $region111: #{concat_output_forward.1} parent=11 // pred_region
          _
        $region112: #{concat_output_forward.1} parent=11 // pred_fallthru
          _
      $region12: #{concat_output_forward.1} parent=5 // pred_fallthru
        _
      %p971 = scmp.lt.s32.totalorder %s76, 2
      // Predicated region
      $region113: #{concat_output_forward.1} parent=5 // pred_check
        %p972 = pneg %p971
      $region114: #{concat_output_forward.1} parent=5 // pred_check_branch
        %974 = sbr.rel (%p972) target = $region116
      $region115: #{concat_output_forward.1} parent=5 // pred_region
        // Predicated region
        $region117: #{concat_output_forward.1} parent=115 // pred_check
          %p975 = pneg %p96
        $region118: #{concat_output_forward.1} parent=115 // pred_check_branch
          %977 = sbr.rel (%p975) target = $region120
        $region119: #{concat_output_forward.1} parent=115 // pred_region
          %p978 = scmp.lt.s32.totalorder %s76, 1
          %s979 = scalar_select %p978, %s76, 1
          %s980 = smul.addr %s979, 2
          %s981 = scalar_lea.vmem %s1, %s980
        $region120: #{concat_output_forward.1} parent=115 // pred_fallthru
          _
        // Predicated region
        $region121: #{concat_output_forward.1} parent=115 // pred_check
          %p982 = pneg %p122
        $region122: #{concat_output_forward.1} parent=115 // pred_check_branch
          %984 = sbr.rel (%p982) target = $region124
        $region123: #{concat_output_forward.1} parent=115 // pred_region
          %p985 = scmp.lt.s32.totalorder %s76, 1
          %s986 = scalar_select %p985, %s76, 1
          %s987 = smul.addr %s986, 4
          %s988 = scalar_lea.vmem %s3, %s987
        $region124: #{concat_output_forward.1} parent=115 // pred_fallthru
          _
        // Predicated region
        $region125: #{concat_output_forward.1} parent=115 // pred_check
          %p989 = pneg %p148
        $region126: #{concat_output_forward.1} parent=115 // pred_check_branch
          %991 = sbr.rel (%p989) target = $region128
        $region127: #{concat_output_forward.1} parent=115 // pred_region
          %p992 = scmp.lt.s32.totalorder %s76, 1
          %s993 = scalar_select %p992, %s76, 1
          %s994 = smul.addr %s993, 8
          %s995 = scalar_lea.vmem %s5, %s994
        $region128: #{concat_output_forward.1} parent=115 // pred_fallthru
          _
        // Predicated region
        $region129: #{concat_output_forward.1} parent=115 // pred_check
          %p996 = pneg %p174
        $region130: #{concat_output_forward.1} parent=115 // pred_check_branch
          %998 = sbr.rel (%p996) target = $region132
        $region131: #{concat_output_forward.1} parent=115 // pred_region
          %p999 = scmp.lt.s32.totalorder %s76, 1
          %s1000 = scalar_select %p999, %s76, 1
          %s1001 = smul.addr %s1000, 4
          %s1002 = smul.addr %s1001, 8
          %s1003 = scalar_lea.vmem %s7, %s1002
        $region132: #{concat_output_forward.1} parent=115 // pred_fallthru
          _
      $region116: #{concat_output_forward.1} parent=5 // pred_fallthru
        _
      %p1004 = scmp.le.s32.totalorder 1, %s76
      %p1005 = scmp.lt.s32.totalorder %s76, 3
      %p1006 = pnand %p1004, %p1005
      %p1007 = pneg %p1006
      // Predicated region
      $region133: #{concat_output_forward.1} parent=5 // pred_check
        _
      $region134: #{concat_output_forward.1} parent=5 // pred_check_branch
        %1009 = sbr.rel (%p1006) target = $region136
      $region135: #{concat_output_forward.1} parent=5 // pred_region
        %s1010 = ssub.s32 %s76, 1
        // Predicated region
        $region137: #{concat_output_forward.1} parent=135 // pred_check
          %p1011 = pneg %p243
        $region138: #{concat_output_forward.1} parent=135 // pred_check_branch
          %1013 = sbr.rel (%p1011) target = $region140
        $region139: #{concat_output_forward.1} parent=135 // pred_region
          %1014 = dma.done [#allocation4], 3072
        $region140: #{concat_output_forward.1} parent=135 // pred_fallthru
          _
        // Predicated region
        $region141: #{concat_output_forward.1} parent=135 // pred_check
          %p1015 = pneg %p264
        $region142: #{concat_output_forward.1} parent=135 // pred_check_branch
          %1017 = sbr.rel (%p1015) target = $region144
        $region143: #{concat_output_forward.1} parent=135 // pred_region
          %1018 = dma.done [#allocation6], 16
        $region144: #{concat_output_forward.1} parent=135 // pred_fallthru
          _
        // Predicated region
        $region145: #{concat_output_forward.1} parent=135 // pred_check
          %p1019 = pneg %p285
        $region146: #{concat_output_forward.1} parent=135 // pred_check_branch
          %1021 = sbr.rel (%p1019) target = $region148
        $region147: #{concat_output_forward.1} parent=135 // pred_region
          %1022 = dma.done [#allocation6], 3072
        $region148: #{concat_output_forward.1} parent=135 // pred_fallthru
          _
        // Predicated region
        $region149: #{concat_output_forward.1} parent=135 // pred_check
          %p1023 = pneg %p306
        $region150: #{concat_output_forward.1} parent=135 // pred_check_branch
          %1025 = sbr.rel (%p1023) target = $region152
        $region151: #{concat_output_forward.1} parent=135 // pred_region
          %1026 = dma.done [#allocation9], 3072
        $region152: #{concat_output_forward.1} parent=135 // pred_fallthru
          _
        // Predicated region
        $region153: #{concat_output_forward.1} parent=135 // pred_check
          %p1027 = pneg %p327
        $region154: #{concat_output_forward.1} parent=135 // pred_check_branch
          %1029 = sbr.rel (%p1027) target = $region156
        $region155: #{concat_output_forward.1} parent=135 // pred_region
          %1030 = dma.done [#allocation9], 16
        $region156: #{concat_output_forward.1} parent=135 // pred_fallthru
          _
        // Predicated region
        $region157: #{concat_output_forward.1} parent=135 // pred_check
          %p1031 = pneg %p369
        $region158: #{concat_output_forward.1} parent=135 // pred_check_branch
          %1033 = sbr.rel (%p1031) target = $region160
        $region159: #{concat_output_forward.1} parent=135 // pred_region
          %1034 = dma.done [#allocation12], 1024
        $region160: #{concat_output_forward.1} parent=135 // pred_fallthru
          _
        // Predicated region
        $region161: #{concat_output_forward.1} parent=135 // pred_check
          %p1035 = pneg %p411
        $region162: #{concat_output_forward.1} parent=135 // pred_check_branch
          %1037 = sbr.rel (%p1035) target = $region164
        $region163: #{concat_output_forward.1} parent=135 // pred_region
          %1038 = dma.done [#allocation12], 16
        $region164: #{concat_output_forward.1} parent=135 // pred_fallthru
          _
        // Predicated region
        $region165: #{concat_output_forward.1} parent=135 // pred_check
          %p1039 = pneg %p432
        $region166: #{concat_output_forward.1} parent=135 // pred_check_branch
          %1041 = sbr.rel (%p1039) target = $region168
        $region167: #{concat_output_forward.1} parent=135 // pred_region
          %1042 = dma.done [#allocation15], 6144
        $region168: #{concat_output_forward.1} parent=135 // pred_fallthru
          _
        // Predicated region
        $region169: #{concat_output_forward.1} parent=135 // pred_check
          %p1043 = pneg %p453
        $region170: #{concat_output_forward.1} parent=135 // pred_check_branch
          %1045 = sbr.rel (%p1043) target = $region172
        $region171: #{concat_output_forward.1} parent=135 // pred_region
          %1046 = dma.done [#allocation15], 6144
        $region172: #{concat_output_forward.1} parent=135 // pred_fallthru
          _
        // Predicated region
        $region173: #{concat_output_forward.1} parent=135 // pred_check
          %p1047 = pneg %p474
        $region174: #{concat_output_forward.1} parent=135 // pred_check_branch
          %1049 = sbr.rel (%p1047) target = $region176
        $region175: #{concat_output_forward.1} parent=135 // pred_region
          %1050 = dma.done [#allocation18], 16
        $region176: #{concat_output_forward.1} parent=135 // pred_fallthru
          _
        // Predicated region
        $region177: #{concat_output_forward.1} parent=135 // pred_check
          %p1051 = pneg %p516
        $region178: #{concat_output_forward.1} parent=135 // pred_check_branch
          %1053 = sbr.rel (%p1051) target = $region180
        $region179: #{concat_output_forward.1} parent=135 // pred_region
          %1054 = dma.done [#allocation18], 4096
        $region180: #{concat_output_forward.1} parent=135 // pred_fallthru
          _
        // Predicated region
        $region181: #{concat_output_forward.1} parent=135 // pred_check
          %p1055 = pneg %p579
        $region182: #{concat_output_forward.1} parent=135 // pred_check_branch
          %1057 = sbr.rel (%p1055) target = $region184
        $region183: #{concat_output_forward.1} parent=135 // pred_region
          %1058 = dma.done [#allocation21], 24576
        $region184: #{concat_output_forward.1} parent=135 // pred_fallthru
          _
        // Predicated region
        $region185: #{concat_output_forward.1} parent=135 // pred_check
          %p1059 = pneg %p600
        $region186: #{concat_output_forward.1} parent=135 // pred_check_branch
          %1061 = sbr.rel (%p1059) target = $region188
        $region187: #{concat_output_forward.1} parent=135 // pred_region
          %1062 = dma.done [#allocation21], 24576
        $region188: #{concat_output_forward.1} parent=135 // pred_fallthru
          _
        // Predicated region
        $region189: #{concat_output_forward.1} parent=135 // pred_check
          %p1063 = pneg %p642
        $region190: #{concat_output_forward.1} parent=135 // pred_check_branch
          %1065 = sbr.rel (%p1063) target = $region192
        $region191: #{concat_output_forward.1} parent=135 // pred_region
          %1066 = dma.done [#allocation24], 24576
        $region192: #{concat_output_forward.1} parent=135 // pred_fallthru
          _
        // Predicated region
        $region193: #{concat_output_forward.1} parent=135 // pred_check
          %p1067 = pneg %p663
        $region194: #{concat_output_forward.1} parent=135 // pred_check_branch
          %1069 = sbr.rel (%p1067) target = $region196
        $region195: #{concat_output_forward.1} parent=135 // pred_region
          %1070 = dma.done [#allocation24], 32
        $region196: #{concat_output_forward.1} parent=135 // pred_fallthru
          _
        // Predicated region
        $region197: #{concat_output_forward.1} parent=135 // pred_check
          %p1071 = pneg %p684
        $region198: #{concat_output_forward.1} parent=135 // pred_check_branch
          %1073 = sbr.rel (%p1071) target = $region200
        $region199: #{concat_output_forward.1} parent=135 // pred_region
          %1074 = dma.done [#allocation27], 4096
        $region200: #{concat_output_forward.1} parent=135 // pred_fallthru
          _
        %p1075 = scmp.lt.s32.totalorder %s81, 1
        %s1076 = scalar_select %p1075, %s81, 1
        %s1077 = smul.addr %s1076, 2
        %s1078 = scalar_lea.vmem %s1, %s1077
        %p1079 = pneg %p102
        %p1080 = pneg %p99
        %p1081 = scmp.lt.s32.totalorder %s81, 1
        %s1082 = scalar_select %p1081, %s81, 1
        %s1083 = smul.addr %s1082, 4
        %s1084 = scalar_lea.vmem %s3, %s1083
        %p1085 = pneg %p128
        %p1086 = pneg %p125
        %p1087 = scmp.lt.s32.totalorder %s81, 1
        %s1088 = scalar_select %p1087, %s81, 1
        %s1089 = smul.addr %s1088, 8
        %s1090 = scalar_lea.vmem %s5, %s1089
        %p1091 = pneg %p154
        %p1092 = pneg %p151
        %p1093 = scmp.lt.s32.totalorder %s81, 1
        %s1094 = scalar_select %p1093, %s81, 1
        %s1095 = smul.addr %s1094, 4
        %s1096 = smul.addr %s1095, 8
        %s1097 = scalar_lea.vmem %s7, %s1096
        %p1098 = pneg %p180
        %p1099 = pneg %p177
        %p1100 = pneg %p201
        %p1101 = pneg %p198
        %p1102 = pneg %p222
        %p1103 = pneg %p219
        %p1104 = pneg %p243
        %p1105 = pneg %p240
        %p1106 = pneg %p264
        %p1107 = pneg %p261
        %p1108 = pneg %p285
        %p1109 = pneg %p282
        %p1110 = pneg %p306
        %p1111 = pneg %p303
        %p1112 = pneg %p327
        %p1113 = pneg %p324
        %p1114 = pneg %p348
        %p1115 = pneg %p345
        %p1116 = pneg %p369
        %p1117 = pneg %p366
        %p1118 = pneg %p390
        %p1119 = pneg %p387
        %p1120 = pneg %p411
        %p1121 = pneg %p408
        %p1122 = pneg %p432
        %p1123 = pneg %p429
        %p1124 = pneg %p453
        %p1125 = pneg %p450
        %p1126 = pneg %p474
        %p1127 = pneg %p471
        %p1128 = pneg %p495
        %p1129 = pneg %p492
        %p1130 = pneg %p516
        %p1131 = pneg %p513
        %p1132 = pneg %p537
        %p1133 = pneg %p534
        %p1134 = pneg %p558
        %p1135 = pneg %p555
        %p1136 = pneg %p579
        %p1137 = pneg %p576
        %p1138 = pneg %p600
        %p1139 = pneg %p597
        %p1140 = pneg %p621
        %p1141 = pneg %p618
        %p1142 = pneg %p642
        %p1143 = pneg %p639
        %p1144 = pneg %p663
        %p1145 = pneg %p660
        %p1146 = pneg %p684
        %p1147 = pneg %p681
        %p1148 = pneg %p705
        %p1149 = pneg %p702
        %p1150 = pneg %p731
        %p1151 = pneg %p728
        %p1152 = scmp.lt.s32.totalorder %s81, 1
        %s1153 = scalar_select %p1152, %s81, 1
        %s1154 = smul.addr %s1153, 2
        %s1155 = smul.addr %s1154, 8
        %s1156 = scalar_lea.vmem %s59, %s1155
        %p1157 = scmp.lt.s32.totalorder %s81, 1
        %s1158 = scalar_select %p1157, %s81, 1
        %s1159 = smul.addr %s1158, 2
        %s1160 = scalar_lea.vmem %s1, %s1159
        %p1161 = scmp.lt.s32.totalorder %s81, 1
        %s1162 = scalar_select %p1161, %s81, 1
        %s1163 = smul.addr %s1162, 4
        %s1164 = scalar_lea.vmem %s3, %s1163
        %p1165 = scmp.lt.s32.totalorder %s81, 1
        %s1166 = scalar_select %p1165, %s81, 1
        %s1167 = smul.addr %s1166, 8
        %s1168 = scalar_lea.vmem %s5, %s1167
        %p1169 = scmp.lt.s32.totalorder %s81, 1
        %s1170 = scalar_select %p1169, %s81, 1
        %s1171 = smul.addr %s1170, 4
        %s1172 = smul.addr %s1171, 8
        %s1173 = scalar_lea.vmem %s7, %s1172
        %p1174 = scmp.lt.s32.totalorder %s81, 1
        %s1175 = scalar_select %p1174, %s81, 1
        %s1176 = smul.addr %s1175, 2
        %s1177 = smul.addr %s1176, 8
        %s1178 = scalar_lea.vmem %s59, %s1177
        %v1179 = vlaneseq
        %v1180 = vshrl.u32 %v1179, 7
        %v1181 = vlaneseq
        %v1182 = vand.u32 %v1181, 127
        %v1183 = vadd.s32 %v1182, 1
        %vm1184 = vcmp.eq.s32.totalorder %v1180, %v1183
        %v1185 = vsel %vm1184, 1, 0
        %v1186 = vcvt.s32.f32 %v1185
        %v1187 = vadd.s32 %v1180, 1
        %vm1188 = vcmp.eq.s32.totalorder %v1182, %v1187
        %v1189 = vsel %vm1188, 1, 0
        %v1190 = vcvt.s32.f32 %v1189
        %v1191 = vadd.s32 %v1180, 8
        %vm1192 = vcmp.eq.s32.totalorder %v1191, %v1183
        %v1193 = vsel %vm1192, 1, 0
        %v1194 = vcvt.s32.f32 %v1193
        %v1195 = vadd.s32 %v1191, 1
        %vm1196 = vcmp.eq.s32.totalorder %v1182, %v1195
        %v1197 = vsel %vm1196, 1, 0
        %v1198 = vcvt.s32.f32 %v1197
        %v1199 = vld [vmem:[%s1160] sm:$0x3]
        %v1200 = vld [vmem:[%s1164] sm:$0xf]
        %v1201 = vld [vmem:[%s11] sm:$0xff]
        %v1202 = vld [vmem:[%s11 + $0x8] sm:$0xff]
        %v1203 = vld [vmem:[%s11 + $0x10] sm:$0xff]
        %v1204 = vld [vmem:[%s11 + $0x18] sm:$0xff]
        %vm1205 = vcmask 261120
        %v1207 = vsel %vm1205, %v1199, 0
        %1209 = vmatprep.subr.mxu0 0.0
        %1210 = vmatpush1.msra.mxu0 %v1201
        %1211 = vmatprep.subr.mxu0 0.0
        %1212 = vmatpush1.msra.mxu0 %v1202
        %1213 = vmatprep.subr.mxu0 0.0
        %1214 = vmatpush1.msra.mxu0 %v1203
        %1215 = vmatprep.subr.mxu0 0.0
        %1216 = vmatpush1.msra.mxu0 %v1204
        %1217 = vmatprep.subr.mxu0 0.0
        %1218 = vmatpush1.msra.mxu0 0.0
        %1219 = vmatprep.subr.mxu0 0.0
        %1220 = vmatpush1.msra.mxu0 0.0
        %1221 = vmatprep.subr.mxu0 0.0
        %1222 = vmatpush1.msra.mxu0 0.0
        %1223 = vmatprep.subr.mxu0 0.0
        %1224 = vmatpush1.msra.mxu0 0.0
        %1225 = vmatprep.subr.mxu0 0.0
        %1226 = vmatpush1.msra.mxu0 0.0
        %1227 = vmatprep.subr.mxu0 0.0
        %1228 = vmatpush1.msra.mxu0 0.0
        %1229 = vmatprep.subr.mxu0 0.0
        %1230 = vmatpush1.msra.mxu0 0.0
        %1231 = vmatprep.subr.mxu0 0.0
        %1232 = vmatpush1.msra.mxu0 0.0
        %1233 = vmatprep.subr.mxu0 0.0
        %1234 = vmatpush1.msra.mxu0 0.0
        %1235 = vmatprep.subr.mxu0 0.0
        %1236 = vmatpush1.msra.mxu0 0.0
        %1237 = vmatprep.subr.mxu0 0.0
        %1238 = vmatpush1.msra.mxu0 0.0
        %1239 = vmatprep.subr.mxu0 0.0
        %1240 = vmatpush1.msra.mxu0 0.0
        %1241 = vmatprep.subr.mxu0 0.0
        %1242 = vmatpush1.msra.mxu0 0.0
        %1243 = vmatprep.subr.mxu0 0.0
        %1244 = vmatpush1.msra.mxu0 0.0
        %1245 = vmatprep.subr.mxu0 0.0
        %1246 = vmatpush1.msra.mxu0 0.0
        %1247 = vmatprep.subr.mxu0 0.0
        %1248 = vmatpush1.msra.mxu0 0.0
        %1249 = vmatprep.subr.mxu0 0.0
        %1250 = vmatpush1.msra.mxu0 0.0
        %1251 = vmatprep.subr.mxu0 0.0
        %1252 = vmatpush1.msra.mxu0 0.0
        %1253 = vmatprep.subr.mxu0 0.0
        %1254 = vmatpush1.msra.mxu0 0.0
        %1255 = vmatprep.subr.mxu0 0.0
        %1256 = vmatpush1.msra.mxu0 0.0
        %1257 = vmatprep.subr.mxu0 0.0
        %1258 = vmatpush1.msra.mxu0 0.0
        %1259 = vmatprep.subr.mxu0 0.0
        %1260 = vmatpush1.msra.mxu0 0.0
        %1261 = vmatprep.subr.mxu0 0.0
        %1262 = vmatpush1.msra.mxu0 0.0
        %1263 = vmatprep.subr.mxu0 0.0
        %1264 = vmatpush1.msra.mxu0 0.0
        %1265 = vmatprep.subr.mxu0 0.0
        %1266 = vmatpush1.msra.mxu0 0.0
        %1267 = vmatprep.subr.mxu0 0.0
        %1268 = vmatpush1.msra.mxu0 0.0
        %1269 = vmatprep.subr.mxu0 0.0
        %1270 = vmatpush1.msra.mxu0 0.0
        %1271 = vmatprep.subr.mxu0 0.0
        %1272 = vmatpush1.msra.mxu0 0.0
        %1273 = vmatprep.mubr.f32.mxu0 0.0
        %1274 = vmatmul.mubr.f32.gmra.mrb[0].mxu0 %v1207
        %v1275 = vpop.f32.mrb[0].mxu0
        %v1276 = vadd.f32 0.0, %v1275
        %v1277 = vpop.f32.mrb[0].mxu0
        %1278 = vdwg.mxu0
        %v1279 = vld [vmem:[%s9] sm:$0xf]
        %vm1280 = vcmask 15360
        %v1282 = vsel %vm1280, %v1279, 0
        %vm1284 = vcmask 1041408
        %v1286 = vsel %vm1284, %v1276, 0
        %1288 = vmatprep.subr.mxu0 0.0
        %1289 = vmatpush1.msra.mxu0 %v1286
        %1290 = vmatprep.subr.mxu0 0.0
        %1291 = vmatpush1.msra.mxu0 0.0
        %1292 = vmatprep.subr.mxu0 0.0
        %1293 = vmatpush1.msra.mxu0 0.0
        %1294 = vmatprep.subr.mxu0 0.0
        %1295 = vmatpush1.msra.mxu0 0.0
        %1296 = vmatprep.subr.mxu0 0.0
        %1297 = vmatpush1.msra.mxu0 0.0
        %1298 = vmatprep.subr.mxu0 0.0
        %1299 = vmatpush1.msra.mxu0 0.0
        %1300 = vmatprep.subr.mxu0 0.0
        %1301 = vmatpush1.msra.mxu0 0.0
        %1302 = vmatprep.subr.mxu0 0.0
        %1303 = vmatpush1.msra.mxu0 0.0
        %1304 = vmatprep.subr.mxu0 0.0
        %1305 = vmatpush1.msra.mxu0 0.0
        %1306 = vmatprep.subr.mxu0 0.0
        %1307 = vmatpush1.msra.mxu0 0.0
        %1308 = vmatprep.subr.mxu0 0.0
        %1309 = vmatpush1.msra.mxu0 0.0
        %1310 = vmatprep.subr.mxu0 0.0
        %1311 = vmatpush1.msra.mxu0 0.0
        %1312 = vmatprep.subr.mxu0 0.0
        %1313 = vmatpush1.msra.mxu0 0.0
        %1314 = vmatprep.subr.mxu0 0.0
        %1315 = vmatpush1.msra.mxu0 0.0
        %1316 = vmatprep.subr.mxu0 0.0
        %1317 = vmatpush1.msra.mxu0 0.0
        %1318 = vmatprep.subr.mxu0 0.0
        %1319 = vmatpush1.msra.mxu0 0.0
        %1320 = vmatprep.subr.mxu0 0.0
        %1321 = vmatpush1.msra.mxu0 0.0
        %1322 = vmatprep.subr.mxu0 0.0
        %1323 = vmatpush1.msra.mxu0 0.0
        %1324 = vmatprep.subr.mxu0 0.0
        %1325 = vmatpush1.msra.mxu0 0.0
        %1326 = vmatprep.subr.mxu0 0.0
        %1327 = vmatpush1.msra.mxu0 0.0
        %1328 = vmatprep.subr.mxu0 0.0
        %1329 = vmatpush1.msra.mxu0 0.0
        %1330 = vmatprep.subr.mxu0 0.0
        %1331 = vmatpush1.msra.mxu0 0.0
        %1332 = vmatprep.subr.mxu0 0.0
        %1333 = vmatpush1.msra.mxu0 0.0
        %1334 = vmatprep.subr.mxu0 0.0
        %1335 = vmatpush1.msra.mxu0 0.0
        %1336 = vmatprep.subr.mxu0 0.0
        %1337 = vmatpush1.msra.mxu0 0.0
        %1338 = vmatprep.subr.mxu0 0.0
        %1339 = vmatpush1.msra.mxu0 0.0
        %1340 = vmatprep.subr.mxu0 0.0
        %1341 = vmatpush1.msra.mxu0 0.0
        %1342 = vmatprep.subr.mxu0 0.0
        %1343 = vmatpush1.msra.mxu0 0.0
        %1344 = vmatprep.subr.mxu0 0.0
        %1345 = vmatpush1.msra.mxu0 0.0
        %1346 = vmatprep.subr.mxu0 0.0
        %1347 = vmatpush1.msra.mxu0 0.0
        %1348 = vmatprep.subr.mxu0 0.0
        %1349 = vmatpush1.msra.mxu0 0.0
        %1350 = vmatprep.subr.mxu0 0.0
        %1351 = vmatpush1.msra.mxu0 0.0
        %1352 = vmatprep.mubr.f32.mxu0 0.0
        %1353 = vmatmul.mubr.f32.gmra.mrb[0].mxu0 %v1282
        %v1354 = vpop.f32.mrb[0].mxu0
        %v1355 = vadd.f32 0.0, %v1354
        %v1356 = vpop.f32.mrb[0].mxu0
        %1357 = vdwg.mxu0
        %v1358 = vld [vmem:[#allocation3] sm:$0xff]
        %v1359 = vld [vmem:[#allocation3 + $0x8] sm:$0xff]
        %v1360 = vld [vmem:[#allocation3 + $0x10] sm:$0xff]
        %v1361 = vld [vmem:[#allocation3 + $0x18] sm:$0xff]
        %v1362 = vld [vmem:[#allocation3 + $0x20] sm:$0xff]
        %v1363 = vld [vmem:[#allocation3 + $0x28] sm:$0xff]
        %v1364 = vld [vmem:[#allocation3 + $0x30] sm:$0xff]
        %v1365 = vld [vmem:[#allocation3 + $0x38] sm:$0xff]
        %s1366 = scalar_lea.vmem %s9, 4
        %v1367 = vld [vmem:[%s1366] sm:$0xf]
        %v1369 = vsel %vm1280, %v1367, 0
        %1371 = vmatprep.subr.mxu0 0.0
        %1372 = vmatpush1.msra.mxu0 %v1286
        %1373 = vmatprep.subr.mxu0 0.0
        %1374 = vmatpush1.msra.mxu0 0.0
        %1375 = vmatprep.subr.mxu0 0.0
        %1376 = vmatpush1.msra.mxu0 0.0
        %1377 = vmatprep.subr.mxu0 0.0
        %1378 = vmatpush1.msra.mxu0 0.0
        %1379 = vmatprep.subr.mxu0 0.0
        %1380 = vmatpush1.msra.mxu0 0.0
        %1381 = vmatprep.subr.mxu0 0.0
        %1382 = vmatpush1.msra.mxu0 0.0
        %1383 = vmatprep.subr.mxu0 0.0
        %1384 = vmatpush1.msra.mxu0 0.0
        %1385 = vmatprep.subr.mxu0 0.0
        %1386 = vmatpush1.msra.mxu0 0.0
        %1387 = vmatprep.subr.mxu0 0.0
        %1388 = vmatpush1.msra.mxu0 0.0
        %1389 = vmatprep.subr.mxu0 0.0
        %1390 = vmatpush1.msra.mxu0 0.0
        %1391 = vmatprep.subr.mxu0 0.0
        %1392 = vmatpush1.msra.mxu0 0.0
        %1393 = vmatprep.subr.mxu0 0.0
        %1394 = vmatpush1.msra.mxu0 0.0
        %1395 = vmatprep.subr.mxu0 0.0
        %1396 = vmatpush1.msra.mxu0 0.0
        %1397 = vmatprep.subr.mxu0 0.0
        %1398 = vmatpush1.msra.mxu0 0.0
        %1399 = vmatprep.subr.mxu0 0.0
        %1400 = vmatpush1.msra.mxu0 0.0
        %1401 = vmatprep.subr.mxu0 0.0
        %1402 = vmatpush1.msra.mxu0 0.0
        %1403 = vmatprep.subr.mxu0 0.0
        %1404 = vmatpush1.msra.mxu0 0.0
        %1405 = vmatprep.subr.mxu0 0.0
        %1406 = vmatpush1.msra.mxu0 0.0
        %1407 = vmatprep.subr.mxu0 0.0
        %1408 = vmatpush1.msra.mxu0 0.0
        %1409 = vmatprep.subr.mxu0 0.0
        %1410 = vmatpush1.msra.mxu0 0.0
        %1411 = vmatprep.subr.mxu0 0.0
        %1412 = vmatpush1.msra.mxu0 0.0
        %1413 = vmatprep.subr.mxu0 0.0
        %1414 = vmatpush1.msra.mxu0 0.0
        %1415 = vmatprep.subr.mxu0 0.0
        %1416 = vmatpush1.msra.mxu0 0.0
        %1417 = vmatprep.subr.mxu0 0.0
        %1418 = vmatpush1.msra.mxu0 0.0
        %1419 = vmatprep.subr.mxu0 0.0
        %1420 = vmatpush1.msra.mxu0 0.0
        %1421 = vmatprep.subr.mxu0 0.0
        %1422 = vmatpush1.msra.mxu0 0.0
        %1423 = vmatprep.subr.mxu0 0.0
        %1424 = vmatpush1.msra.mxu0 0.0
        %1425 = vmatprep.subr.mxu0 0.0
        %1426 = vmatpush1.msra.mxu0 0.0
        %1427 = vmatprep.subr.mxu0 0.0
        %1428 = vmatpush1.msra.mxu0 0.0
        %1429 = vmatprep.subr.mxu0 0.0
        %1430 = vmatpush1.msra.mxu0 0.0
        %1431 = vmatprep.subr.mxu0 0.0
        %1432 = vmatpush1.msra.mxu0 0.0
        %1433 = vmatprep.subr.mxu0 0.0
        %1434 = vmatpush1.msra.mxu0 0.0
        %1435 = vmatprep.mubr.f32.mxu0 0.0
        %1436 = vmatmul.mubr.f32.gmra.mrb[0].mxu0 %v1369
        %v1437 = vpop.f32.mrb[0].mxu0
        %v1438 = vadd.f32 0.0, %v1437
        %v1439 = vpop.f32.mrb[0].mxu0
        %1440 = vdwg.mxu0
        %s1441 = scalar_lea.vmem [#allocation3], 64
        %v1442 = vld [vmem:[%s1441] sm:$0xff]
        %v1443 = vld [vmem:[%s1441 + $0x8] sm:$0xff]
        %v1444 = vld [vmem:[%s1441 + $0x10] sm:$0xff]
        %v1445 = vld [vmem:[%s1441 + $0x18] sm:$0xff]
        %v1446 = vld [vmem:[%s1441 + $0x20] sm:$0xff]
        %v1447 = vld [vmem:[%s1441 + $0x28] sm:$0xff]
        %v1448 = vld [vmem:[%s1441 + $0x30] sm:$0xff]
        %v1449 = vld [vmem:[%s1441 + $0x38] sm:$0xff]
        %vm1450 = vcmask 523264
        %v1452 = vsel %vm1450, %v1438, 0
        %1454 = vmatprep.subr.mxu0 0.0
        %1455 = vmatpush1.msra.mxu0 %v1442
        %1456 = vmatprep.subr.mxu0 0.0
        %1457 = vmatpush1.msra.mxu0 %v1443
        %1458 = vmatprep.subr.mxu0 0.0
        %1459 = vmatpush1.msra.mxu0 %v1444
        %1460 = vmatprep.subr.mxu0 0.0
        %1461 = vmatpush1.msra.mxu0 %v1445
        %1462 = vmatprep.subr.mxu0 0.0
        %1463 = vmatpush1.msra.mxu0 %v1446
        %1464 = vmatprep.subr.mxu0 0.0
        %1465 = vmatpush1.msra.mxu0 %v1447
        %1466 = vmatprep.subr.mxu0 0.0
        %1467 = vmatpush1.msra.mxu0 %v1448
        %1468 = vmatprep.subr.mxu0 0.0
        %1469 = vmatpush1.msra.mxu0 %v1449
        %1470 = vmatprep.subr.mxu0 0.0
        %1471 = vmatpush1.msra.mxu0 0.0
        %1472 = vmatprep.subr.mxu0 0.0
        %1473 = vmatpush1.msra.mxu0 0.0
        %1474 = vmatprep.subr.mxu0 0.0
        %1475 = vmatpush1.msra.mxu0 0.0
        %1476 = vmatprep.subr.mxu0 0.0
        %1477 = vmatpush1.msra.mxu0 0.0
        %1478 = vmatprep.subr.mxu0 0.0
        %1479 = vmatpush1.msra.mxu0 0.0
        %1480 = vmatprep.subr.mxu0 0.0
        %1481 = vmatpush1.msra.mxu0 0.0
        %1482 = vmatprep.subr.mxu0 0.0
        %1483 = vmatpush1.msra.mxu0 0.0
        %1484 = vmatprep.subr.mxu0 0.0
        %1485 = vmatpush1.msra.mxu0 0.0
        %1486 = vmatprep.subr.mxu0 0.0
        %1487 = vmatpush1.msra.mxu0 0.0
        %1488 = vmatprep.subr.mxu0 0.0
        %1489 = vmatpush1.msra.mxu0 0.0
        %1490 = vmatprep.subr.mxu0 0.0
        %1491 = vmatpush1.msra.mxu0 0.0
        %1492 = vmatprep.subr.mxu0 0.0
        %1493 = vmatpush1.msra.mxu0 0.0
        %1494 = vmatprep.subr.mxu0 0.0
        %1495 = vmatpush1.msra.mxu0 0.0
        %1496 = vmatprep.subr.mxu0 0.0
        %1497 = vmatpush1.msra.mxu0 0.0
        %1498 = vmatprep.subr.mxu0 0.0
        %1499 = vmatpush1.msra.mxu0 0.0
        %1500 = vmatprep.subr.mxu0 0.0
        %1501 = vmatpush1.msra.mxu0 0.0
        %1502 = vmatprep.subr.mxu0 0.0
        %1503 = vmatpush1.msra.mxu0 0.0
        %1504 = vmatprep.subr.mxu0 0.0
        %1505 = vmatpush1.msra.mxu0 0.0
        %1506 = vmatprep.subr.mxu0 0.0
        %1507 = vmatpush1.msra.mxu0 0.0
        %1508 = vmatprep.subr.mxu0 0.0
        %1509 = vmatpush1.msra.mxu0 0.0
        %1510 = vmatprep.subr.mxu0 0.0
        %1511 = vmatpush1.msra.mxu0 0.0
        %1512 = vmatprep.subr.mxu0 0.0
        %1513 = vmatpush1.msra.mxu0 0.0
        %1514 = vmatprep.subr.mxu0 0.0
        %1515 = vmatpush1.msra.mxu0 0.0
        %1516 = vmatprep.subr.mxu0 0.0
        %1517 = vmatpush1.msra.mxu0 0.0
        %1518 = vmatprep.mubr.f32.mxu0 0.0
        %1519 = vmatmul.mubr.f32.gmra.mrb[0].mxu0 %v1452
        %v1520 = vpop.f32.mrb[0].mxu0
        %v1521 = vadd.f32 0.0, %v1520
        %v1522 = vpop.f32.mrb[0].mxu0
        %1523 = vdwg.mxu0
        %v1525 = vsel %vm1450, %v1355, 0
        %1527 = vmatprep.subr.mxu0 0.0
        %1528 = vmatpush1.msra.mxu0 %v1358
        %1529 = vmatprep.subr.mxu0 0.0
        %1530 = vmatpush1.msra.mxu0 %v1359
        %1531 = vmatprep.subr.mxu0 0.0
        %1532 = vmatpush1.msra.mxu0 %v1360
        %1533 = vmatprep.subr.mxu0 0.0
        %1534 = vmatpush1.msra.mxu0 %v1361
        %1535 = vmatprep.subr.mxu0 0.0
        %1536 = vmatpush1.msra.mxu0 %v1362
        %1537 = vmatprep.subr.mxu0 0.0
        %1538 = vmatpush1.msra.mxu0 %v1363
        %1539 = vmatprep.subr.mxu0 0.0
        %1540 = vmatpush1.msra.mxu0 %v1364
        %1541 = vmatprep.subr.mxu0 0.0
        %1542 = vmatpush1.msra.mxu0 %v1365
        %1543 = vmatprep.subr.mxu0 0.0
        %1544 = vmatpush1.msra.mxu0 0.0
        %1545 = vmatprep.subr.mxu0 0.0
        %1546 = vmatpush1.msra.mxu0 0.0
        %1547 = vmatprep.subr.mxu0 0.0
        %1548 = vmatpush1.msra.mxu0 0.0
        %1549 = vmatprep.subr.mxu0 0.0
        %1550 = vmatpush1.msra.mxu0 0.0
        %1551 = vmatprep.subr.mxu0 0.0
        %1552 = vmatpush1.msra.mxu0 0.0
        %1553 = vmatprep.subr.mxu0 0.0
        %1554 = vmatpush1.msra.mxu0 0.0
        %1555 = vmatprep.subr.mxu0 0.0
        %1556 = vmatpush1.msra.mxu0 0.0
        %1557 = vmatprep.subr.mxu0 0.0
        %1558 = vmatpush1.msra.mxu0 0.0
        %1559 = vmatprep.subr.mxu0 0.0
        %1560 = vmatpush1.msra.mxu0 0.0
        %1561 = vmatprep.subr.mxu0 0.0
        %1562 = vmatpush1.msra.mxu0 0.0
        %1563 = vmatprep.subr.mxu0 0.0
        %1564 = vmatpush1.msra.mxu0 0.0
        %1565 = vmatprep.subr.mxu0 0.0
        %1566 = vmatpush1.msra.mxu0 0.0
        %1567 = vmatprep.subr.mxu0 0.0
        %1568 = vmatpush1.msra.mxu0 0.0
        %1569 = vmatprep.subr.mxu0 0.0
        %1570 = vmatpush1.msra.mxu0 0.0
        %1571 = vmatprep.subr.mxu0 0.0
        %1572 = vmatpush1.msra.mxu0 0.0
        %1573 = vmatprep.subr.mxu0 0.0
        %1574 = vmatpush1.msra.mxu0 0.0
        %1575 = vmatprep.subr.mxu0 0.0
        %1576 = vmatpush1.msra.mxu0 0.0
        %1577 = vmatprep.subr.mxu0 0.0
        %1578 = vmatpush1.msra.mxu0 0.0
        %1579 = vmatprep.subr.mxu0 0.0
        %1580 = vmatpush1.msra.mxu0 0.0
        %1581 = vmatprep.subr.mxu0 0.0
        %1582 = vmatpush1.msra.mxu0 0.0
        %1583 = vmatprep.subr.mxu0 0.0
        %1584 = vmatpush1.msra.mxu0 0.0
        %1585 = vmatprep.subr.mxu0 0.0
        %1586 = vmatpush1.msra.mxu0 0.0
        %1587 = vmatprep.subr.mxu0 0.0
        %1588 = vmatpush1.msra.mxu0 0.0
        %1589 = vmatprep.subr.mxu0 0.0
        %1590 = vmatpush1.msra.mxu0 0.0
        %1591 = vmatprep.mubr.f32.mxu0 0.0
        %1592 = vmatmul.mubr.f32.gmra.mrb[0].mxu0 %v1525
        %v1593 = vpop.f32.mrb[0].mxu0
        %v1594 = vadd.f32 %v1521, %v1593
        %v1595 = vpop.f32.mrb[0].mxu0
        %1596 = vdwg.mxu0
        %s1597 = scalar_lea.vmem %s9, 8
        %v1598 = vld [vmem:[%s1597] sm:$0xf]
        %v1600 = vsel %vm1280, %v1598, 0
        %1602 = vmatprep.subr.mxu0 0.0
        %1603 = vmatpush1.msra.mxu0 %v1286
        %1604 = vmatprep.subr.mxu0 0.0
        %1605 = vmatpush1.msra.mxu0 0.0
        %1606 = vmatprep.subr.mxu0 0.0
        %1607 = vmatpush1.msra.mxu0 0.0
        %1608 = vmatprep.subr.mxu0 0.0
        %1609 = vmatpush1.msra.mxu0 0.0
        %1610 = vmatprep.subr.mxu0 0.0
        %1611 = vmatpush1.msra.mxu0 0.0
        %1612 = vmatprep.subr.mxu0 0.0
        %1613 = vmatpush1.msra.mxu0 0.0
        %1614 = vmatprep.subr.mxu0 0.0
        %1615 = vmatpush1.msra.mxu0 0.0
        %1616 = vmatprep.subr.mxu0 0.0
        %1617 = vmatpush1.msra.mxu0 0.0
        %1618 = vmatprep.subr.mxu0 0.0
        %1619 = vmatpush1.msra.mxu0 0.0
        %1620 = vmatprep.subr.mxu0 0.0
        %1621 = vmatpush1.msra.mxu0 0.0
        %1622 = vmatprep.subr.mxu0 0.0
        %1623 = vmatpush1.msra.mxu0 0.0
        %1624 = vmatprep.subr.mxu0 0.0
        %1625 = vmatpush1.msra.mxu0 0.0
        %1626 = vmatprep.subr.mxu0 0.0
        %1627 = vmatpush1.msra.mxu0 0.0
        %1628 = vmatprep.subr.mxu0 0.0
        %1629 = vmatpush1.msra.mxu0 0.0
        %1630 = vmatprep.subr.mxu0 0.0
        %1631 = vmatpush1.msra.mxu0 0.0
        %1632 = vmatprep.subr.mxu0 0.0
        %1633 = vmatpush1.msra.mxu0 0.0
        %1634 = vmatprep.subr.mxu0 0.0
        %1635 = vmatpush1.msra.mxu0 0.0
        %1636 = vmatprep.subr.mxu0 0.0
        %1637 = vmatpush1.msra.mxu0 0.0
        %1638 = vmatprep.subr.mxu0 0.0
        %1639 = vmatpush1.msra.mxu0 0.0
        %1640 = vmatprep.subr.mxu0 0.0
        %1641 = vmatpush1.msra.mxu0 0.0
        %1642 = vmatprep.subr.mxu0 0.0
        %1643 = vmatpush1.msra.mxu0 0.0
        %1644 = vmatprep.subr.mxu0 0.0
        %1645 = vmatpush1.msra.mxu0 0.0
        %1646 = vmatprep.subr.mxu0 0.0
        %1647 = vmatpush1.msra.mxu0 0.0
        %1648 = vmatprep.subr.mxu0 0.0
        %1649 = vmatpush1.msra.mxu0 0.0
        %1650 = vmatprep.subr.mxu0 0.0
        %1651 = vmatpush1.msra.mxu0 0.0
        %1652 = vmatprep.subr.mxu0 0.0
        %1653 = vmatpush1.msra.mxu0 0.0
        %1654 = vmatprep.subr.mxu0 0.0
        %1655 = vmatpush1.msra.mxu0 0.0
        %1656 = vmatprep.subr.mxu0 0.0
        %1657 = vmatpush1.msra.mxu0 0.0
        %1658 = vmatprep.subr.mxu0 0.0
        %1659 = vmatpush1.msra.mxu0 0.0
        %1660 = vmatprep.subr.mxu0 0.0
        %1661 = vmatpush1.msra.mxu0 0.0
        %1662 = vmatprep.subr.mxu0 0.0
        %1663 = vmatpush1.msra.mxu0 0.0
        %1664 = vmatprep.subr.mxu0 0.0
        %1665 = vmatpush1.msra.mxu0 0.0
        %1666 = vmatprep.mubr.f32.mxu0 0.0
        %1667 = vmatmul.mubr.f32.gmra.mrb[0].mxu0 %v1600
        %v1668 = vpop.f32.mrb[0].mxu0
        %v1669 = vadd.f32 0.0, %v1668
        %v1670 = vpop.f32.mrb[0].mxu0
        %1671 = vdwg.mxu0
        %s1672 = scalar_lea.vmem [#allocation3], 128
        %v1673 = vld [vmem:[%s1672] sm:$0xff]
        %v1674 = vld [vmem:[%s1672 + $0x8] sm:$0xff]
        %v1675 = vld [vmem:[%s1672 + $0x10] sm:$0xff]
        %v1676 = vld [vmem:[%s1672 + $0x18] sm:$0xff]
        %v1677 = vld [vmem:[%s1672 + $0x20] sm:$0xff]
        %v1678 = vld [vmem:[%s1672 + $0x28] sm:$0xff]
        %v1679 = vld [vmem:[%s1672 + $0x30] sm:$0xff]
        %v1680 = vld [vmem:[%s1672 + $0x38] sm:$0xff]
        %v1682 = vsel %vm1450, %v1669, 0
        %1684 = vmatprep.subr.mxu0 0.0
        %1685 = vmatpush1.msra.mxu0 %v1673
        %1686 = vmatprep.subr.mxu0 0.0
        %1687 = vmatpush1.msra.mxu0 %v1674
        %1688 = vmatprep.subr.mxu0 0.0
        %1689 = vmatpush1.msra.mxu0 %v1675
        %1690 = vmatprep.subr.mxu0 0.0
        %1691 = vmatpush1.msra.mxu0 %v1676
        %1692 = vmatprep.subr.mxu0 0.0
        %1693 = vmatpush1.msra.mxu0 %v1677
        %1694 = vmatprep.subr.mxu0 0.0
        %1695 = vmatpush1.msra.mxu0 %v1678
        %1696 = vmatprep.subr.mxu0 0.0
        %1697 = vmatpush1.msra.mxu0 %v1679
        %1698 = vmatprep.subr.mxu0 0.0
        %1699 = vmatpush1.msra.mxu0 %v1680
        %1700 = vmatprep.subr.mxu0 0.0
        %1701 = vmatpush1.msra.mxu0 0.0
        %1702 = vmatprep.subr.mxu0 0.0
        %1703 = vmatpush1.msra.mxu0 0.0
        %1704 = vmatprep.subr.mxu0 0.0
        %1705 = vmatpush1.msra.mxu0 0.0
        %1706 = vmatprep.subr.mxu0 0.0
        %1707 = vmatpush1.msra.mxu0 0.0
        %1708 = vmatprep.subr.mxu0 0.0
        %1709 = vmatpush1.msra.mxu0 0.0
        %1710 = vmatprep.subr.mxu0 0.0
        %1711 = vmatpush1.msra.mxu0 0.0
        %1712 = vmatprep.subr.mxu0 0.0
        %1713 = vmatpush1.msra.mxu0 0.0
        %1714 = vmatprep.subr.mxu0 0.0
        %1715 = vmatpush1.msra.mxu0 0.0
        %1716 = vmatprep.subr.mxu0 0.0
        %1717 = vmatpush1.msra.mxu0 0.0
        %1718 = vmatprep.subr.mxu0 0.0
        %1719 = vmatpush1.msra.mxu0 0.0
        %1720 = vmatprep.subr.mxu0 0.0
        %1721 = vmatpush1.msra.mxu0 0.0
        %1722 = vmatprep.subr.mxu0 0.0
        %1723 = vmatpush1.msra.mxu0 0.0
        %1724 = vmatprep.subr.mxu0 0.0
        %1725 = vmatpush1.msra.mxu0 0.0
        %1726 = vmatprep.subr.mxu0 0.0
        %1727 = vmatpush1.msra.mxu0 0.0
        %1728 = vmatprep.subr.mxu0 0.0
        %1729 = vmatpush1.msra.mxu0 0.0
        %1730 = vmatprep.subr.mxu0 0.0
        %1731 = vmatpush1.msra.mxu0 0.0
        %1732 = vmatprep.subr.mxu0 0.0
        %1733 = vmatpush1.msra.mxu0 0.0
        %1734 = vmatprep.subr.mxu0 0.0
        %1735 = vmatpush1.msra.mxu0 0.0
        %1736 = vmatprep.subr.mxu0 0.0
        %1737 = vmatpush1.msra.mxu0 0.0
        %1738 = vmatprep.subr.mxu0 0.0
        %1739 = vmatpush1.msra.mxu0 0.0
        %1740 = vmatprep.subr.mxu0 0.0
        %1741 = vmatpush1.msra.mxu0 0.0
        %1742 = vmatprep.subr.mxu0 0.0
        %1743 = vmatpush1.msra.mxu0 0.0
        %1744 = vmatprep.subr.mxu0 0.0
        %1745 = vmatpush1.msra.mxu0 0.0
        %1746 = vmatprep.subr.mxu0 0.0
        %1747 = vmatpush1.msra.mxu0 0.0
        %1748 = vmatprep.mubr.f32.mxu0 0.0
        %1749 = vmatmul.mubr.f32.gmra.mrb[0].mxu0 %v1682
        %v1750 = vpop.f32.mrb[0].mxu0
        %v1751 = vadd.f32 0.0, %v1750
        %v1752 = vpop.f32.mrb[0].mxu0
        %1753 = vdwg.mxu0
        %v1754 = vadd.f32 %v1594, %v1751
        %v1755 = vld [vmem:[#allocation5] sm:$0x1]
        %v1757 = vlaneseq
        %v1758 = vshrl.u32 %v1757, 7
        %v1759 = vsub.s32 0, %v1758
        %v1760 = vrot.slane %v1755, %v1759
        %v1762 = vadd.f32 %v1754, %v1760
        %v1763 = vmax.f32 %v1762, 0.0
        %vm1764 = vcmask 31744
        %v1766 = vsel %vm1764, %v1186, 0
        %vm1768 = vcmask 1043456
        %v1770 = vsel %vm1768, %v1200, 0
        %1772 = vmatprep.subr.mxu0 0.0
        %1773 = vmatpush1.msra.mxu0 %v1770
        %1774 = vmatprep.subr.mxu0 0.0
        %1775 = vmatpush1.msra.mxu0 0.0
        %1776 = vmatprep.subr.mxu0 0.0
        %1777 = vmatpush1.msra.mxu0 0.0
        %1778 = vmatprep.subr.mxu0 0.0
        %1779 = vmatpush1.msra.mxu0 0.0
        %1780 = vmatprep.subr.mxu0 0.0
        %1781 = vmatpush1.msra.mxu0 0.0
        %1782 = vmatprep.subr.mxu0 0.0
        %1783 = vmatpush1.msra.mxu0 0.0
        %1784 = vmatprep.subr.mxu0 0.0
        %1785 = vmatpush1.msra.mxu0 0.0
        %1786 = vmatprep.subr.mxu0 0.0
        %1787 = vmatpush1.msra.mxu0 0.0
        %1788 = vmatprep.subr.mxu0 0.0
        %1789 = vmatpush1.msra.mxu0 0.0
        %1790 = vmatprep.subr.mxu0 0.0
        %1791 = vmatpush1.msra.mxu0 0.0
        %1792 = vmatprep.subr.mxu0 0.0
        %1793 = vmatpush1.msra.mxu0 0.0
        %1794 = vmatprep.subr.mxu0 0.0
        %1795 = vmatpush1.msra.mxu0 0.0
        %1796 = vmatprep.subr.mxu0 0.0
        %1797 = vmatpush1.msra.mxu0 0.0
        %1798 = vmatprep.subr.mxu0 0.0
        %1799 = vmatpush1.msra.mxu0 0.0
        %1800 = vmatprep.subr.mxu0 0.0
        %1801 = vmatpush1.msra.mxu0 0.0
        %1802 = vmatprep.subr.mxu0 0.0
        %1803 = vmatpush1.msra.mxu0 0.0
        %1804 = vmatprep.subr.mxu0 0.0
        %1805 = vmatpush1.msra.mxu0 0.0
        %1806 = vmatprep.subr.mxu0 0.0
        %1807 = vmatpush1.msra.mxu0 0.0
        %1808 = vmatprep.subr.mxu0 0.0
        %1809 = vmatpush1.msra.mxu0 0.0
        %1810 = vmatprep.subr.mxu0 0.0
        %1811 = vmatpush1.msra.mxu0 0.0
        %1812 = vmatprep.subr.mxu0 0.0
        %1813 = vmatpush1.msra.mxu0 0.0
        %1814 = vmatprep.subr.mxu0 0.0
        %1815 = vmatpush1.msra.mxu0 0.0
        %1816 = vmatprep.subr.mxu0 0.0
        %1817 = vmatpush1.msra.mxu0 0.0
        %1818 = vmatprep.subr.mxu0 0.0
        %1819 = vmatpush1.msra.mxu0 0.0
        %1820 = vmatprep.subr.mxu0 0.0
        %1821 = vmatpush1.msra.mxu0 0.0
        %1822 = vmatprep.subr.mxu0 0.0
        %1823 = vmatpush1.msra.mxu0 0.0
        %1824 = vmatprep.subr.mxu0 0.0
        %1825 = vmatpush1.msra.mxu0 0.0
        %1826 = vmatprep.subr.mxu0 0.0
        %1827 = vmatpush1.msra.mxu0 0.0
        %1828 = vmatprep.subr.mxu0 0.0
        %1829 = vmatpush1.msra.mxu0 0.0
        %1830 = vmatprep.subr.mxu0 0.0
        %1831 = vmatpush1.msra.mxu0 0.0
        %1832 = vmatprep.subr.mxu0 0.0
        %1833 = vmatpush1.msra.mxu0 0.0
        %1834 = vmatprep.subr.mxu0 0.0
        %1835 = vmatpush1.msra.mxu0 0.0
        %1836 = vmatprep.mubr.f32.mxu0 0.0
        %1837 = vmatmul.mubr.f32.gmra.mrb[0].mxu0 %v1766
        %v1838 = vpop.f32.mrb[0].mxu0
        %v1839 = vadd.f32 0.0, %v1838
        %v1840 = vpop.f32.mrb[0].mxu0
        %1841 = vdwg.mxu0
        %v1843 = vsel %vm1764, %v1190, 0
        %1845 = vmatprep.subr.mxu0 0.0
        %1846 = vmatpush1.msra.mxu0 %v1770
        %1847 = vmatprep.subr.mxu0 0.0
        %1848 = vmatpush1.msra.mxu0 0.0
        %1849 = vmatprep.subr.mxu0 0.0
        %1850 = vmatpush1.msra.mxu0 0.0
        %1851 = vmatprep.subr.mxu0 0.0
        %1852 = vmatpush1.msra.mxu0 0.0
        %1853 = vmatprep.subr.mxu0 0.0
        %1854 = vmatpush1.msra.mxu0 0.0
        %1855 = vmatprep.subr.mxu0 0.0
        %1856 = vmatpush1.msra.mxu0 0.0
        %1857 = vmatprep.subr.mxu0 0.0
        %1858 = vmatpush1.msra.mxu0 0.0
        %1859 = vmatprep.subr.mxu0 0.0
        %1860 = vmatpush1.msra.mxu0 0.0
        %1861 = vmatprep.subr.mxu0 0.0
        %1862 = vmatpush1.msra.mxu0 0.0
        %1863 = vmatprep.subr.mxu0 0.0
        %1864 = vmatpush1.msra.mxu0 0.0
        %1865 = vmatprep.subr.mxu0 0.0
        %1866 = vmatpush1.msra.mxu0 0.0
        %1867 = vmatprep.subr.mxu0 0.0
        %1868 = vmatpush1.msra.mxu0 0.0
        %1869 = vmatprep.subr.mxu0 0.0
        %1870 = vmatpush1.msra.mxu0 0.0
        %1871 = vmatprep.subr.mxu0 0.0
        %1872 = vmatpush1.msra.mxu0 0.0
        %1873 = vmatprep.subr.mxu0 0.0
        %1874 = vmatpush1.msra.mxu0 0.0
        %1875 = vmatprep.subr.mxu0 0.0
        %1876 = vmatpush1.msra.mxu0 0.0
        %1877 = vmatprep.subr.mxu0 0.0
        %1878 = vmatpush1.msra.mxu0 0.0
        %1879 = vmatprep.subr.mxu0 0.0
        %1880 = vmatpush1.msra.mxu0 0.0
        %1881 = vmatprep.subr.mxu0 0.0
        %1882 = vmatpush1.msra.mxu0 0.0
        %1883 = vmatprep.subr.mxu0 0.0
        %1884 = vmatpush1.msra.mxu0 0.0
        %1885 = vmatprep.subr.mxu0 0.0
        %1886 = vmatpush1.msra.mxu0 0.0
        %1887 = vmatprep.subr.mxu0 0.0
        %1888 = vmatpush1.msra.mxu0 0.0
        %1889 = vmatprep.subr.mxu0 0.0
        %1890 = vmatpush1.msra.mxu0 0.0
        %1891 = vmatprep.subr.mxu0 0.0
        %1892 = vmatpush1.msra.mxu0 0.0
        %1893 = vmatprep.subr.mxu0 0.0
        %1894 = vmatpush1.msra.mxu0 0.0
        %1895 = vmatprep.subr.mxu0 0.0
        %1896 = vmatpush1.msra.mxu0 0.0
        %1897 = vmatprep.subr.mxu0 0.0
        %1898 = vmatpush1.msra.mxu0 0.0
        %1899 = vmatprep.subr.mxu0 0.0
        %1900 = vmatpush1.msra.mxu0 0.0
        %1901 = vmatprep.subr.mxu0 0.0
        %1902 = vmatpush1.msra.mxu0 0.0
        %1903 = vmatprep.subr.mxu0 0.0
        %1904 = vmatpush1.msra.mxu0 0.0
        %1905 = vmatprep.subr.mxu0 0.0
        %1906 = vmatpush1.msra.mxu0 0.0
        %1907 = vmatprep.subr.mxu0 0.0
        %1908 = vmatpush1.msra.mxu0 0.0
        %1909 = vmatprep.mubr.f32.mxu0 0.0
        %1910 = vmatmul.mubr.f32.gmra.mrb[0].mxu0 %v1843
        %v1911 = vpop.f32.mrb[0].mxu0
        %v1912 = vadd.f32 0.0, %v1911
        %v1913 = vpop.f32.mrb[0].mxu0
        %1914 = vdwg.mxu0
        %v1915 = vld [vmem:[#allocation7] sm:$0xff]
        %v1916 = vld [vmem:[#allocation7 + $0x8] sm:$0xff]
        %v1917 = vld [vmem:[#allocation7 + $0x10] sm:$0xff]
        %v1918 = vld [vmem:[#allocation7 + $0x18] sm:$0xff]
        %v1919 = vld [vmem:[#allocation7 + $0x20] sm:$0xff]
        %v1920 = vld [vmem:[#allocation7 + $0x28] sm:$0xff]
        %v1921 = vld [vmem:[#allocation7 + $0x30] sm:$0xff]
        %v1922 = vld [vmem:[#allocation7 + $0x38] sm:$0xff]
        %s1923 = scalar_lea.vmem [#allocation7], 64
        %v1924 = vld [vmem:[%s1923] sm:$0xff]
        %v1925 = vld [vmem:[%s1923 + $0x8] sm:$0xff]
        %v1926 = vld [vmem:[%s1923 + $0x10] sm:$0xff]
        %v1927 = vld [vmem:[%s1923 + $0x18] sm:$0xff]
        %v1928 = vld [vmem:[%s1923 + $0x20] sm:$0xff]
        %v1929 = vld [vmem:[%s1923 + $0x28] sm:$0xff]
        %v1930 = vld [vmem:[%s1923 + $0x30] sm:$0xff]
        %v1931 = vld [vmem:[%s1923 + $0x38] sm:$0xff]
        %v1932 = vsel %vm1450, %v1200, 0
        %1934 = vmatprep.subr.mxu0 0.0
        %1935 = vmatpush1.msra.mxu0 %v1924
        %1936 = vmatprep.subr.mxu0 0.0
        %1937 = vmatpush1.msra.mxu0 %v1925
        %1938 = vmatprep.subr.mxu0 0.0
        %1939 = vmatpush1.msra.mxu0 %v1926
        %1940 = vmatprep.subr.mxu0 0.0
        %1941 = vmatpush1.msra.mxu0 %v1927
        %1942 = vmatprep.subr.mxu0 0.0
        %1943 = vmatpush1.msra.mxu0 %v1928
        %1944 = vmatprep.subr.mxu0 0.0
        %1945 = vmatpush1.msra.mxu0 %v1929
        %1946 = vmatprep.subr.mxu0 0.0
        %1947 = vmatpush1.msra.mxu0 %v1930
        %1948 = vmatprep.subr.mxu0 0.0
        %1949 = vmatpush1.msra.mxu0 %v1931
        %1950 = vmatprep.subr.mxu0 0.0
        %1951 = vmatpush1.msra.mxu0 0.0
        %1952 = vmatprep.subr.mxu0 0.0
        %1953 = vmatpush1.msra.mxu0 0.0
        %1954 = vmatprep.subr.mxu0 0.0
        %1955 = vmatpush1.msra.mxu0 0.0
        %1956 = vmatprep.subr.mxu0 0.0
        %1957 = vmatpush1.msra.mxu0 0.0
        %1958 = vmatprep.subr.mxu0 0.0
        %1959 = vmatpush1.msra.mxu0 0.0
        %1960 = vmatprep.subr.mxu0 0.0
        %1961 = vmatpush1.msra.mxu0 0.0
        %1962 = vmatprep.subr.mxu0 0.0
        %1963 = vmatpush1.msra.mxu0 0.0
        %1964 = vmatprep.subr.mxu0 0.0
        %1965 = vmatpush1.msra.mxu0 0.0
        %1966 = vmatprep.subr.mxu0 0.0
        %1967 = vmatpush1.msra.mxu0 0.0
        %1968 = vmatprep.subr.mxu0 0.0
        %1969 = vmatpush1.msra.mxu0 0.0
        %1970 = vmatprep.subr.mxu0 0.0
        %1971 = vmatpush1.msra.mxu0 0.0
        %1972 = vmatprep.subr.mxu0 0.0
        %1973 = vmatpush1.msra.mxu0 0.0
        %1974 = vmatprep.subr.mxu0 0.0
        %1975 = vmatpush1.msra.mxu0 0.0
        %1976 = vmatprep.subr.mxu0 0.0
        %1977 = vmatpush1.msra.mxu0 0.0
        %1978 = vmatprep.subr.mxu0 0.0
        %1979 = vmatpush1.msra.mxu0 0.0
        %1980 = vmatprep.subr.mxu0 0.0
        %1981 = vmatpush1.msra.mxu0 0.0
        %1982 = vmatprep.subr.mxu0 0.0
        %1983 = vmatpush1.msra.mxu0 0.0
        %1984 = vmatprep.subr.mxu0 0.0
        %1985 = vmatpush1.msra.mxu0 0.0
        %1986 = vmatprep.subr.mxu0 0.0
        %1987 = vmatpush1.msra.mxu0 0.0
        %1988 = vmatprep.subr.mxu0 0.0
        %1989 = vmatpush1.msra.mxu0 0.0
        %1990 = vmatprep.subr.mxu0 0.0
        %1991 = vmatpush1.msra.mxu0 0.0
        %1992 = vmatprep.subr.mxu0 0.0
        %1993 = vmatpush1.msra.mxu0 0.0
        %1994 = vmatprep.subr.mxu0 0.0
        %1995 = vmatpush1.msra.mxu0 0.0
        %1996 = vmatprep.subr.mxu0 0.0
        %1997 = vmatpush1.msra.mxu0 0.0
        %1998 = vmatprep.mubr.f32.mxu0 0.0
        %1999 = vmatmul.mubr.f32.gmra.mrb[0].mxu0 %v1932
        %v2000 = vpop.f32.mrb[0].mxu0
        %v2001 = vadd.f32 0.0, %v2000
        %v2002 = vpop.f32.mrb[0].mxu0
        %2003 = vdwg.mxu0
        %v2005 = vsel %vm1450, %v1839, 0
        %2007 = vmatprep.subr.mxu0 0.0
        %2008 = vmatpush1.msra.mxu0 %v1915
        %2009 = vmatprep.subr.mxu0 0.0
        %2010 = vmatpush1.msra.mxu0 %v1916
        %2011 = vmatprep.subr.mxu0 0.0
        %2012 = vmatpush1.msra.mxu0 %v1917
        %2013 = vmatprep.subr.mxu0 0.0
        %2014 = vmatpush1.msra.mxu0 %v1918
        %2015 = vmatprep.subr.mxu0 0.0
        %2016 = vmatpush1.msra.mxu0 %v1919
        %2017 = vmatprep.subr.mxu0 0.0
        %2018 = vmatpush1.msra.mxu0 %v1920
        %2019 = vmatprep.subr.mxu0 0.0
        %2020 = vmatpush1.msra.mxu0 %v1921
        %2021 = vmatprep.subr.mxu0 0.0
        %2022 = vmatpush1.msra.mxu0 %v1922
        %2023 = vmatprep.subr.mxu0 0.0
        %2024 = vmatpush1.msra.mxu0 0.0
        %2025 = vmatprep.subr.mxu0 0.0
        %2026 = vmatpush1.msra.mxu0 0.0
        %2027 = vmatprep.subr.mxu0 0.0
        %2028 = vmatpush1.msra.mxu0 0.0
        %2029 = vmatprep.subr.mxu0 0.0
        %2030 = vmatpush1.msra.mxu0 0.0
        %2031 = vmatprep.subr.mxu0 0.0
        %2032 = vmatpush1.msra.mxu0 0.0
        %2033 = vmatprep.subr.mxu0 0.0
        %2034 = vmatpush1.msra.mxu0 0.0
        %2035 = vmatprep.subr.mxu0 0.0
        %2036 = vmatpush1.msra.mxu0 0.0
        %2037 = vmatprep.subr.mxu0 0.0
        %2038 = vmatpush1.msra.mxu0 0.0
        %2039 = vmatprep.subr.mxu0 0.0
        %2040 = vmatpush1.msra.mxu0 0.0
        %2041 = vmatprep.subr.mxu0 0.0
        %2042 = vmatpush1.msra.mxu0 0.0
        %2043 = vmatprep.subr.mxu0 0.0
        %2044 = vmatpush1.msra.mxu0 0.0
        %2045 = vmatprep.subr.mxu0 0.0
        %2046 = vmatpush1.msra.mxu0 0.0
        %2047 = vmatprep.subr.mxu0 0.0
        %2048 = vmatpush1.msra.mxu0 0.0
        %2049 = vmatprep.subr.mxu0 0.0
        %2050 = vmatpush1.msra.mxu0 0.0
        %2051 = vmatprep.subr.mxu0 0.0
        %2052 = vmatpush1.msra.mxu0 0.0
        %2053 = vmatprep.subr.mxu0 0.0
        %2054 = vmatpush1.msra.mxu0 0.0
        %2055 = vmatprep.subr.mxu0 0.0
        %2056 = vmatpush1.msra.mxu0 0.0
        %2057 = vmatprep.subr.mxu0 0.0
        %2058 = vmatpush1.msra.mxu0 0.0
        %2059 = vmatprep.subr.mxu0 0.0
        %2060 = vmatpush1.msra.mxu0 0.0
        %2061 = vmatprep.subr.mxu0 0.0
        %2062 = vmatpush1.msra.mxu0 0.0
        %2063 = vmatprep.subr.mxu0 0.0
        %2064 = vmatpush1.msra.mxu0 0.0
        %2065 = vmatprep.subr.mxu0 0.0
        %2066 = vmatpush1.msra.mxu0 0.0
        %2067 = vmatprep.subr.mxu0 0.0
        %2068 = vmatpush1.msra.mxu0 0.0
        %2069 = vmatprep.subr.mxu0 0.0
        %2070 = vmatpush1.msra.mxu0 0.0
        %2071 = vmatprep.mubr.f32.mxu0 0.0
        %2072 = vmatmul.mubr.f32.gmra.mrb[0].mxu0 %v2005
        %v2073 = vpop.f32.mrb[0].mxu0
        %v2074 = vadd.f32 %v2001, %v2073
        %v2075 = vpop.f32.mrb[0].mxu0
        %2076 = vdwg.mxu0
        %s2077 = scalar_lea.vmem [#allocation7], 128
        %v2078 = vld [vmem:[%s2077] sm:$0xff]
        %v2079 = vld [vmem:[%s2077 + $0x8] sm:$0xff]
        %v2080 = vld [vmem:[%s2077 + $0x10] sm:$0xff]
        %v2081 = vld [vmem:[%s2077 + $0x18] sm:$0xff]
        %v2082 = vld [vmem:[%s2077 + $0x20] sm:$0xff]
        %v2083 = vld [vmem:[%s2077 + $0x28] sm:$0xff]
        %v2084 = vld [vmem:[%s2077 + $0x30] sm:$0xff]
        %v2085 = vld [vmem:[%s2077 + $0x38] sm:$0xff]
        %v2087 = vsel %vm1450, %v1912, 0
        %2089 = vmatprep.subr.mxu0 0.0
        %2090 = vmatpush1.msra.mxu0 %v2078
        %2091 = vmatprep.subr.mxu0 0.0
        %2092 = vmatpush1.msra.mxu0 %v2079
        %2093 = vmatprep.subr.mxu0 0.0
        %2094 = vmatpush1.msra.mxu0 %v2080
        %2095 = vmatprep.subr.mxu0 0.0
        %2096 = vmatpush1.msra.mxu0 %v2081
        %2097 = vmatprep.subr.mxu0 0.0
        %2098 = vmatpush1.msra.mxu0 %v2082
        %2099 = vmatprep.subr.mxu0 0.0
        %2100 = vmatpush1.msra.mxu0 %v2083
        %2101 = vmatprep.subr.mxu0 0.0
        %2102 = vmatpush1.msra.mxu0 %v2084
        %2103 = vmatprep.subr.mxu0 0.0
        %2104 = vmatpush1.msra.mxu0 %v2085
        %2105 = vmatprep.subr.mxu0 0.0
        %2106 = vmatpush1.msra.mxu0 0.0
        %2107 = vmatprep.subr.mxu0 0.0
        %2108 = vmatpush1.msra.mxu0 0.0
        %2109 = vmatprep.subr.mxu0 0.0
        %2110 = vmatpush1.msra.mxu0 0.0
        %2111 = vmatprep.subr.mxu0 0.0
        %2112 = vmatpush1.msra.mxu0 0.0
        %2113 = vmatprep.subr.mxu0 0.0
        %2114 = vmatpush1.msra.mxu0 0.0
        %2115 = vmatprep.subr.mxu0 0.0
        %2116 = vmatpush1.msra.mxu0 0.0
        %2117 = vmatprep.subr.mxu0 0.0
        %2118 = vmatpush1.msra.mxu0 0.0
        %2119 = vmatprep.subr.mxu0 0.0
        %2120 = vmatpush1.msra.mxu0 0.0
        %2121 = vmatprep.subr.mxu0 0.0
        %2122 = vmatpush1.msra.mxu0 0.0
        %2123 = vmatprep.subr.mxu0 0.0
        %2124 = vmatpush1.msra.mxu0 0.0
        %2125 = vmatprep.subr.mxu0 0.0
        %2126 = vmatpush1.msra.mxu0 0.0
        %2127 = vmatprep.subr.mxu0 0.0
        %2128 = vmatpush1.msra.mxu0 0.0
        %2129 = vmatprep.subr.mxu0 0.0
        %2130 = vmatpush1.msra.mxu0 0.0
        %2131 = vmatprep.subr.mxu0 0.0
        %2132 = vmatpush1.msra.mxu0 0.0
        %2133 = vmatprep.subr.mxu0 0.0
        %2134 = vmatpush1.msra.mxu0 0.0
        %2135 = vmatprep.subr.mxu0 0.0
        %2136 = vmatpush1.msra.mxu0 0.0
        %2137 = vmatprep.subr.mxu0 0.0
        %2138 = vmatpush1.msra.mxu0 0.0
        %2139 = vmatprep.subr.mxu0 0.0
        %2140 = vmatpush1.msra.mxu0 0.0
        %2141 = vmatprep.subr.mxu0 0.0
        %2142 = vmatpush1.msra.mxu0 0.0
        %2143 = vmatprep.subr.mxu0 0.0
        %2144 = vmatpush1.msra.mxu0 0.0
        %2145 = vmatprep.subr.mxu0 0.0
        %2146 = vmatpush1.msra.mxu0 0.0
        %2147 = vmatprep.subr.mxu0 0.0
        %2148 = vmatpush1.msra.mxu0 0.0
        %2149 = vmatprep.subr.mxu0 0.0
        %2150 = vmatpush1.msra.mxu0 0.0
        %2151 = vmatprep.subr.mxu0 0.0
        %2152 = vmatpush1.msra.mxu0 0.0
        %2153 = vmatprep.mubr.f32.mxu0 0.0
        %2154 = vmatmul.mubr.f32.gmra.mrb[0].mxu0 %v2087
        %v2155 = vpop.f32.mrb[0].mxu0
        %v2156 = vadd.f32 0.0, %v2155
        %v2157 = vpop.f32.mrb[0].mxu0
        %2158 = vdwg.mxu0
        %v2159 = vadd.f32 %v2074, %v2156
        %v2161 = vsel %vm1768, %v1763, 0
        %2163 = vmatprep.subr.mxu0 0.0
        %2164 = vmatpush1.msra.mxu0 %v2161
        %2165 = vmatprep.subr.mxu0 0.0
        %2166 = vmatpush1.msra.mxu0 0.0
        %2167 = vmatprep.subr.mxu0 0.0
        %2168 = vmatpush1.msra.mxu0 0.0
        %2169 = vmatprep.subr.mxu0 0.0
        %2170 = vmatpush1.msra.mxu0 0.0
        %2171 = vmatprep.subr.mxu0 0.0
        %2172 = vmatpush1.msra.mxu0 0.0
        %2173 = vmatprep.subr.mxu0 0.0
        %2174 = vmatpush1.msra.mxu0 0.0
        %2175 = vmatprep.subr.mxu0 0.0
        %2176 = vmatpush1.msra.mxu0 0.0
        %2177 = vmatprep.subr.mxu0 0.0
        %2178 = vmatpush1.msra.mxu0 0.0
        %2179 = vmatprep.subr.mxu0 0.0
        %2180 = vmatpush1.msra.mxu0 0.0
        %2181 = vmatprep.subr.mxu0 0.0
        %2182 = vmatpush1.msra.mxu0 0.0
        %2183 = vmatprep.subr.mxu0 0.0
        %2184 = vmatpush1.msra.mxu0 0.0
        %2185 = vmatprep.subr.mxu0 0.0
        %2186 = vmatpush1.msra.mxu0 0.0
        %2187 = vmatprep.subr.mxu0 0.0
        %2188 = vmatpush1.msra.mxu0 0.0
        %2189 = vmatprep.subr.mxu0 0.0
        %2190 = vmatpush1.msra.mxu0 0.0
        %2191 = vmatprep.subr.mxu0 0.0
        %2192 = vmatpush1.msra.mxu0 0.0
        %2193 = vmatprep.subr.mxu0 0.0
        %2194 = vmatpush1.msra.mxu0 0.0
        %2195 = vmatprep.subr.mxu0 0.0
        %2196 = vmatpush1.msra.mxu0 0.0
        %2197 = vmatprep.subr.mxu0 0.0
        %2198 = vmatpush1.msra.mxu0 0.0
        %2199 = vmatprep.subr.mxu0 0.0
        %2200 = vmatpush1.msra.mxu0 0.0
        %2201 = vmatprep.subr.mxu0 0.0
        %2202 = vmatpush1.msra.mxu0 0.0
        %2203 = vmatprep.subr.mxu0 0.0
        %2204 = vmatpush1.msra.mxu0 0.0
        %2205 = vmatprep.subr.mxu0 0.0
        %2206 = vmatpush1.msra.mxu0 0.0
        %2207 = vmatprep.subr.mxu0 0.0
        %2208 = vmatpush1.msra.mxu0 0.0
        %2209 = vmatprep.subr.mxu0 0.0
        %2210 = vmatpush1.msra.mxu0 0.0
        %2211 = vmatprep.subr.mxu0 0.0
        %2212 = vmatpush1.msra.mxu0 0.0
        %2213 = vmatprep.subr.mxu0 0.0
        %2214 = vmatpush1.msra.mxu0 0.0
        %2215 = vmatprep.subr.mxu0 0.0
        %2216 = vmatpush1.msra.mxu0 0.0
        %2217 = vmatprep.subr.mxu0 0.0
        %2218 = vmatpush1.msra.mxu0 0.0
        %2219 = vmatprep.subr.mxu0 0.0
        %2220 = vmatpush1.msra.mxu0 0.0
        %2221 = vmatprep.subr.mxu0 0.0
        %2222 = vmatpush1.msra.mxu0 0.0
        %2223 = vmatprep.subr.mxu0 0.0
        %2224 = vmatpush1.msra.mxu0 0.0
        %2225 = vmatprep.subr.mxu0 0.0
        %2226 = vmatpush1.msra.mxu0 0.0
        %2227 = vmatprep.mubr.f32.mxu0 0.0
        %2228 = vmatmul.mubr.f32.gmra.mrb[0].mxu0 %v1766
        %v2229 = vpop.f32.mrb[0].mxu0
        %v2230 = vadd.f32 0.0, %v2229
        %v2231 = vpop.f32.mrb[0].mxu0
        %2232 = vdwg.mxu0
        %2233 = vmatprep.subr.mxu0 0.0
        %2234 = vmatpush1.msra.mxu0 %v2161
        %2235 = vmatprep.subr.mxu0 0.0
        %2236 = vmatpush1.msra.mxu0 0.0
        %2237 = vmatprep.subr.mxu0 0.0
        %2238 = vmatpush1.msra.mxu0 0.0
        %2239 = vmatprep.subr.mxu0 0.0
        %2240 = vmatpush1.msra.mxu0 0.0
        %2241 = vmatprep.subr.mxu0 0.0
        %2242 = vmatpush1.msra.mxu0 0.0
        %2243 = vmatprep.subr.mxu0 0.0
        %2244 = vmatpush1.msra.mxu0 0.0
        %2245 = vmatprep.subr.mxu0 0.0
        %2246 = vmatpush1.msra.mxu0 0.0
        %2247 = vmatprep.subr.mxu0 0.0
        %2248 = vmatpush1.msra.mxu0 0.0
        %2249 = vmatprep.subr.mxu0 0.0
        %2250 = vmatpush1.msra.mxu0 0.0
        %2251 = vmatprep.subr.mxu0 0.0
        %2252 = vmatpush1.msra.mxu0 0.0
        %2253 = vmatprep.subr.mxu0 0.0
        %2254 = vmatpush1.msra.mxu0 0.0
        %2255 = vmatprep.subr.mxu0 0.0
        %2256 = vmatpush1.msra.mxu0 0.0
        %2257 = vmatprep.subr.mxu0 0.0
        %2258 = vmatpush1.msra.mxu0 0.0
        %2259 = vmatprep.subr.mxu0 0.0
        %2260 = vmatpush1.msra.mxu0 0.0
        %2261 = vmatprep.subr.mxu0 0.0
        %2262 = vmatpush1.msra.mxu0 0.0
        %2263 = vmatprep.subr.mxu0 0.0
        %2264 = vmatpush1.msra.mxu0 0.0
        %2265 = vmatprep.subr.mxu0 0.0
        %2266 = vmatpush1.msra.mxu0 0.0
        %2267 = vmatprep.subr.mxu0 0.0
        %2268 = vmatpush1.msra.mxu0 0.0
        %2269 = vmatprep.subr.mxu0 0.0
        %2270 = vmatpush1.msra.mxu0 0.0
        %2271 = vmatprep.subr.mxu0 0.0
        %2272 = vmatpush1.msra.mxu0 0.0
        %2273 = vmatprep.subr.mxu0 0.0
        %2274 = vmatpush1.msra.mxu0 0.0
        %2275 = vmatprep.subr.mxu0 0.0
        %2276 = vmatpush1.msra.mxu0 0.0
        %2277 = vmatprep.subr.mxu0 0.0
        %2278 = vmatpush1.msra.mxu0 0.0
        %2279 = vmatprep.subr.mxu0 0.0
        %2280 = vmatpush1.msra.mxu0 0.0
        %2281 = vmatprep.subr.mxu0 0.0
        %2282 = vmatpush1.msra.mxu0 0.0
        %2283 = vmatprep.subr.mxu0 0.0
        %2284 = vmatpush1.msra.mxu0 0.0
        %2285 = vmatprep.subr.mxu0 0.0
        %2286 = vmatpush1.msra.mxu0 0.0
        %2287 = vmatprep.subr.mxu0 0.0
        %2288 = vmatpush1.msra.mxu0 0.0
        %2289 = vmatprep.subr.mxu0 0.0
        %2290 = vmatpush1.msra.mxu0 0.0
        %2291 = vmatprep.subr.mxu0 0.0
        %2292 = vmatpush1.msra.mxu0 0.0
        %2293 = vmatprep.subr.mxu0 0.0
        %2294 = vmatpush1.msra.mxu0 0.0
        %2295 = vmatprep.subr.mxu0 0.0
        %2296 = vmatpush1.msra.mxu0 0.0
        %2297 = vmatprep.mubr.f32.mxu0 0.0
        %2298 = vmatmul.mubr.f32.gmra.mrb[0].mxu0 %v1843
        %v2299 = vpop.f32.mrb[0].mxu0
        %v2300 = vadd.f32 0.0, %v2299
        %v2301 = vpop.f32.mrb[0].mxu0
        %2302 = vdwg.mxu0
        %v2303 = vld [vmem:[#allocation8] sm:$0xff]
        %v2304 = vld [vmem:[#allocation8 + $0x8] sm:$0xff]
        %v2305 = vld [vmem:[#allocation8 + $0x10] sm:$0xff]
        %v2306 = vld [vmem:[#allocation8 + $0x18] sm:$0xff]
        %v2307 = vld [vmem:[#allocation8 + $0x20] sm:$0xff]
        %v2308 = vld [vmem:[#allocation8 + $0x28] sm:$0xff]
        %v2309 = vld [vmem:[#allocation8 + $0x30] sm:$0xff]
        %v2310 = vld [vmem:[#allocation8 + $0x38] sm:$0xff]
        %s2311 = scalar_lea.vmem [#allocation8], 64
        %v2312 = vld [vmem:[%s2311] sm:$0xff]
        %v2313 = vld [vmem:[%s2311 + $0x8] sm:$0xff]
        %v2314 = vld [vmem:[%s2311 + $0x10] sm:$0xff]
        %v2315 = vld [vmem:[%s2311 + $0x18] sm:$0xff]
        %v2316 = vld [vmem:[%s2311 + $0x20] sm:$0xff]
        %v2317 = vld [vmem:[%s2311 + $0x28] sm:$0xff]
        %v2318 = vld [vmem:[%s2311 + $0x30] sm:$0xff]
        %v2319 = vld [vmem:[%s2311 + $0x38] sm:$0xff]
        %v2320 = vsel %vm1450, %v1763, 0
        %2322 = vmatprep.subr.mxu0 0.0
        %2323 = vmatpush1.msra.mxu0 %v2312
        %2324 = vmatprep.subr.mxu0 0.0
        %2325 = vmatpush1.msra.mxu0 %v2313
        %2326 = vmatprep.subr.mxu0 0.0
        %2327 = vmatpush1.msra.mxu0 %v2314
        %2328 = vmatprep.subr.mxu0 0.0
        %2329 = vmatpush1.msra.mxu0 %v2315
        %2330 = vmatprep.subr.mxu0 0.0
        %2331 = vmatpush1.msra.mxu0 %v2316
        %2332 = vmatprep.subr.mxu0 0.0
        %2333 = vmatpush1.msra.mxu0 %v2317
        %2334 = vmatprep.subr.mxu0 0.0
        %2335 = vmatpush1.msra.mxu0 %v2318
        %2336 = vmatprep.subr.mxu0 0.0
        %2337 = vmatpush1.msra.mxu0 %v2319
        %2338 = vmatprep.subr.mxu0 0.0
        %2339 = vmatpush1.msra.mxu0 0.0
        %2340 = vmatprep.subr.mxu0 0.0
        %2341 = vmatpush1.msra.mxu0 0.0
        %2342 = vmatprep.subr.mxu0 0.0
        %2343 = vmatpush1.msra.mxu0 0.0
        %2344 = vmatprep.subr.mxu0 0.0
        %2345 = vmatpush1.msra.mxu0 0.0
        %2346 = vmatprep.subr.mxu0 0.0
        %2347 = vmatpush1.msra.mxu0 0.0
        %2348 = vmatprep.subr.mxu0 0.0
        %2349 = vmatpush1.msra.mxu0 0.0
        %2350 = vmatprep.subr.mxu0 0.0
        %2351 = vmatpush1.msra.mxu0 0.0
        %2352 = vmatprep.subr.mxu0 0.0
        %2353 = vmatpush1.msra.mxu0 0.0
        %2354 = vmatprep.subr.mxu0 0.0
        %2355 = vmatpush1.msra.mxu0 0.0
        %2356 = vmatprep.subr.mxu0 0.0
        %2357 = vmatpush1.msra.mxu0 0.0
        %2358 = vmatprep.subr.mxu0 0.0
        %2359 = vmatpush1.msra.mxu0 0.0
        %2360 = vmatprep.subr.mxu0 0.0
        %2361 = vmatpush1.msra.mxu0 0.0
        %2362 = vmatprep.subr.mxu0 0.0
        %2363 = vmatpush1.msra.mxu0 0.0
        %2364 = vmatprep.subr.mxu0 0.0
        %2365 = vmatpush1.msra.mxu0 0.0
        %2366 = vmatprep.subr.mxu0 0.0
        %2367 = vmatpush1.msra.mxu0 0.0
        %2368 = vmatprep.subr.mxu0 0.0
        %2369 = vmatpush1.msra.mxu0 0.0
        %2370 = vmatprep.subr.mxu0 0.0
        %2371 = vmatpush1.msra.mxu0 0.0
        %2372 = vmatprep.subr.mxu0 0.0
        %2373 = vmatpush1.msra.mxu0 0.0
        %2374 = vmatprep.subr.mxu0 0.0
        %2375 = vmatpush1.msra.mxu0 0.0
        %2376 = vmatprep.subr.mxu0 0.0
        %2377 = vmatpush1.msra.mxu0 0.0
        %2378 = vmatprep.subr.mxu0 0.0
        %2379 = vmatpush1.msra.mxu0 0.0
        %2380 = vmatprep.subr.mxu0 0.0
        %2381 = vmatpush1.msra.mxu0 0.0
        %2382 = vmatprep.subr.mxu0 0.0
        %2383 = vmatpush1.msra.mxu0 0.0
        %2384 = vmatprep.subr.mxu0 0.0
        %2385 = vmatpush1.msra.mxu0 0.0
        %2386 = vmatprep.mubr.f32.mxu0 0.0
        %2387 = vmatmul.mubr.f32.gmra.mrb[0].mxu0 %v2320
        %v2388 = vpop.f32.mrb[0].mxu0
        %v2389 = vadd.f32 0.0, %v2388
        %v2390 = vpop.f32.mrb[0].mxu0
        %2391 = vdwg.mxu0
        %v2393 = vsel %vm1450, %v2230, 0
        %2395 = vmatprep.subr.mxu0 0.0
        %2396 = vmatpush1.msra.mxu0 %v2303
        %2397 = vmatprep.subr.mxu0 0.0
        %2398 = vmatpush1.msra.mxu0 %v2304
        %2399 = vmatprep.subr.mxu0 0.0
        %2400 = vmatpush1.msra.mxu0 %v2305
        %2401 = vmatprep.subr.mxu0 0.0
        %2402 = vmatpush1.msra.mxu0 %v2306
        %2403 = vmatprep.subr.mxu0 0.0
        %2404 = vmatpush1.msra.mxu0 %v2307
        %2405 = vmatprep.subr.mxu0 0.0
        %2406 = vmatpush1.msra.mxu0 %v2308
        %2407 = vmatprep.subr.mxu0 0.0
        %2408 = vmatpush1.msra.mxu0 %v2309
        %2409 = vmatprep.subr.mxu0 0.0
        %2410 = vmatpush1.msra.mxu0 %v2310
        %2411 = vmatprep.subr.mxu0 0.0
        %2412 = vmatpush1.msra.mxu0 0.0
        %2413 = vmatprep.subr.mxu0 0.0
        %2414 = vmatpush1.msra.mxu0 0.0
        %2415 = vmatprep.subr.mxu0 0.0
        %2416 = vmatpush1.msra.mxu0 0.0
        %2417 = vmatprep.subr.mxu0 0.0
        %2418 = vmatpush1.msra.mxu0 0.0
        %2419 = vmatprep.subr.mxu0 0.0
        %2420 = vmatpush1.msra.mxu0 0.0
        %2421 = vmatprep.subr.mxu0 0.0
        %2422 = vmatpush1.msra.mxu0 0.0
        %2423 = vmatprep.subr.mxu0 0.0
        %2424 = vmatpush1.msra.mxu0 0.0
        %2425 = vmatprep.subr.mxu0 0.0
        %2426 = vmatpush1.msra.mxu0 0.0
        %2427 = vmatprep.subr.mxu0 0.0
        %2428 = vmatpush1.msra.mxu0 0.0
        %2429 = vmatprep.subr.mxu0 0.0
        %2430 = vmatpush1.msra.mxu0 0.0
        %2431 = vmatprep.subr.mxu0 0.0
        %2432 = vmatpush1.msra.mxu0 0.0
        %2433 = vmatprep.subr.mxu0 0.0
        %2434 = vmatpush1.msra.mxu0 0.0
        %2435 = vmatprep.subr.mxu0 0.0
        %2436 = vmatpush1.msra.mxu0 0.0
        %2437 = vmatprep.subr.mxu0 0.0
        %2438 = vmatpush1.msra.mxu0 0.0
        %2439 = vmatprep.subr.mxu0 0.0
        %2440 = vmatpush1.msra.mxu0 0.0
        %2441 = vmatprep.subr.mxu0 0.0
        %2442 = vmatpush1.msra.mxu0 0.0
        %2443 = vmatprep.subr.mxu0 0.0
        %2444 = vmatpush1.msra.mxu0 0.0
        %2445 = vmatprep.subr.mxu0 0.0
        %2446 = vmatpush1.msra.mxu0 0.0
        %2447 = vmatprep.subr.mxu0 0.0
        %2448 = vmatpush1.msra.mxu0 0.0
        %2449 = vmatprep.subr.mxu0 0.0
        %2450 = vmatpush1.msra.mxu0 0.0
        %2451 = vmatprep.subr.mxu0 0.0
        %2452 = vmatpush1.msra.mxu0 0.0
        %2453 = vmatprep.subr.mxu0 0.0
        %2454 = vmatpush1.msra.mxu0 0.0
        %2455 = vmatprep.subr.mxu0 0.0
        %2456 = vmatpush1.msra.mxu0 0.0
        %2457 = vmatprep.subr.mxu0 0.0
        %2458 = vmatpush1.msra.mxu0 0.0
        %2459 = vmatprep.mubr.f32.mxu0 0.0
        %2460 = vmatmul.mubr.f32.gmra.mrb[0].mxu0 %v2393
        %v2461 = vpop.f32.mrb[0].mxu0
        %v2462 = vadd.f32 %v2389, %v2461
        %v2463 = vpop.f32.mrb[0].mxu0
        %2464 = vdwg.mxu0
        %s2465 = scalar_lea.vmem [#allocation8], 128
        %v2466 = vld [vmem:[%s2465] sm:$0xff]
        %v2467 = vld [vmem:[%s2465 + $0x8] sm:$0xff]
        %v2468 = vld [vmem:[%s2465 + $0x10] sm:$0xff]
        %v2469 = vld [vmem:[%s2465 + $0x18] sm:$0xff]
        %v2470 = vld [vmem:[%s2465 + $0x20] sm:$0xff]
        %v2471 = vld [vmem:[%s2465 + $0x28] sm:$0xff]
        %v2472 = vld [vmem:[%s2465 + $0x30] sm:$0xff]
        %v2473 = vld [vmem:[%s2465 + $0x38] sm:$0xff]
        %v2475 = vsel %vm1450, %v2300, 0
        %2477 = vmatprep.subr.mxu0 0.0
        %2478 = vmatpush1.msra.mxu0 %v2466
        %2479 = vmatprep.subr.mxu0 0.0
        %2480 = vmatpush1.msra.mxu0 %v2467
        %2481 = vmatprep.subr.mxu0 0.0
        %2482 = vmatpush1.msra.mxu0 %v2468
        %2483 = vmatprep.subr.mxu0 0.0
        %2484 = vmatpush1.msra.mxu0 %v2469
        %2485 = vmatprep.subr.mxu0 0.0
        %2486 = vmatpush1.msra.mxu0 %v2470
        %2487 = vmatprep.subr.mxu0 0.0
        %2488 = vmatpush1.msra.mxu0 %v2471
        %2489 = vmatprep.subr.mxu0 0.0
        %2490 = vmatpush1.msra.mxu0 %v2472
        %2491 = vmatprep.subr.mxu0 0.0
        %2492 = vmatpush1.msra.mxu0 %v2473
        %2493 = vmatprep.subr.mxu0 0.0
        %2494 = vmatpush1.msra.mxu0 0.0
        %2495 = vmatprep.subr.mxu0 0.0
        %2496 = vmatpush1.msra.mxu0 0.0
        %2497 = vmatprep.subr.mxu0 0.0
        %2498 = vmatpush1.msra.mxu0 0.0
        %2499 = vmatprep.subr.mxu0 0.0
        %2500 = vmatpush1.msra.mxu0 0.0
        %2501 = vmatprep.subr.mxu0 0.0
        %2502 = vmatpush1.msra.mxu0 0.0
        %2503 = vmatprep.subr.mxu0 0.0
        %2504 = vmatpush1.msra.mxu0 0.0
        %2505 = vmatprep.subr.mxu0 0.0
        %2506 = vmatpush1.msra.mxu0 0.0
        %2507 = vmatprep.subr.mxu0 0.0
        %2508 = vmatpush1.msra.mxu0 0.0
        %2509 = vmatprep.subr.mxu0 0.0
        %2510 = vmatpush1.msra.mxu0 0.0
        %2511 = vmatprep.subr.mxu0 0.0
        %2512 = vmatpush1.msra.mxu0 0.0
        %2513 = vmatprep.subr.mxu0 0.0
        %2514 = vmatpush1.msra.mxu0 0.0
        %2515 = vmatprep.subr.mxu0 0.0
        %2516 = vmatpush1.msra.mxu0 0.0
        %2517 = vmatprep.subr.mxu0 0.0
        %2518 = vmatpush1.msra.mxu0 0.0
        %2519 = vmatprep.subr.mxu0 0.0
        %2520 = vmatpush1.msra.mxu0 0.0
        %2521 = vmatprep.subr.mxu0 0.0
        %2522 = vmatpush1.msra.mxu0 0.0
        %2523 = vmatprep.subr.mxu0 0.0
        %2524 = vmatpush1.msra.mxu0 0.0
        %2525 = vmatprep.subr.mxu0 0.0
        %2526 = vmatpush1.msra.mxu0 0.0
        %2527 = vmatprep.subr.mxu0 0.0
        %2528 = vmatpush1.msra.mxu0 0.0
        %2529 = vmatprep.subr.mxu0 0.0
        %2530 = vmatpush1.msra.mxu0 0.0
        %2531 = vmatprep.subr.mxu0 0.0
        %2532 = vmatpush1.msra.mxu0 0.0
        %2533 = vmatprep.subr.mxu0 0.0
        %2534 = vmatpush1.msra.mxu0 0.0
        %2535 = vmatprep.subr.mxu0 0.0
        %2536 = vmatpush1.msra.mxu0 0.0
        %2537 = vmatprep.subr.mxu0 0.0
        %2538 = vmatpush1.msra.mxu0 0.0
        %2539 = vmatprep.subr.mxu0 0.0
        %2540 = vmatpush1.msra.mxu0 0.0
        %2541 = vmatprep.mubr.f32.mxu0 0.0
        %2542 = vmatmul.mubr.f32.gmra.mrb[0].mxu0 %v2475
        %v2543 = vpop.f32.mrb[0].mxu0
        %v2544 = vadd.f32 0.0, %v2543
        %v2545 = vpop.f32.mrb[0].mxu0
        %2546 = vdwg.mxu0
        %v2547 = vadd.f32 %v2462, %v2544
        %v2548 = vadd.f32 %v2159, %v2547
        %v2549 = vld [vmem:[#allocation10] sm:$0x1]
        %v2551 = vlaneseq
        %v2552 = vshrl.u32 %v2551, 7
        %v2553 = vsub.s32 0, %v2552
        %v2554 = vrot.slane %v2549, %v2553
        %v2556 = vadd.f32 %v2548, %v2554
        %v2557 = vmax.f32 %v2556, 0.0
        %v2558 = vld [vmem:[%s1168] sm:$0xff]
        %v2559 = vld [vmem:[#allocation11] sm:$0xff]
        %v2560 = vld [vmem:[#allocation11 + $0x8] sm:$0xff]
        %v2561 = vld [vmem:[#allocation11 + $0x10] sm:$0xff]
        %v2562 = vld [vmem:[#allocation11 + $0x18] sm:$0xff]
        %v2563 = vld [vmem:[#allocation11 + $0x20] sm:$0xff]
        %v2564 = vld [vmem:[#allocation11 + $0x28] sm:$0xff]
        %v2565 = vld [vmem:[#allocation11 + $0x30] sm:$0xff]
        %v2566 = vld [vmem:[#allocation11 + $0x38] sm:$0xff]
        %v2568 = vsel %vm1450, %v2557, 0
        %2570 = vmatprep.subr.mxu0 0.0
        %2571 = vmatpush1.msra.mxu0 %v2559
        %2572 = vmatprep.subr.mxu0 0.0
        %2573 = vmatpush1.msra.mxu0 %v2560
        %2574 = vmatprep.subr.mxu0 0.0
        %2575 = vmatpush1.msra.mxu0 %v2561
        %2576 = vmatprep.subr.mxu0 0.0
        %2577 = vmatpush1.msra.mxu0 %v2562
        %2578 = vmatprep.subr.mxu0 0.0
        %2579 = vmatpush1.msra.mxu0 %v2563
        %2580 = vmatprep.subr.mxu0 0.0
        %2581 = vmatpush1.msra.mxu0 %v2564
        %2582 = vmatprep.subr.mxu0 0.0
        %2583 = vmatpush1.msra.mxu0 %v2565
        %2584 = vmatprep.subr.mxu0 0.0
        %2585 = vmatpush1.msra.mxu0 %v2566
        %2586 = vmatprep.subr.mxu0 0.0
        %2587 = vmatpush1.msra.mxu0 0.0
        %2588 = vmatprep.subr.mxu0 0.0
        %2589 = vmatpush1.msra.mxu0 0.0
        %2590 = vmatprep.subr.mxu0 0.0
        %2591 = vmatpush1.msra.mxu0 0.0
        %2592 = vmatprep.subr.mxu0 0.0
        %2593 = vmatpush1.msra.mxu0 0.0
        %2594 = vmatprep.subr.mxu0 0.0
        %2595 = vmatpush1.msra.mxu0 0.0
        %2596 = vmatprep.subr.mxu0 0.0
        %2597 = vmatpush1.msra.mxu0 0.0
        %2598 = vmatprep.subr.mxu0 0.0
        %2599 = vmatpush1.msra.mxu0 0.0
        %2600 = vmatprep.subr.mxu0 0.0
        %2601 = vmatpush1.msra.mxu0 0.0
        %2602 = vmatprep.subr.mxu0 0.0
        %2603 = vmatpush1.msra.mxu0 0.0
        %2604 = vmatprep.subr.mxu0 0.0
        %2605 = vmatpush1.msra.mxu0 0.0
        %2606 = vmatprep.subr.mxu0 0.0
        %2607 = vmatpush1.msra.mxu0 0.0
        %2608 = vmatprep.subr.mxu0 0.0
        %2609 = vmatpush1.msra.mxu0 0.0
        %2610 = vmatprep.subr.mxu0 0.0
        %2611 = vmatpush1.msra.mxu0 0.0
        %2612 = vmatprep.subr.mxu0 0.0
        %2613 = vmatpush1.msra.mxu0 0.0
        %2614 = vmatprep.subr.mxu0 0.0
        %2615 = vmatpush1.msra.mxu0 0.0
        %2616 = vmatprep.subr.mxu0 0.0
        %2617 = vmatpush1.msra.mxu0 0.0
        %2618 = vmatprep.subr.mxu0 0.0
        %2619 = vmatpush1.msra.mxu0 0.0
        %2620 = vmatprep.subr.mxu0 0.0
        %2621 = vmatpush1.msra.mxu0 0.0
        %2622 = vmatprep.subr.mxu0 0.0
        %2623 = vmatpush1.msra.mxu0 0.0
        %2624 = vmatprep.subr.mxu0 0.0
        %2625 = vmatpush1.msra.mxu0 0.0
        %2626 = vmatprep.subr.mxu0 0.0
        %2627 = vmatpush1.msra.mxu0 0.0
        %2628 = vmatprep.subr.mxu0 0.0
        %2629 = vmatpush1.msra.mxu0 0.0
        %2630 = vmatprep.subr.mxu0 0.0
        %2631 = vmatpush1.msra.mxu0 0.0
        %2632 = vmatprep.subr.mxu0 0.0
        %2633 = vmatpush1.msra.mxu0 0.0
        %2634 = vmatprep.mubr.f32.mxu0 0.0
        %2635 = vmatmul.mubr.f32.gmra.mrb[0].mxu0 %v2568
        %v2636 = vpop.f32.mrb[0].mxu0
        %v2637 = vadd.f32 0.0, %v2636
        %v2638 = vpop.f32.mrb[0].mxu0
        %2639 = vdwg.mxu0
        %v2640 = vld [vmem:[%s23] sm:$0xff]
        %v2642 = vsel %vm1764, %v2640, 0
        %v2645 = vsel %vm1768, %v2637, 0
        %2647 = vmatprep.subr.mxu0 0.0
        %2648 = vmatpush1.msra.mxu0 %v2645
        %2649 = vmatprep.subr.mxu0 0.0
        %2650 = vmatpush1.msra.mxu0 0.0
        %2651 = vmatprep.subr.mxu0 0.0
        %2652 = vmatpush1.msra.mxu0 0.0
        %2653 = vmatprep.subr.mxu0 0.0
        %2654 = vmatpush1.msra.mxu0 0.0
        %2655 = vmatprep.subr.mxu0 0.0
        %2656 = vmatpush1.msra.mxu0 0.0
        %2657 = vmatprep.subr.mxu0 0.0
        %2658 = vmatpush1.msra.mxu0 0.0
        %2659 = vmatprep.subr.mxu0 0.0
        %2660 = vmatpush1.msra.mxu0 0.0
        %2661 = vmatprep.subr.mxu0 0.0
        %2662 = vmatpush1.msra.mxu0 0.0
        %2663 = vmatprep.subr.mxu0 0.0
        %2664 = vmatpush1.msra.mxu0 0.0
        %2665 = vmatprep.subr.mxu0 0.0
        %2666 = vmatpush1.msra.mxu0 0.0
        %2667 = vmatprep.subr.mxu0 0.0
        %2668 = vmatpush1.msra.mxu0 0.0
        %2669 = vmatprep.subr.mxu0 0.0
        %2670 = vmatpush1.msra.mxu0 0.0
        %2671 = vmatprep.subr.mxu0 0.0
        %2672 = vmatpush1.msra.mxu0 0.0
        %2673 = vmatprep.subr.mxu0 0.0
        %2674 = vmatpush1.msra.mxu0 0.0
        %2675 = vmatprep.subr.mxu0 0.0
        %2676 = vmatpush1.msra.mxu0 0.0
        %2677 = vmatprep.subr.mxu0 0.0
        %2678 = vmatpush1.msra.mxu0 0.0
        %2679 = vmatprep.subr.mxu0 0.0
        %2680 = vmatpush1.msra.mxu0 0.0
        %2681 = vmatprep.subr.mxu0 0.0
        %2682 = vmatpush1.msra.mxu0 0.0
        %2683 = vmatprep.subr.mxu0 0.0
        %2684 = vmatpush1.msra.mxu0 0.0
        %2685 = vmatprep.subr.mxu0 0.0
        %2686 = vmatpush1.msra.mxu0 0.0
        %2687 = vmatprep.subr.mxu0 0.0
        %2688 = vmatpush1.msra.mxu0 0.0
        %2689 = vmatprep.subr.mxu0 0.0
        %2690 = vmatpush1.msra.mxu0 0.0
        %2691 = vmatprep.subr.mxu0 0.0
        %2692 = vmatpush1.msra.mxu0 0.0
        %2693 = vmatprep.subr.mxu0 0.0
        %2694 = vmatpush1.msra.mxu0 0.0
        %2695 = vmatprep.subr.mxu0 0.0
        %2696 = vmatpush1.msra.mxu0 0.0
        %2697 = vmatprep.subr.mxu0 0.0
        %2698 = vmatpush1.msra.mxu0 0.0
        %2699 = vmatprep.subr.mxu0 0.0
        %2700 = vmatpush1.msra.mxu0 0.0
        %2701 = vmatprep.subr.mxu0 0.0
        %2702 = vmatpush1.msra.mxu0 0.0
        %2703 = vmatprep.subr.mxu0 0.0
        %2704 = vmatpush1.msra.mxu0 0.0
        %2705 = vmatprep.subr.mxu0 0.0
        %2706 = vmatpush1.msra.mxu0 0.0
        %2707 = vmatprep.subr.mxu0 0.0
        %2708 = vmatpush1.msra.mxu0 0.0
        %2709 = vmatprep.subr.mxu0 0.0
        %2710 = vmatpush1.msra.mxu0 0.0
        %2711 = vmatprep.mubr.f32.mxu0 0.0
        %2712 = vmatmul.mubr.f32.gmra.mrb[0].mxu0 %v2642
        %v2713 = vpop.f32.mrb[0].mxu0
        %v2714 = vadd.f32 0.0, %v2713
        %v2715 = vpop.f32.mrb[0].mxu0
        %2716 = vdwg.mxu0
        %v2717 = vld [vmem:[%s27] sm:$0xff]
        %v2718 = vld [vmem:[%s27 + $0x8] sm:$0xff]
        %v2719 = vld [vmem:[%s27 + $0x10] sm:$0xff]
        %v2720 = vld [vmem:[%s27 + $0x18] sm:$0xff]
        %v2721 = vld [vmem:[%s27 + $0x20] sm:$0xff]
        %v2722 = vld [vmem:[%s27 + $0x28] sm:$0xff]
        %v2723 = vld [vmem:[%s27 + $0x30] sm:$0xff]
        %v2724 = vld [vmem:[%s27 + $0x38] sm:$0xff]
        %v2725 = vld [vmem:[%s27 + $0x40] sm:$0xff]
        %v2726 = vld [vmem:[%s27 + $0x48] sm:$0xff]
        %v2727 = vld [vmem:[%s27 + $0x50] sm:$0xff]
        %v2728 = vld [vmem:[%s27 + $0x58] sm:$0xff]
        %v2729 = vld [vmem:[%s27 + $0x60] sm:$0xff]
        %v2730 = vld [vmem:[%s27 + $0x68] sm:$0xff]
        %v2731 = vld [vmem:[%s27 + $0x70] sm:$0xff]
        %v2732 = vld [vmem:[%s27 + $0x78] sm:$0xff]
        %s2733 = scalar_lea.vmem %s23, 8
        %v2734 = vld [vmem:[%s2733] sm:$0xff]
        %v2736 = vsel %vm1764, %v2734, 0
        %2738 = vmatprep.subr.mxu0 0.0
        %2739 = vmatpush1.msra.mxu0 %v2645
        %2740 = vmatprep.subr.mxu0 0.0
        %2741 = vmatpush1.msra.mxu0 0.0
        %2742 = vmatprep.subr.mxu0 0.0
        %2743 = vmatpush1.msra.mxu0 0.0
        %2744 = vmatprep.subr.mxu0 0.0
        %2745 = vmatpush1.msra.mxu0 0.0
        %2746 = vmatprep.subr.mxu0 0.0
        %2747 = vmatpush1.msra.mxu0 0.0
        %2748 = vmatprep.subr.mxu0 0.0
        %2749 = vmatpush1.msra.mxu0 0.0
        %2750 = vmatprep.subr.mxu0 0.0
        %2751 = vmatpush1.msra.mxu0 0.0
        %2752 = vmatprep.subr.mxu0 0.0
        %2753 = vmatpush1.msra.mxu0 0.0
        %2754 = vmatprep.subr.mxu0 0.0
        %2755 = vmatpush1.msra.mxu0 0.0
        %2756 = vmatprep.subr.mxu0 0.0
        %2757 = vmatpush1.msra.mxu0 0.0
        %2758 = vmatprep.subr.mxu0 0.0
        %2759 = vmatpush1.msra.mxu0 0.0
        %2760 = vmatprep.subr.mxu0 0.0
        %2761 = vmatpush1.msra.mxu0 0.0
        %2762 = vmatprep.subr.mxu0 0.0
        %2763 = vmatpush1.msra.mxu0 0.0
        %2764 = vmatprep.subr.mxu0 0.0
        %2765 = vmatpush1.msra.mxu0 0.0
        %2766 = vmatprep.subr.mxu0 0.0
        %2767 = vmatpush1.msra.mxu0 0.0
        %2768 = vmatprep.subr.mxu0 0.0
        %2769 = vmatpush1.msra.mxu0 0.0
        %2770 = vmatprep.subr.mxu0 0.0
        %2771 = vmatpush1.msra.mxu0 0.0
        %2772 = vmatprep.subr.mxu0 0.0
        %2773 = vmatpush1.msra.mxu0 0.0
        %2774 = vmatprep.subr.mxu0 0.0
        %2775 = vmatpush1.msra.mxu0 0.0
        %2776 = vmatprep.subr.mxu0 0.0
        %2777 = vmatpush1.msra.mxu0 0.0
        %2778 = vmatprep.subr.mxu0 0.0
        %2779 = vmatpush1.msra.mxu0 0.0
        %2780 = vmatprep.subr.mxu0 0.0
        %2781 = vmatpush1.msra.mxu0 0.0
        %2782 = vmatprep.subr.mxu0 0.0
        %2783 = vmatpush1.msra.mxu0 0.0
        %2784 = vmatprep.subr.mxu0 0.0
        %2785 = vmatpush1.msra.mxu0 0.0
        %2786 = vmatprep.subr.mxu0 0.0
        %2787 = vmatpush1.msra.mxu0 0.0
        %2788 = vmatprep.subr.mxu0 0.0
        %2789 = vmatpush1.msra.mxu0 0.0
        %2790 = vmatprep.subr.mxu0 0.0
        %2791 = vmatpush1.msra.mxu0 0.0
        %2792 = vmatprep.subr.mxu0 0.0
        %2793 = vmatpush1.msra.mxu0 0.0
        %2794 = vmatprep.subr.mxu0 0.0
        %2795 = vmatpush1.msra.mxu0 0.0
        %2796 = vmatprep.subr.mxu0 0.0
        %2797 = vmatpush1.msra.mxu0 0.0
        %2798 = vmatprep.subr.mxu0 0.0
        %2799 = vmatpush1.msra.mxu0 0.0
        %2800 = vmatprep.subr.mxu0 0.0
        %2801 = vmatpush1.msra.mxu0 0.0
        %2802 = vmatprep.mubr.f32.mxu0 0.0
        %2803 = vmatmul.mubr.f32.gmra.mrb[0].mxu0 %v2736
        %v2804 = vpop.f32.mrb[0].mxu0
        %v2805 = vadd.f32 0.0, %v2804
        %v2806 = vpop.f32.mrb[0].mxu0
        %2807 = vdwg.mxu0
        %s2808 = scalar_lea.vmem %s27, 128
        %v2809 = vld [vmem:[%s2808] sm:$0xff]
        %v2810 = vld [vmem:[%s2808 + $0x8] sm:$0xff]
        %v2811 = vld [vmem:[%s2808 + $0x10] sm:$0xff]
        %v2812 = vld [vmem:[%s2808 + $0x18] sm:$0xff]
        %v2813 = vld [vmem:[%s2808 + $0x20] sm:$0xff]
        %v2814 = vld [vmem:[%s2808 + $0x28] sm:$0xff]
        %v2815 = vld [vmem:[%s2808 + $0x30] sm:$0xff]
        %v2816 = vld [vmem:[%s2808 + $0x38] sm:$0xff]
        %v2817 = vld [vmem:[%s2808 + $0x40] sm:$0xff]
        %v2818 = vld [vmem:[%s2808 + $0x48] sm:$0xff]
        %v2819 = vld [vmem:[%s2808 + $0x50] sm:$0xff]
        %v2820 = vld [vmem:[%s2808 + $0x58] sm:$0xff]
        %v2821 = vld [vmem:[%s2808 + $0x60] sm:$0xff]
        %v2822 = vld [vmem:[%s2808 + $0x68] sm:$0xff]
        %v2823 = vld [vmem:[%s2808 + $0x70] sm:$0xff]
        %v2824 = vld [vmem:[%s2808 + $0x78] sm:$0xff]
        %2825 = vmatprep.subr.mxu0 0.0
        %2826 = vmatpush1.msra.mxu0 %v2809
        %2827 = vmatprep.subr.mxu0 0.0
        %2828 = vmatpush1.msra.mxu0 %v2810
        %2829 = vmatprep.subr.mxu0 0.0
        %2830 = vmatpush1.msra.mxu0 %v2811
        %2831 = vmatprep.subr.mxu0 0.0
        %2832 = vmatpush1.msra.mxu0 %v2812
        %2833 = vmatprep.subr.mxu0 0.0
        %2834 = vmatpush1.msra.mxu0 %v2813
        %2835 = vmatprep.subr.mxu0 0.0
        %2836 = vmatpush1.msra.mxu0 %v2814
        %2837 = vmatprep.subr.mxu0 0.0
        %2838 = vmatpush1.msra.mxu0 %v2815
        %2839 = vmatprep.subr.mxu0 0.0
        %2840 = vmatpush1.msra.mxu0 %v2816
        %2841 = vmatprep.subr.mxu0 0.0
        %2842 = vmatpush1.msra.mxu0 %v2817
        %2843 = vmatprep.subr.mxu0 0.0
        %2844 = vmatpush1.msra.mxu0 %v2818
        %2845 = vmatprep.subr.mxu0 0.0
        %2846 = vmatpush1.msra.mxu0 %v2819
        %2847 = vmatprep.subr.mxu0 0.0
        %2848 = vmatpush1.msra.mxu0 %v2820
        %2849 = vmatprep.subr.mxu0 0.0
        %2850 = vmatpush1.msra.mxu0 %v2821
        %2851 = vmatprep.subr.mxu0 0.0
        %2852 = vmatpush1.msra.mxu0 %v2822
        %2853 = vmatprep.subr.mxu0 0.0
        %2854 = vmatpush1.msra.mxu0 %v2823
        %2855 = vmatprep.subr.mxu0 0.0
        %2856 = vmatpush1.msra.mxu0 %v2824
        %2857 = vmatprep.subr.mxu0 0.0
        %2858 = vmatpush1.msra.mxu0 0.0
        %2859 = vmatprep.subr.mxu0 0.0
        %2860 = vmatpush1.msra.mxu0 0.0
        %2861 = vmatprep.subr.mxu0 0.0
        %2862 = vmatpush1.msra.mxu0 0.0
        %2863 = vmatprep.subr.mxu0 0.0
        %2864 = vmatpush1.msra.mxu0 0.0
        %2865 = vmatprep.subr.mxu0 0.0
        %2866 = vmatpush1.msra.mxu0 0.0
        %2867 = vmatprep.subr.mxu0 0.0
        %2868 = vmatpush1.msra.mxu0 0.0
        %2869 = vmatprep.subr.mxu0 0.0
        %2870 = vmatpush1.msra.mxu0 0.0
        %2871 = vmatprep.subr.mxu0 0.0
        %2872 = vmatpush1.msra.mxu0 0.0
        %2873 = vmatprep.subr.mxu0 0.0
        %2874 = vmatpush1.msra.mxu0 0.0
        %2875 = vmatprep.subr.mxu0 0.0
        %2876 = vmatpush1.msra.mxu0 0.0
        %2877 = vmatprep.subr.mxu0 0.0
        %2878 = vmatpush1.msra.mxu0 0.0
        %2879 = vmatprep.subr.mxu0 0.0
        %2880 = vmatpush1.msra.mxu0 0.0
        %2881 = vmatprep.subr.mxu0 0.0
        %2882 = vmatpush1.msra.mxu0 0.0
        %2883 = vmatprep.subr.mxu0 0.0
        %2884 = vmatpush1.msra.mxu0 0.0
        %2885 = vmatprep.subr.mxu0 0.0
        %2886 = vmatpush1.msra.mxu0 0.0
        %2887 = vmatprep.subr.mxu0 0.0
        %2888 = vmatpush1.msra.mxu0 0.0
        %2889 = vmatprep.mubr.f32.mxu0 0.0
        %2890 = vmatmul.mubr.f32.gmra.mrb[0].mxu0 %v2805
        %v2891 = vpop.f32.mrb[0].mxu0
        %v2892 = vadd.f32 0.0, %v2891
        %v2893 = vpop.f32.mrb[0].mxu0
        %2894 = vdwg.mxu0
        %2895 = vmatprep.subr.mxu0 0.0
        %2896 = vmatpush1.msra.mxu0 %v2717
        %2897 = vmatprep.subr.mxu0 0.0
        %2898 = vmatpush1.msra.mxu0 %v2718
        %2899 = vmatprep.subr.mxu0 0.0
        %2900 = vmatpush1.msra.mxu0 %v2719
        %2901 = vmatprep.subr.mxu0 0.0
        %2902 = vmatpush1.msra.mxu0 %v2720
        %2903 = vmatprep.subr.mxu0 0.0
        %2904 = vmatpush1.msra.mxu0 %v2721
        %2905 = vmatprep.subr.mxu0 0.0
        %2906 = vmatpush1.msra.mxu0 %v2722
        %2907 = vmatprep.subr.mxu0 0.0
        %2908 = vmatpush1.msra.mxu0 %v2723
        %2909 = vmatprep.subr.mxu0 0.0
        %2910 = vmatpush1.msra.mxu0 %v2724
        %2911 = vmatprep.subr.mxu0 0.0
        %2912 = vmatpush1.msra.mxu0 %v2725
        %2913 = vmatprep.subr.mxu0 0.0
        %2914 = vmatpush1.msra.mxu0 %v2726
        %2915 = vmatprep.subr.mxu0 0.0
        %2916 = vmatpush1.msra.mxu0 %v2727
        %2917 = vmatprep.subr.mxu0 0.0
        %2918 = vmatpush1.msra.mxu0 %v2728
        %2919 = vmatprep.subr.mxu0 0.0
        %2920 = vmatpush1.msra.mxu0 %v2729
        %2921 = vmatprep.subr.mxu0 0.0
        %2922 = vmatpush1.msra.mxu0 %v2730
        %2923 = vmatprep.subr.mxu0 0.0
        %2924 = vmatpush1.msra.mxu0 %v2731
        %2925 = vmatprep.subr.mxu0 0.0
        %2926 = vmatpush1.msra.mxu0 %v2732
        %2927 = vmatprep.subr.mxu0 0.0
        %2928 = vmatpush1.msra.mxu0 0.0
        %2929 = vmatprep.subr.mxu0 0.0
        %2930 = vmatpush1.msra.mxu0 0.0
        %2931 = vmatprep.subr.mxu0 0.0
        %2932 = vmatpush1.msra.mxu0 0.0
        %2933 = vmatprep.subr.mxu0 0.0
        %2934 = vmatpush1.msra.mxu0 0.0
        %2935 = vmatprep.subr.mxu0 0.0
        %2936 = vmatpush1.msra.mxu0 0.0
        %2937 = vmatprep.subr.mxu0 0.0
        %2938 = vmatpush1.msra.mxu0 0.0
        %2939 = vmatprep.subr.mxu0 0.0
        %2940 = vmatpush1.msra.mxu0 0.0
        %2941 = vmatprep.subr.mxu0 0.0
        %2942 = vmatpush1.msra.mxu0 0.0
        %2943 = vmatprep.subr.mxu0 0.0
        %2944 = vmatpush1.msra.mxu0 0.0
        %2945 = vmatprep.subr.mxu0 0.0
        %2946 = vmatpush1.msra.mxu0 0.0
        %2947 = vmatprep.subr.mxu0 0.0
        %2948 = vmatpush1.msra.mxu0 0.0
        %2949 = vmatprep.subr.mxu0 0.0
        %2950 = vmatpush1.msra.mxu0 0.0
        %2951 = vmatprep.subr.mxu0 0.0
        %2952 = vmatpush1.msra.mxu0 0.0
        %2953 = vmatprep.subr.mxu0 0.0
        %2954 = vmatpush1.msra.mxu0 0.0
        %2955 = vmatprep.subr.mxu0 0.0
        %2956 = vmatpush1.msra.mxu0 0.0
        %2957 = vmatprep.subr.mxu0 0.0
        %2958 = vmatpush1.msra.mxu0 0.0
        %2959 = vmatprep.mubr.f32.mxu0 0.0
        %2960 = vmatmul.mubr.f32.gmra.mrb[0].mxu0 %v2714
        %v2961 = vpop.f32.mrb[0].mxu0
        %v2962 = vadd.f32 %v2892, %v2961
        %v2963 = vpop.f32.mrb[0].mxu0
        %2964 = vdwg.mxu0
        %s2965 = scalar_lea.vmem %s23, 16
        %v2966 = vld [vmem:[%s2965] sm:$0xff]
        %v2968 = vsel %vm1764, %v2966, 0
        %2970 = vmatprep.subr.mxu0 0.0
        %2971 = vmatpush1.msra.mxu0 %v2645
        %2972 = vmatprep.subr.mxu0 0.0
        %2973 = vmatpush1.msra.mxu0 0.0
        %2974 = vmatprep.subr.mxu0 0.0
        %2975 = vmatpush1.msra.mxu0 0.0
        %2976 = vmatprep.subr.mxu0 0.0
        %2977 = vmatpush1.msra.mxu0 0.0
        %2978 = vmatprep.subr.mxu0 0.0
        %2979 = vmatpush1.msra.mxu0 0.0
        %2980 = vmatprep.subr.mxu0 0.0
        %2981 = vmatpush1.msra.mxu0 0.0
        %2982 = vmatprep.subr.mxu0 0.0
        %2983 = vmatpush1.msra.mxu0 0.0
        %2984 = vmatprep.subr.mxu0 0.0
        %2985 = vmatpush1.msra.mxu0 0.0
        %2986 = vmatprep.subr.mxu0 0.0
        %2987 = vmatpush1.msra.mxu0 0.0
        %2988 = vmatprep.subr.mxu0 0.0
        %2989 = vmatpush1.msra.mxu0 0.0
        %2990 = vmatprep.subr.mxu0 0.0
        %2991 = vmatpush1.msra.mxu0 0.0
        %2992 = vmatprep.subr.mxu0 0.0
        %2993 = vmatpush1.msra.mxu0 0.0
        %2994 = vmatprep.subr.mxu0 0.0
        %2995 = vmatpush1.msra.mxu0 0.0
        %2996 = vmatprep.subr.mxu0 0.0
        %2997 = vmatpush1.msra.mxu0 0.0
        %2998 = vmatprep.subr.mxu0 0.0
        %2999 = vmatpush1.msra.mxu0 0.0
        %3000 = vmatprep.subr.mxu0 0.0
        %3001 = vmatpush1.msra.mxu0 0.0
        %3002 = vmatprep.subr.mxu0 0.0
        %3003 = vmatpush1.msra.mxu0 0.0
        %3004 = vmatprep.subr.mxu0 0.0
        %3005 = vmatpush1.msra.mxu0 0.0
        %3006 = vmatprep.subr.mxu0 0.0
        %3007 = vmatpush1.msra.mxu0 0.0
        %3008 = vmatprep.subr.mxu0 0.0
        %3009 = vmatpush1.msra.mxu0 0.0
        %3010 = vmatprep.subr.mxu0 0.0
        %3011 = vmatpush1.msra.mxu0 0.0
        %3012 = vmatprep.subr.mxu0 0.0
        %3013 = vmatpush1.msra.mxu0 0.0
        %3014 = vmatprep.subr.mxu0 0.0
        %3015 = vmatpush1.msra.mxu0 0.0
        %3016 = vmatprep.subr.mxu0 0.0
        %3017 = vmatpush1.msra.mxu0 0.0
        %3018 = vmatprep.subr.mxu0 0.0
        %3019 = vmatpush1.msra.mxu0 0.0
        %3020 = vmatprep.subr.mxu0 0.0
        %3021 = vmatpush1.msra.mxu0 0.0
        %3022 = vmatprep.subr.mxu0 0.0
        %3023 = vmatpush1.msra.mxu0 0.0
        %3024 = vmatprep.subr.mxu0 0.0
        %3025 = vmatpush1.msra.mxu0 0.0
        %3026 = vmatprep.subr.mxu0 0.0
        %3027 = vmatpush1.msra.mxu0 0.0
        %3028 = vmatprep.subr.mxu0 0.0
        %3029 = vmatpush1.msra.mxu0 0.0
        %3030 = vmatprep.subr.mxu0 0.0
        %3031 = vmatpush1.msra.mxu0 0.0
        %3032 = vmatprep.subr.mxu0 0.0
        %3033 = vmatpush1.msra.mxu0 0.0
        %3034 = vmatprep.mubr.f32.mxu0 0.0
        %3035 = vmatmul.mubr.f32.gmra.mrb[0].mxu0 %v2968
        %v3036 = vpop.f32.mrb[0].mxu0
        %v3037 = vadd.f32 0.0, %v3036
        %v3038 = vpop.f32.mrb[0].mxu0
        %3039 = vdwg.mxu0
        %s3040 = scalar_lea.vmem %s27, 256
        %v3041 = vld [vmem:[%s3040] sm:$0xff]
        %v3042 = vld [vmem:[%s3040 + $0x8] sm:$0xff]
        %v3043 = vld [vmem:[%s3040 + $0x10] sm:$0xff]
        %v3044 = vld [vmem:[%s3040 + $0x18] sm:$0xff]
        %v3045 = vld [vmem:[%s3040 + $0x20] sm:$0xff]
        %v3046 = vld [vmem:[%s3040 + $0x28] sm:$0xff]
        %v3047 = vld [vmem:[%s3040 + $0x30] sm:$0xff]
        %v3048 = vld [vmem:[%s3040 + $0x38] sm:$0xff]
        %v3049 = vld [vmem:[%s3040 + $0x40] sm:$0xff]
        %v3050 = vld [vmem:[%s3040 + $0x48] sm:$0xff]
        %v3051 = vld [vmem:[%s3040 + $0x50] sm:$0xff]
        %v3052 = vld [vmem:[%s3040 + $0x58] sm:$0xff]
        %v3053 = vld [vmem:[%s3040 + $0x60] sm:$0xff]
        %v3054 = vld [vmem:[%s3040 + $0x68] sm:$0xff]
        %v3055 = vld [vmem:[%s3040 + $0x70] sm:$0xff]
        %v3056 = vld [vmem:[%s3040 + $0x78] sm:$0xff]
        %3057 = vmatprep.subr.mxu0 0.0
        %3058 = vmatpush1.msra.mxu0 %v3041
        %3059 = vmatprep.subr.mxu0 0.0
        %3060 = vmatpush1.msra.mxu0 %v3042
        %3061 = vmatprep.subr.mxu0 0.0
        %3062 = vmatpush1.msra.mxu0 %v3043
        %3063 = vmatprep.subr.mxu0 0.0
        %3064 = vmatpush1.msra.mxu0 %v3044
        %3065 = vmatprep.subr.mxu0 0.0
        %3066 = vmatpush1.msra.mxu0 %v3045
        %3067 = vmatprep.subr.mxu0 0.0
        %3068 = vmatpush1.msra.mxu0 %v3046
        %3069 = vmatprep.subr.mxu0 0.0
        %3070 = vmatpush1.msra.mxu0 %v3047
        %3071 = vmatprep.subr.mxu0 0.0
        %3072 = vmatpush1.msra.mxu0 %v3048
        %3073 = vmatprep.subr.mxu0 0.0
        %3074 = vmatpush1.msra.mxu0 %v3049
        %3075 = vmatprep.subr.mxu0 0.0
        %3076 = vmatpush1.msra.mxu0 %v3050
        %3077 = vmatprep.subr.mxu0 0.0
        %3078 = vmatpush1.msra.mxu0 %v3051
        %3079 = vmatprep.subr.mxu0 0.0
        %3080 = vmatpush1.msra.mxu0 %v3052
        %3081 = vmatprep.subr.mxu0 0.0
        %3082 = vmatpush1.msra.mxu0 %v3053
        %3083 = vmatprep.subr.mxu0 0.0
        %3084 = vmatpush1.msra.mxu0 %v3054
        %3085 = vmatprep.subr.mxu0 0.0
        %3086 = vmatpush1.msra.mxu0 %v3055
        %3087 = vmatprep.subr.mxu0 0.0
        %3088 = vmatpush1.msra.mxu0 %v3056
        %3089 = vmatprep.subr.mxu0 0.0
        %3090 = vmatpush1.msra.mxu0 0.0
        %3091 = vmatprep.subr.mxu0 0.0
        %3092 = vmatpush1.msra.mxu0 0.0
        %3093 = vmatprep.subr.mxu0 0.0
        %3094 = vmatpush1.msra.mxu0 0.0
        %3095 = vmatprep.subr.mxu0 0.0
        %3096 = vmatpush1.msra.mxu0 0.0
        %3097 = vmatprep.subr.mxu0 0.0
        %3098 = vmatpush1.msra.mxu0 0.0
        %3099 = vmatprep.subr.mxu0 0.0
        %3100 = vmatpush1.msra.mxu0 0.0
        %3101 = vmatprep.subr.mxu0 0.0
        %3102 = vmatpush1.msra.mxu0 0.0
        %3103 = vmatprep.subr.mxu0 0.0
        %3104 = vmatpush1.msra.mxu0 0.0
        %3105 = vmatprep.subr.mxu0 0.0
        %3106 = vmatpush1.msra.mxu0 0.0
        %3107 = vmatprep.subr.mxu0 0.0
        %3108 = vmatpush1.msra.mxu0 0.0
        %3109 = vmatprep.subr.mxu0 0.0
        %3110 = vmatpush1.msra.mxu0 0.0
        %3111 = vmatprep.subr.mxu0 0.0
        %3112 = vmatpush1.msra.mxu0 0.0
        %3113 = vmatprep.subr.mxu0 0.0
        %3114 = vmatpush1.msra.mxu0 0.0
        %3115 = vmatprep.subr.mxu0 0.0
        %3116 = vmatpush1.msra.mxu0 0.0
        %3117 = vmatprep.subr.mxu0 0.0
        %3118 = vmatpush1.msra.mxu0 0.0
        %3119 = vmatprep.subr.mxu0 0.0
        %3120 = vmatpush1.msra.mxu0 0.0
        %3121 = vmatprep.mubr.f32.mxu0 0.0
        %3122 = vmatmul.mubr.f32.gmra.mrb[0].mxu0 %v3037
        %v3123 = vpop.f32.mrb[0].mxu0
        %v3124 = vadd.f32 0.0, %v3123
        %v3125 = vpop.f32.mrb[0].mxu0
        %3126 = vdwg.mxu0
        %v3127 = vadd.f32 %v2962, %v3124
        %v3128 = vld [vmem:[#allocation13] sm:$0x1]
        %v3130 = vlaneseq
        %v3131 = vshrl.u32 %v3130, 7
        %v3132 = vsub.s32 0, %v3131
        %v3133 = vrot.slane %v3128, %v3132
        %v3135 = vadd.f32 %v3127, %v3133
        %v3136 = vmax.f32 %v3135, 0.0
        %vm3137 = vcmask 64512
        %v3138 = vsel %vm3137, %v1186, 0
        %3140 = vmatprep.subr.mxu0 0.0
        %3141 = vmatpush1.msra.mxu0 %v2558
        %3142 = vmatprep.subr.mxu0 0.0
        %3143 = vmatpush1.msra.mxu0 0.0
        %3144 = vmatprep.subr.mxu0 0.0
        %3145 = vmatpush1.msra.mxu0 0.0
        %3146 = vmatprep.subr.mxu0 0.0
        %3147 = vmatpush1.msra.mxu0 0.0
        %3148 = vmatprep.subr.mxu0 0.0
        %3149 = vmatpush1.msra.mxu0 0.0
        %3150 = vmatprep.subr.mxu0 0.0
        %3151 = vmatpush1.msra.mxu0 0.0
        %3152 = vmatprep.subr.mxu0 0.0
        %3153 = vmatpush1.msra.mxu0 0.0
        %3154 = vmatprep.subr.mxu0 0.0
        %3155 = vmatpush1.msra.mxu0 0.0
        %3156 = vmatprep.subr.mxu0 0.0
        %3157 = vmatpush1.msra.mxu0 0.0
        %3158 = vmatprep.subr.mxu0 0.0
        %3159 = vmatpush1.msra.mxu0 0.0
        %3160 = vmatprep.subr.mxu0 0.0
        %3161 = vmatpush1.msra.mxu0 0.0
        %3162 = vmatprep.subr.mxu0 0.0
        %3163 = vmatpush1.msra.mxu0 0.0
        %3164 = vmatprep.subr.mxu0 0.0
        %3165 = vmatpush1.msra.mxu0 0.0
        %3166 = vmatprep.subr.mxu0 0.0
        %3167 = vmatpush1.msra.mxu0 0.0
        %3168 = vmatprep.subr.mxu0 0.0
        %3169 = vmatpush1.msra.mxu0 0.0
        %3170 = vmatprep.subr.mxu0 0.0
        %3171 = vmatpush1.msra.mxu0 0.0
        %3172 = vmatprep.subr.mxu0 0.0
        %3173 = vmatpush1.msra.mxu0 0.0
        %3174 = vmatprep.subr.mxu0 0.0
        %3175 = vmatpush1.msra.mxu0 0.0
        %3176 = vmatprep.subr.mxu0 0.0
        %3177 = vmatpush1.msra.mxu0 0.0
        %3178 = vmatprep.subr.mxu0 0.0
        %3179 = vmatpush1.msra.mxu0 0.0
        %3180 = vmatprep.subr.mxu0 0.0
        %3181 = vmatpush1.msra.mxu0 0.0
        %3182 = vmatprep.subr.mxu0 0.0
        %3183 = vmatpush1.msra.mxu0 0.0
        %3184 = vmatprep.subr.mxu0 0.0
        %3185 = vmatpush1.msra.mxu0 0.0
        %3186 = vmatprep.subr.mxu0 0.0
        %3187 = vmatpush1.msra.mxu0 0.0
        %3188 = vmatprep.subr.mxu0 0.0
        %3189 = vmatpush1.msra.mxu0 0.0
        %3190 = vmatprep.subr.mxu0 0.0
        %3191 = vmatpush1.msra.mxu0 0.0
        %3192 = vmatprep.subr.mxu0 0.0
        %3193 = vmatpush1.msra.mxu0 0.0
        %3194 = vmatprep.subr.mxu0 0.0
        %3195 = vmatpush1.msra.mxu0 0.0
        %3196 = vmatprep.subr.mxu0 0.0
        %3197 = vmatpush1.msra.mxu0 0.0
        %3198 = vmatprep.subr.mxu0 0.0
        %3199 = vmatpush1.msra.mxu0 0.0
        %3200 = vmatprep.subr.mxu0 0.0
        %3201 = vmatpush1.msra.mxu0 0.0
        %3202 = vmatprep.subr.mxu0 0.0
        %3203 = vmatpush1.msra.mxu0 0.0
        %3204 = vmatprep.mubr.f32.mxu0 0.0
        %3205 = vmatmul.mubr.f32.gmra.mrb[0].mxu0 %v3138
        %v3206 = vpop.f32.mrb[0].mxu0
        %v3207 = vadd.f32 0.0, %v3206
        %v3208 = vpop.f32.mrb[0].mxu0
        %3209 = vdwg.mxu0
        %v3210 = vsel %vm3137, %v1190, 0
        %3212 = vmatprep.subr.mxu0 0.0
        %3213 = vmatpush1.msra.mxu0 %v2558
        %3214 = vmatprep.subr.mxu0 0.0
        %3215 = vmatpush1.msra.mxu0 0.0
        %3216 = vmatprep.subr.mxu0 0.0
        %3217 = vmatpush1.msra.mxu0 0.0
        %3218 = vmatprep.subr.mxu0 0.0
        %3219 = vmatpush1.msra.mxu0 0.0
        %3220 = vmatprep.subr.mxu0 0.0
        %3221 = vmatpush1.msra.mxu0 0.0
        %3222 = vmatprep.subr.mxu0 0.0
        %3223 = vmatpush1.msra.mxu0 0.0
        %3224 = vmatprep.subr.mxu0 0.0
        %3225 = vmatpush1.msra.mxu0 0.0
        %3226 = vmatprep.subr.mxu0 0.0
        %3227 = vmatpush1.msra.mxu0 0.0
        %3228 = vmatprep.subr.mxu0 0.0
        %3229 = vmatpush1.msra.mxu0 0.0
        %3230 = vmatprep.subr.mxu0 0.0
        %3231 = vmatpush1.msra.mxu0 0.0
        %3232 = vmatprep.subr.mxu0 0.0
        %3233 = vmatpush1.msra.mxu0 0.0
        %3234 = vmatprep.subr.mxu0 0.0
        %3235 = vmatpush1.msra.mxu0 0.0
        %3236 = vmatprep.subr.mxu0 0.0
        %3237 = vmatpush1.msra.mxu0 0.0
        %3238 = vmatprep.subr.mxu0 0.0
        %3239 = vmatpush1.msra.mxu0 0.0
        %3240 = vmatprep.subr.mxu0 0.0
        %3241 = vmatpush1.msra.mxu0 0.0
        %3242 = vmatprep.subr.mxu0 0.0
        %3243 = vmatpush1.msra.mxu0 0.0
        %3244 = vmatprep.subr.mxu0 0.0
        %3245 = vmatpush1.msra.mxu0 0.0
        %3246 = vmatprep.subr.mxu0 0.0
        %3247 = vmatpush1.msra.mxu0 0.0
        %3248 = vmatprep.subr.mxu0 0.0
        %3249 = vmatpush1.msra.mxu0 0.0
        %3250 = vmatprep.subr.mxu0 0.0
        %3251 = vmatpush1.msra.mxu0 0.0
        %3252 = vmatprep.subr.mxu0 0.0
        %3253 = vmatpush1.msra.mxu0 0.0
        %3254 = vmatprep.subr.mxu0 0.0
        %3255 = vmatpush1.msra.mxu0 0.0
        %3256 = vmatprep.subr.mxu0 0.0
        %3257 = vmatpush1.msra.mxu0 0.0
        %3258 = vmatprep.subr.mxu0 0.0
        %3259 = vmatpush1.msra.mxu0 0.0
        %3260 = vmatprep.subr.mxu0 0.0
        %3261 = vmatpush1.msra.mxu0 0.0
        %3262 = vmatprep.subr.mxu0 0.0
        %3263 = vmatpush1.msra.mxu0 0.0
        %3264 = vmatprep.subr.mxu0 0.0
        %3265 = vmatpush1.msra.mxu0 0.0
        %3266 = vmatprep.subr.mxu0 0.0
        %3267 = vmatpush1.msra.mxu0 0.0
        %3268 = vmatprep.subr.mxu0 0.0
        %3269 = vmatpush1.msra.mxu0 0.0
        %3270 = vmatprep.subr.mxu0 0.0
        %3271 = vmatpush1.msra.mxu0 0.0
        %3272 = vmatprep.subr.mxu0 0.0
        %3273 = vmatpush1.msra.mxu0 0.0
        %3274 = vmatprep.subr.mxu0 0.0
        %3275 = vmatpush1.msra.mxu0 0.0
        %3276 = vmatprep.mubr.f32.mxu0 0.0
        %3277 = vmatmul.mubr.f32.gmra.mrb[0].mxu0 %v3210
        %v3278 = vpop.f32.mrb[0].mxu0
        %v3279 = vadd.f32 0.0, %v3278
        %v3280 = vpop.f32.mrb[0].mxu0
        %3281 = vdwg.mxu0
        %v3282 = vld [vmem:[#allocation14] sm:$0xff]
        %v3283 = vld [vmem:[#allocation14 + $0x8] sm:$0xff]
        %v3284 = vld [vmem:[#allocation14 + $0x10] sm:$0xff]
        %v3285 = vld [vmem:[#allocation14 + $0x18] sm:$0xff]
        %v3286 = vld [vmem:[#allocation14 + $0x20] sm:$0xff]
        %v3287 = vld [vmem:[#allocation14 + $0x28] sm:$0xff]
        %v3288 = vld [vmem:[#allocation14 + $0x30] sm:$0xff]
        %v3289 = vld [vmem:[#allocation14 + $0x38] sm:$0xff]
        %v3290 = vld [vmem:[#allocation14 + $0x40] sm:$0xff]
        %v3291 = vld [vmem:[#allocation14 + $0x48] sm:$0xff]
        %v3292 = vld [vmem:[#allocation14 + $0x50] sm:$0xff]
        %v3293 = vld [vmem:[#allocation14 + $0x58] sm:$0xff]
        %v3294 = vld [vmem:[#allocation14 + $0x60] sm:$0xff]
        %v3295 = vld [vmem:[#allocation14 + $0x68] sm:$0xff]
        %v3296 = vld [vmem:[#allocation14 + $0x70] sm:$0xff]
        %v3297 = vld [vmem:[#allocation14 + $0x78] sm:$0xff]
        %s3298 = scalar_lea.vmem [#allocation14], 128
        %v3299 = vld [vmem:[%s3298] sm:$0xff]
        %v3300 = vld [vmem:[%s3298 + $0x8] sm:$0xff]
        %v3301 = vld [vmem:[%s3298 + $0x10] sm:$0xff]
        %v3302 = vld [vmem:[%s3298 + $0x18] sm:$0xff]
        %v3303 = vld [vmem:[%s3298 + $0x20] sm:$0xff]
        %v3304 = vld [vmem:[%s3298 + $0x28] sm:$0xff]
        %v3305 = vld [vmem:[%s3298 + $0x30] sm:$0xff]
        %v3306 = vld [vmem:[%s3298 + $0x38] sm:$0xff]
        %v3307 = vld [vmem:[%s3298 + $0x40] sm:$0xff]
        %v3308 = vld [vmem:[%s3298 + $0x48] sm:$0xff]
        %v3309 = vld [vmem:[%s3298 + $0x50] sm:$0xff]
        %v3310 = vld [vmem:[%s3298 + $0x58] sm:$0xff]
        %v3311 = vld [vmem:[%s3298 + $0x60] sm:$0xff]
        %v3312 = vld [vmem:[%s3298 + $0x68] sm:$0xff]
        %v3313 = vld [vmem:[%s3298 + $0x70] sm:$0xff]
        %v3314 = vld [vmem:[%s3298 + $0x78] sm:$0xff]
        %3315 = vmatprep.subr.mxu0 0.0
        %3316 = vmatpush1.msra.mxu0 %v3299
        %3317 = vmatprep.subr.mxu0 0.0
        %3318 = vmatpush1.msra.mxu0 %v3300
        %3319 = vmatprep.subr.mxu0 0.0
        %3320 = vmatpush1.msra.mxu0 %v3301
        %3321 = vmatprep.subr.mxu0 0.0
        %3322 = vmatpush1.msra.mxu0 %v3302
        %3323 = vmatprep.subr.mxu0 0.0
        %3324 = vmatpush1.msra.mxu0 %v3303
        %3325 = vmatprep.subr.mxu0 0.0
        %3326 = vmatpush1.msra.mxu0 %v3304
        %3327 = vmatprep.subr.mxu0 0.0
        %3328 = vmatpush1.msra.mxu0 %v3305
        %3329 = vmatprep.subr.mxu0 0.0
        %3330 = vmatpush1.msra.mxu0 %v3306
        %3331 = vmatprep.subr.mxu0 0.0
        %3332 = vmatpush1.msra.mxu0 %v3307
        %3333 = vmatprep.subr.mxu0 0.0
        %3334 = vmatpush1.msra.mxu0 %v3308
        %3335 = vmatprep.subr.mxu0 0.0
        %3336 = vmatpush1.msra.mxu0 %v3309
        %3337 = vmatprep.subr.mxu0 0.0
        %3338 = vmatpush1.msra.mxu0 %v3310
        %3339 = vmatprep.subr.mxu0 0.0
        %3340 = vmatpush1.msra.mxu0 %v3311
        %3341 = vmatprep.subr.mxu0 0.0
        %3342 = vmatpush1.msra.mxu0 %v3312
        %3343 = vmatprep.subr.mxu0 0.0
        %3344 = vmatpush1.msra.mxu0 %v3313
        %3345 = vmatprep.subr.mxu0 0.0
        %3346 = vmatpush1.msra.mxu0 %v3314
        %3347 = vmatprep.subr.mxu0 0.0
        %3348 = vmatpush1.msra.mxu0 0.0
        %3349 = vmatprep.subr.mxu0 0.0
        %3350 = vmatpush1.msra.mxu0 0.0
        %3351 = vmatprep.subr.mxu0 0.0
        %3352 = vmatpush1.msra.mxu0 0.0
        %3353 = vmatprep.subr.mxu0 0.0
        %3354 = vmatpush1.msra.mxu0 0.0
        %3355 = vmatprep.subr.mxu0 0.0
        %3356 = vmatpush1.msra.mxu0 0.0
        %3357 = vmatprep.subr.mxu0 0.0
        %3358 = vmatpush1.msra.mxu0 0.0
        %3359 = vmatprep.subr.mxu0 0.0
        %3360 = vmatpush1.msra.mxu0 0.0
        %3361 = vmatprep.subr.mxu0 0.0
        %3362 = vmatpush1.msra.mxu0 0.0
        %3363 = vmatprep.subr.mxu0 0.0
        %3364 = vmatpush1.msra.mxu0 0.0
        %3365 = vmatprep.subr.mxu0 0.0
        %3366 = vmatpush1.msra.mxu0 0.0
        %3367 = vmatprep.subr.mxu0 0.0
        %3368 = vmatpush1.msra.mxu0 0.0
        %3369 = vmatprep.subr.mxu0 0.0
        %3370 = vmatpush1.msra.mxu0 0.0
        %3371 = vmatprep.subr.mxu0 0.0
        %3372 = vmatpush1.msra.mxu0 0.0
        %3373 = vmatprep.subr.mxu0 0.0
        %3374 = vmatpush1.msra.mxu0 0.0
        %3375 = vmatprep.subr.mxu0 0.0
        %3376 = vmatpush1.msra.mxu0 0.0
        %3377 = vmatprep.subr.mxu0 0.0
        %3378 = vmatpush1.msra.mxu0 0.0
        %3379 = vmatprep.mubr.f32.mxu0 0.0
        %3380 = vmatmul.mubr.f32.gmra.mrb[0].mxu0 %v2558
        %v3381 = vpop.f32.mrb[0].mxu0
        %v3382 = vadd.f32 0.0, %v3381
        %v3383 = vpop.f32.mrb[0].mxu0
        %3384 = vdwg.mxu0
        %3385 = vmatprep.subr.mxu0 0.0
        %3386 = vmatpush1.msra.mxu0 %v3282
        %3387 = vmatprep.subr.mxu0 0.0
        %3388 = vmatpush1.msra.mxu0 %v3283
        %3389 = vmatprep.subr.mxu0 0.0
        %3390 = vmatpush1.msra.mxu0 %v3284
        %3391 = vmatprep.subr.mxu0 0.0
        %3392 = vmatpush1.msra.mxu0 %v3285
        %3393 = vmatprep.subr.mxu0 0.0
        %3394 = vmatpush1.msra.mxu0 %v3286
        %3395 = vmatprep.subr.mxu0 0.0
        %3396 = vmatpush1.msra.mxu0 %v3287
        %3397 = vmatprep.subr.mxu0 0.0
        %3398 = vmatpush1.msra.mxu0 %v3288
        %3399 = vmatprep.subr.mxu0 0.0
        %3400 = vmatpush1.msra.mxu0 %v3289
        %3401 = vmatprep.subr.mxu0 0.0
        %3402 = vmatpush1.msra.mxu0 %v3290
        %3403 = vmatprep.subr.mxu0 0.0
        %3404 = vmatpush1.msra.mxu0 %v3291
        %3405 = vmatprep.subr.mxu0 0.0
        %3406 = vmatpush1.msra.mxu0 %v3292
        %3407 = vmatprep.subr.mxu0 0.0
        %3408 = vmatpush1.msra.mxu0 %v3293
        %3409 = vmatprep.subr.mxu0 0.0
        %3410 = vmatpush1.msra.mxu0 %v3294
        %3411 = vmatprep.subr.mxu0 0.0
        %3412 = vmatpush1.msra.mxu0 %v3295
        %3413 = vmatprep.subr.mxu0 0.0
        %3414 = vmatpush1.msra.mxu0 %v3296
        %3415 = vmatprep.subr.mxu0 0.0
        %3416 = vmatpush1.msra.mxu0 %v3297
        %3417 = vmatprep.subr.mxu0 0.0
        %3418 = vmatpush1.msra.mxu0 0.0
        %3419 = vmatprep.subr.mxu0 0.0
        %3420 = vmatpush1.msra.mxu0 0.0
        %3421 = vmatprep.subr.mxu0 0.0
        %3422 = vmatpush1.msra.mxu0 0.0
        %3423 = vmatprep.subr.mxu0 0.0
        %3424 = vmatpush1.msra.mxu0 0.0
        %3425 = vmatprep.subr.mxu0 0.0
        %3426 = vmatpush1.msra.mxu0 0.0
        %3427 = vmatprep.subr.mxu0 0.0
        %3428 = vmatpush1.msra.mxu0 0.0
        %3429 = vmatprep.subr.mxu0 0.0
        %3430 = vmatpush1.msra.mxu0 0.0
        %3431 = vmatprep.subr.mxu0 0.0
        %3432 = vmatpush1.msra.mxu0 0.0
        %3433 = vmatprep.subr.mxu0 0.0
        %3434 = vmatpush1.msra.mxu0 0.0
        %3435 = vmatprep.subr.mxu0 0.0
        %3436 = vmatpush1.msra.mxu0 0.0
        %3437 = vmatprep.subr.mxu0 0.0
        %3438 = vmatpush1.msra.mxu0 0.0
        %3439 = vmatprep.subr.mxu0 0.0
        %3440 = vmatpush1.msra.mxu0 0.0
        %3441 = vmatprep.subr.mxu0 0.0
        %3442 = vmatpush1.msra.mxu0 0.0
        %3443 = vmatprep.subr.mxu0 0.0
        %3444 = vmatpush1.msra.mxu0 0.0
        %3445 = vmatprep.subr.mxu0 0.0
        %3446 = vmatpush1.msra.mxu0 0.0
        %3447 = vmatprep.subr.mxu0 0.0
        %3448 = vmatpush1.msra.mxu0 0.0
        %3449 = vmatprep.mubr.f32.mxu0 0.0
        %3450 = vmatmul.mubr.f32.gmra.mrb[0].mxu0 %v3207
        %v3451 = vpop.f32.mrb[0].mxu0
        %v3452 = vadd.f32 %v3382, %v3451
        %v3453 = vpop.f32.mrb[0].mxu0
        %3454 = vdwg.mxu0
        %s3455 = scalar_lea.vmem [#allocation14], 256
        %v3456 = vld [vmem:[%s3455] sm:$0xff]
        %v3457 = vld [vmem:[%s3455 + $0x8] sm:$0xff]
        %v3458 = vld [vmem:[%s3455 + $0x10] sm:$0xff]
        %v3459 = vld [vmem:[%s3455 + $0x18] sm:$0xff]
        %v3460 = vld [vmem:[%s3455 + $0x20] sm:$0xff]
        %v3461 = vld [vmem:[%s3455 + $0x28] sm:$0xff]
        %v3462 = vld [vmem:[%s3455 + $0x30] sm:$0xff]
        %v3463 = vld [vmem:[%s3455 + $0x38] sm:$0xff]
        %v3464 = vld [vmem:[%s3455 + $0x40] sm:$0xff]
        %v3465 = vld [vmem:[%s3455 + $0x48] sm:$0xff]
        %v3466 = vld [vmem:[%s3455 + $0x50] sm:$0xff]
        %v3467 = vld [vmem:[%s3455 + $0x58] sm:$0xff]
        %v3468 = vld [vmem:[%s3455 + $0x60] sm:$0xff]
        %v3469 = vld [vmem:[%s3455 + $0x68] sm:$0xff]
        %v3470 = vld [vmem:[%s3455 + $0x70] sm:$0xff]
        %v3471 = vld [vmem:[%s3455 + $0x78] sm:$0xff]
        %3472 = vmatprep.subr.mxu0 0.0
        %3473 = vmatpush1.msra.mxu0 %v3456
        %3474 = vmatprep.subr.mxu0 0.0
        %3475 = vmatpush1.msra.mxu0 %v3457
        %3476 = vmatprep.subr.mxu0 0.0
        %3477 = vmatpush1.msra.mxu0 %v3458
        %3478 = vmatprep.subr.mxu0 0.0
        %3479 = vmatpush1.msra.mxu0 %v3459
        %3480 = vmatprep.subr.mxu0 0.0
        %3481 = vmatpush1.msra.mxu0 %v3460
        %3482 = vmatprep.subr.mxu0 0.0
        %3483 = vmatpush1.msra.mxu0 %v3461
        %3484 = vmatprep.subr.mxu0 0.0
        %3485 = vmatpush1.msra.mxu0 %v3462
        %3486 = vmatprep.subr.mxu0 0.0
        %3487 = vmatpush1.msra.mxu0 %v3463
        %3488 = vmatprep.subr.mxu0 0.0
        %3489 = vmatpush1.msra.mxu0 %v3464
        %3490 = vmatprep.subr.mxu0 0.0
        %3491 = vmatpush1.msra.mxu0 %v3465
        %3492 = vmatprep.subr.mxu0 0.0
        %3493 = vmatpush1.msra.mxu0 %v3466
        %3494 = vmatprep.subr.mxu0 0.0
        %3495 = vmatpush1.msra.mxu0 %v3467
        %3496 = vmatprep.subr.mxu0 0.0
        %3497 = vmatpush1.msra.mxu0 %v3468
        %3498 = vmatprep.subr.mxu0 0.0
        %3499 = vmatpush1.msra.mxu0 %v3469
        %3500 = vmatprep.subr.mxu0 0.0
        %3501 = vmatpush1.msra.mxu0 %v3470
        %3502 = vmatprep.subr.mxu0 0.0
        %3503 = vmatpush1.msra.mxu0 %v3471
        %3504 = vmatprep.subr.mxu0 0.0
        %3505 = vmatpush1.msra.mxu0 0.0
        %3506 = vmatprep.subr.mxu0 0.0
        %3507 = vmatpush1.msra.mxu0 0.0
        %3508 = vmatprep.subr.mxu0 0.0
        %3509 = vmatpush1.msra.mxu0 0.0
        %3510 = vmatprep.subr.mxu0 0.0
        %3511 = vmatpush1.msra.mxu0 0.0
        %3512 = vmatprep.subr.mxu0 0.0
        %3513 = vmatpush1.msra.mxu0 0.0
        %3514 = vmatprep.subr.mxu0 0.0
        %3515 = vmatpush1.msra.mxu0 0.0
        %3516 = vmatprep.subr.mxu0 0.0
        %3517 = vmatpush1.msra.mxu0 0.0
        %3518 = vmatprep.subr.mxu0 0.0
        %3519 = vmatpush1.msra.mxu0 0.0
        %3520 = vmatprep.subr.mxu0 0.0
        %3521 = vmatpush1.msra.mxu0 0.0
        %3522 = vmatprep.subr.mxu0 0.0
        %3523 = vmatpush1.msra.mxu0 0.0
        %3524 = vmatprep.subr.mxu0 0.0
        %3525 = vmatpush1.msra.mxu0 0.0
        %3526 = vmatprep.subr.mxu0 0.0
        %3527 = vmatpush1.msra.mxu0 0.0
        %3528 = vmatprep.subr.mxu0 0.0
        %3529 = vmatpush1.msra.mxu0 0.0
        %3530 = vmatprep.subr.mxu0 0.0
        %3531 = vmatpush1.msra.mxu0 0.0
        %3532 = vmatprep.subr.mxu0 0.0
        %3533 = vmatpush1.msra.mxu0 0.0
        %3534 = vmatprep.subr.mxu0 0.0
        %3535 = vmatpush1.msra.mxu0 0.0
        %3536 = vmatprep.mubr.f32.mxu0 0.0
        %3537 = vmatmul.mubr.f32.gmra.mrb[0].mxu0 %v3279
        %v3538 = vpop.f32.mrb[0].mxu0
        %v3539 = vadd.f32 0.0, %v3538
        %v3540 = vpop.f32.mrb[0].mxu0
        %3541 = vdwg.mxu0
        %v3542 = vadd.f32 %v3452, %v3539
        %3543 = vmatprep.subr.mxu0 0.0
        %3544 = vmatpush1.msra.mxu0 %v3136
        %3545 = vmatprep.subr.mxu0 0.0
        %3546 = vmatpush1.msra.mxu0 0.0
        %3547 = vmatprep.subr.mxu0 0.0
        %3548 = vmatpush1.msra.mxu0 0.0
        %3549 = vmatprep.subr.mxu0 0.0
        %3550 = vmatpush1.msra.mxu0 0.0
        %3551 = vmatprep.subr.mxu0 0.0
        %3552 = vmatpush1.msra.mxu0 0.0
        %3553 = vmatprep.subr.mxu0 0.0
        %3554 = vmatpush1.msra.mxu0 0.0
        %3555 = vmatprep.subr.mxu0 0.0
        %3556 = vmatpush1.msra.mxu0 0.0
        %3557 = vmatprep.subr.mxu0 0.0
        %3558 = vmatpush1.msra.mxu0 0.0
        %3559 = vmatprep.subr.mxu0 0.0
        %3560 = vmatpush1.msra.mxu0 0.0
        %3561 = vmatprep.subr.mxu0 0.0
        %3562 = vmatpush1.msra.mxu0 0.0
        %3563 = vmatprep.subr.mxu0 0.0
        %3564 = vmatpush1.msra.mxu0 0.0
        %3565 = vmatprep.subr.mxu0 0.0
        %3566 = vmatpush1.msra.mxu0 0.0
        %3567 = vmatprep.subr.mxu0 0.0
        %3568 = vmatpush1.msra.mxu0 0.0
        %3569 = vmatprep.subr.mxu0 0.0
        %3570 = vmatpush1.msra.mxu0 0.0
        %3571 = vmatprep.subr.mxu0 0.0
        %3572 = vmatpush1.msra.mxu0 0.0
        %3573 = vmatprep.subr.mxu0 0.0
        %3574 = vmatpush1.msra.mxu0 0.0
        %3575 = vmatprep.subr.mxu0 0.0
        %3576 = vmatpush1.msra.mxu0 0.0
        %3577 = vmatprep.subr.mxu0 0.0
        %3578 = vmatpush1.msra.mxu0 0.0
        %3579 = vmatprep.subr.mxu0 0.0
        %3580 = vmatpush1.msra.mxu0 0.0
        %3581 = vmatprep.subr.mxu0 0.0
        %3582 = vmatpush1.msra.mxu0 0.0
        %3583 = vmatprep.subr.mxu0 0.0
        %3584 = vmatpush1.msra.mxu0 0.0
        %3585 = vmatprep.subr.mxu0 0.0
        %3586 = vmatpush1.msra.mxu0 0.0
        %3587 = vmatprep.subr.mxu0 0.0
        %3588 = vmatpush1.msra.mxu0 0.0
        %3589 = vmatprep.subr.mxu0 0.0
        %3590 = vmatpush1.msra.mxu0 0.0
        %3591 = vmatprep.subr.mxu0 0.0
        %3592 = vmatpush1.msra.mxu0 0.0
        %3593 = vmatprep.subr.mxu0 0.0
        %3594 = vmatpush1.msra.mxu0 0.0
        %3595 = vmatprep.subr.mxu0 0.0
        %3596 = vmatpush1.msra.mxu0 0.0
        %3597 = vmatprep.subr.mxu0 0.0
        %3598 = vmatpush1.msra.mxu0 0.0
        %3599 = vmatprep.subr.mxu0 0.0
        %3600 = vmatpush1.msra.mxu0 0.0
        %3601 = vmatprep.subr.mxu0 0.0
        %3602 = vmatpush1.msra.mxu0 0.0
        %3603 = vmatprep.subr.mxu0 0.0
        %3604 = vmatpush1.msra.mxu0 0.0
        %3605 = vmatprep.subr.mxu0 0.0
        %3606 = vmatpush1.msra.mxu0 0.0
        %3607 = vmatprep.mubr.f32.mxu0 0.0
        %3608 = vmatmul.mubr.f32.gmra.mrb[0].mxu0 %v3138
        %v3609 = vpop.f32.mrb[0].mxu0
        %v3610 = vadd.f32 0.0, %v3609
        %v3611 = vpop.f32.mrb[0].mxu0
        %3612 = vdwg.mxu0
        %3613 = vmatprep.subr.mxu0 0.0
        %3614 = vmatpush1.msra.mxu0 %v3136
        %3615 = vmatprep.subr.mxu0 0.0
        %3616 = vmatpush1.msra.mxu0 0.0
        %3617 = vmatprep.subr.mxu0 0.0
        %3618 = vmatpush1.msra.mxu0 0.0
        %3619 = vmatprep.subr.mxu0 0.0
        %3620 = vmatpush1.msra.mxu0 0.0
        %3621 = vmatprep.subr.mxu0 0.0
        %3622 = vmatpush1.msra.mxu0 0.0
        %3623 = vmatprep.subr.mxu0 0.0
        %3624 = vmatpush1.msra.mxu0 0.0
        %3625 = vmatprep.subr.mxu0 0.0
        %3626 = vmatpush1.msra.mxu0 0.0
        %3627 = vmatprep.subr.mxu0 0.0
        %3628 = vmatpush1.msra.mxu0 0.0
        %3629 = vmatprep.subr.mxu0 0.0
        %3630 = vmatpush1.msra.mxu0 0.0
        %3631 = vmatprep.subr.mxu0 0.0
        %3632 = vmatpush1.msra.mxu0 0.0
        %3633 = vmatprep.subr.mxu0 0.0
        %3634 = vmatpush1.msra.mxu0 0.0
        %3635 = vmatprep.subr.mxu0 0.0
        %3636 = vmatpush1.msra.mxu0 0.0
        %3637 = vmatprep.subr.mxu0 0.0
        %3638 = vmatpush1.msra.mxu0 0.0
        %3639 = vmatprep.subr.mxu0 0.0
        %3640 = vmatpush1.msra.mxu0 0.0
        %3641 = vmatprep.subr.mxu0 0.0
        %3642 = vmatpush1.msra.mxu0 0.0
        %3643 = vmatprep.subr.mxu0 0.0
        %3644 = vmatpush1.msra.mxu0 0.0
        %3645 = vmatprep.subr.mxu0 0.0
        %3646 = vmatpush1.msra.mxu0 0.0
        %3647 = vmatprep.subr.mxu0 0.0
        %3648 = vmatpush1.msra.mxu0 0.0
        %3649 = vmatprep.subr.mxu0 0.0
        %3650 = vmatpush1.msra.mxu0 0.0
        %3651 = vmatprep.subr.mxu0 0.0
        %3652 = vmatpush1.msra.mxu0 0.0
        %3653 = vmatprep.subr.mxu0 0.0
        %3654 = vmatpush1.msra.mxu0 0.0
        %3655 = vmatprep.subr.mxu0 0.0
        %3656 = vmatpush1.msra.mxu0 0.0
        %3657 = vmatprep.subr.mxu0 0.0
        %3658 = vmatpush1.msra.mxu0 0.0
        %3659 = vmatprep.subr.mxu0 0.0
        %3660 = vmatpush1.msra.mxu0 0.0
        %3661 = vmatprep.subr.mxu0 0.0
        %3662 = vmatpush1.msra.mxu0 0.0
        %3663 = vmatprep.subr.mxu0 0.0
        %3664 = vmatpush1.msra.mxu0 0.0
        %3665 = vmatprep.subr.mxu0 0.0
        %3666 = vmatpush1.msra.mxu0 0.0
        %3667 = vmatprep.subr.mxu0 0.0
        %3668 = vmatpush1.msra.mxu0 0.0
        %3669 = vmatprep.subr.mxu0 0.0
        %3670 = vmatpush1.msra.mxu0 0.0
        %3671 = vmatprep.subr.mxu0 0.0
        %3672 = vmatpush1.msra.mxu0 0.0
        %3673 = vmatprep.subr.mxu0 0.0
        %3674 = vmatpush1.msra.mxu0 0.0
        %3675 = vmatprep.subr.mxu0 0.0
        %3676 = vmatpush1.msra.mxu0 0.0
        %3677 = vmatprep.mubr.f32.mxu0 0.0
        %3678 = vmatmul.mubr.f32.gmra.mrb[0].mxu0 %v3210
        %v3679 = vpop.f32.mrb[0].mxu0
        %v3680 = vadd.f32 0.0, %v3679
        %v3681 = vpop.f32.mrb[0].mxu0
        %3682 = vdwg.mxu0
        %v3683 = vld [vmem:[#allocation16] sm:$0xff]
        %v3684 = vld [vmem:[#allocation16 + $0x8] sm:$0xff]
        %v3685 = vld [vmem:[#allocation16 + $0x10] sm:$0xff]
        %v3686 = vld [vmem:[#allocation16 + $0x18] sm:$0xff]
        %v3687 = vld [vmem:[#allocation16 + $0x20] sm:$0xff]
        %v3688 = vld [vmem:[#allocation16 + $0x28] sm:$0xff]
        %v3689 = vld [vmem:[#allocation16 + $0x30] sm:$0xff]
        %v3690 = vld [vmem:[#allocation16 + $0x38] sm:$0xff]
        %v3691 = vld [vmem:[#allocation16 + $0x40] sm:$0xff]
        %v3692 = vld [vmem:[#allocation16 + $0x48] sm:$0xff]
        %v3693 = vld [vmem:[#allocation16 + $0x50] sm:$0xff]
        %v3694 = vld [vmem:[#allocation16 + $0x58] sm:$0xff]
        %v3695 = vld [vmem:[#allocation16 + $0x60] sm:$0xff]
        %v3696 = vld [vmem:[#allocation16 + $0x68] sm:$0xff]
        %v3697 = vld [vmem:[#allocation16 + $0x70] sm:$0xff]
        %v3698 = vld [vmem:[#allocation16 + $0x78] sm:$0xff]
        %s3699 = scalar_lea.vmem [#allocation16], 128
        %v3700 = vld [vmem:[%s3699] sm:$0xff]
        %v3701 = vld [vmem:[%s3699 + $0x8] sm:$0xff]
        %v3702 = vld [vmem:[%s3699 + $0x10] sm:$0xff]
        %v3703 = vld [vmem:[%s3699 + $0x18] sm:$0xff]
        %v3704 = vld [vmem:[%s3699 + $0x20] sm:$0xff]
        %v3705 = vld [vmem:[%s3699 + $0x28] sm:$0xff]
        %v3706 = vld [vmem:[%s3699 + $0x30] sm:$0xff]
        %v3707 = vld [vmem:[%s3699 + $0x38] sm:$0xff]
        %v3708 = vld [vmem:[%s3699 + $0x40] sm:$0xff]
        %v3709 = vld [vmem:[%s3699 + $0x48] sm:$0xff]
        %v3710 = vld [vmem:[%s3699 + $0x50] sm:$0xff]
        %v3711 = vld [vmem:[%s3699 + $0x58] sm:$0xff]
        %v3712 = vld [vmem:[%s3699 + $0x60] sm:$0xff]
        %v3713 = vld [vmem:[%s3699 + $0x68] sm:$0xff]
        %v3714 = vld [vmem:[%s3699 + $0x70] sm:$0xff]
        %v3715 = vld [vmem:[%s3699 + $0x78] sm:$0xff]
        %3716 = vmatprep.subr.mxu0 0.0
        %3717 = vmatpush1.msra.mxu0 %v3700
        %3718 = vmatprep.subr.mxu0 0.0
        %3719 = vmatpush1.msra.mxu0 %v3701
        %3720 = vmatprep.subr.mxu0 0.0
        %3721 = vmatpush1.msra.mxu0 %v3702
        %3722 = vmatprep.subr.mxu0 0.0
        %3723 = vmatpush1.msra.mxu0 %v3703
        %3724 = vmatprep.subr.mxu0 0.0
        %3725 = vmatpush1.msra.mxu0 %v3704
        %3726 = vmatprep.subr.mxu0 0.0
        %3727 = vmatpush1.msra.mxu0 %v3705
        %3728 = vmatprep.subr.mxu0 0.0
        %3729 = vmatpush1.msra.mxu0 %v3706
        %3730 = vmatprep.subr.mxu0 0.0
        %3731 = vmatpush1.msra.mxu0 %v3707
        %3732 = vmatprep.subr.mxu0 0.0
        %3733 = vmatpush1.msra.mxu0 %v3708
        %3734 = vmatprep.subr.mxu0 0.0
        %3735 = vmatpush1.msra.mxu0 %v3709
        %3736 = vmatprep.subr.mxu0 0.0
        %3737 = vmatpush1.msra.mxu0 %v3710
        %3738 = vmatprep.subr.mxu0 0.0
        %3739 = vmatpush1.msra.mxu0 %v3711
        %3740 = vmatprep.subr.mxu0 0.0
        %3741 = vmatpush1.msra.mxu0 %v3712
        %3742 = vmatprep.subr.mxu0 0.0
        %3743 = vmatpush1.msra.mxu0 %v3713
        %3744 = vmatprep.subr.mxu0 0.0
        %3745 = vmatpush1.msra.mxu0 %v3714
        %3746 = vmatprep.subr.mxu0 0.0
        %3747 = vmatpush1.msra.mxu0 %v3715
        %3748 = vmatprep.subr.mxu0 0.0
        %3749 = vmatpush1.msra.mxu0 0.0
        %3750 = vmatprep.subr.mxu0 0.0
        %3751 = vmatpush1.msra.mxu0 0.0
        %3752 = vmatprep.subr.mxu0 0.0
        %3753 = vmatpush1.msra.mxu0 0.0
        %3754 = vmatprep.subr.mxu0 0.0
        %3755 = vmatpush1.msra.mxu0 0.0
        %3756 = vmatprep.subr.mxu0 0.0
        %3757 = vmatpush1.msra.mxu0 0.0
        %3758 = vmatprep.subr.mxu0 0.0
        %3759 = vmatpush1.msra.mxu0 0.0
        %3760 = vmatprep.subr.mxu0 0.0
        %3761 = vmatpush1.msra.mxu0 0.0
        %3762 = vmatprep.subr.mxu0 0.0
        %3763 = vmatpush1.msra.mxu0 0.0
        %3764 = vmatprep.subr.mxu0 0.0
        %3765 = vmatpush1.msra.mxu0 0.0
        %3766 = vmatprep.subr.mxu0 0.0
        %3767 = vmatpush1.msra.mxu0 0.0
        %3768 = vmatprep.subr.mxu0 0.0
        %3769 = vmatpush1.msra.mxu0 0.0
        %3770 = vmatprep.subr.mxu0 0.0
        %3771 = vmatpush1.msra.mxu0 0.0
        %3772 = vmatprep.subr.mxu0 0.0
        %3773 = vmatpush1.msra.mxu0 0.0
        %3774 = vmatprep.subr.mxu0 0.0
        %3775 = vmatpush1.msra.mxu0 0.0
        %3776 = vmatprep.subr.mxu0 0.0
        %3777 = vmatpush1.msra.mxu0 0.0
        %3778 = vmatprep.subr.mxu0 0.0
        %3779 = vmatpush1.msra.mxu0 0.0
        %3780 = vmatprep.mubr.f32.mxu0 0.0
        %3781 = vmatmul.mubr.f32.gmra.mrb[0].mxu0 %v3136
        %v3782 = vpop.f32.mrb[0].mxu0
        %v3783 = vadd.f32 0.0, %v3782
        %v3784 = vpop.f32.mrb[0].mxu0
        %3785 = vdwg.mxu0
        %3786 = vmatprep.subr.mxu0 0.0
        %3787 = vmatpush1.msra.mxu0 %v3683
        %3788 = vmatprep.subr.mxu0 0.0
        %3789 = vmatpush1.msra.mxu0 %v3684
        %3790 = vmatprep.subr.mxu0 0.0
        %3791 = vmatpush1.msra.mxu0 %v3685
        %3792 = vmatprep.subr.mxu0 0.0
        %3793 = vmatpush1.msra.mxu0 %v3686
        %3794 = vmatprep.subr.mxu0 0.0
        %3795 = vmatpush1.msra.mxu0 %v3687
        %3796 = vmatprep.subr.mxu0 0.0
        %3797 = vmatpush1.msra.mxu0 %v3688
        %3798 = vmatprep.subr.mxu0 0.0
        %3799 = vmatpush1.msra.mxu0 %v3689
        %3800 = vmatprep.subr.mxu0 0.0
        %3801 = vmatpush1.msra.mxu0 %v3690
        %3802 = vmatprep.subr.mxu0 0.0
        %3803 = vmatpush1.msra.mxu0 %v3691
        %3804 = vmatprep.subr.mxu0 0.0
        %3805 = vmatpush1.msra.mxu0 %v3692
        %3806 = vmatprep.subr.mxu0 0.0
        %3807 = vmatpush1.msra.mxu0 %v3693
        %3808 = vmatprep.subr.mxu0 0.0
        %3809 = vmatpush1.msra.mxu0 %v3694
        %3810 = vmatprep.subr.mxu0 0.0
        %3811 = vmatpush1.msra.mxu0 %v3695
        %3812 = vmatprep.subr.mxu0 0.0
        %3813 = vmatpush1.msra.mxu0 %v3696
        %3814 = vmatprep.subr.mxu0 0.0
        %3815 = vmatpush1.msra.mxu0 %v3697
        %3816 = vmatprep.subr.mxu0 0.0
        %3817 = vmatpush1.msra.mxu0 %v3698
        %3818 = vmatprep.subr.mxu0 0.0
        %3819 = vmatpush1.msra.mxu0 0.0
        %3820 = vmatprep.subr.mxu0 0.0
        %3821 = vmatpush1.msra.mxu0 0.0
        %3822 = vmatprep.subr.mxu0 0.0
        %3823 = vmatpush1.msra.mxu0 0.0
        %3824 = vmatprep.subr.mxu0 0.0
        %3825 = vmatpush1.msra.mxu0 0.0
        %3826 = vmatprep.subr.mxu0 0.0
        %3827 = vmatpush1.msra.mxu0 0.0
        %3828 = vmatprep.subr.mxu0 0.0
        %3829 = vmatpush1.msra.mxu0 0.0
        %3830 = vmatprep.subr.mxu0 0.0
        %3831 = vmatpush1.msra.mxu0 0.0
        %3832 = vmatprep.subr.mxu0 0.0
        %3833 = vmatpush1.msra.mxu0 0.0
        %3834 = vmatprep.subr.mxu0 0.0
        %3835 = vmatpush1.msra.mxu0 0.0
        %3836 = vmatprep.subr.mxu0 0.0
        %3837 = vmatpush1.msra.mxu0 0.0
        %3838 = vmatprep.subr.mxu0 0.0
        %3839 = vmatpush1.msra.mxu0 0.0
        %3840 = vmatprep.subr.mxu0 0.0
        %3841 = vmatpush1.msra.mxu0 0.0
        %3842 = vmatprep.subr.mxu0 0.0
        %3843 = vmatpush1.msra.mxu0 0.0
        %3844 = vmatprep.subr.mxu0 0.0
        %3845 = vmatpush1.msra.mxu0 0.0
        %3846 = vmatprep.subr.mxu0 0.0
        %3847 = vmatpush1.msra.mxu0 0.0
        %3848 = vmatprep.subr.mxu0 0.0
        %3849 = vmatpush1.msra.mxu0 0.0
        %3850 = vmatprep.mubr.f32.mxu0 0.0
        %3851 = vmatmul.mubr.f32.gmra.mrb[0].mxu0 %v3610
        %v3852 = vpop.f32.mrb[0].mxu0
        %v3853 = vadd.f32 %v3783, %v3852
        %v3854 = vpop.f32.mrb[0].mxu0
        %3855 = vdwg.mxu0
        %s3856 = scalar_lea.vmem [#allocation16], 256
        %v3857 = vld [vmem:[%s3856] sm:$0xff]
        %v3858 = vld [vmem:[%s3856 + $0x8] sm:$0xff]
        %v3859 = vld [vmem:[%s3856 + $0x10] sm:$0xff]
        %v3860 = vld [vmem:[%s3856 + $0x18] sm:$0xff]
        %v3861 = vld [vmem:[%s3856 + $0x20] sm:$0xff]
        %v3862 = vld [vmem:[%s3856 + $0x28] sm:$0xff]
        %v3863 = vld [vmem:[%s3856 + $0x30] sm:$0xff]
        %v3864 = vld [vmem:[%s3856 + $0x38] sm:$0xff]
        %v3865 = vld [vmem:[%s3856 + $0x40] sm:$0xff]
        %v3866 = vld [vmem:[%s3856 + $0x48] sm:$0xff]
        %v3867 = vld [vmem:[%s3856 + $0x50] sm:$0xff]
        %v3868 = vld [vmem:[%s3856 + $0x58] sm:$0xff]
        %v3869 = vld [vmem:[%s3856 + $0x60] sm:$0xff]
        %v3870 = vld [vmem:[%s3856 + $0x68] sm:$0xff]
        %v3871 = vld [vmem:[%s3856 + $0x70] sm:$0xff]
        %v3872 = vld [vmem:[%s3856 + $0x78] sm:$0xff]
        %3873 = vmatprep.subr.mxu0 0.0
        %3874 = vmatpush1.msra.mxu0 %v3857
        %3875 = vmatprep.subr.mxu0 0.0
        %3876 = vmatpush1.msra.mxu0 %v3858
        %3877 = vmatprep.subr.mxu0 0.0
        %3878 = vmatpush1.msra.mxu0 %v3859
        %3879 = vmatprep.subr.mxu0 0.0
        %3880 = vmatpush1.msra.mxu0 %v3860
        %3881 = vmatprep.subr.mxu0 0.0
        %3882 = vmatpush1.msra.mxu0 %v3861
        %3883 = vmatprep.subr.mxu0 0.0
        %3884 = vmatpush1.msra.mxu0 %v3862
        %3885 = vmatprep.subr.mxu0 0.0
        %3886 = vmatpush1.msra.mxu0 %v3863
        %3887 = vmatprep.subr.mxu0 0.0
        %3888 = vmatpush1.msra.mxu0 %v3864
        %3889 = vmatprep.subr.mxu0 0.0
        %3890 = vmatpush1.msra.mxu0 %v3865
        %3891 = vmatprep.subr.mxu0 0.0
        %3892 = vmatpush1.msra.mxu0 %v3866
        %3893 = vmatprep.subr.mxu0 0.0
        %3894 = vmatpush1.msra.mxu0 %v3867
        %3895 = vmatprep.subr.mxu0 0.0
        %3896 = vmatpush1.msra.mxu0 %v3868
        %3897 = vmatprep.subr.mxu0 0.0
        %3898 = vmatpush1.msra.mxu0 %v3869
        %3899 = vmatprep.subr.mxu0 0.0
        %3900 = vmatpush1.msra.mxu0 %v3870
        %3901 = vmatprep.subr.mxu0 0.0
        %3902 = vmatpush1.msra.mxu0 %v3871
        %3903 = vmatprep.subr.mxu0 0.0
        %3904 = vmatpush1.msra.mxu0 %v3872
        %3905 = vmatprep.subr.mxu0 0.0
        %3906 = vmatpush1.msra.mxu0 0.0
        %3907 = vmatprep.subr.mxu0 0.0
        %3908 = vmatpush1.msra.mxu0 0.0
        %3909 = vmatprep.subr.mxu0 0.0
        %3910 = vmatpush1.msra.mxu0 0.0
        %3911 = vmatprep.subr.mxu0 0.0
        %3912 = vmatpush1.msra.mxu0 0.0
        %3913 = vmatprep.subr.mxu0 0.0
        %3914 = vmatpush1.msra.mxu0 0.0
        %3915 = vmatprep.subr.mxu0 0.0
        %3916 = vmatpush1.msra.mxu0 0.0
        %3917 = vmatprep.subr.mxu0 0.0
        %3918 = vmatpush1.msra.mxu0 0.0
        %3919 = vmatprep.subr.mxu0 0.0
        %3920 = vmatpush1.msra.mxu0 0.0
        %3921 = vmatprep.subr.mxu0 0.0
        %3922 = vmatpush1.msra.mxu0 0.0
        %3923 = vmatprep.subr.mxu0 0.0
        %3924 = vmatpush1.msra.mxu0 0.0
        %3925 = vmatprep.subr.mxu0 0.0
        %3926 = vmatpush1.msra.mxu0 0.0
        %3927 = vmatprep.subr.mxu0 0.0
        %3928 = vmatpush1.msra.mxu0 0.0
        %3929 = vmatprep.subr.mxu0 0.0
        %3930 = vmatpush1.msra.mxu0 0.0
        %3931 = vmatprep.subr.mxu0 0.0
        %3932 = vmatpush1.msra.mxu0 0.0
        %3933 = vmatprep.subr.mxu0 0.0
        %3934 = vmatpush1.msra.mxu0 0.0
        %3935 = vmatprep.subr.mxu0 0.0
        %3936 = vmatpush1.msra.mxu0 0.0
        %3937 = vmatprep.mubr.f32.mxu0 0.0
        %3938 = vmatmul.mubr.f32.gmra.mrb[0].mxu0 %v3680
        %v3939 = vpop.f32.mrb[0].mxu0
        %v3940 = vadd.f32 0.0, %v3939
        %v3941 = vpop.f32.mrb[0].mxu0
        %3942 = vdwg.mxu0
        %v3943 = vadd.f32 %v3853, %v3940
        %v3944 = vadd.f32 %v3542, %v3943
        %v3945 = vld [vmem:[#allocation17] sm:$0x1]
        %v3947 = vlaneseq
        %v3948 = vshrl.u32 %v3947, 7
        %v3949 = vsub.s32 0, %v3948
        %v3950 = vrot.slane %v3945, %v3949
        %v3952 = vadd.f32 %v3944, %v3950
        %v3953 = vmax.f32 %v3952, 0.0
        %v3954 = vld [vmem:[%s1173] sm:$0xff]
        %v3955 = vld [vmem:[%s1173 + $0x8] sm:$0xff]
        %v3956 = vld [vmem:[%s1173 + $0x10] sm:$0xff]
        %v3957 = vld [vmem:[%s1173 + $0x18] sm:$0xff]
        %v3958 = vld [vmem:[#allocation19] sm:$0xff]
        %v3959 = vld [vmem:[#allocation19 + $0x8] sm:$0xff]
        %v3960 = vld [vmem:[#allocation19 + $0x10] sm:$0xff]
        %v3961 = vld [vmem:[#allocation19 + $0x18] sm:$0xff]
        %v3962 = vld [vmem:[#allocation19 + $0x20] sm:$0xff]
        %v3963 = vld [vmem:[#allocation19 + $0x28] sm:$0xff]
        %v3964 = vld [vmem:[#allocation19 + $0x30] sm:$0xff]
        %v3965 = vld [vmem:[#allocation19 + $0x38] sm:$0xff]
        %v3966 = vld [vmem:[#allocation19 + $0x40] sm:$0xff]
        %v3967 = vld [vmem:[#allocation19 + $0x48] sm:$0xff]
        %v3968 = vld [vmem:[#allocation19 + $0x50] sm:$0xff]
        %v3969 = vld [vmem:[#allocation19 + $0x58] sm:$0xff]
        %v3970 = vld [vmem:[#allocation19 + $0x60] sm:$0xff]
        %v3971 = vld [vmem:[#allocation19 + $0x68] sm:$0xff]
        %v3972 = vld [vmem:[#allocation19 + $0x70] sm:$0xff]
        %v3973 = vld [vmem:[#allocation19 + $0x78] sm:$0xff]
        %v3974 = vld [vmem:[#allocation19 + $0x80] sm:$0xff]
        %v3975 = vld [vmem:[#allocation19 + $0x88] sm:$0xff]
        %v3976 = vld [vmem:[#allocation19 + $0x90] sm:$0xff]
        %v3977 = vld [vmem:[#allocation19 + $0x98] sm:$0xff]
        %v3978 = vld [vmem:[#allocation19 + $0xa0] sm:$0xff]
        %v3979 = vld [vmem:[#allocation19 + $0xa8] sm:$0xff]
        %v3980 = vld [vmem:[#allocation19 + $0xb0] sm:$0xff]
        %v3981 = vld [vmem:[#allocation19 + $0xb8] sm:$0xff]
        %v3982 = vld [vmem:[#allocation19 + $0xc0] sm:$0xff]
        %v3983 = vld [vmem:[#allocation19 + $0xc8] sm:$0xff]
        %v3984 = vld [vmem:[#allocation19 + $0xd0] sm:$0xff]
        %v3985 = vld [vmem:[#allocation19 + $0xd8] sm:$0xff]
        %v3986 = vld [vmem:[#allocation19 + $0xe0] sm:$0xff]
        %v3987 = vld [vmem:[#allocation19 + $0xe8] sm:$0xff]
        %v3988 = vld [vmem:[#allocation19 + $0xf0] sm:$0xff]
        %v3989 = vld [vmem:[#allocation19 + $0xf8] sm:$0xff]
        %3990 = vmatprep.subr.mxu0 %v3959
        %3991 = vmatpush1.msra.mxu0 %v3958
        %3992 = vmatprep.subr.mxu0 %v3961
        %3993 = vmatpush1.msra.mxu0 %v3960
        %3994 = vmatprep.subr.mxu0 %v3963
        %3995 = vmatpush1.msra.mxu0 %v3962
        %3996 = vmatprep.subr.mxu0 %v3965
        %3997 = vmatpush1.msra.mxu0 %v3964
        %3998 = vmatprep.subr.mxu0 %v3967
        %3999 = vmatpush1.msra.mxu0 %v3966
        %4000 = vmatprep.subr.mxu0 %v3969
        %4001 = vmatpush1.msra.mxu0 %v3968
        %4002 = vmatprep.subr.mxu0 %v3971
        %4003 = vmatpush1.msra.mxu0 %v3970
        %4004 = vmatprep.subr.mxu0 %v3973
        %4005 = vmatpush1.msra.mxu0 %v3972
        %4006 = vmatprep.subr.mxu0 %v3975
        %4007 = vmatpush1.msra.mxu0 %v3974
        %4008 = vmatprep.subr.mxu0 %v3977
        %4009 = vmatpush1.msra.mxu0 %v3976
        %4010 = vmatprep.subr.mxu0 %v3979
        %4011 = vmatpush1.msra.mxu0 %v3978
        %4012 = vmatprep.subr.mxu0 %v3981
        %4013 = vmatpush1.msra.mxu0 %v3980
        %4014 = vmatprep.subr.mxu0 %v3983
        %4015 = vmatpush1.msra.mxu0 %v3982
        %4016 = vmatprep.subr.mxu0 %v3985
        %4017 = vmatpush1.msra.mxu0 %v3984
        %4018 = vmatprep.subr.mxu0 %v3987
        %4019 = vmatpush1.msra.mxu0 %v3986
        %4020 = vmatprep.subr.mxu0 %v3989
        %4021 = vmatpush1.msra.mxu0 %v3988
        %4022 = vmatprep.subr.mxu0 0.0
        %4023 = vmatpush1.msra.mxu0 0.0
        %4024 = vmatprep.subr.mxu0 0.0
        %4025 = vmatpush1.msra.mxu0 0.0
        %4026 = vmatprep.subr.mxu0 0.0
        %4027 = vmatpush1.msra.mxu0 0.0
        %4028 = vmatprep.subr.mxu0 0.0
        %4029 = vmatpush1.msra.mxu0 0.0
        %4030 = vmatprep.subr.mxu0 0.0
        %4031 = vmatpush1.msra.mxu0 0.0
        %4032 = vmatprep.subr.mxu0 0.0
        %4033 = vmatpush1.msra.mxu0 0.0
        %4034 = vmatprep.subr.mxu0 0.0
        %4035 = vmatpush1.msra.mxu0 0.0
        %4036 = vmatprep.subr.mxu0 0.0
        %4037 = vmatpush1.msra.mxu0 0.0
        %4038 = vmatprep.subr.mxu0 0.0
        %4039 = vmatpush1.msra.mxu0 0.0
        %4040 = vmatprep.subr.mxu0 0.0
        %4041 = vmatpush1.msra.mxu0 0.0
        %4042 = vmatprep.subr.mxu0 0.0
        %4043 = vmatpush1.msra.mxu0 0.0
        %4044 = vmatprep.subr.mxu0 0.0
        %4045 = vmatpush1.msra.mxu0 0.0
        %4046 = vmatprep.subr.mxu0 0.0
        %4047 = vmatpush1.msra.mxu0 0.0
        %4048 = vmatprep.subr.mxu0 0.0
        %4049 = vmatpush1.msra.mxu0 0.0
        %4050 = vmatprep.subr.mxu0 0.0
        %4051 = vmatpush1.msra.mxu0 0.0
        %4052 = vmatprep.subr.mxu0 0.0
        %4053 = vmatpush1.msra.mxu0 0.0
        %4054 = vmatprep.mubr.f32.mxu0 0.0
        %4055 = vmatmul.mubr.f32.gmra.mrb[0].mxu0 %v3953
        %v4056 = vpop.f32.mrb[0].mxu0
        %v4057 = vadd.f32 0.0, %v4056
        %v4058 = vpop.f32.mrb[0].mxu0
        %v4059 = vadd.f32 0.0, %v4058
        %4060 = vdwg.mxu0
        %v4061 = vld [vmem:[%s37] sm:$0xff]
        %v4062 = vld [vmem:[%s37 + $0x8] sm:$0xff]
        %v4064 = vsel %vm3137, %v4061, 0
        %v4067 = vsel %vm3137, %v4062, 0
        %4069 = vmatprep.subr.mxu0 %v4059
        %4070 = vmatpush1.msra.mxu0 %v4057
        %4071 = vmatprep.subr.mxu0 0.0
        %4072 = vmatpush1.msra.mxu0 0.0
        %4073 = vmatprep.subr.mxu0 0.0
        %4074 = vmatpush1.msra.mxu0 0.0
        %4075 = vmatprep.subr.mxu0 0.0
        %4076 = vmatpush1.msra.mxu0 0.0
        %4077 = vmatprep.subr.mxu0 0.0
        %4078 = vmatpush1.msra.mxu0 0.0
        %4079 = vmatprep.subr.mxu0 0.0
        %4080 = vmatpush1.msra.mxu0 0.0
        %4081 = vmatprep.subr.mxu0 0.0
        %4082 = vmatpush1.msra.mxu0 0.0
        %4083 = vmatprep.subr.mxu0 0.0
        %4084 = vmatpush1.msra.mxu0 0.0
        %4085 = vmatprep.subr.mxu0 0.0
        %4086 = vmatpush1.msra.mxu0 0.0
        %4087 = vmatprep.subr.mxu0 0.0
        %4088 = vmatpush1.msra.mxu0 0.0
        %4089 = vmatprep.subr.mxu0 0.0
        %4090 = vmatpush1.msra.mxu0 0.0
        %4091 = vmatprep.subr.mxu0 0.0
        %4092 = vmatpush1.msra.mxu0 0.0
        %4093 = vmatprep.subr.mxu0 0.0
        %4094 = vmatpush1.msra.mxu0 0.0
        %4095 = vmatprep.subr.mxu0 0.0
        %4096 = vmatpush1.msra.mxu0 0.0
        %4097 = vmatprep.subr.mxu0 0.0
        %4098 = vmatpush1.msra.mxu0 0.0
        %4099 = vmatprep.subr.mxu0 0.0
        %4100 = vmatpush1.msra.mxu0 0.0
        %4101 = vmatprep.subr.mxu0 0.0
        %4102 = vmatpush1.msra.mxu0 0.0
        %4103 = vmatprep.subr.mxu0 0.0
        %4104 = vmatpush1.msra.mxu0 0.0
        %4105 = vmatprep.subr.mxu0 0.0
        %4106 = vmatpush1.msra.mxu0 0.0
        %4107 = vmatprep.subr.mxu0 0.0
        %4108 = vmatpush1.msra.mxu0 0.0
        %4109 = vmatprep.subr.mxu0 0.0
        %4110 = vmatpush1.msra.mxu0 0.0
        %4111 = vmatprep.subr.mxu0 0.0
        %4112 = vmatpush1.msra.mxu0 0.0
        %4113 = vmatprep.subr.mxu0 0.0
        %4114 = vmatpush1.msra.mxu0 0.0
        %4115 = vmatprep.subr.mxu0 0.0
        %4116 = vmatpush1.msra.mxu0 0.0
        %4117 = vmatprep.subr.mxu0 0.0
        %4118 = vmatpush1.msra.mxu0 0.0
        %4119 = vmatprep.subr.mxu0 0.0
        %4120 = vmatpush1.msra.mxu0 0.0
        %4121 = vmatprep.subr.mxu0 0.0
        %4122 = vmatpush1.msra.mxu0 0.0
        %4123 = vmatprep.subr.mxu0 0.0
        %4124 = vmatpush1.msra.mxu0 0.0
        %4125 = vmatprep.subr.mxu0 0.0
        %4126 = vmatpush1.msra.mxu0 0.0
        %4127 = vmatprep.subr.mxu0 0.0
        %4128 = vmatpush1.msra.mxu0 0.0
        %4129 = vmatprep.subr.mxu0 0.0
        %4130 = vmatpush1.msra.mxu0 0.0
        %4131 = vmatprep.subr.mxu0 0.0
        %4132 = vmatpush1.msra.mxu0 0.0
        %4133 = vmatprep.mubr.f32.mxu0 0.0
        %4134 = vmatmul.mubr.f32.gmra.mrb[0].mxu0 %v4064
        %v4135 = vpop.f32.mrb[0].mxu0
        %v4136 = vadd.f32 0.0, %v4135
        %v4137 = vpop.f32.mrb[0].mxu0
        %v4138 = vadd.f32 0.0, %v4137
        %4139 = vmatprep.mubr.f32.mxu0 0.0
        %4140 = vmatmul.mubr.f32.gmra.mrb[0].mxu0 %v4067
        %v4141 = vpop.f32.mrb[0].mxu0
        %v4142 = vadd.f32 0.0, %v4141
        %v4143 = vpop.f32.mrb[0].mxu0
        %v4144 = vadd.f32 0.0, %v4143
        %4145 = vdwg.mxu0
        %v4146 = vld [vmem:[%s41] sm:$0xff]
        %v4147 = vld [vmem:[%s41 + $0x8] sm:$0xff]
        %v4148 = vld [vmem:[%s41 + $0x10] sm:$0xff]
        %v4149 = vld [vmem:[%s41 + $0x18] sm:$0xff]
        %v4150 = vld [vmem:[%s41 + $0x20] sm:$0xff]
        %v4151 = vld [vmem:[%s41 + $0x28] sm:$0xff]
        %v4152 = vld [vmem:[%s41 + $0x30] sm:$0xff]
        %v4153 = vld [vmem:[%s41 + $0x38] sm:$0xff]
        %v4154 = vld [vmem:[%s41 + $0x40] sm:$0xff]
        %v4155 = vld [vmem:[%s41 + $0x48] sm:$0xff]
        %v4156 = vld [vmem:[%s41 + $0x50] sm:$0xff]
        %v4157 = vld [vmem:[%s41 + $0x58] sm:$0xff]
        %v4158 = vld [vmem:[%s41 + $0x60] sm:$0xff]
        %v4159 = vld [vmem:[%s41 + $0x68] sm:$0xff]
        %v4160 = vld [vmem:[%s41 + $0x70] sm:$0xff]
        %v4161 = vld [vmem:[%s41 + $0x78] sm:$0xff]
        %v4162 = vld [vmem:[%s41 + $0x80] sm:$0xff]
        %v4163 = vld [vmem:[%s41 + $0x88] sm:$0xff]
        %v4164 = vld [vmem:[%s41 + $0x90] sm:$0xff]
        %v4165 = vld [vmem:[%s41 + $0x98] sm:$0xff]
        %v4166 = vld [vmem:[%s41 + $0xa0] sm:$0xff]
        %v4167 = vld [vmem:[%s41 + $0xa8] sm:$0xff]
        %v4168 = vld [vmem:[%s41 + $0xb0] sm:$0xff]
        %v4169 = vld [vmem:[%s41 + $0xb8] sm:$0xff]
        %v4170 = vld [vmem:[%s41 + $0xc0] sm:$0xff]
        %v4171 = vld [vmem:[%s41 + $0xc8] sm:$0xff]
        %v4172 = vld [vmem:[%s41 + $0xd0] sm:$0xff]
        %v4173 = vld [vmem:[%s41 + $0xd8] sm:$0xff]
        %v4174 = vld [vmem:[%s41 + $0xe0] sm:$0xff]
        %v4175 = vld [vmem:[%s41 + $0xe8] sm:$0xff]
        %v4176 = vld [vmem:[%s41 + $0xf0] sm:$0xff]
        %v4177 = vld [vmem:[%s41 + $0xf8] sm:$0xff]
        %v4178 = vld [vmem:[%s41 + $0x100] sm:$0xff]
        %v4179 = vld [vmem:[%s41 + $0x108] sm:$0xff]
        %v4180 = vld [vmem:[%s41 + $0x110] sm:$0xff]
        %v4181 = vld [vmem:[%s41 + $0x118] sm:$0xff]
        %v4182 = vld [vmem:[%s41 + $0x120] sm:$0xff]
        %v4183 = vld [vmem:[%s41 + $0x128] sm:$0xff]
        %v4184 = vld [vmem:[%s41 + $0x130] sm:$0xff]
        %v4185 = vld [vmem:[%s41 + $0x138] sm:$0xff]
        %v4186 = vld [vmem:[%s41 + $0x140] sm:$0xff]
        %v4187 = vld [vmem:[%s41 + $0x148] sm:$0xff]
        %v4188 = vld [vmem:[%s41 + $0x150] sm:$0xff]
        %v4189 = vld [vmem:[%s41 + $0x158] sm:$0xff]
        %v4190 = vld [vmem:[%s41 + $0x160] sm:$0xff]
        %v4191 = vld [vmem:[%s41 + $0x168] sm:$0xff]
        %v4192 = vld [vmem:[%s41 + $0x170] sm:$0xff]
        %v4193 = vld [vmem:[%s41 + $0x178] sm:$0xff]
        %v4194 = vld [vmem:[%s41 + $0x180] sm:$0xff]
        %v4195 = vld [vmem:[%s41 + $0x188] sm:$0xff]
        %v4196 = vld [vmem:[%s41 + $0x190] sm:$0xff]
        %v4197 = vld [vmem:[%s41 + $0x198] sm:$0xff]
        %v4198 = vld [vmem:[%s41 + $0x1a0] sm:$0xff]
        %v4199 = vld [vmem:[%s41 + $0x1a8] sm:$0xff]
        %v4200 = vld [vmem:[%s41 + $0x1b0] sm:$0xff]
        %v4201 = vld [vmem:[%s41 + $0x1b8] sm:$0xff]
        %v4202 = vld [vmem:[%s41 + $0x1c0] sm:$0xff]
        %v4203 = vld [vmem:[%s41 + $0x1c8] sm:$0xff]
        %v4204 = vld [vmem:[%s41 + $0x1d0] sm:$0xff]
        %v4205 = vld [vmem:[%s41 + $0x1d8] sm:$0xff]
        %v4206 = vld [vmem:[%s41 + $0x1e0] sm:$0xff]
        %v4207 = vld [vmem:[%s41 + $0x1e8] sm:$0xff]
        %v4208 = vld [vmem:[%s41 + $0x1f0] sm:$0xff]
        %v4209 = vld [vmem:[%s41 + $0x1f8] sm:$0xff]
        %s4210 = scalar_lea.vmem %s37, 16
        %v4211 = vld [vmem:[%s4210] sm:$0xff]
        %v4212 = vld [vmem:[%s4210 + $0x8] sm:$0xff]
        %v4214 = vsel %vm3137, %v4211, 0
        %v4217 = vsel %vm3137, %v4212, 0
        %4219 = vmatprep.subr.mxu0 %v4059
        %4220 = vmatpush1.msra.mxu0 %v4057
        %4221 = vmatprep.subr.mxu0 0.0
        %4222 = vmatpush1.msra.mxu0 0.0
        %4223 = vmatprep.subr.mxu0 0.0
        %4224 = vmatpush1.msra.mxu0 0.0
        %4225 = vmatprep.subr.mxu0 0.0
        %4226 = vmatpush1.msra.mxu0 0.0
        %4227 = vmatprep.subr.mxu0 0.0
        %4228 = vmatpush1.msra.mxu0 0.0
        %4229 = vmatprep.subr.mxu0 0.0
        %4230 = vmatpush1.msra.mxu0 0.0
        %4231 = vmatprep.subr.mxu0 0.0
        %4232 = vmatpush1.msra.mxu0 0.0
        %4233 = vmatprep.subr.mxu0 0.0
        %4234 = vmatpush1.msra.mxu0 0.0
        %4235 = vmatprep.subr.mxu0 0.0
        %4236 = vmatpush1.msra.mxu0 0.0
        %4237 = vmatprep.subr.mxu0 0.0
        %4238 = vmatpush1.msra.mxu0 0.0
        %4239 = vmatprep.subr.mxu0 0.0
        %4240 = vmatpush1.msra.mxu0 0.0
        %4241 = vmatprep.subr.mxu0 0.0
        %4242 = vmatpush1.msra.mxu0 0.0
        %4243 = vmatprep.subr.mxu0 0.0
        %4244 = vmatpush1.msra.mxu0 0.0
        %4245 = vmatprep.subr.mxu0 0.0
        %4246 = vmatpush1.msra.mxu0 0.0
        %4247 = vmatprep.subr.mxu0 0.0
        %4248 = vmatpush1.msra.mxu0 0.0
        %4249 = vmatprep.subr.mxu0 0.0
        %4250 = vmatpush1.msra.mxu0 0.0
        %4251 = vmatprep.subr.mxu0 0.0
        %4252 = vmatpush1.msra.mxu0 0.0
        %4253 = vmatprep.subr.mxu0 0.0
        %4254 = vmatpush1.msra.mxu0 0.0
        %4255 = vmatprep.subr.mxu0 0.0
        %4256 = vmatpush1.msra.mxu0 0.0
        %4257 = vmatprep.subr.mxu0 0.0
        %4258 = vmatpush1.msra.mxu0 0.0
        %4259 = vmatprep.subr.mxu0 0.0
        %4260 = vmatpush1.msra.mxu0 0.0
        %4261 = vmatprep.subr.mxu0 0.0
        %4262 = vmatpush1.msra.mxu0 0.0
        %4263 = vmatprep.subr.mxu0 0.0
        %4264 = vmatpush1.msra.mxu0 0.0
        %4265 = vmatprep.subr.mxu0 0.0
        %4266 = vmatpush1.msra.mxu0 0.0
        %4267 = vmatprep.subr.mxu0 0.0
        %4268 = vmatpush1.msra.mxu0 0.0
        %4269 = vmatprep.subr.mxu0 0.0
        %4270 = vmatpush1.msra.mxu0 0.0
        %4271 = vmatprep.subr.mxu0 0.0
        %4272 = vmatpush1.msra.mxu0 0.0
        %4273 = vmatprep.subr.mxu0 0.0
        %4274 = vmatpush1.msra.mxu0 0.0
        %4275 = vmatprep.subr.mxu0 0.0
        %4276 = vmatpush1.msra.mxu0 0.0
        %4277 = vmatprep.subr.mxu0 0.0
        %4278 = vmatpush1.msra.mxu0 0.0
        %4279 = vmatprep.subr.mxu0 0.0
        %4280 = vmatpush1.msra.mxu0 0.0
        %4281 = vmatprep.subr.mxu0 0.0
        %4282 = vmatpush1.msra.mxu0 0.0
        %4283 = vmatprep.mubr.f32.mxu0 0.0
        %4284 = vmatmul.mubr.f32.gmra.mrb[0].mxu0 %v4214
        %v4285 = vpop.f32.mrb[0].mxu0
        %v4286 = vadd.f32 0.0, %v4285
        %v4287 = vpop.f32.mrb[0].mxu0
        %v4288 = vadd.f32 0.0, %v4287
        %4289 = vmatprep.mubr.f32.mxu0 0.0
        %4290 = vmatmul.mubr.f32.gmra.mrb[0].mxu0 %v4217
        %v4291 = vpop.f32.mrb[0].mxu0
        %v4292 = vadd.f32 0.0, %v4291
        %v4293 = vpop.f32.mrb[0].mxu0
        %v4294 = vadd.f32 0.0, %v4293
        %4295 = vdwg.mxu0
        %s4296 = scalar_lea.vmem %s41, 512
        %v4297 = vld [vmem:[%s4296] sm:$0xff]
        %v4298 = vld [vmem:[%s4296 + $0x8] sm:$0xff]
        %v4299 = vld [vmem:[%s4296 + $0x10] sm:$0xff]
        %v4300 = vld [vmem:[%s4296 + $0x18] sm:$0xff]
        %v4301 = vld [vmem:[%s4296 + $0x20] sm:$0xff]
        %v4302 = vld [vmem:[%s4296 + $0x28] sm:$0xff]
        %v4303 = vld [vmem:[%s4296 + $0x30] sm:$0xff]
        %v4304 = vld [vmem:[%s4296 + $0x38] sm:$0xff]
        %v4305 = vld [vmem:[%s4296 + $0x40] sm:$0xff]
        %v4306 = vld [vmem:[%s4296 + $0x48] sm:$0xff]
        %v4307 = vld [vmem:[%s4296 + $0x50] sm:$0xff]
        %v4308 = vld [vmem:[%s4296 + $0x58] sm:$0xff]
        %v4309 = vld [vmem:[%s4296 + $0x60] sm:$0xff]
        %v4310 = vld [vmem:[%s4296 + $0x68] sm:$0xff]
        %v4311 = vld [vmem:[%s4296 + $0x70] sm:$0xff]
        %v4312 = vld [vmem:[%s4296 + $0x78] sm:$0xff]
        %v4313 = vld [vmem:[%s4296 + $0x80] sm:$0xff]
        %v4314 = vld [vmem:[%s4296 + $0x88] sm:$0xff]
        %v4315 = vld [vmem:[%s4296 + $0x90] sm:$0xff]
        %v4316 = vld [vmem:[%s4296 + $0x98] sm:$0xff]
        %v4317 = vld [vmem:[%s4296 + $0xa0] sm:$0xff]
        %v4318 = vld [vmem:[%s4296 + $0xa8] sm:$0xff]
        %v4319 = vld [vmem:[%s4296 + $0xb0] sm:$0xff]
        %v4320 = vld [vmem:[%s4296 + $0xb8] sm:$0xff]
        %v4321 = vld [vmem:[%s4296 + $0xc0] sm:$0xff]
        %v4322 = vld [vmem:[%s4296 + $0xc8] sm:$0xff]
        %v4323 = vld [vmem:[%s4296 + $0xd0] sm:$0xff]
        %v4324 = vld [vmem:[%s4296 + $0xd8] sm:$0xff]
        %v4325 = vld [vmem:[%s4296 + $0xe0] sm:$0xff]
        %v4326 = vld [vmem:[%s4296 + $0xe8] sm:$0xff]
        %v4327 = vld [vmem:[%s4296 + $0xf0] sm:$0xff]
        %v4328 = vld [vmem:[%s4296 + $0xf8] sm:$0xff]
        %v4329 = vld [vmem:[%s4296 + $0x100] sm:$0xff]
        %v4330 = vld [vmem:[%s4296 + $0x108] sm:$0xff]
        %v4331 = vld [vmem:[%s4296 + $0x110] sm:$0xff]
        %v4332 = vld [vmem:[%s4296 + $0x118] sm:$0xff]
        %v4333 = vld [vmem:[%s4296 + $0x120] sm:$0xff]
        %v4334 = vld [vmem:[%s4296 + $0x128] sm:$0xff]
        %v4335 = vld [vmem:[%s4296 + $0x130] sm:$0xff]
        %v4336 = vld [vmem:[%s4296 + $0x138] sm:$0xff]
        %v4337 = vld [vmem:[%s4296 + $0x140] sm:$0xff]
        %v4338 = vld [vmem:[%s4296 + $0x148] sm:$0xff]
        %v4339 = vld [vmem:[%s4296 + $0x150] sm:$0xff]
        %v4340 = vld [vmem:[%s4296 + $0x158] sm:$0xff]
        %v4341 = vld [vmem:[%s4296 + $0x160] sm:$0xff]
        %v4342 = vld [vmem:[%s4296 + $0x168] sm:$0xff]
        %v4343 = vld [vmem:[%s4296 + $0x170] sm:$0xff]
        %v4344 = vld [vmem:[%s4296 + $0x178] sm:$0xff]
        %v4345 = vld [vmem:[%s4296 + $0x180] sm:$0xff]
        %v4346 = vld [vmem:[%s4296 + $0x188] sm:$0xff]
        %v4347 = vld [vmem:[%s4296 + $0x190] sm:$0xff]
        %v4348 = vld [vmem:[%s4296 + $0x198] sm:$0xff]
        %v4349 = vld [vmem:[%s4296 + $0x1a0] sm:$0xff]
        %v4350 = vld [vmem:[%s4296 + $0x1a8] sm:$0xff]
        %v4351 = vld [vmem:[%s4296 + $0x1b0] sm:$0xff]
        %v4352 = vld [vmem:[%s4296 + $0x1b8] sm:$0xff]
        %v4353 = vld [vmem:[%s4296 + $0x1c0] sm:$0xff]
        %v4354 = vld [vmem:[%s4296 + $0x1c8] sm:$0xff]
        %v4355 = vld [vmem:[%s4296 + $0x1d0] sm:$0xff]
        %v4356 = vld [vmem:[%s4296 + $0x1d8] sm:$0xff]
        %v4357 = vld [vmem:[%s4296 + $0x1e0] sm:$0xff]
        %v4358 = vld [vmem:[%s4296 + $0x1e8] sm:$0xff]
        %v4359 = vld [vmem:[%s4296 + $0x1f0] sm:$0xff]
        %v4360 = vld [vmem:[%s4296 + $0x1f8] sm:$0xff]
        %4361 = vmatprep.subr.mxu0 %v4298
        %4362 = vmatpush1.msra.mxu0 %v4297
        %4363 = vmatprep.subr.mxu0 %v4300
        %4364 = vmatpush1.msra.mxu0 %v4299
        %4365 = vmatprep.subr.mxu0 %v4302
        %4366 = vmatpush1.msra.mxu0 %v4301
        %4367 = vmatprep.subr.mxu0 %v4304
        %4368 = vmatpush1.msra.mxu0 %v4303
        %4369 = vmatprep.subr.mxu0 %v4306
        %4370 = vmatpush1.msra.mxu0 %v4305
        %4371 = vmatprep.subr.mxu0 %v4308
        %4372 = vmatpush1.msra.mxu0 %v4307
        %4373 = vmatprep.subr.mxu0 %v4310
        %4374 = vmatpush1.msra.mxu0 %v4309
        %4375 = vmatprep.subr.mxu0 %v4312
        %4376 = vmatpush1.msra.mxu0 %v4311
        %4377 = vmatprep.subr.mxu0 %v4314
        %4378 = vmatpush1.msra.mxu0 %v4313
        %4379 = vmatprep.subr.mxu0 %v4316
        %4380 = vmatpush1.msra.mxu0 %v4315
        %4381 = vmatprep.subr.mxu0 %v4318
        %4382 = vmatpush1.msra.mxu0 %v4317
        %4383 = vmatprep.subr.mxu0 %v4320
        %4384 = vmatpush1.msra.mxu0 %v4319
        %4385 = vmatprep.subr.mxu0 %v4322
        %4386 = vmatpush1.msra.mxu0 %v4321
        %4387 = vmatprep.subr.mxu0 %v4324
        %4388 = vmatpush1.msra.mxu0 %v4323
        %4389 = vmatprep.subr.mxu0 %v4326
        %4390 = vmatpush1.msra.mxu0 %v4325
        %4391 = vmatprep.subr.mxu0 %v4328
        %4392 = vmatpush1.msra.mxu0 %v4327
        %4393 = vmatprep.subr.mxu0 %v4330
        %4394 = vmatpush1.msra.mxu0 %v4329
        %4395 = vmatprep.subr.mxu0 %v4332
        %4396 = vmatpush1.msra.mxu0 %v4331
        %4397 = vmatprep.subr.mxu0 %v4334
        %4398 = vmatpush1.msra.mxu0 %v4333
        %4399 = vmatprep.subr.mxu0 %v4336
        %4400 = vmatpush1.msra.mxu0 %v4335
        %4401 = vmatprep.subr.mxu0 %v4338
        %4402 = vmatpush1.msra.mxu0 %v4337
        %4403 = vmatprep.subr.mxu0 %v4340
        %4404 = vmatpush1.msra.mxu0 %v4339
        %4405 = vmatprep.subr.mxu0 %v4342
        %4406 = vmatpush1.msra.mxu0 %v4341
        %4407 = vmatprep.subr.mxu0 %v4344
        %4408 = vmatpush1.msra.mxu0 %v4343
        %4409 = vmatprep.subr.mxu0 %v4346
        %4410 = vmatpush1.msra.mxu0 %v4345
        %4411 = vmatprep.subr.mxu0 %v4348
        %4412 = vmatpush1.msra.mxu0 %v4347
        %4413 = vmatprep.subr.mxu0 %v4350
        %4414 = vmatpush1.msra.mxu0 %v4349
        %4415 = vmatprep.subr.mxu0 %v4352
        %4416 = vmatpush1.msra.mxu0 %v4351
        %4417 = vmatprep.subr.mxu0 %v4354
        %4418 = vmatpush1.msra.mxu0 %v4353
        %4419 = vmatprep.subr.mxu0 %v4356
        %4420 = vmatpush1.msra.mxu0 %v4355
        %4421 = vmatprep.subr.mxu0 %v4358
        %4422 = vmatpush1.msra.mxu0 %v4357
        %4423 = vmatprep.subr.mxu0 %v4360
        %4424 = vmatpush1.msra.mxu0 %v4359
        %4425 = vmatprep.mubr.f32.mxu0 %v4288
        %4426 = vmatmul.mubr.f32.gmra.mrb[0].mxu0 %v4286
        %v4427 = vpop.f32.mrb[0].mxu0
        %v4428 = vadd.f32 0.0, %v4427
        %v4429 = vpop.f32.mrb[0].mxu0
        %v4430 = vadd.f32 0.0, %v4429
        %4431 = vmatprep.mubr.f32.mxu0 %v4294
        %4432 = vmatmul.mubr.f32.gmra.mrb[0].mxu0 %v4292
        %v4433 = vpop.f32.mrb[0].mxu0
        %v4434 = vadd.f32 0.0, %v4433
        %v4435 = vpop.f32.mrb[0].mxu0
        %v4436 = vadd.f32 0.0, %v4435
        %4437 = vdwg.mxu0
        %4438 = vmatprep.subr.mxu0 %v4147
        %4439 = vmatpush1.msra.mxu0 %v4146
        %4440 = vmatprep.subr.mxu0 %v4149
        %4441 = vmatpush1.msra.mxu0 %v4148
        %4442 = vmatprep.subr.mxu0 %v4151
        %4443 = vmatpush1.msra.mxu0 %v4150
        %4444 = vmatprep.subr.mxu0 %v4153
        %4445 = vmatpush1.msra.mxu0 %v4152
        %4446 = vmatprep.subr.mxu0 %v4155
        %4447 = vmatpush1.msra.mxu0 %v4154
        %4448 = vmatprep.subr.mxu0 %v4157
        %4449 = vmatpush1.msra.mxu0 %v4156
        %4450 = vmatprep.subr.mxu0 %v4159
        %4451 = vmatpush1.msra.mxu0 %v4158
        %4452 = vmatprep.subr.mxu0 %v4161
        %4453 = vmatpush1.msra.mxu0 %v4160
        %4454 = vmatprep.subr.mxu0 %v4163
        %4455 = vmatpush1.msra.mxu0 %v4162
        %4456 = vmatprep.subr.mxu0 %v4165
        %4457 = vmatpush1.msra.mxu0 %v4164
        %4458 = vmatprep.subr.mxu0 %v4167
        %4459 = vmatpush1.msra.mxu0 %v4166
        %4460 = vmatprep.subr.mxu0 %v4169
        %4461 = vmatpush1.msra.mxu0 %v4168
        %4462 = vmatprep.subr.mxu0 %v4171
        %4463 = vmatpush1.msra.mxu0 %v4170
        %4464 = vmatprep.subr.mxu0 %v4173
        %4465 = vmatpush1.msra.mxu0 %v4172
        %4466 = vmatprep.subr.mxu0 %v4175
        %4467 = vmatpush1.msra.mxu0 %v4174
        %4468 = vmatprep.subr.mxu0 %v4177
        %4469 = vmatpush1.msra.mxu0 %v4176
        %4470 = vmatprep.subr.mxu0 %v4179
        %4471 = vmatpush1.msra.mxu0 %v4178
        %4472 = vmatprep.subr.mxu0 %v4181
        %4473 = vmatpush1.msra.mxu0 %v4180
        %4474 = vmatprep.subr.mxu0 %v4183
        %4475 = vmatpush1.msra.mxu0 %v4182
        %4476 = vmatprep.subr.mxu0 %v4185
        %4477 = vmatpush1.msra.mxu0 %v4184
        %4478 = vmatprep.subr.mxu0 %v4187
        %4479 = vmatpush1.msra.mxu0 %v4186
        %4480 = vmatprep.subr.mxu0 %v4189
        %4481 = vmatpush1.msra.mxu0 %v4188
        %4482 = vmatprep.subr.mxu0 %v4191
        %4483 = vmatpush1.msra.mxu0 %v4190
        %4484 = vmatprep.subr.mxu0 %v4193
        %4485 = vmatpush1.msra.mxu0 %v4192
        %4486 = vmatprep.subr.mxu0 %v4195
        %4487 = vmatpush1.msra.mxu0 %v4194
        %4488 = vmatprep.subr.mxu0 %v4197
        %4489 = vmatpush1.msra.mxu0 %v4196
        %4490 = vmatprep.subr.mxu0 %v4199
        %4491 = vmatpush1.msra.mxu0 %v4198
        %4492 = vmatprep.subr.mxu0 %v4201
        %4493 = vmatpush1.msra.mxu0 %v4200
        %4494 = vmatprep.subr.mxu0 %v4203
        %4495 = vmatpush1.msra.mxu0 %v4202
        %4496 = vmatprep.subr.mxu0 %v4205
        %4497 = vmatpush1.msra.mxu0 %v4204
        %4498 = vmatprep.subr.mxu0 %v4207
        %4499 = vmatpush1.msra.mxu0 %v4206
        %4500 = vmatprep.subr.mxu0 %v4209
        %4501 = vmatpush1.msra.mxu0 %v4208
        %4502 = vmatprep.mubr.f32.mxu0 %v4138
        %4503 = vmatmul.mubr.f32.gmra.mrb[0].mxu0 %v4136
        %v4504 = vpop.f32.mrb[0].mxu0
        %v4505 = vadd.f32 %v4428, %v4504
        %v4506 = vpop.f32.mrb[0].mxu0
        %v4507 = vadd.f32 %v4430, %v4506
        %4508 = vmatprep.mubr.f32.mxu0 %v4144
        %4509 = vmatmul.mubr.f32.gmra.mrb[0].mxu0 %v4142
        %v4510 = vpop.f32.mrb[0].mxu0
        %v4511 = vadd.f32 %v4434, %v4510
        %v4512 = vpop.f32.mrb[0].mxu0
        %v4513 = vadd.f32 %v4436, %v4512
        %4514 = vdwg.mxu0
        %s4515 = scalar_lea.vmem %s37, 32
        %v4516 = vld [vmem:[%s4515] sm:$0xff]
        %v4517 = vld [vmem:[%s4515 + $0x8] sm:$0xff]
        %v4519 = vsel %vm3137, %v4516, 0
        %v4522 = vsel %vm3137, %v4517, 0
        %4524 = vmatprep.subr.mxu0 %v4059
        %4525 = vmatpush1.msra.mxu0 %v4057
        %4526 = vmatprep.subr.mxu0 0.0
        %4527 = vmatpush1.msra.mxu0 0.0
        %4528 = vmatprep.subr.mxu0 0.0
        %4529 = vmatpush1.msra.mxu0 0.0
        %4530 = vmatprep.subr.mxu0 0.0
        %4531 = vmatpush1.msra.mxu0 0.0
        %4532 = vmatprep.subr.mxu0 0.0
        %4533 = vmatpush1.msra.mxu0 0.0
        %4534 = vmatprep.subr.mxu0 0.0
        %4535 = vmatpush1.msra.mxu0 0.0
        %4536 = vmatprep.subr.mxu0 0.0
        %4537 = vmatpush1.msra.mxu0 0.0
        %4538 = vmatprep.subr.mxu0 0.0
        %4539 = vmatpush1.msra.mxu0 0.0
        %4540 = vmatprep.subr.mxu0 0.0
        %4541 = vmatpush1.msra.mxu0 0.0
        %4542 = vmatprep.subr.mxu0 0.0
        %4543 = vmatpush1.msra.mxu0 0.0
        %4544 = vmatprep.subr.mxu0 0.0
        %4545 = vmatpush1.msra.mxu0 0.0
        %4546 = vmatprep.subr.mxu0 0.0
        %4547 = vmatpush1.msra.mxu0 0.0
        %4548 = vmatprep.subr.mxu0 0.0
        %4549 = vmatpush1.msra.mxu0 0.0
        %4550 = vmatprep.subr.mxu0 0.0
        %4551 = vmatpush1.msra.mxu0 0.0
        %4552 = vmatprep.subr.mxu0 0.0
        %4553 = vmatpush1.msra.mxu0 0.0
        %4554 = vmatprep.subr.mxu0 0.0
        %4555 = vmatpush1.msra.mxu0 0.0
        %4556 = vmatprep.subr.mxu0 0.0
        %4557 = vmatpush1.msra.mxu0 0.0
        %4558 = vmatprep.subr.mxu0 0.0
        %4559 = vmatpush1.msra.mxu0 0.0
        %4560 = vmatprep.subr.mxu0 0.0
        %4561 = vmatpush1.msra.mxu0 0.0
        %4562 = vmatprep.subr.mxu0 0.0
        %4563 = vmatpush1.msra.mxu0 0.0
        %4564 = vmatprep.subr.mxu0 0.0
        %4565 = vmatpush1.msra.mxu0 0.0
        %4566 = vmatprep.subr.mxu0 0.0
        %4567 = vmatpush1.msra.mxu0 0.0
        %4568 = vmatprep.subr.mxu0 0.0
        %4569 = vmatpush1.msra.mxu0 0.0
        %4570 = vmatprep.subr.mxu0 0.0
        %4571 = vmatpush1.msra.mxu0 0.0
        %4572 = vmatprep.subr.mxu0 0.0
        %4573 = vmatpush1.msra.mxu0 0.0
        %4574 = vmatprep.subr.mxu0 0.0
        %4575 = vmatpush1.msra.mxu0 0.0
        %4576 = vmatprep.subr.mxu0 0.0
        %4577 = vmatpush1.msra.mxu0 0.0
        %4578 = vmatprep.subr.mxu0 0.0
        %4579 = vmatpush1.msra.mxu0 0.0
        %4580 = vmatprep.subr.mxu0 0.0
        %4581 = vmatpush1.msra.mxu0 0.0
        %4582 = vmatprep.subr.mxu0 0.0
        %4583 = vmatpush1.msra.mxu0 0.0
        %4584 = vmatprep.subr.mxu0 0.0
        %4585 = vmatpush1.msra.mxu0 0.0
        %4586 = vmatprep.subr.mxu0 0.0
        %4587 = vmatpush1.msra.mxu0 0.0
        %4588 = vmatprep.mubr.f32.mxu0 0.0
        %4589 = vmatmul.mubr.f32.gmra.mrb[0].mxu0 %v4519
        %v4590 = vpop.f32.mrb[0].mxu0
        %v4591 = vadd.f32 0.0, %v4590
        %v4592 = vpop.f32.mrb[0].mxu0
        %v4593 = vadd.f32 0.0, %v4592
        %4594 = vmatprep.mubr.f32.mxu0 0.0
        %4595 = vmatmul.mubr.f32.gmra.mrb[0].mxu0 %v4522
        %v4596 = vpop.f32.mrb[0].mxu0
        %v4597 = vadd.f32 0.0, %v4596
        %v4598 = vpop.f32.mrb[0].mxu0
        %v4599 = vadd.f32 0.0, %v4598
        %4600 = vdwg.mxu0
        %s4601 = scalar_lea.vmem %s41, 1024
        %v4602 = vld [vmem:[%s4601] sm:$0xff]
        %v4603 = vld [vmem:[%s4601 + $0x8] sm:$0xff]
        %v4604 = vld [vmem:[%s4601 + $0x10] sm:$0xff]
        %v4605 = vld [vmem:[%s4601 + $0x18] sm:$0xff]
        %v4606 = vld [vmem:[%s4601 + $0x20] sm:$0xff]
        %v4607 = vld [vmem:[%s4601 + $0x28] sm:$0xff]
        %v4608 = vld [vmem:[%s4601 + $0x30] sm:$0xff]
        %v4609 = vld [vmem:[%s4601 + $0x38] sm:$0xff]
        %v4610 = vld [vmem:[%s4601 + $0x40] sm:$0xff]
        %v4611 = vld [vmem:[%s4601 + $0x48] sm:$0xff]
        %v4612 = vld [vmem:[%s4601 + $0x50] sm:$0xff]
        %v4613 = vld [vmem:[%s4601 + $0x58] sm:$0xff]
        %v4614 = vld [vmem:[%s4601 + $0x60] sm:$0xff]
        %v4615 = vld [vmem:[%s4601 + $0x68] sm:$0xff]
        %v4616 = vld [vmem:[%s4601 + $0x70] sm:$0xff]
        %v4617 = vld [vmem:[%s4601 + $0x78] sm:$0xff]
        %v4618 = vld [vmem:[%s4601 + $0x80] sm:$0xff]
        %v4619 = vld [vmem:[%s4601 + $0x88] sm:$0xff]
        %v4620 = vld [vmem:[%s4601 + $0x90] sm:$0xff]
        %v4621 = vld [vmem:[%s4601 + $0x98] sm:$0xff]
        %v4622 = vld [vmem:[%s4601 + $0xa0] sm:$0xff]
        %v4623 = vld [vmem:[%s4601 + $0xa8] sm:$0xff]
        %v4624 = vld [vmem:[%s4601 + $0xb0] sm:$0xff]
        %v4625 = vld [vmem:[%s4601 + $0xb8] sm:$0xff]
        %v4626 = vld [vmem:[%s4601 + $0xc0] sm:$0xff]
        %v4627 = vld [vmem:[%s4601 + $0xc8] sm:$0xff]
        %v4628 = vld [vmem:[%s4601 + $0xd0] sm:$0xff]
        %v4629 = vld [vmem:[%s4601 + $0xd8] sm:$0xff]
        %v4630 = vld [vmem:[%s4601 + $0xe0] sm:$0xff]
        %v4631 = vld [vmem:[%s4601 + $0xe8] sm:$0xff]
        %v4632 = vld [vmem:[%s4601 + $0xf0] sm:$0xff]
        %v4633 = vld [vmem:[%s4601 + $0xf8] sm:$0xff]
        %v4634 = vld [vmem:[%s4601 + $0x100] sm:$0xff]
        %v4635 = vld [vmem:[%s4601 + $0x108] sm:$0xff]
        %v4636 = vld [vmem:[%s4601 + $0x110] sm:$0xff]
        %v4637 = vld [vmem:[%s4601 + $0x118] sm:$0xff]
        %v4638 = vld [vmem:[%s4601 + $0x120] sm:$0xff]
        %v4639 = vld [vmem:[%s4601 + $0x128] sm:$0xff]
        %v4640 = vld [vmem:[%s4601 + $0x130] sm:$0xff]
        %v4641 = vld [vmem:[%s4601 + $0x138] sm:$0xff]
        %v4642 = vld [vmem:[%s4601 + $0x140] sm:$0xff]
        %v4643 = vld [vmem:[%s4601 + $0x148] sm:$0xff]
        %v4644 = vld [vmem:[%s4601 + $0x150] sm:$0xff]
        %v4645 = vld [vmem:[%s4601 + $0x158] sm:$0xff]
        %v4646 = vld [vmem:[%s4601 + $0x160] sm:$0xff]
        %v4647 = vld [vmem:[%s4601 + $0x168] sm:$0xff]
        %v4648 = vld [vmem:[%s4601 + $0x170] sm:$0xff]
        %v4649 = vld [vmem:[%s4601 + $0x178] sm:$0xff]
        %v4650 = vld [vmem:[%s4601 + $0x180] sm:$0xff]
        %v4651 = vld [vmem:[%s4601 + $0x188] sm:$0xff]
        %v4652 = vld [vmem:[%s4601 + $0x190] sm:$0xff]
        %v4653 = vld [vmem:[%s4601 + $0x198] sm:$0xff]
        %v4654 = vld [vmem:[%s4601 + $0x1a0] sm:$0xff]
        %v4655 = vld [vmem:[%s4601 + $0x1a8] sm:$0xff]
        %v4656 = vld [vmem:[%s4601 + $0x1b0] sm:$0xff]
        %v4657 = vld [vmem:[%s4601 + $0x1b8] sm:$0xff]
        %v4658 = vld [vmem:[%s4601 + $0x1c0] sm:$0xff]
        %v4659 = vld [vmem:[%s4601 + $0x1c8] sm:$0xff]
        %v4660 = vld [vmem:[%s4601 + $0x1d0] sm:$0xff]
        %v4661 = vld [vmem:[%s4601 + $0x1d8] sm:$0xff]
        %v4662 = vld [vmem:[%s4601 + $0x1e0] sm:$0xff]
        %v4663 = vld [vmem:[%s4601 + $0x1e8] sm:$0xff]
        %v4664 = vld [vmem:[%s4601 + $0x1f0] sm:$0xff]
        %v4665 = vld [vmem:[%s4601 + $0x1f8] sm:$0xff]
        %4666 = vmatprep.subr.mxu0 %v4603
        %4667 = vmatpush1.msra.mxu0 %v4602
        %4668 = vmatprep.subr.mxu0 %v4605
        %4669 = vmatpush1.msra.mxu0 %v4604
        %4670 = vmatprep.subr.mxu0 %v4607
        %4671 = vmatpush1.msra.mxu0 %v4606
        %4672 = vmatprep.subr.mxu0 %v4609
        %4673 = vmatpush1.msra.mxu0 %v4608
        %4674 = vmatprep.subr.mxu0 %v4611
        %4675 = vmatpush1.msra.mxu0 %v4610
        %4676 = vmatprep.subr.mxu0 %v4613
        %4677 = vmatpush1.msra.mxu0 %v4612
        %4678 = vmatprep.subr.mxu0 %v4615
        %4679 = vmatpush1.msra.mxu0 %v4614
        %4680 = vmatprep.subr.mxu0 %v4617
        %4681 = vmatpush1.msra.mxu0 %v4616
        %4682 = vmatprep.subr.mxu0 %v4619
        %4683 = vmatpush1.msra.mxu0 %v4618
        %4684 = vmatprep.subr.mxu0 %v4621
        %4685 = vmatpush1.msra.mxu0 %v4620
        %4686 = vmatprep.subr.mxu0 %v4623
        %4687 = vmatpush1.msra.mxu0 %v4622
        %4688 = vmatprep.subr.mxu0 %v4625
        %4689 = vmatpush1.msra.mxu0 %v4624
        %4690 = vmatprep.subr.mxu0 %v4627
        %4691 = vmatpush1.msra.mxu0 %v4626
        %4692 = vmatprep.subr.mxu0 %v4629
        %4693 = vmatpush1.msra.mxu0 %v4628
        %4694 = vmatprep.subr.mxu0 %v4631
        %4695 = vmatpush1.msra.mxu0 %v4630
        %4696 = vmatprep.subr.mxu0 %v4633
        %4697 = vmatpush1.msra.mxu0 %v4632
        %4698 = vmatprep.subr.mxu0 %v4635
        %4699 = vmatpush1.msra.mxu0 %v4634
        %4700 = vmatprep.subr.mxu0 %v4637
        %4701 = vmatpush1.msra.mxu0 %v4636
        %4702 = vmatprep.subr.mxu0 %v4639
        %4703 = vmatpush1.msra.mxu0 %v4638
        %4704 = vmatprep.subr.mxu0 %v4641
        %4705 = vmatpush1.msra.mxu0 %v4640
        %4706 = vmatprep.subr.mxu0 %v4643
        %4707 = vmatpush1.msra.mxu0 %v4642
        %4708 = vmatprep.subr.mxu0 %v4645
        %4709 = vmatpush1.msra.mxu0 %v4644
        %4710 = vmatprep.subr.mxu0 %v4647
        %4711 = vmatpush1.msra.mxu0 %v4646
        %4712 = vmatprep.subr.mxu0 %v4649
        %4713 = vmatpush1.msra.mxu0 %v4648
        %4714 = vmatprep.subr.mxu0 %v4651
        %4715 = vmatpush1.msra.mxu0 %v4650
        %4716 = vmatprep.subr.mxu0 %v4653
        %4717 = vmatpush1.msra.mxu0 %v4652
        %4718 = vmatprep.subr.mxu0 %v4655
        %4719 = vmatpush1.msra.mxu0 %v4654
        %4720 = vmatprep.subr.mxu0 %v4657
        %4721 = vmatpush1.msra.mxu0 %v4656
        %4722 = vmatprep.subr.mxu0 %v4659
        %4723 = vmatpush1.msra.mxu0 %v4658
        %4724 = vmatprep.subr.mxu0 %v4661
        %4725 = vmatpush1.msra.mxu0 %v4660
        %4726 = vmatprep.subr.mxu0 %v4663
        %4727 = vmatpush1.msra.mxu0 %v4662
        %4728 = vmatprep.subr.mxu0 %v4665
        %4729 = vmatpush1.msra.mxu0 %v4664
        %4730 = vmatprep.mubr.f32.mxu0 %v4593
        %4731 = vmatmul.mubr.f32.gmra.mrb[0].mxu0 %v4591
        %v4732 = vpop.f32.mrb[0].mxu0
        %v4733 = vadd.f32 0.0, %v4732
        %v4734 = vpop.f32.mrb[0].mxu0
        %v4735 = vadd.f32 0.0, %v4734
        %4736 = vmatprep.mubr.f32.mxu0 %v4599
        %4737 = vmatmul.mubr.f32.gmra.mrb[0].mxu0 %v4597
        %v4738 = vpop.f32.mrb[0].mxu0
        %v4739 = vadd.f32 0.0, %v4738
        %v4740 = vpop.f32.mrb[0].mxu0
        %v4741 = vadd.f32 0.0, %v4740
        %4742 = vdwg.mxu0
        %v4743 = vadd.f32 %v4505, %v4733
        %v4744 = vadd.f32 %v4507, %v4735
        %v4745 = vadd.f32 %v4511, %v4739
        %v4746 = vadd.f32 %v4513, %v4741
        %v4747 = vld [vmem:[%s43] sm:$0x3]
        %v4749 = vlaneseq
        %v4750 = vshrl.u32 %v4749, 7
        %v4751 = vsub.s32 0, %v4750
        %v4752 = vrot.slane %v4747, %v4751
        %v4753 = vlaneseq
        %v4754 = vshrl.u32 %v4753, 7
        %v4755 = vsub.s32 1, %v4754
        %v4756 = vrot.slane %v4747, %v4755
        %v4759 = vadd.f32 %v4743, %v4752
        %v4760 = vadd.f32 %v4744, %v4756
        %v4761 = vadd.f32 %v4745, %v4752
        %v4762 = vadd.f32 %v4746, %v4756
        %v4763 = vmax.f32 %v4759, 0.0
        %v4764 = vmax.f32 %v4760, 0.0
        %v4765 = vmax.f32 %v4761, 0.0
        %v4766 = vmax.f32 %v4762, 0.0
        %vm4767 = vcmask 130048
        %v4768 = vsel %vm4767, %v1186, 0
        %v4771 = vsel %vm4767, %v1194, 0
        %4773 = vmatprep.subr.mxu0 %v3955
        %4774 = vmatpush1.msra.mxu0 %v3954
        %4775 = vmatprep.subr.mxu0 %v3957
        %4776 = vmatpush1.msra.mxu0 %v3956
        %4777 = vmatprep.subr.mxu0 0.0
        %4778 = vmatpush1.msra.mxu0 0.0
        %4779 = vmatprep.subr.mxu0 0.0
        %4780 = vmatpush1.msra.mxu0 0.0
        %4781 = vmatprep.subr.mxu0 0.0
        %4782 = vmatpush1.msra.mxu0 0.0
        %4783 = vmatprep.subr.mxu0 0.0
        %4784 = vmatpush1.msra.mxu0 0.0
        %4785 = vmatprep.subr.mxu0 0.0
        %4786 = vmatpush1.msra.mxu0 0.0
        %4787 = vmatprep.subr.mxu0 0.0
        %4788 = vmatpush1.msra.mxu0 0.0
        %4789 = vmatprep.subr.mxu0 0.0
        %4790 = vmatpush1.msra.mxu0 0.0
        %4791 = vmatprep.subr.mxu0 0.0
        %4792 = vmatpush1.msra.mxu0 0.0
        %4793 = vmatprep.subr.mxu0 0.0
        %4794 = vmatpush1.msra.mxu0 0.0
        %4795 = vmatprep.subr.mxu0 0.0
        %4796 = vmatpush1.msra.mxu0 0.0
        %4797 = vmatprep.subr.mxu0 0.0
        %4798 = vmatpush1.msra.mxu0 0.0
        %4799 = vmatprep.subr.mxu0 0.0
        %4800 = vmatpush1.msra.mxu0 0.0
        %4801 = vmatprep.subr.mxu0 0.0
        %4802 = vmatpush1.msra.mxu0 0.0
        %4803 = vmatprep.subr.mxu0 0.0
        %4804 = vmatpush1.msra.mxu0 0.0
        %4805 = vmatprep.subr.mxu0 0.0
        %4806 = vmatpush1.msra.mxu0 0.0
        %4807 = vmatprep.subr.mxu0 0.0
        %4808 = vmatpush1.msra.mxu0 0.0
        %4809 = vmatprep.subr.mxu0 0.0
        %4810 = vmatpush1.msra.mxu0 0.0
        %4811 = vmatprep.subr.mxu0 0.0
        %4812 = vmatpush1.msra.mxu0 0.0
        %4813 = vmatprep.subr.mxu0 0.0
        %4814 = vmatpush1.msra.mxu0 0.0
        %4815 = vmatprep.subr.mxu0 0.0
        %4816 = vmatpush1.msra.mxu0 0.0
        %4817 = vmatprep.subr.mxu0 0.0
        %4818 = vmatpush1.msra.mxu0 0.0
        %4819 = vmatprep.subr.mxu0 0.0
        %4820 = vmatpush1.msra.mxu0 0.0
        %4821 = vmatprep.subr.mxu0 0.0
        %4822 = vmatpush1.msra.mxu0 0.0
        %4823 = vmatprep.subr.mxu0 0.0
        %4824 = vmatpush1.msra.mxu0 0.0
        %4825 = vmatprep.subr.mxu0 0.0
        %4826 = vmatpush1.msra.mxu0 0.0
        %4827 = vmatprep.subr.mxu0 0.0
        %4828 = vmatpush1.msra.mxu0 0.0
        %4829 = vmatprep.subr.mxu0 0.0
        %4830 = vmatpush1.msra.mxu0 0.0
        %4831 = vmatprep.subr.mxu0 0.0
        %4832 = vmatpush1.msra.mxu0 0.0
        %4833 = vmatprep.subr.mxu0 0.0
        %4834 = vmatpush1.msra.mxu0 0.0
        %4835 = vmatprep.subr.mxu0 0.0
        %4836 = vmatpush1.msra.mxu0 0.0
        %4837 = vmatprep.mubr.f32.mxu0 0.0
        %4838 = vmatmul.mubr.f32.gmra.mrb[0].mxu0 %v4768
        %v4839 = vpop.f32.mrb[0].mxu0
        %v4840 = vadd.f32 0.0, %v4839
        %v4841 = vpop.f32.mrb[0].mxu0
        %v4842 = vadd.f32 0.0, %v4841
        %4843 = vmatprep.mubr.f32.mxu0 0.0
        %4844 = vmatmul.mubr.f32.gmra.mrb[0].mxu0 %v4771
        %v4845 = vpop.f32.mrb[0].mxu0
        %v4846 = vadd.f32 0.0, %v4845
        %v4847 = vpop.f32.mrb[0].mxu0
        %v4848 = vadd.f32 0.0, %v4847
        %4849 = vdwg.mxu0
        %v4850 = vsel %vm4767, %v1190, 0
        %v4853 = vsel %vm4767, %v1198, 0
        %4855 = vmatprep.subr.mxu0 %v3955
        %4856 = vmatpush1.msra.mxu0 %v3954
        %4857 = vmatprep.subr.mxu0 %v3957
        %4858 = vmatpush1.msra.mxu0 %v3956
        %4859 = vmatprep.subr.mxu0 0.0
        %4860 = vmatpush1.msra.mxu0 0.0
        %4861 = vmatprep.subr.mxu0 0.0
        %4862 = vmatpush1.msra.mxu0 0.0
        %4863 = vmatprep.subr.mxu0 0.0
        %4864 = vmatpush1.msra.mxu0 0.0
        %4865 = vmatprep.subr.mxu0 0.0
        %4866 = vmatpush1.msra.mxu0 0.0
        %4867 = vmatprep.subr.mxu0 0.0
        %4868 = vmatpush1.msra.mxu0 0.0
        %4869 = vmatprep.subr.mxu0 0.0
        %4870 = vmatpush1.msra.mxu0 0.0
        %4871 = vmatprep.subr.mxu0 0.0
        %4872 = vmatpush1.msra.mxu0 0.0
        %4873 = vmatprep.subr.mxu0 0.0
        %4874 = vmatpush1.msra.mxu0 0.0
        %4875 = vmatprep.subr.mxu0 0.0
        %4876 = vmatpush1.msra.mxu0 0.0
        %4877 = vmatprep.subr.mxu0 0.0
        %4878 = vmatpush1.msra.mxu0 0.0
        %4879 = vmatprep.subr.mxu0 0.0
        %4880 = vmatpush1.msra.mxu0 0.0
        %4881 = vmatprep.subr.mxu0 0.0
        %4882 = vmatpush1.msra.mxu0 0.0
        %4883 = vmatprep.subr.mxu0 0.0
        %4884 = vmatpush1.msra.mxu0 0.0
        %4885 = vmatprep.subr.mxu0 0.0
        %4886 = vmatpush1.msra.mxu0 0.0
        %4887 = vmatprep.subr.mxu0 0.0
        %4888 = vmatpush1.msra.mxu0 0.0
        %4889 = vmatprep.subr.mxu0 0.0
        %4890 = vmatpush1.msra.mxu0 0.0
        %4891 = vmatprep.subr.mxu0 0.0
        %4892 = vmatpush1.msra.mxu0 0.0
        %4893 = vmatprep.subr.mxu0 0.0
        %4894 = vmatpush1.msra.mxu0 0.0
        %4895 = vmatprep.subr.mxu0 0.0
        %4896 = vmatpush1.msra.mxu0 0.0
        %4897 = vmatprep.subr.mxu0 0.0
        %4898 = vmatpush1.msra.mxu0 0.0
        %4899 = vmatprep.subr.mxu0 0.0
        %4900 = vmatpush1.msra.mxu0 0.0
        %4901 = vmatprep.subr.mxu0 0.0
        %4902 = vmatpush1.msra.mxu0 0.0
        %4903 = vmatprep.subr.mxu0 0.0
        %4904 = vmatpush1.msra.mxu0 0.0
        %4905 = vmatprep.subr.mxu0 0.0
        %4906 = vmatpush1.msra.mxu0 0.0
        %4907 = vmatprep.subr.mxu0 0.0
        %4908 = vmatpush1.msra.mxu0 0.0
        %4909 = vmatprep.subr.mxu0 0.0
        %4910 = vmatpush1.msra.mxu0 0.0
        %4911 = vmatprep.subr.mxu0 0.0
        %4912 = vmatpush1.msra.mxu0 0.0
        %4913 = vmatprep.subr.mxu0 0.0
        %4914 = vmatpush1.msra.mxu0 0.0
        %4915 = vmatprep.subr.mxu0 0.0
        %4916 = vmatpush1.msra.mxu0 0.0
        %4917 = vmatprep.subr.mxu0 0.0
        %4918 = vmatpush1.msra.mxu0 0.0
        %4919 = vmatprep.mubr.f32.mxu0 0.0
        %4920 = vmatmul.mubr.f32.gmra.mrb[0].mxu0 %v4850
        %v4921 = vpop.f32.mrb[0].mxu0
        %v4922 = vadd.f32 0.0, %v4921
        %v4923 = vpop.f32.mrb[0].mxu0
        %v4924 = vadd.f32 0.0, %v4923
        %4925 = vmatprep.mubr.f32.mxu0 0.0
        %4926 = vmatmul.mubr.f32.gmra.mrb[0].mxu0 %v4853
        %v4927 = vpop.f32.mrb[0].mxu0
        %v4928 = vadd.f32 0.0, %v4927
        %v4929 = vpop.f32.mrb[0].mxu0
        %v4930 = vadd.f32 0.0, %v4929
        %4931 = vdwg.mxu0
        %v4932 = vld [vmem:[#allocation20] sm:$0xff]
        %v4933 = vld [vmem:[#allocation20 + $0x8] sm:$0xff]
        %v4934 = vld [vmem:[#allocation20 + $0x10] sm:$0xff]
        %v4935 = vld [vmem:[#allocation20 + $0x18] sm:$0xff]
        %v4936 = vld [vmem:[#allocation20 + $0x20] sm:$0xff]
        %v4937 = vld [vmem:[#allocation20 + $0x28] sm:$0xff]
        %v4938 = vld [vmem:[#allocation20 + $0x30] sm:$0xff]
        %v4939 = vld [vmem:[#allocation20 + $0x38] sm:$0xff]
        %v4940 = vld [vmem:[#allocation20 + $0x40] sm:$0xff]
        %v4941 = vld [vmem:[#allocation20 + $0x48] sm:$0xff]
        %v4942 = vld [vmem:[#allocation20 + $0x50] sm:$0xff]
        %v4943 = vld [vmem:[#allocation20 + $0x58] sm:$0xff]
        %v4944 = vld [vmem:[#allocation20 + $0x60] sm:$0xff]
        %v4945 = vld [vmem:[#allocation20 + $0x68] sm:$0xff]
        %v4946 = vld [vmem:[#allocation20 + $0x70] sm:$0xff]
        %v4947 = vld [vmem:[#allocation20 + $0x78] sm:$0xff]
        %v4948 = vld [vmem:[#allocation20 + $0x80] sm:$0xff]
        %v4949 = vld [vmem:[#allocation20 + $0x88] sm:$0xff]
        %v4950 = vld [vmem:[#allocation20 + $0x90] sm:$0xff]
        %v4951 = vld [vmem:[#allocation20 + $0x98] sm:$0xff]
        %v4952 = vld [vmem:[#allocation20 + $0xa0] sm:$0xff]
        %v4953 = vld [vmem:[#allocation20 + $0xa8] sm:$0xff]
        %v4954 = vld [vmem:[#allocation20 + $0xb0] sm:$0xff]
        %v4955 = vld [vmem:[#allocation20 + $0xb8] sm:$0xff]
        %v4956 = vld [vmem:[#allocation20 + $0xc0] sm:$0xff]
        %v4957 = vld [vmem:[#allocation20 + $0xc8] sm:$0xff]
        %v4958 = vld [vmem:[#allocation20 + $0xd0] sm:$0xff]
        %v4959 = vld [vmem:[#allocation20 + $0xd8] sm:$0xff]
        %v4960 = vld [vmem:[#allocation20 + $0xe0] sm:$0xff]
        %v4961 = vld [vmem:[#allocation20 + $0xe8] sm:$0xff]
        %v4962 = vld [vmem:[#allocation20 + $0xf0] sm:$0xff]
        %v4963 = vld [vmem:[#allocation20 + $0xf8] sm:$0xff]
        %v4964 = vld [vmem:[#allocation20 + $0x100] sm:$0xff]
        %v4965 = vld [vmem:[#allocation20 + $0x108] sm:$0xff]
        %v4966 = vld [vmem:[#allocation20 + $0x110] sm:$0xff]
        %v4967 = vld [vmem:[#allocation20 + $0x118] sm:$0xff]
        %v4968 = vld [vmem:[#allocation20 + $0x120] sm:$0xff]
        %v4969 = vld [vmem:[#allocation20 + $0x128] sm:$0xff]
        %v4970 = vld [vmem:[#allocation20 + $0x130] sm:$0xff]
        %v4971 = vld [vmem:[#allocation20 + $0x138] sm:$0xff]
        %v4972 = vld [vmem:[#allocation20 + $0x140] sm:$0xff]
        %v4973 = vld [vmem:[#allocation20 + $0x148] sm:$0xff]
        %v4974 = vld [vmem:[#allocation20 + $0x150] sm:$0xff]
        %v4975 = vld [vmem:[#allocation20 + $0x158] sm:$0xff]
        %v4976 = vld [vmem:[#allocation20 + $0x160] sm:$0xff]
        %v4977 = vld [vmem:[#allocation20 + $0x168] sm:$0xff]
        %v4978 = vld [vmem:[#allocation20 + $0x170] sm:$0xff]
        %v4979 = vld [vmem:[#allocation20 + $0x178] sm:$0xff]
        %v4980 = vld [vmem:[#allocation20 + $0x180] sm:$0xff]
        %v4981 = vld [vmem:[#allocation20 + $0x188] sm:$0xff]
        %v4982 = vld [vmem:[#allocation20 + $0x190] sm:$0xff]
        %v4983 = vld [vmem:[#allocation20 + $0x198] sm:$0xff]
        %v4984 = vld [vmem:[#allocation20 + $0x1a0] sm:$0xff]
        %v4985 = vld [vmem:[#allocation20 + $0x1a8] sm:$0xff]
        %v4986 = vld [vmem:[#allocation20 + $0x1b0] sm:$0xff]
        %v4987 = vld [vmem:[#allocation20 + $0x1b8] sm:$0xff]
        %v4988 = vld [vmem:[#allocation20 + $0x1c0] sm:$0xff]
        %v4989 = vld [vmem:[#allocation20 + $0x1c8] sm:$0xff]
        %v4990 = vld [vmem:[#allocation20 + $0x1d0] sm:$0xff]
        %v4991 = vld [vmem:[#allocation20 + $0x1d8] sm:$0xff]
        %v4992 = vld [vmem:[#allocation20 + $0x1e0] sm:$0xff]
        %v4993 = vld [vmem:[#allocation20 + $0x1e8] sm:$0xff]
        %v4994 = vld [vmem:[#allocation20 + $0x1f0] sm:$0xff]
        %v4995 = vld [vmem:[#allocation20 + $0x1f8] sm:$0xff]
        %s4996 = scalar_lea.vmem [#allocation20], 512
        %v4997 = vld [vmem:[%s4996] sm:$0xff]
        %v4998 = vld [vmem:[%s4996 + $0x8] sm:$0xff]
        %v4999 = vld [vmem:[%s4996 + $0x10] sm:$0xff]
        %v5000 = vld [vmem:[%s4996 + $0x18] sm:$0xff]
        %v5001 = vld [vmem:[%s4996 + $0x20] sm:$0xff]
        %v5002 = vld [vmem:[%s4996 + $0x28] sm:$0xff]
        %v5003 = vld [vmem:[%s4996 + $0x30] sm:$0xff]
        %v5004 = vld [vmem:[%s4996 + $0x38] sm:$0xff]
        %v5005 = vld [vmem:[%s4996 + $0x40] sm:$0xff]
        %v5006 = vld [vmem:[%s4996 + $0x48] sm:$0xff]
        %v5007 = vld [vmem:[%s4996 + $0x50] sm:$0xff]
        %v5008 = vld [vmem:[%s4996 + $0x58] sm:$0xff]
        %v5009 = vld [vmem:[%s4996 + $0x60] sm:$0xff]
        %v5010 = vld [vmem:[%s4996 + $0x68] sm:$0xff]
        %v5011 = vld [vmem:[%s4996 + $0x70] sm:$0xff]
        %v5012 = vld [vmem:[%s4996 + $0x78] sm:$0xff]
        %v5013 = vld [vmem:[%s4996 + $0x80] sm:$0xff]
        %v5014 = vld [vmem:[%s4996 + $0x88] sm:$0xff]
        %v5015 = vld [vmem:[%s4996 + $0x90] sm:$0xff]
        %v5016 = vld [vmem:[%s4996 + $0x98] sm:$0xff]
        %v5017 = vld [vmem:[%s4996 + $0xa0] sm:$0xff]
        %v5018 = vld [vmem:[%s4996 + $0xa8] sm:$0xff]
        %v5019 = vld [vmem:[%s4996 + $0xb0] sm:$0xff]
        %v5020 = vld [vmem:[%s4996 + $0xb8] sm:$0xff]
        %v5021 = vld [vmem:[%s4996 + $0xc0] sm:$0xff]
        %v5022 = vld [vmem:[%s4996 + $0xc8] sm:$0xff]
        %v5023 = vld [vmem:[%s4996 + $0xd0] sm:$0xff]
        %v5024 = vld [vmem:[%s4996 + $0xd8] sm:$0xff]
        %v5025 = vld [vmem:[%s4996 + $0xe0] sm:$0xff]
        %v5026 = vld [vmem:[%s4996 + $0xe8] sm:$0xff]
        %v5027 = vld [vmem:[%s4996 + $0xf0] sm:$0xff]
        %v5028 = vld [vmem:[%s4996 + $0xf8] sm:$0xff]
        %v5029 = vld [vmem:[%s4996 + $0x100] sm:$0xff]
        %v5030 = vld [vmem:[%s4996 + $0x108] sm:$0xff]
        %v5031 = vld [vmem:[%s4996 + $0x110] sm:$0xff]
        %v5032 = vld [vmem:[%s4996 + $0x118] sm:$0xff]
        %v5033 = vld [vmem:[%s4996 + $0x120] sm:$0xff]
        %v5034 = vld [vmem:[%s4996 + $0x128] sm:$0xff]
        %v5035 = vld [vmem:[%s4996 + $0x130] sm:$0xff]
        %v5036 = vld [vmem:[%s4996 + $0x138] sm:$0xff]
        %v5037 = vld [vmem:[%s4996 + $0x140] sm:$0xff]
        %v5038 = vld [vmem:[%s4996 + $0x148] sm:$0xff]
        %v5039 = vld [vmem:[%s4996 + $0x150] sm:$0xff]
        %v5040 = vld [vmem:[%s4996 + $0x158] sm:$0xff]
        %v5041 = vld [vmem:[%s4996 + $0x160] sm:$0xff]
        %v5042 = vld [vmem:[%s4996 + $0x168] sm:$0xff]
        %v5043 = vld [vmem:[%s4996 + $0x170] sm:$0xff]
        %v5044 = vld [vmem:[%s4996 + $0x178] sm:$0xff]
        %v5045 = vld [vmem:[%s4996 + $0x180] sm:$0xff]
        %v5046 = vld [vmem:[%s4996 + $0x188] sm:$0xff]
        %v5047 = vld [vmem:[%s4996 + $0x190] sm:$0xff]
        %v5048 = vld [vmem:[%s4996 + $0x198] sm:$0xff]
        %v5049 = vld [vmem:[%s4996 + $0x1a0] sm:$0xff]
        %v5050 = vld [vmem:[%s4996 + $0x1a8] sm:$0xff]
        %v5051 = vld [vmem:[%s4996 + $0x1b0] sm:$0xff]
        %v5052 = vld [vmem:[%s4996 + $0x1b8] sm:$0xff]
        %v5053 = vld [vmem:[%s4996 + $0x1c0] sm:$0xff]
        %v5054 = vld [vmem:[%s4996 + $0x1c8] sm:$0xff]
        %v5055 = vld [vmem:[%s4996 + $0x1d0] sm:$0xff]
        %v5056 = vld [vmem:[%s4996 + $0x1d8] sm:$0xff]
        %v5057 = vld [vmem:[%s4996 + $0x1e0] sm:$0xff]
        %v5058 = vld [vmem:[%s4996 + $0x1e8] sm:$0xff]
        %v5059 = vld [vmem:[%s4996 + $0x1f0] sm:$0xff]
        %v5060 = vld [vmem:[%s4996 + $0x1f8] sm:$0xff]
        %5061 = vmatprep.subr.mxu0 %v4998
        %5062 = vmatpush1.msra.mxu0 %v4997
        %5063 = vmatprep.subr.mxu0 %v5000
        %5064 = vmatpush1.msra.mxu0 %v4999
        %5065 = vmatprep.subr.mxu0 %v5002
        %5066 = vmatpush1.msra.mxu0 %v5001
        %5067 = vmatprep.subr.mxu0 %v5004
        %5068 = vmatpush1.msra.mxu0 %v5003
        %5069 = vmatprep.subr.mxu0 %v5006
        %5070 = vmatpush1.msra.mxu0 %v5005
        %5071 = vmatprep.subr.mxu0 %v5008
        %5072 = vmatpush1.msra.mxu0 %v5007
        %5073 = vmatprep.subr.mxu0 %v5010
        %5074 = vmatpush1.msra.mxu0 %v5009
        %5075 = vmatprep.subr.mxu0 %v5012
        %5076 = vmatpush1.msra.mxu0 %v5011
        %5077 = vmatprep.subr.mxu0 %v5014
        %5078 = vmatpush1.msra.mxu0 %v5013
        %5079 = vmatprep.subr.mxu0 %v5016
        %5080 = vmatpush1.msra.mxu0 %v5015
        %5081 = vmatprep.subr.mxu0 %v5018
        %5082 = vmatpush1.msra.mxu0 %v5017
        %5083 = vmatprep.subr.mxu0 %v5020
        %5084 = vmatpush1.msra.mxu0 %v5019
        %5085 = vmatprep.subr.mxu0 %v5022
        %5086 = vmatpush1.msra.mxu0 %v5021
        %5087 = vmatprep.subr.mxu0 %v5024
        %5088 = vmatpush1.msra.mxu0 %v5023
        %5089 = vmatprep.subr.mxu0 %v5026
        %5090 = vmatpush1.msra.mxu0 %v5025
        %5091 = vmatprep.subr.mxu0 %v5028
        %5092 = vmatpush1.msra.mxu0 %v5027
        %5093 = vmatprep.subr.mxu0 %v5030
        %5094 = vmatpush1.msra.mxu0 %v5029
        %5095 = vmatprep.subr.mxu0 %v5032
        %5096 = vmatpush1.msra.mxu0 %v5031
        %5097 = vmatprep.subr.mxu0 %v5034
        %5098 = vmatpush1.msra.mxu0 %v5033
        %5099 = vmatprep.subr.mxu0 %v5036
        %5100 = vmatpush1.msra.mxu0 %v5035
        %5101 = vmatprep.subr.mxu0 %v5038
        %5102 = vmatpush1.msra.mxu0 %v5037
        %5103 = vmatprep.subr.mxu0 %v5040
        %5104 = vmatpush1.msra.mxu0 %v5039
        %5105 = vmatprep.subr.mxu0 %v5042
        %5106 = vmatpush1.msra.mxu0 %v5041
        %5107 = vmatprep.subr.mxu0 %v5044
        %5108 = vmatpush1.msra.mxu0 %v5043
        %5109 = vmatprep.subr.mxu0 %v5046
        %5110 = vmatpush1.msra.mxu0 %v5045
        %5111 = vmatprep.subr.mxu0 %v5048
        %5112 = vmatpush1.msra.mxu0 %v5047
        %5113 = vmatprep.subr.mxu0 %v5050
        %5114 = vmatpush1.msra.mxu0 %v5049
        %5115 = vmatprep.subr.mxu0 %v5052
        %5116 = vmatpush1.msra.mxu0 %v5051
        %5117 = vmatprep.subr.mxu0 %v5054
        %5118 = vmatpush1.msra.mxu0 %v5053
        %5119 = vmatprep.subr.mxu0 %v5056
        %5120 = vmatpush1.msra.mxu0 %v5055
        %5121 = vmatprep.subr.mxu0 %v5058
        %5122 = vmatpush1.msra.mxu0 %v5057
        %5123 = vmatprep.subr.mxu0 %v5060
        %5124 = vmatpush1.msra.mxu0 %v5059
        %5125 = vmatprep.mubr.f32.mxu0 %v3955
        %5126 = vmatmul.mubr.f32.gmra.mrb[0].mxu0 %v3954
        %v5127 = vpop.f32.mrb[0].mxu0
        %v5128 = vadd.f32 0.0, %v5127
        %v5129 = vpop.f32.mrb[0].mxu0
        %v5130 = vadd.f32 0.0, %v5129
        %5131 = vmatprep.mubr.f32.mxu0 %v3957
        %5132 = vmatmul.mubr.f32.gmra.mrb[0].mxu0 %v3956
        %v5133 = vpop.f32.mrb[0].mxu0
        %v5134 = vadd.f32 0.0, %v5133
        %v5135 = vpop.f32.mrb[0].mxu0
        %v5136 = vadd.f32 0.0, %v5135
        %5137 = vdwg.mxu0
        %5138 = vmatprep.subr.mxu0 %v4933
        %5139 = vmatpush1.msra.mxu0 %v4932
        %5140 = vmatprep.subr.mxu0 %v4935
        %5141 = vmatpush1.msra.mxu0 %v4934
        %5142 = vmatprep.subr.mxu0 %v4937
        %5143 = vmatpush1.msra.mxu0 %v4936
        %5144 = vmatprep.subr.mxu0 %v4939
        %5145 = vmatpush1.msra.mxu0 %v4938
        %5146 = vmatprep.subr.mxu0 %v4941
        %5147 = vmatpush1.msra.mxu0 %v4940
        %5148 = vmatprep.subr.mxu0 %v4943
        %5149 = vmatpush1.msra.mxu0 %v4942
        %5150 = vmatprep.subr.mxu0 %v4945
        %5151 = vmatpush1.msra.mxu0 %v4944
        %5152 = vmatprep.subr.mxu0 %v4947
        %5153 = vmatpush1.msra.mxu0 %v4946
        %5154 = vmatprep.subr.mxu0 %v4949
        %5155 = vmatpush1.msra.mxu0 %v4948
        %5156 = vmatprep.subr.mxu0 %v4951
        %5157 = vmatpush1.msra.mxu0 %v4950
        %5158 = vmatprep.subr.mxu0 %v4953
        %5159 = vmatpush1.msra.mxu0 %v4952
        %5160 = vmatprep.subr.mxu0 %v4955
        %5161 = vmatpush1.msra.mxu0 %v4954
        %5162 = vmatprep.subr.mxu0 %v4957
        %5163 = vmatpush1.msra.mxu0 %v4956
        %5164 = vmatprep.subr.mxu0 %v4959
        %5165 = vmatpush1.msra.mxu0 %v4958
        %5166 = vmatprep.subr.mxu0 %v4961
        %5167 = vmatpush1.msra.mxu0 %v4960
        %5168 = vmatprep.subr.mxu0 %v4963
        %5169 = vmatpush1.msra.mxu0 %v4962
        %5170 = vmatprep.subr.mxu0 %v4965
        %5171 = vmatpush1.msra.mxu0 %v4964
        %5172 = vmatprep.subr.mxu0 %v4967
        %5173 = vmatpush1.msra.mxu0 %v4966
        %5174 = vmatprep.subr.mxu0 %v4969
        %5175 = vmatpush1.msra.mxu0 %v4968
        %5176 = vmatprep.subr.mxu0 %v4971
        %5177 = vmatpush1.msra.mxu0 %v4970
        %5178 = vmatprep.subr.mxu0 %v4973
        %5179 = vmatpush1.msra.mxu0 %v4972
        %5180 = vmatprep.subr.mxu0 %v4975
        %5181 = vmatpush1.msra.mxu0 %v4974
        %5182 = vmatprep.subr.mxu0 %v4977
        %5183 = vmatpush1.msra.mxu0 %v4976
        %5184 = vmatprep.subr.mxu0 %v4979
        %5185 = vmatpush1.msra.mxu0 %v4978
        %5186 = vmatprep.subr.mxu0 %v4981
        %5187 = vmatpush1.msra.mxu0 %v4980
        %5188 = vmatprep.subr.mxu0 %v4983
        %5189 = vmatpush1.msra.mxu0 %v4982
        %5190 = vmatprep.subr.mxu0 %v4985
        %5191 = vmatpush1.msra.mxu0 %v4984
        %5192 = vmatprep.subr.mxu0 %v4987
        %5193 = vmatpush1.msra.mxu0 %v4986
        %5194 = vmatprep.subr.mxu0 %v4989
        %5195 = vmatpush1.msra.mxu0 %v4988
        %5196 = vmatprep.subr.mxu0 %v4991
        %5197 = vmatpush1.msra.mxu0 %v4990
        %5198 = vmatprep.subr.mxu0 %v4993
        %5199 = vmatpush1.msra.mxu0 %v4992
        %5200 = vmatprep.subr.mxu0 %v4995
        %5201 = vmatpush1.msra.mxu0 %v4994
        %5202 = vmatprep.mubr.f32.mxu0 %v4842
        %5203 = vmatmul.mubr.f32.gmra.mrb[0].mxu0 %v4840
        %v5204 = vpop.f32.mrb[0].mxu0
        %v5205 = vadd.f32 %v5128, %v5204
        %v5206 = vpop.f32.mrb[0].mxu0
        %v5207 = vadd.f32 %v5130, %v5206
        %5208 = vmatprep.mubr.f32.mxu0 %v4848
        %5209 = vmatmul.mubr.f32.gmra.mrb[0].mxu0 %v4846
        %v5210 = vpop.f32.mrb[0].mxu0
        %v5211 = vadd.f32 %v5134, %v5210
        %v5212 = vpop.f32.mrb[0].mxu0
        %v5213 = vadd.f32 %v5136, %v5212
        %5214 = vdwg.mxu0
        %s5215 = scalar_lea.vmem [#allocation20], 1024
        %v5216 = vld [vmem:[%s5215] sm:$0xff]
        %v5217 = vld [vmem:[%s5215 + $0x8] sm:$0xff]
        %v5218 = vld [vmem:[%s5215 + $0x10] sm:$0xff]
        %v5219 = vld [vmem:[%s5215 + $0x18] sm:$0xff]
        %v5220 = vld [vmem:[%s5215 + $0x20] sm:$0xff]
        %v5221 = vld [vmem:[%s5215 + $0x28] sm:$0xff]
        %v5222 = vld [vmem:[%s5215 + $0x30] sm:$0xff]
        %v5223 = vld [vmem:[%s5215 + $0x38] sm:$0xff]
        %v5224 = vld [vmem:[%s5215 + $0x40] sm:$0xff]
        %v5225 = vld [vmem:[%s5215 + $0x48] sm:$0xff]
        %v5226 = vld [vmem:[%s5215 + $0x50] sm:$0xff]
        %v5227 = vld [vmem:[%s5215 + $0x58] sm:$0xff]
        %v5228 = vld [vmem:[%s5215 + $0x60] sm:$0xff]
        %v5229 = vld [vmem:[%s5215 + $0x68] sm:$0xff]
        %v5230 = vld [vmem:[%s5215 + $0x70] sm:$0xff]
        %v5231 = vld [vmem:[%s5215 + $0x78] sm:$0xff]
        %v5232 = vld [vmem:[%s5215 + $0x80] sm:$0xff]
        %v5233 = vld [vmem:[%s5215 + $0x88] sm:$0xff]
        %v5234 = vld [vmem:[%s5215 + $0x90] sm:$0xff]
        %v5235 = vld [vmem:[%s5215 + $0x98] sm:$0xff]
        %v5236 = vld [vmem:[%s5215 + $0xa0] sm:$0xff]
        %v5237 = vld [vmem:[%s5215 + $0xa8] sm:$0xff]
        %v5238 = vld [vmem:[%s5215 + $0xb0] sm:$0xff]
        %v5239 = vld [vmem:[%s5215 + $0xb8] sm:$0xff]
        %v5240 = vld [vmem:[%s5215 + $0xc0] sm:$0xff]
        %v5241 = vld [vmem:[%s5215 + $0xc8] sm:$0xff]
        %v5242 = vld [vmem:[%s5215 + $0xd0] sm:$0xff]
        %v5243 = vld [vmem:[%s5215 + $0xd8] sm:$0xff]
        %v5244 = vld [vmem:[%s5215 + $0xe0] sm:$0xff]
        %v5245 = vld [vmem:[%s5215 + $0xe8] sm:$0xff]
        %v5246 = vld [vmem:[%s5215 + $0xf0] sm:$0xff]
        %v5247 = vld [vmem:[%s5215 + $0xf8] sm:$0xff]
        %v5248 = vld [vmem:[%s5215 + $0x100] sm:$0xff]
        %v5249 = vld [vmem:[%s5215 + $0x108] sm:$0xff]
        %v5250 = vld [vmem:[%s5215 + $0x110] sm:$0xff]
        %v5251 = vld [vmem:[%s5215 + $0x118] sm:$0xff]
        %v5252 = vld [vmem:[%s5215 + $0x120] sm:$0xff]
        %v5253 = vld [vmem:[%s5215 + $0x128] sm:$0xff]
        %v5254 = vld [vmem:[%s5215 + $0x130] sm:$0xff]
        %v5255 = vld [vmem:[%s5215 + $0x138] sm:$0xff]
        %v5256 = vld [vmem:[%s5215 + $0x140] sm:$0xff]
        %v5257 = vld [vmem:[%s5215 + $0x148] sm:$0xff]
        %v5258 = vld [vmem:[%s5215 + $0x150] sm:$0xff]
        %v5259 = vld [vmem:[%s5215 + $0x158] sm:$0xff]
        %v5260 = vld [vmem:[%s5215 + $0x160] sm:$0xff]
        %v5261 = vld [vmem:[%s5215 + $0x168] sm:$0xff]
        %v5262 = vld [vmem:[%s5215 + $0x170] sm:$0xff]
        %v5263 = vld [vmem:[%s5215 + $0x178] sm:$0xff]
        %v5264 = vld [vmem:[%s5215 + $0x180] sm:$0xff]
        %v5265 = vld [vmem:[%s5215 + $0x188] sm:$0xff]
        %v5266 = vld [vmem:[%s5215 + $0x190] sm:$0xff]
        %v5267 = vld [vmem:[%s5215 + $0x198] sm:$0xff]
        %v5268 = vld [vmem:[%s5215 + $0x1a0] sm:$0xff]
        %v5269 = vld [vmem:[%s5215 + $0x1a8] sm:$0xff]
        %v5270 = vld [vmem:[%s5215 + $0x1b0] sm:$0xff]
        %v5271 = vld [vmem:[%s5215 + $0x1b8] sm:$0xff]
        %v5272 = vld [vmem:[%s5215 + $0x1c0] sm:$0xff]
        %v5273 = vld [vmem:[%s5215 + $0x1c8] sm:$0xff]
        %v5274 = vld [vmem:[%s5215 + $0x1d0] sm:$0xff]
        %v5275 = vld [vmem:[%s5215 + $0x1d8] sm:$0xff]
        %v5276 = vld [vmem:[%s5215 + $0x1e0] sm:$0xff]
        %v5277 = vld [vmem:[%s5215 + $0x1e8] sm:$0xff]
        %v5278 = vld [vmem:[%s5215 + $0x1f0] sm:$0xff]
        %v5279 = vld [vmem:[%s5215 + $0x1f8] sm:$0xff]
        %5280 = vmatprep.subr.mxu0 %v5217
        %5281 = vmatpush1.msra.mxu0 %v5216
        %5282 = vmatprep.subr.mxu0 %v5219
        %5283 = vmatpush1.msra.mxu0 %v5218
        %5284 = vmatprep.subr.mxu0 %v5221
        %5285 = vmatpush1.msra.mxu0 %v5220
        %5286 = vmatprep.subr.mxu0 %v5223
        %5287 = vmatpush1.msra.mxu0 %v5222
        %5288 = vmatprep.subr.mxu0 %v5225
        %5289 = vmatpush1.msra.mxu0 %v5224
        %5290 = vmatprep.subr.mxu0 %v5227
        %5291 = vmatpush1.msra.mxu0 %v5226
        %5292 = vmatprep.subr.mxu0 %v5229
        %5293 = vmatpush1.msra.mxu0 %v5228
        %5294 = vmatprep.subr.mxu0 %v5231
        %5295 = vmatpush1.msra.mxu0 %v5230
        %5296 = vmatprep.subr.mxu0 %v5233
        %5297 = vmatpush1.msra.mxu0 %v5232
        %5298 = vmatprep.subr.mxu0 %v5235
        %5299 = vmatpush1.msra.mxu0 %v5234
        %5300 = vmatprep.subr.mxu0 %v5237
        %5301 = vmatpush1.msra.mxu0 %v5236
        %5302 = vmatprep.subr.mxu0 %v5239
        %5303 = vmatpush1.msra.mxu0 %v5238
        %5304 = vmatprep.subr.mxu0 %v5241
        %5305 = vmatpush1.msra.mxu0 %v5240
        %5306 = vmatprep.subr.mxu0 %v5243
        %5307 = vmatpush1.msra.mxu0 %v5242
        %5308 = vmatprep.subr.mxu0 %v5245
        %5309 = vmatpush1.msra.mxu0 %v5244
        %5310 = vmatprep.subr.mxu0 %v5247
        %5311 = vmatpush1.msra.mxu0 %v5246
        %5312 = vmatprep.subr.mxu0 %v5249
        %5313 = vmatpush1.msra.mxu0 %v5248
        %5314 = vmatprep.subr.mxu0 %v5251
        %5315 = vmatpush1.msra.mxu0 %v5250
        %5316 = vmatprep.subr.mxu0 %v5253
        %5317 = vmatpush1.msra.mxu0 %v5252
        %5318 = vmatprep.subr.mxu0 %v5255
        %5319 = vmatpush1.msra.mxu0 %v5254
        %5320 = vmatprep.subr.mxu0 %v5257
        %5321 = vmatpush1.msra.mxu0 %v5256
        %5322 = vmatprep.subr.mxu0 %v5259
        %5323 = vmatpush1.msra.mxu0 %v5258
        %5324 = vmatprep.subr.mxu0 %v5261
        %5325 = vmatpush1.msra.mxu0 %v5260
        %5326 = vmatprep.subr.mxu0 %v5263
        %5327 = vmatpush1.msra.mxu0 %v5262
        %5328 = vmatprep.subr.mxu0 %v5265
        %5329 = vmatpush1.msra.mxu0 %v5264
        %5330 = vmatprep.subr.mxu0 %v5267
        %5331 = vmatpush1.msra.mxu0 %v5266
        %5332 = vmatprep.subr.mxu0 %v5269
        %5333 = vmatpush1.msra.mxu0 %v5268
        %5334 = vmatprep.subr.mxu0 %v5271
        %5335 = vmatpush1.msra.mxu0 %v5270
        %5336 = vmatprep.subr.mxu0 %v5273
        %5337 = vmatpush1.msra.mxu0 %v5272
        %5338 = vmatprep.subr.mxu0 %v5275
        %5339 = vmatpush1.msra.mxu0 %v5274
        %5340 = vmatprep.subr.mxu0 %v5277
        %5341 = vmatpush1.msra.mxu0 %v5276
        %5342 = vmatprep.subr.mxu0 %v5279
        %5343 = vmatpush1.msra.mxu0 %v5278
        %5344 = vmatprep.mubr.f32.mxu0 %v4924
        %5345 = vmatmul.mubr.f32.gmra.mrb[0].mxu0 %v4922
        %v5346 = vpop.f32.mrb[0].mxu0
        %v5347 = vadd.f32 0.0, %v5346
        %v5348 = vpop.f32.mrb[0].mxu0
        %v5349 = vadd.f32 0.0, %v5348
        %5350 = vmatprep.mubr.f32.mxu0 %v4930
        %5351 = vmatmul.mubr.f32.gmra.mrb[0].mxu0 %v4928
        %v5352 = vpop.f32.mrb[0].mxu0
        %v5353 = vadd.f32 0.0, %v5352
        %v5354 = vpop.f32.mrb[0].mxu0
        %v5355 = vadd.f32 0.0, %v5354
        %5356 = vdwg.mxu0
        %v5357 = vadd.f32 %v5205, %v5347
        %v5358 = vadd.f32 %v5207, %v5349
        %v5359 = vadd.f32 %v5211, %v5353
        %v5360 = vadd.f32 %v5213, %v5355
        %5361 = vmatprep.subr.mxu0 %v4764
        %5362 = vmatpush1.msra.mxu0 %v4763
        %5363 = vmatprep.subr.mxu0 %v4766
        %5364 = vmatpush1.msra.mxu0 %v4765
        %5365 = vmatprep.subr.mxu0 0.0
        %5366 = vmatpush1.msra.mxu0 0.0
        %5367 = vmatprep.subr.mxu0 0.0
        %5368 = vmatpush1.msra.mxu0 0.0
        %5369 = vmatprep.subr.mxu0 0.0
        %5370 = vmatpush1.msra.mxu0 0.0
        %5371 = vmatprep.subr.mxu0 0.0
        %5372 = vmatpush1.msra.mxu0 0.0
        %5373 = vmatprep.subr.mxu0 0.0
        %5374 = vmatpush1.msra.mxu0 0.0
        %5375 = vmatprep.subr.mxu0 0.0
        %5376 = vmatpush1.msra.mxu0 0.0
        %5377 = vmatprep.subr.mxu0 0.0
        %5378 = vmatpush1.msra.mxu0 0.0
        %5379 = vmatprep.subr.mxu0 0.0
        %5380 = vmatpush1.msra.mxu0 0.0
        %5381 = vmatprep.subr.mxu0 0.0
        %5382 = vmatpush1.msra.mxu0 0.0
        %5383 = vmatprep.subr.mxu0 0.0
        %5384 = vmatpush1.msra.mxu0 0.0
        %5385 = vmatprep.subr.mxu0 0.0
        %5386 = vmatpush1.msra.mxu0 0.0
        %5387 = vmatprep.subr.mxu0 0.0
        %5388 = vmatpush1.msra.mxu0 0.0
        %5389 = vmatprep.subr.mxu0 0.0
        %5390 = vmatpush1.msra.mxu0 0.0
        %5391 = vmatprep.subr.mxu0 0.0
        %5392 = vmatpush1.msra.mxu0 0.0
        %5393 = vmatprep.subr.mxu0 0.0
        %5394 = vmatpush1.msra.mxu0 0.0
        %5395 = vmatprep.subr.mxu0 0.0
        %5396 = vmatpush1.msra.mxu0 0.0
        %5397 = vmatprep.subr.mxu0 0.0
        %5398 = vmatpush1.msra.mxu0 0.0
        %5399 = vmatprep.subr.mxu0 0.0
        %5400 = vmatpush1.msra.mxu0 0.0
        %5401 = vmatprep.subr.mxu0 0.0
        %5402 = vmatpush1.msra.mxu0 0.0
        %5403 = vmatprep.subr.mxu0 0.0
        %5404 = vmatpush1.msra.mxu0 0.0
        %5405 = vmatprep.subr.mxu0 0.0
        %5406 = vmatpush1.msra.mxu0 0.0
        %5407 = vmatprep.subr.mxu0 0.0
        %5408 = vmatpush1.msra.mxu0 0.0
        %5409 = vmatprep.subr.mxu0 0.0
        %5410 = vmatpush1.msra.mxu0 0.0
        %5411 = vmatprep.subr.mxu0 0.0
        %5412 = vmatpush1.msra.mxu0 0.0
        %5413 = vmatprep.subr.mxu0 0.0
        %5414 = vmatpush1.msra.mxu0 0.0
        %5415 = vmatprep.subr.mxu0 0.0
        %5416 = vmatpush1.msra.mxu0 0.0
        %5417 = vmatprep.subr.mxu0 0.0
        %5418 = vmatpush1.msra.mxu0 0.0
        %5419 = vmatprep.subr.mxu0 0.0
        %5420 = vmatpush1.msra.mxu0 0.0
        %5421 = vmatprep.subr.mxu0 0.0
        %5422 = vmatpush1.msra.mxu0 0.0
        %5423 = vmatprep.subr.mxu0 0.0
        %5424 = vmatpush1.msra.mxu0 0.0
        %5425 = vmatprep.mubr.f32.mxu0 0.0
        %5426 = vmatmul.mubr.f32.gmra.mrb[0].mxu0 %v4768
        %v5427 = vpop.f32.mrb[0].mxu0
        %v5428 = vadd.f32 0.0, %v5427
        %v5429 = vpop.f32.mrb[0].mxu0
        %v5430 = vadd.f32 0.0, %v5429
        %5431 = vmatprep.mubr.f32.mxu0 0.0
        %5432 = vmatmul.mubr.f32.gmra.mrb[0].mxu0 %v4771
        %v5433 = vpop.f32.mrb[0].mxu0
        %v5434 = vadd.f32 0.0, %v5433
        %v5435 = vpop.f32.mrb[0].mxu0
        %v5436 = vadd.f32 0.0, %v5435
        %5437 = vdwg.mxu0
        %5438 = vmatprep.subr.mxu0 %v4764
        %5439 = vmatpush1.msra.mxu0 %v4763
        %5440 = vmatprep.subr.mxu0 %v4766
        %5441 = vmatpush1.msra.mxu0 %v4765
        %5442 = vmatprep.subr.mxu0 0.0
        %5443 = vmatpush1.msra.mxu0 0.0
        %5444 = vmatprep.subr.mxu0 0.0
        %5445 = vmatpush1.msra.mxu0 0.0
        %5446 = vmatprep.subr.mxu0 0.0
        %5447 = vmatpush1.msra.mxu0 0.0
        %5448 = vmatprep.subr.mxu0 0.0
        %5449 = vmatpush1.msra.mxu0 0.0
        %5450 = vmatprep.subr.mxu0 0.0
        %5451 = vmatpush1.msra.mxu0 0.0
        %5452 = vmatprep.subr.mxu0 0.0
        %5453 = vmatpush1.msra.mxu0 0.0
        %5454 = vmatprep.subr.mxu0 0.0
        %5455 = vmatpush1.msra.mxu0 0.0
        %5456 = vmatprep.subr.mxu0 0.0
        %5457 = vmatpush1.msra.mxu0 0.0
        %5458 = vmatprep.subr.mxu0 0.0
        %5459 = vmatpush1.msra.mxu0 0.0
        %5460 = vmatprep.subr.mxu0 0.0
        %5461 = vmatpush1.msra.mxu0 0.0
        %5462 = vmatprep.subr.mxu0 0.0
        %5463 = vmatpush1.msra.mxu0 0.0
        %5464 = vmatprep.subr.mxu0 0.0
        %5465 = vmatpush1.msra.mxu0 0.0
        %5466 = vmatprep.subr.mxu0 0.0
        %5467 = vmatpush1.msra.mxu0 0.0
        %5468 = vmatprep.subr.mxu0 0.0
        %5469 = vmatpush1.msra.mxu0 0.0
        %5470 = vmatprep.subr.mxu0 0.0
        %5471 = vmatpush1.msra.mxu0 0.0
        %5472 = vmatprep.subr.mxu0 0.0
        %5473 = vmatpush1.msra.mxu0 0.0
        %5474 = vmatprep.subr.mxu0 0.0
        %5475 = vmatpush1.msra.mxu0 0.0
        %5476 = vmatprep.subr.mxu0 0.0
        %5477 = vmatpush1.msra.mxu0 0.0
        %5478 = vmatprep.subr.mxu0 0.0
        %5479 = vmatpush1.msra.mxu0 0.0
        %5480 = vmatprep.subr.mxu0 0.0
        %5481 = vmatpush1.msra.mxu0 0.0
        %5482 = vmatprep.subr.mxu0 0.0
        %5483 = vmatpush1.msra.mxu0 0.0
        %5484 = vmatprep.subr.mxu0 0.0
        %5485 = vmatpush1.msra.mxu0 0.0
        %5486 = vmatprep.subr.mxu0 0.0
        %5487 = vmatpush1.msra.mxu0 0.0
        %5488 = vmatprep.subr.mxu0 0.0
        %5489 = vmatpush1.msra.mxu0 0.0
        %5490 = vmatprep.subr.mxu0 0.0
        %5491 = vmatpush1.msra.mxu0 0.0
        %5492 = vmatprep.subr.mxu0 0.0
        %5493 = vmatpush1.msra.mxu0 0.0
        %5494 = vmatprep.subr.mxu0 0.0
        %5495 = vmatpush1.msra.mxu0 0.0
        %5496 = vmatprep.subr.mxu0 0.0
        %5497 = vmatpush1.msra.mxu0 0.0
        %5498 = vmatprep.subr.mxu0 0.0
        %5499 = vmatpush1.msra.mxu0 0.0
        %5500 = vmatprep.subr.mxu0 0.0
        %5501 = vmatpush1.msra.mxu0 0.0
        %5502 = vmatprep.mubr.f32.mxu0 0.0
        %5503 = vmatmul.mubr.f32.gmra.mrb[0].mxu0 %v4850
        %v5504 = vpop.f32.mrb[0].mxu0
        %v5505 = vadd.f32 0.0, %v5504
        %v5506 = vpop.f32.mrb[0].mxu0
        %v5507 = vadd.f32 0.0, %v5506
        %5508 = vmatprep.mubr.f32.mxu0 0.0
        %5509 = vmatmul.mubr.f32.gmra.mrb[0].mxu0 %v4853
        %v5510 = vpop.f32.mrb[0].mxu0
        %v5511 = vadd.f32 0.0, %v5510
        %v5512 = vpop.f32.mrb[0].mxu0
        %v5513 = vadd.f32 0.0, %v5512
        %5514 = vdwg.mxu0
        %v5515 = vld [vmem:[#allocation22] sm:$0xff]
        %v5516 = vld [vmem:[#allocation22 + $0x8] sm:$0xff]
        %v5517 = vld [vmem:[#allocation22 + $0x10] sm:$0xff]
        %v5518 = vld [vmem:[#allocation22 + $0x18] sm:$0xff]
        %v5519 = vld [vmem:[#allocation22 + $0x20] sm:$0xff]
        %v5520 = vld [vmem:[#allocation22 + $0x28] sm:$0xff]
        %v5521 = vld [vmem:[#allocation22 + $0x30] sm:$0xff]
        %v5522 = vld [vmem:[#allocation22 + $0x38] sm:$0xff]
        %v5523 = vld [vmem:[#allocation22 + $0x40] sm:$0xff]
        %v5524 = vld [vmem:[#allocation22 + $0x48] sm:$0xff]
        %v5525 = vld [vmem:[#allocation22 + $0x50] sm:$0xff]
        %v5526 = vld [vmem:[#allocation22 + $0x58] sm:$0xff]
        %v5527 = vld [vmem:[#allocation22 + $0x60] sm:$0xff]
        %v5528 = vld [vmem:[#allocation22 + $0x68] sm:$0xff]
        %v5529 = vld [vmem:[#allocation22 + $0x70] sm:$0xff]
        %v5530 = vld [vmem:[#allocation22 + $0x78] sm:$0xff]
        %v5531 = vld [vmem:[#allocation22 + $0x80] sm:$0xff]
        %v5532 = vld [vmem:[#allocation22 + $0x88] sm:$0xff]
        %v5533 = vld [vmem:[#allocation22 + $0x90] sm:$0xff]
        %v5534 = vld [vmem:[#allocation22 + $0x98] sm:$0xff]
        %v5535 = vld [vmem:[#allocation22 + $0xa0] sm:$0xff]
        %v5536 = vld [vmem:[#allocation22 + $0xa8] sm:$0xff]
        %v5537 = vld [vmem:[#allocation22 + $0xb0] sm:$0xff]
        %v5538 = vld [vmem:[#allocation22 + $0xb8] sm:$0xff]
        %v5539 = vld [vmem:[#allocation22 + $0xc0] sm:$0xff]
        %v5540 = vld [vmem:[#allocation22 + $0xc8] sm:$0xff]
        %v5541 = vld [vmem:[#allocation22 + $0xd0] sm:$0xff]
        %v5542 = vld [vmem:[#allocation22 + $0xd8] sm:$0xff]
        %v5543 = vld [vmem:[#allocation22 + $0xe0] sm:$0xff]
        %v5544 = vld [vmem:[#allocation22 + $0xe8] sm:$0xff]
        %v5545 = vld [vmem:[#allocation22 + $0xf0] sm:$0xff]
        %v5546 = vld [vmem:[#allocation22 + $0xf8] sm:$0xff]
        %v5547 = vld [vmem:[#allocation22 + $0x100] sm:$0xff]
        %v5548 = vld [vmem:[#allocation22 + $0x108] sm:$0xff]
        %v5549 = vld [vmem:[#allocation22 + $0x110] sm:$0xff]
        %v5550 = vld [vmem:[#allocation22 + $0x118] sm:$0xff]
        %v5551 = vld [vmem:[#allocation22 + $0x120] sm:$0xff]
        %v5552 = vld [vmem:[#allocation22 + $0x128] sm:$0xff]
        %v5553 = vld [vmem:[#allocation22 + $0x130] sm:$0xff]
        %v5554 = vld [vmem:[#allocation22 + $0x138] sm:$0xff]
        %v5555 = vld [vmem:[#allocation22 + $0x140] sm:$0xff]
        %v5556 = vld [vmem:[#allocation22 + $0x148] sm:$0xff]
        %v5557 = vld [vmem:[#allocation22 + $0x150] sm:$0xff]
        %v5558 = vld [vmem:[#allocation22 + $0x158] sm:$0xff]
        %v5559 = vld [vmem:[#allocation22 + $0x160] sm:$0xff]
        %v5560 = vld [vmem:[#allocation22 + $0x168] sm:$0xff]
        %v5561 = vld [vmem:[#allocation22 + $0x170] sm:$0xff]
        %v5562 = vld [vmem:[#allocation22 + $0x178] sm:$0xff]
        %v5563 = vld [vmem:[#allocation22 + $0x180] sm:$0xff]
        %v5564 = vld [vmem:[#allocation22 + $0x188] sm:$0xff]
        %v5565 = vld [vmem:[#allocation22 + $0x190] sm:$0xff]
        %v5566 = vld [vmem:[#allocation22 + $0x198] sm:$0xff]
        %v5567 = vld [vmem:[#allocation22 + $0x1a0] sm:$0xff]
        %v5568 = vld [vmem:[#allocation22 + $0x1a8] sm:$0xff]
        %v5569 = vld [vmem:[#allocation22 + $0x1b0] sm:$0xff]
        %v5570 = vld [vmem:[#allocation22 + $0x1b8] sm:$0xff]
        %v5571 = vld [vmem:[#allocation22 + $0x1c0] sm:$0xff]
        %v5572 = vld [vmem:[#allocation22 + $0x1c8] sm:$0xff]
        %v5573 = vld [vmem:[#allocation22 + $0x1d0] sm:$0xff]
        %v5574 = vld [vmem:[#allocation22 + $0x1d8] sm:$0xff]
        %v5575 = vld [vmem:[#allocation22 + $0x1e0] sm:$0xff]
        %v5576 = vld [vmem:[#allocation22 + $0x1e8] sm:$0xff]
        %v5577 = vld [vmem:[#allocation22 + $0x1f0] sm:$0xff]
        %v5578 = vld [vmem:[#allocation22 + $0x1f8] sm:$0xff]
        %s5579 = scalar_lea.vmem [#allocation22], 512
        %v5580 = vld [vmem:[%s5579] sm:$0xff]
        %v5581 = vld [vmem:[%s5579 + $0x8] sm:$0xff]
        %v5582 = vld [vmem:[%s5579 + $0x10] sm:$0xff]
        %v5583 = vld [vmem:[%s5579 + $0x18] sm:$0xff]
        %v5584 = vld [vmem:[%s5579 + $0x20] sm:$0xff]
        %v5585 = vld [vmem:[%s5579 + $0x28] sm:$0xff]
        %v5586 = vld [vmem:[%s5579 + $0x30] sm:$0xff]
        %v5587 = vld [vmem:[%s5579 + $0x38] sm:$0xff]
        %v5588 = vld [vmem:[%s5579 + $0x40] sm:$0xff]
        %v5589 = vld [vmem:[%s5579 + $0x48] sm:$0xff]
        %v5590 = vld [vmem:[%s5579 + $0x50] sm:$0xff]
        %v5591 = vld [vmem:[%s5579 + $0x58] sm:$0xff]
        %v5592 = vld [vmem:[%s5579 + $0x60] sm:$0xff]
        %v5593 = vld [vmem:[%s5579 + $0x68] sm:$0xff]
        %v5594 = vld [vmem:[%s5579 + $0x70] sm:$0xff]
        %v5595 = vld [vmem:[%s5579 + $0x78] sm:$0xff]
        %v5596 = vld [vmem:[%s5579 + $0x80] sm:$0xff]
        %v5597 = vld [vmem:[%s5579 + $0x88] sm:$0xff]
        %v5598 = vld [vmem:[%s5579 + $0x90] sm:$0xff]
        %v5599 = vld [vmem:[%s5579 + $0x98] sm:$0xff]
        %v5600 = vld [vmem:[%s5579 + $0xa0] sm:$0xff]
        %v5601 = vld [vmem:[%s5579 + $0xa8] sm:$0xff]
        %v5602 = vld [vmem:[%s5579 + $0xb0] sm:$0xff]
        %v5603 = vld [vmem:[%s5579 + $0xb8] sm:$0xff]
        %v5604 = vld [vmem:[%s5579 + $0xc0] sm:$0xff]
        %v5605 = vld [vmem:[%s5579 + $0xc8] sm:$0xff]
        %v5606 = vld [vmem:[%s5579 + $0xd0] sm:$0xff]
        %v5607 = vld [vmem:[%s5579 + $0xd8] sm:$0xff]
        %v5608 = vld [vmem:[%s5579 + $0xe0] sm:$0xff]
        %v5609 = vld [vmem:[%s5579 + $0xe8] sm:$0xff]
        %v5610 = vld [vmem:[%s5579 + $0xf0] sm:$0xff]
        %v5611 = vld [vmem:[%s5579 + $0xf8] sm:$0xff]
        %v5612 = vld [vmem:[%s5579 + $0x100] sm:$0xff]
        %v5613 = vld [vmem:[%s5579 + $0x108] sm:$0xff]
        %v5614 = vld [vmem:[%s5579 + $0x110] sm:$0xff]
        %v5615 = vld [vmem:[%s5579 + $0x118] sm:$0xff]
        %v5616 = vld [vmem:[%s5579 + $0x120] sm:$0xff]
        %v5617 = vld [vmem:[%s5579 + $0x128] sm:$0xff]
        %v5618 = vld [vmem:[%s5579 + $0x130] sm:$0xff]
        %v5619 = vld [vmem:[%s5579 + $0x138] sm:$0xff]
        %v5620 = vld [vmem:[%s5579 + $0x140] sm:$0xff]
        %v5621 = vld [vmem:[%s5579 + $0x148] sm:$0xff]
        %v5622 = vld [vmem:[%s5579 + $0x150] sm:$0xff]
        %v5623 = vld [vmem:[%s5579 + $0x158] sm:$0xff]
        %v5624 = vld [vmem:[%s5579 + $0x160] sm:$0xff]
        %v5625 = vld [vmem:[%s5579 + $0x168] sm:$0xff]
        %v5626 = vld [vmem:[%s5579 + $0x170] sm:$0xff]
        %v5627 = vld [vmem:[%s5579 + $0x178] sm:$0xff]
        %v5628 = vld [vmem:[%s5579 + $0x180] sm:$0xff]
        %v5629 = vld [vmem:[%s5579 + $0x188] sm:$0xff]
        %v5630 = vld [vmem:[%s5579 + $0x190] sm:$0xff]
        %v5631 = vld [vmem:[%s5579 + $0x198] sm:$0xff]
        %v5632 = vld [vmem:[%s5579 + $0x1a0] sm:$0xff]
        %v5633 = vld [vmem:[%s5579 + $0x1a8] sm:$0xff]
        %v5634 = vld [vmem:[%s5579 + $0x1b0] sm:$0xff]
        %v5635 = vld [vmem:[%s5579 + $0x1b8] sm:$0xff]
        %v5636 = vld [vmem:[%s5579 + $0x1c0] sm:$0xff]
        %v5637 = vld [vmem:[%s5579 + $0x1c8] sm:$0xff]
        %v5638 = vld [vmem:[%s5579 + $0x1d0] sm:$0xff]
        %v5639 = vld [vmem:[%s5579 + $0x1d8] sm:$0xff]
        %v5640 = vld [vmem:[%s5579 + $0x1e0] sm:$0xff]
        %v5641 = vld [vmem:[%s5579 + $0x1e8] sm:$0xff]
        %v5642 = vld [vmem:[%s5579 + $0x1f0] sm:$0xff]
        %v5643 = vld [vmem:[%s5579 + $0x1f8] sm:$0xff]
        %5644 = vmatprep.subr.mxu0 %v5581
        %5645 = vmatpush1.msra.mxu0 %v5580
        %5646 = vmatprep.subr.mxu0 %v5583
        %5647 = vmatpush1.msra.mxu0 %v5582
        %5648 = vmatprep.subr.mxu0 %v5585
        %5649 = vmatpush1.msra.mxu0 %v5584
        %5650 = vmatprep.subr.mxu0 %v5587
        %5651 = vmatpush1.msra.mxu0 %v5586
        %5652 = vmatprep.subr.mxu0 %v5589
        %5653 = vmatpush1.msra.mxu0 %v5588
        %5654 = vmatprep.subr.mxu0 %v5591
        %5655 = vmatpush1.msra.mxu0 %v5590
        %5656 = vmatprep.subr.mxu0 %v5593
        %5657 = vmatpush1.msra.mxu0 %v5592
        %5658 = vmatprep.subr.mxu0 %v5595
        %5659 = vmatpush1.msra.mxu0 %v5594
        %5660 = vmatprep.subr.mxu0 %v5597
        %5661 = vmatpush1.msra.mxu0 %v5596
        %5662 = vmatprep.subr.mxu0 %v5599
        %5663 = vmatpush1.msra.mxu0 %v5598
        %5664 = vmatprep.subr.mxu0 %v5601
        %5665 = vmatpush1.msra.mxu0 %v5600
        %5666 = vmatprep.subr.mxu0 %v5603
        %5667 = vmatpush1.msra.mxu0 %v5602
        %5668 = vmatprep.subr.mxu0 %v5605
        %5669 = vmatpush1.msra.mxu0 %v5604
        %5670 = vmatprep.subr.mxu0 %v5607
        %5671 = vmatpush1.msra.mxu0 %v5606
        %5672 = vmatprep.subr.mxu0 %v5609
        %5673 = vmatpush1.msra.mxu0 %v5608
        %5674 = vmatprep.subr.mxu0 %v5611
        %5675 = vmatpush1.msra.mxu0 %v5610
        %5676 = vmatprep.subr.mxu0 %v5613
        %5677 = vmatpush1.msra.mxu0 %v5612
        %5678 = vmatprep.subr.mxu0 %v5615
        %5679 = vmatpush1.msra.mxu0 %v5614
        %5680 = vmatprep.subr.mxu0 %v5617
        %5681 = vmatpush1.msra.mxu0 %v5616
        %5682 = vmatprep.subr.mxu0 %v5619
        %5683 = vmatpush1.msra.mxu0 %v5618
        %5684 = vmatprep.subr.mxu0 %v5621
        %5685 = vmatpush1.msra.mxu0 %v5620
        %5686 = vmatprep.subr.mxu0 %v5623
        %5687 = vmatpush1.msra.mxu0 %v5622
        %5688 = vmatprep.subr.mxu0 %v5625
        %5689 = vmatpush1.msra.mxu0 %v5624
        %5690 = vmatprep.subr.mxu0 %v5627
        %5691 = vmatpush1.msra.mxu0 %v5626
        %5692 = vmatprep.subr.mxu0 %v5629
        %5693 = vmatpush1.msra.mxu0 %v5628
        %5694 = vmatprep.subr.mxu0 %v5631
        %5695 = vmatpush1.msra.mxu0 %v5630
        %5696 = vmatprep.subr.mxu0 %v5633
        %5697 = vmatpush1.msra.mxu0 %v5632
        %5698 = vmatprep.subr.mxu0 %v5635
        %5699 = vmatpush1.msra.mxu0 %v5634
        %5700 = vmatprep.subr.mxu0 %v5637
        %5701 = vmatpush1.msra.mxu0 %v5636
        %5702 = vmatprep.subr.mxu0 %v5639
        %5703 = vmatpush1.msra.mxu0 %v5638
        %5704 = vmatprep.subr.mxu0 %v5641
        %5705 = vmatpush1.msra.mxu0 %v5640
        %5706 = vmatprep.subr.mxu0 %v5643
        %5707 = vmatpush1.msra.mxu0 %v5642
        %5708 = vmatprep.mubr.f32.mxu0 %v4764
        %5709 = vmatmul.mubr.f32.gmra.mrb[0].mxu0 %v4763
        %v5710 = vpop.f32.mrb[0].mxu0
        %v5711 = vadd.f32 0.0, %v5710
        %v5712 = vpop.f32.mrb[0].mxu0
        %v5713 = vadd.f32 0.0, %v5712
        %5714 = vmatprep.mubr.f32.mxu0 %v4766
        %5715 = vmatmul.mubr.f32.gmra.mrb[0].mxu0 %v4765
        %v5716 = vpop.f32.mrb[0].mxu0
        %v5717 = vadd.f32 0.0, %v5716
        %v5718 = vpop.f32.mrb[0].mxu0
        %v5719 = vadd.f32 0.0, %v5718
        %5720 = vdwg.mxu0
        %5721 = vmatprep.subr.mxu0 %v5516
        %5722 = vmatpush1.msra.mxu0 %v5515
        %5723 = vmatprep.subr.mxu0 %v5518
        %5724 = vmatpush1.msra.mxu0 %v5517
        %5725 = vmatprep.subr.mxu0 %v5520
        %5726 = vmatpush1.msra.mxu0 %v5519
        %5727 = vmatprep.subr.mxu0 %v5522
        %5728 = vmatpush1.msra.mxu0 %v5521
        %5729 = vmatprep.subr.mxu0 %v5524
        %5730 = vmatpush1.msra.mxu0 %v5523
        %5731 = vmatprep.subr.mxu0 %v5526
        %5732 = vmatpush1.msra.mxu0 %v5525
        %5733 = vmatprep.subr.mxu0 %v5528
        %5734 = vmatpush1.msra.mxu0 %v5527
        %5735 = vmatprep.subr.mxu0 %v5530
        %5736 = vmatpush1.msra.mxu0 %v5529
        %5737 = vmatprep.subr.mxu0 %v5532
        %5738 = vmatpush1.msra.mxu0 %v5531
        %5739 = vmatprep.subr.mxu0 %v5534
        %5740 = vmatpush1.msra.mxu0 %v5533
        %5741 = vmatprep.subr.mxu0 %v5536
        %5742 = vmatpush1.msra.mxu0 %v5535
        %5743 = vmatprep.subr.mxu0 %v5538
        %5744 = vmatpush1.msra.mxu0 %v5537
        %5745 = vmatprep.subr.mxu0 %v5540
        %5746 = vmatpush1.msra.mxu0 %v5539
        %5747 = vmatprep.subr.mxu0 %v5542
        %5748 = vmatpush1.msra.mxu0 %v5541
        %5749 = vmatprep.subr.mxu0 %v5544
        %5750 = vmatpush1.msra.mxu0 %v5543
        %5751 = vmatprep.subr.mxu0 %v5546
        %5752 = vmatpush1.msra.mxu0 %v5545
        %5753 = vmatprep.subr.mxu0 %v5548
        %5754 = vmatpush1.msra.mxu0 %v5547
        %5755 = vmatprep.subr.mxu0 %v5550
        %5756 = vmatpush1.msra.mxu0 %v5549
        %5757 = vmatprep.subr.mxu0 %v5552
        %5758 = vmatpush1.msra.mxu0 %v5551
        %5759 = vmatprep.subr.mxu0 %v5554
        %5760 = vmatpush1.msra.mxu0 %v5553
        %5761 = vmatprep.subr.mxu0 %v5556
        %5762 = vmatpush1.msra.mxu0 %v5555
        %5763 = vmatprep.subr.mxu0 %v5558
        %5764 = vmatpush1.msra.mxu0 %v5557
        %5765 = vmatprep.subr.mxu0 %v5560
        %5766 = vmatpush1.msra.mxu0 %v5559
        %5767 = vmatprep.subr.mxu0 %v5562
        %5768 = vmatpush1.msra.mxu0 %v5561
        %5769 = vmatprep.subr.mxu0 %v5564
        %5770 = vmatpush1.msra.mxu0 %v5563
        %5771 = vmatprep.subr.mxu0 %v5566
        %5772 = vmatpush1.msra.mxu0 %v5565
        %5773 = vmatprep.subr.mxu0 %v5568
        %5774 = vmatpush1.msra.mxu0 %v5567
        %5775 = vmatprep.subr.mxu0 %v5570
        %5776 = vmatpush1.msra.mxu0 %v5569
        %5777 = vmatprep.subr.mxu0 %v5572
        %5778 = vmatpush1.msra.mxu0 %v5571
        %5779 = vmatprep.subr.mxu0 %v5574
        %5780 = vmatpush1.msra.mxu0 %v5573
        %5781 = vmatprep.subr.mxu0 %v5576
        %5782 = vmatpush1.msra.mxu0 %v5575
        %5783 = vmatprep.subr.mxu0 %v5578
        %5784 = vmatpush1.msra.mxu0 %v5577
        %5785 = vmatprep.mubr.f32.mxu0 %v5430
        %5786 = vmatmul.mubr.f32.gmra.mrb[0].mxu0 %v5428
        %v5787 = vpop.f32.mrb[0].mxu0
        %v5788 = vadd.f32 %v5711, %v5787
        %v5789 = vpop.f32.mrb[0].mxu0
        %v5790 = vadd.f32 %v5713, %v5789
        %5791 = vmatprep.mubr.f32.mxu0 %v5436
        %5792 = vmatmul.mubr.f32.gmra.mrb[0].mxu0 %v5434
        %v5793 = vpop.f32.mrb[0].mxu0
        %v5794 = vadd.f32 %v5717, %v5793
        %v5795 = vpop.f32.mrb[0].mxu0
        %v5796 = vadd.f32 %v5719, %v5795
        %5797 = vdwg.mxu0
        %s5798 = scalar_lea.vmem [#allocation22], 1024
        %v5799 = vld [vmem:[%s5798] sm:$0xff]
        %v5800 = vld [vmem:[%s5798 + $0x8] sm:$0xff]
        %v5801 = vld [vmem:[%s5798 + $0x10] sm:$0xff]
        %v5802 = vld [vmem:[%s5798 + $0x18] sm:$0xff]
        %v5803 = vld [vmem:[%s5798 + $0x20] sm:$0xff]
        %v5804 = vld [vmem:[%s5798 + $0x28] sm:$0xff]
        %v5805 = vld [vmem:[%s5798 + $0x30] sm:$0xff]
        %v5806 = vld [vmem:[%s5798 + $0x38] sm:$0xff]
        %v5807 = vld [vmem:[%s5798 + $0x40] sm:$0xff]
        %v5808 = vld [vmem:[%s5798 + $0x48] sm:$0xff]
        %v5809 = vld [vmem:[%s5798 + $0x50] sm:$0xff]
        %v5810 = vld [vmem:[%s5798 + $0x58] sm:$0xff]
        %v5811 = vld [vmem:[%s5798 + $0x60] sm:$0xff]
        %v5812 = vld [vmem:[%s5798 + $0x68] sm:$0xff]
        %v5813 = vld [vmem:[%s5798 + $0x70] sm:$0xff]
        %v5814 = vld [vmem:[%s5798 + $0x78] sm:$0xff]
        %v5815 = vld [vmem:[%s5798 + $0x80] sm:$0xff]
        %v5816 = vld [vmem:[%s5798 + $0x88] sm:$0xff]
        %v5817 = vld [vmem:[%s5798 + $0x90] sm:$0xff]
        %v5818 = vld [vmem:[%s5798 + $0x98] sm:$0xff]
        %v5819 = vld [vmem:[%s5798 + $0xa0] sm:$0xff]
        %v5820 = vld [vmem:[%s5798 + $0xa8] sm:$0xff]
        %v5821 = vld [vmem:[%s5798 + $0xb0] sm:$0xff]
        %v5822 = vld [vmem:[%s5798 + $0xb8] sm:$0xff]
        %v5823 = vld [vmem:[%s5798 + $0xc0] sm:$0xff]
        %v5824 = vld [vmem:[%s5798 + $0xc8] sm:$0xff]
        %v5825 = vld [vmem:[%s5798 + $0xd0] sm:$0xff]
        %v5826 = vld [vmem:[%s5798 + $0xd8] sm:$0xff]
        %v5827 = vld [vmem:[%s5798 + $0xe0] sm:$0xff]
        %v5828 = vld [vmem:[%s5798 + $0xe8] sm:$0xff]
        %v5829 = vld [vmem:[%s5798 + $0xf0] sm:$0xff]
        %v5830 = vld [vmem:[%s5798 + $0xf8] sm:$0xff]
        %v5831 = vld [vmem:[%s5798 + $0x100] sm:$0xff]
        %v5832 = vld [vmem:[%s5798 + $0x108] sm:$0xff]
        %v5833 = vld [vmem:[%s5798 + $0x110] sm:$0xff]
        %v5834 = vld [vmem:[%s5798 + $0x118] sm:$0xff]
        %v5835 = vld [vmem:[%s5798 + $0x120] sm:$0xff]
        %v5836 = vld [vmem:[%s5798 + $0x128] sm:$0xff]
        %v5837 = vld [vmem:[%s5798 + $0x130] sm:$0xff]
        %v5838 = vld [vmem:[%s5798 + $0x138] sm:$0xff]
        %v5839 = vld [vmem:[%s5798 + $0x140] sm:$0xff]
        %v5840 = vld [vmem:[%s5798 + $0x148] sm:$0xff]
        %v5841 = vld [vmem:[%s5798 + $0x150] sm:$0xff]
        %v5842 = vld [vmem:[%s5798 + $0x158] sm:$0xff]
        %v5843 = vld [vmem:[%s5798 + $0x160] sm:$0xff]
        %v5844 = vld [vmem:[%s5798 + $0x168] sm:$0xff]
        %v5845 = vld [vmem:[%s5798 + $0x170] sm:$0xff]
        %v5846 = vld [vmem:[%s5798 + $0x178] sm:$0xff]
        %v5847 = vld [vmem:[%s5798 + $0x180] sm:$0xff]
        %v5848 = vld [vmem:[%s5798 + $0x188] sm:$0xff]
        %v5849 = vld [vmem:[%s5798 + $0x190] sm:$0xff]
        %v5850 = vld [vmem:[%s5798 + $0x198] sm:$0xff]
        %v5851 = vld [vmem:[%s5798 + $0x1a0] sm:$0xff]
        %v5852 = vld [vmem:[%s5798 + $0x1a8] sm:$0xff]
        %v5853 = vld [vmem:[%s5798 + $0x1b0] sm:$0xff]
        %v5854 = vld [vmem:[%s5798 + $0x1b8] sm:$0xff]
        %v5855 = vld [vmem:[%s5798 + $0x1c0] sm:$0xff]
        %v5856 = vld [vmem:[%s5798 + $0x1c8] sm:$0xff]
        %v5857 = vld [vmem:[%s5798 + $0x1d0] sm:$0xff]
        %v5858 = vld [vmem:[%s5798 + $0x1d8] sm:$0xff]
        %v5859 = vld [vmem:[%s5798 + $0x1e0] sm:$0xff]
        %v5860 = vld [vmem:[%s5798 + $0x1e8] sm:$0xff]
        %v5861 = vld [vmem:[%s5798 + $0x1f0] sm:$0xff]
        %v5862 = vld [vmem:[%s5798 + $0x1f8] sm:$0xff]
        %5863 = vmatprep.subr.mxu0 %v5800
        %5864 = vmatpush1.msra.mxu0 %v5799
        %5865 = vmatprep.subr.mxu0 %v5802
        %5866 = vmatpush1.msra.mxu0 %v5801
        %5867 = vmatprep.subr.mxu0 %v5804
        %5868 = vmatpush1.msra.mxu0 %v5803
        %5869 = vmatprep.subr.mxu0 %v5806
        %5870 = vmatpush1.msra.mxu0 %v5805
        %5871 = vmatprep.subr.mxu0 %v5808
        %5872 = vmatpush1.msra.mxu0 %v5807
        %5873 = vmatprep.subr.mxu0 %v5810
        %5874 = vmatpush1.msra.mxu0 %v5809
        %5875 = vmatprep.subr.mxu0 %v5812
        %5876 = vmatpush1.msra.mxu0 %v5811
        %5877 = vmatprep.subr.mxu0 %v5814
        %5878 = vmatpush1.msra.mxu0 %v5813
        %5879 = vmatprep.subr.mxu0 %v5816
        %5880 = vmatpush1.msra.mxu0 %v5815
        %5881 = vmatprep.subr.mxu0 %v5818
        %5882 = vmatpush1.msra.mxu0 %v5817
        %5883 = vmatprep.subr.mxu0 %v5820
        %5884 = vmatpush1.msra.mxu0 %v5819
        %5885 = vmatprep.subr.mxu0 %v5822
        %5886 = vmatpush1.msra.mxu0 %v5821
        %5887 = vmatprep.subr.mxu0 %v5824
        %5888 = vmatpush1.msra.mxu0 %v5823
        %5889 = vmatprep.subr.mxu0 %v5826
        %5890 = vmatpush1.msra.mxu0 %v5825
        %5891 = vmatprep.subr.mxu0 %v5828
        %5892 = vmatpush1.msra.mxu0 %v5827
        %5893 = vmatprep.subr.mxu0 %v5830
        %5894 = vmatpush1.msra.mxu0 %v5829
        %5895 = vmatprep.subr.mxu0 %v5832
        %5896 = vmatpush1.msra.mxu0 %v5831
        %5897 = vmatprep.subr.mxu0 %v5834
        %5898 = vmatpush1.msra.mxu0 %v5833
        %5899 = vmatprep.subr.mxu0 %v5836
        %5900 = vmatpush1.msra.mxu0 %v5835
        %5901 = vmatprep.subr.mxu0 %v5838
        %5902 = vmatpush1.msra.mxu0 %v5837
        %5903 = vmatprep.subr.mxu0 %v5840
        %5904 = vmatpush1.msra.mxu0 %v5839
        %5905 = vmatprep.subr.mxu0 %v5842
        %5906 = vmatpush1.msra.mxu0 %v5841
        %5907 = vmatprep.subr.mxu0 %v5844
        %5908 = vmatpush1.msra.mxu0 %v5843
        %5909 = vmatprep.subr.mxu0 %v5846
        %5910 = vmatpush1.msra.mxu0 %v5845
        %5911 = vmatprep.subr.mxu0 %v5848
        %5912 = vmatpush1.msra.mxu0 %v5847
        %5913 = vmatprep.subr.mxu0 %v5850
        %5914 = vmatpush1.msra.mxu0 %v5849
        %5915 = vmatprep.subr.mxu0 %v5852
        %5916 = vmatpush1.msra.mxu0 %v5851
        %5917 = vmatprep.subr.mxu0 %v5854
        %5918 = vmatpush1.msra.mxu0 %v5853
        %5919 = vmatprep.subr.mxu0 %v5856
        %5920 = vmatpush1.msra.mxu0 %v5855
        %5921 = vmatprep.subr.mxu0 %v5858
        %5922 = vmatpush1.msra.mxu0 %v5857
        %5923 = vmatprep.subr.mxu0 %v5860
        %5924 = vmatpush1.msra.mxu0 %v5859
        %5925 = vmatprep.subr.mxu0 %v5862
        %5926 = vmatpush1.msra.mxu0 %v5861
        %5927 = vmatprep.mubr.f32.mxu0 %v5507
        %5928 = vmatmul.mubr.f32.gmra.mrb[0].mxu0 %v5505
        %v5929 = vpop.f32.mrb[0].mxu0
        %v5930 = vadd.f32 0.0, %v5929
        %v5931 = vpop.f32.mrb[0].mxu0
        %v5932 = vadd.f32 0.0, %v5931
        %5933 = vmatprep.mubr.f32.mxu0 %v5513
        %5934 = vmatmul.mubr.f32.gmra.mrb[0].mxu0 %v5511
        %v5935 = vpop.f32.mrb[0].mxu0
        %v5936 = vadd.f32 0.0, %v5935
        %v5937 = vpop.f32.mrb[0].mxu0
        %v5938 = vadd.f32 0.0, %v5937
        %5939 = vdwg.mxu0
        %v5940 = vadd.f32 %v5788, %v5930
        %v5941 = vadd.f32 %v5790, %v5932
        %v5942 = vadd.f32 %v5794, %v5936
        %v5943 = vadd.f32 %v5796, %v5938
        %v5944 = vadd.f32 %v5357, %v5940
        %v5945 = vadd.f32 %v5358, %v5941
        %v5946 = vadd.f32 %v5359, %v5942
        %v5947 = vadd.f32 %v5360, %v5943
        %v5948 = vld [vmem:[%s49] sm:$0x3]
        %v5950 = vlaneseq
        %v5951 = vshrl.u32 %v5950, 7
        %v5952 = vsub.s32 0, %v5951
        %v5953 = vrot.slane %v5948, %v5952
        %v5954 = vlaneseq
        %v5955 = vshrl.u32 %v5954, 7
        %v5956 = vsub.s32 1, %v5955
        %v5957 = vrot.slane %v5948, %v5956
        %v5960 = vadd.f32 %v5944, %v5953
        %v5961 = vadd.f32 %v5945, %v5957
        %v5962 = vadd.f32 %v5946, %v5953
        %v5963 = vadd.f32 %v5947, %v5957
        %v5964 = vmax.f32 %v5960, 0.0
        %v5965 = vmax.f32 %v5961, 0.0
        %v5966 = vmax.f32 %v5962, 0.0
        %v5967 = vmax.f32 %v5963, 0.0
        %5968 = vmatprep.subr.mxu0 %v5965
        %5969 = vmatpush1.msra.mxu0 %v5964
        %5970 = vmatprep.subr.mxu0 %v5967
        %5971 = vmatpush1.msra.mxu0 %v5966
        %5972 = vmatprep.subr.mxu0 0.0
        %5973 = vmatpush1.msra.mxu0 0.0
        %5974 = vmatprep.subr.mxu0 0.0
        %5975 = vmatpush1.msra.mxu0 0.0
        %5976 = vmatprep.subr.mxu0 0.0
        %5977 = vmatpush1.msra.mxu0 0.0
        %5978 = vmatprep.subr.mxu0 0.0
        %5979 = vmatpush1.msra.mxu0 0.0
        %5980 = vmatprep.subr.mxu0 0.0
        %5981 = vmatpush1.msra.mxu0 0.0
        %5982 = vmatprep.subr.mxu0 0.0
        %5983 = vmatpush1.msra.mxu0 0.0
        %5984 = vmatprep.subr.mxu0 0.0
        %5985 = vmatpush1.msra.mxu0 0.0
        %5986 = vmatprep.subr.mxu0 0.0
        %5987 = vmatpush1.msra.mxu0 0.0
        %5988 = vmatprep.subr.mxu0 0.0
        %5989 = vmatpush1.msra.mxu0 0.0
        %5990 = vmatprep.subr.mxu0 0.0
        %5991 = vmatpush1.msra.mxu0 0.0
        %5992 = vmatprep.subr.mxu0 0.0
        %5993 = vmatpush1.msra.mxu0 0.0
        %5994 = vmatprep.subr.mxu0 0.0
        %5995 = vmatpush1.msra.mxu0 0.0
        %5996 = vmatprep.subr.mxu0 0.0
        %5997 = vmatpush1.msra.mxu0 0.0
        %5998 = vmatprep.subr.mxu0 0.0
        %5999 = vmatpush1.msra.mxu0 0.0
        %6000 = vmatprep.subr.mxu0 0.0
        %6001 = vmatpush1.msra.mxu0 0.0
        %6002 = vmatprep.subr.mxu0 0.0
        %6003 = vmatpush1.msra.mxu0 0.0
        %6004 = vmatprep.subr.mxu0 0.0
        %6005 = vmatpush1.msra.mxu0 0.0
        %6006 = vmatprep.subr.mxu0 0.0
        %6007 = vmatpush1.msra.mxu0 0.0
        %6008 = vmatprep.subr.mxu0 0.0
        %6009 = vmatpush1.msra.mxu0 0.0
        %6010 = vmatprep.subr.mxu0 0.0
        %6011 = vmatpush1.msra.mxu0 0.0
        %6012 = vmatprep.subr.mxu0 0.0
        %6013 = vmatpush1.msra.mxu0 0.0
        %6014 = vmatprep.subr.mxu0 0.0
        %6015 = vmatpush1.msra.mxu0 0.0
        %6016 = vmatprep.subr.mxu0 0.0
        %6017 = vmatpush1.msra.mxu0 0.0
        %6018 = vmatprep.subr.mxu0 0.0
        %6019 = vmatpush1.msra.mxu0 0.0
        %6020 = vmatprep.subr.mxu0 0.0
        %6021 = vmatpush1.msra.mxu0 0.0
        %6022 = vmatprep.subr.mxu0 0.0
        %6023 = vmatpush1.msra.mxu0 0.0
        %6024 = vmatprep.subr.mxu0 0.0
        %6025 = vmatpush1.msra.mxu0 0.0
        %6026 = vmatprep.subr.mxu0 0.0
        %6027 = vmatpush1.msra.mxu0 0.0
        %6028 = vmatprep.subr.mxu0 0.0
        %6029 = vmatpush1.msra.mxu0 0.0
        %6030 = vmatprep.subr.mxu0 0.0
        %6031 = vmatpush1.msra.mxu0 0.0
        %6032 = vmatprep.mubr.f32.mxu0 0.0
        %6033 = vmatmul.mubr.f32.gmra.mrb[0].mxu0 %v4768
        %v6034 = vpop.f32.mrb[0].mxu0
        %v6035 = vadd.f32 0.0, %v6034
        %v6036 = vpop.f32.mrb[0].mxu0
        %v6037 = vadd.f32 0.0, %v6036
        %6038 = vmatprep.mubr.f32.mxu0 0.0
        %6039 = vmatmul.mubr.f32.gmra.mrb[0].mxu0 %v4771
        %v6040 = vpop.f32.mrb[0].mxu0
        %v6041 = vadd.f32 0.0, %v6040
        %v6042 = vpop.f32.mrb[0].mxu0
        %v6043 = vadd.f32 0.0, %v6042
        %6044 = vdwg.mxu0
        %6045 = vmatprep.subr.mxu0 %v5965
        %6046 = vmatpush1.msra.mxu0 %v5964
        %6047 = vmatprep.subr.mxu0 %v5967
        %6048 = vmatpush1.msra.mxu0 %v5966
        %6049 = vmatprep.subr.mxu0 0.0
        %6050 = vmatpush1.msra.mxu0 0.0
        %6051 = vmatprep.subr.mxu0 0.0
        %6052 = vmatpush1.msra.mxu0 0.0
        %6053 = vmatprep.subr.mxu0 0.0
        %6054 = vmatpush1.msra.mxu0 0.0
        %6055 = vmatprep.subr.mxu0 0.0
        %6056 = vmatpush1.msra.mxu0 0.0
        %6057 = vmatprep.subr.mxu0 0.0
        %6058 = vmatpush1.msra.mxu0 0.0
        %6059 = vmatprep.subr.mxu0 0.0
        %6060 = vmatpush1.msra.mxu0 0.0
        %6061 = vmatprep.subr.mxu0 0.0
        %6062 = vmatpush1.msra.mxu0 0.0
        %6063 = vmatprep.subr.mxu0 0.0
        %6064 = vmatpush1.msra.mxu0 0.0
        %6065 = vmatprep.subr.mxu0 0.0
        %6066 = vmatpush1.msra.mxu0 0.0
        %6067 = vmatprep.subr.mxu0 0.0
        %6068 = vmatpush1.msra.mxu0 0.0
        %6069 = vmatprep.subr.mxu0 0.0
        %6070 = vmatpush1.msra.mxu0 0.0
        %6071 = vmatprep.subr.mxu0 0.0
        %6072 = vmatpush1.msra.mxu0 0.0
        %6073 = vmatprep.subr.mxu0 0.0
        %6074 = vmatpush1.msra.mxu0 0.0
        %6075 = vmatprep.subr.mxu0 0.0
        %6076 = vmatpush1.msra.mxu0 0.0
        %6077 = vmatprep.subr.mxu0 0.0
        %6078 = vmatpush1.msra.mxu0 0.0
        %6079 = vmatprep.subr.mxu0 0.0
        %6080 = vmatpush1.msra.mxu0 0.0
        %6081 = vmatprep.subr.mxu0 0.0
        %6082 = vmatpush1.msra.mxu0 0.0
        %6083 = vmatprep.subr.mxu0 0.0
        %6084 = vmatpush1.msra.mxu0 0.0
        %6085 = vmatprep.subr.mxu0 0.0
        %6086 = vmatpush1.msra.mxu0 0.0
        %6087 = vmatprep.subr.mxu0 0.0
        %6088 = vmatpush1.msra.mxu0 0.0
        %6089 = vmatprep.subr.mxu0 0.0
        %6090 = vmatpush1.msra.mxu0 0.0
        %6091 = vmatprep.subr.mxu0 0.0
        %6092 = vmatpush1.msra.mxu0 0.0
        %6093 = vmatprep.subr.mxu0 0.0
        %6094 = vmatpush1.msra.mxu0 0.0
        %6095 = vmatprep.subr.mxu0 0.0
        %6096 = vmatpush1.msra.mxu0 0.0
        %6097 = vmatprep.subr.mxu0 0.0
        %6098 = vmatpush1.msra.mxu0 0.0
        %6099 = vmatprep.subr.mxu0 0.0
        %6100 = vmatpush1.msra.mxu0 0.0
        %6101 = vmatprep.subr.mxu0 0.0
        %6102 = vmatpush1.msra.mxu0 0.0
        %6103 = vmatprep.subr.mxu0 0.0
        %6104 = vmatpush1.msra.mxu0 0.0
        %6105 = vmatprep.subr.mxu0 0.0
        %6106 = vmatpush1.msra.mxu0 0.0
        %6107 = vmatprep.subr.mxu0 0.0
        %6108 = vmatpush1.msra.mxu0 0.0
        %6109 = vmatprep.mubr.f32.mxu0 0.0
        %6110 = vmatmul.mubr.f32.gmra.mrb[0].mxu0 %v4850
        %v6111 = vpop.f32.mrb[0].mxu0
        %v6112 = vadd.f32 0.0, %v6111
        %v6113 = vpop.f32.mrb[0].mxu0
        %v6114 = vadd.f32 0.0, %v6113
        %6115 = vmatprep.mubr.f32.mxu0 0.0
        %6116 = vmatmul.mubr.f32.gmra.mrb[0].mxu0 %v4853
        %v6117 = vpop.f32.mrb[0].mxu0
        %v6118 = vadd.f32 0.0, %v6117
        %v6119 = vpop.f32.mrb[0].mxu0
        %v6120 = vadd.f32 0.0, %v6119
        %6121 = vdwg.mxu0
        %v6122 = vld [vmem:[#allocation23] sm:$0xff]
        %v6123 = vld [vmem:[#allocation23 + $0x8] sm:$0xff]
        %v6124 = vld [vmem:[#allocation23 + $0x10] sm:$0xff]
        %v6125 = vld [vmem:[#allocation23 + $0x18] sm:$0xff]
        %v6126 = vld [vmem:[#allocation23 + $0x20] sm:$0xff]
        %v6127 = vld [vmem:[#allocation23 + $0x28] sm:$0xff]
        %v6128 = vld [vmem:[#allocation23 + $0x30] sm:$0xff]
        %v6129 = vld [vmem:[#allocation23 + $0x38] sm:$0xff]
        %v6130 = vld [vmem:[#allocation23 + $0x40] sm:$0xff]
        %v6131 = vld [vmem:[#allocation23 + $0x48] sm:$0xff]
        %v6132 = vld [vmem:[#allocation23 + $0x50] sm:$0xff]
        %v6133 = vld [vmem:[#allocation23 + $0x58] sm:$0xff]
        %v6134 = vld [vmem:[#allocation23 + $0x60] sm:$0xff]
        %v6135 = vld [vmem:[#allocation23 + $0x68] sm:$0xff]
        %v6136 = vld [vmem:[#allocation23 + $0x70] sm:$0xff]
        %v6137 = vld [vmem:[#allocation23 + $0x78] sm:$0xff]
        %v6138 = vld [vmem:[#allocation23 + $0x80] sm:$0xff]
        %v6139 = vld [vmem:[#allocation23 + $0x88] sm:$0xff]
        %v6140 = vld [vmem:[#allocation23 + $0x90] sm:$0xff]
        %v6141 = vld [vmem:[#allocation23 + $0x98] sm:$0xff]
        %v6142 = vld [vmem:[#allocation23 + $0xa0] sm:$0xff]
        %v6143 = vld [vmem:[#allocation23 + $0xa8] sm:$0xff]
        %v6144 = vld [vmem:[#allocation23 + $0xb0] sm:$0xff]
        %v6145 = vld [vmem:[#allocation23 + $0xb8] sm:$0xff]
        %v6146 = vld [vmem:[#allocation23 + $0xc0] sm:$0xff]
        %v6147 = vld [vmem:[#allocation23 + $0xc8] sm:$0xff]
        %v6148 = vld [vmem:[#allocation23 + $0xd0] sm:$0xff]
        %v6149 = vld [vmem:[#allocation23 + $0xd8] sm:$0xff]
        %v6150 = vld [vmem:[#allocation23 + $0xe0] sm:$0xff]
        %v6151 = vld [vmem:[#allocation23 + $0xe8] sm:$0xff]
        %v6152 = vld [vmem:[#allocation23 + $0xf0] sm:$0xff]
        %v6153 = vld [vmem:[#allocation23 + $0xf8] sm:$0xff]
        %v6154 = vld [vmem:[#allocation23 + $0x100] sm:$0xff]
        %v6155 = vld [vmem:[#allocation23 + $0x108] sm:$0xff]
        %v6156 = vld [vmem:[#allocation23 + $0x110] sm:$0xff]
        %v6157 = vld [vmem:[#allocation23 + $0x118] sm:$0xff]
        %v6158 = vld [vmem:[#allocation23 + $0x120] sm:$0xff]
        %v6159 = vld [vmem:[#allocation23 + $0x128] sm:$0xff]
        %v6160 = vld [vmem:[#allocation23 + $0x130] sm:$0xff]
        %v6161 = vld [vmem:[#allocation23 + $0x138] sm:$0xff]
        %v6162 = vld [vmem:[#allocation23 + $0x140] sm:$0xff]
        %v6163 = vld [vmem:[#allocation23 + $0x148] sm:$0xff]
        %v6164 = vld [vmem:[#allocation23 + $0x150] sm:$0xff]
        %v6165 = vld [vmem:[#allocation23 + $0x158] sm:$0xff]
        %v6166 = vld [vmem:[#allocation23 + $0x160] sm:$0xff]
        %v6167 = vld [vmem:[#allocation23 + $0x168] sm:$0xff]
        %v6168 = vld [vmem:[#allocation23 + $0x170] sm:$0xff]
        %v6169 = vld [vmem:[#allocation23 + $0x178] sm:$0xff]
        %v6170 = vld [vmem:[#allocation23 + $0x180] sm:$0xff]
        %v6171 = vld [vmem:[#allocation23 + $0x188] sm:$0xff]
        %v6172 = vld [vmem:[#allocation23 + $0x190] sm:$0xff]
        %v6173 = vld [vmem:[#allocation23 + $0x198] sm:$0xff]
        %v6174 = vld [vmem:[#allocation23 + $0x1a0] sm:$0xff]
        %v6175 = vld [vmem:[#allocation23 + $0x1a8] sm:$0xff]
        %v6176 = vld [vmem:[#allocation23 + $0x1b0] sm:$0xff]
        %v6177 = vld [vmem:[#allocation23 + $0x1b8] sm:$0xff]
        %v6178 = vld [vmem:[#allocation23 + $0x1c0] sm:$0xff]
        %v6179 = vld [vmem:[#allocation23 + $0x1c8] sm:$0xff]
        %v6180 = vld [vmem:[#allocation23 + $0x1d0] sm:$0xff]
        %v6181 = vld [vmem:[#allocation23 + $0x1d8] sm:$0xff]
        %v6182 = vld [vmem:[#allocation23 + $0x1e0] sm:$0xff]
        %v6183 = vld [vmem:[#allocation23 + $0x1e8] sm:$0xff]
        %v6184 = vld [vmem:[#allocation23 + $0x1f0] sm:$0xff]
        %v6185 = vld [vmem:[#allocation23 + $0x1f8] sm:$0xff]
        %s6186 = scalar_lea.vmem [#allocation23], 512
        %v6187 = vld [vmem:[%s6186] sm:$0xff]
        %v6188 = vld [vmem:[%s6186 + $0x8] sm:$0xff]
        %v6189 = vld [vmem:[%s6186 + $0x10] sm:$0xff]
        %v6190 = vld [vmem:[%s6186 + $0x18] sm:$0xff]
        %v6191 = vld [vmem:[%s6186 + $0x20] sm:$0xff]
        %v6192 = vld [vmem:[%s6186 + $0x28] sm:$0xff]
        %v6193 = vld [vmem:[%s6186 + $0x30] sm:$0xff]
        %v6194 = vld [vmem:[%s6186 + $0x38] sm:$0xff]
        %v6195 = vld [vmem:[%s6186 + $0x40] sm:$0xff]
        %v6196 = vld [vmem:[%s6186 + $0x48] sm:$0xff]
        %v6197 = vld [vmem:[%s6186 + $0x50] sm:$0xff]
        %v6198 = vld [vmem:[%s6186 + $0x58] sm:$0xff]
        %v6199 = vld [vmem:[%s6186 + $0x60] sm:$0xff]
        %v6200 = vld [vmem:[%s6186 + $0x68] sm:$0xff]
        %v6201 = vld [vmem:[%s6186 + $0x70] sm:$0xff]
        %v6202 = vld [vmem:[%s6186 + $0x78] sm:$0xff]
        %v6203 = vld [vmem:[%s6186 + $0x80] sm:$0xff]
        %v6204 = vld [vmem:[%s6186 + $0x88] sm:$0xff]
        %v6205 = vld [vmem:[%s6186 + $0x90] sm:$0xff]
        %v6206 = vld [vmem:[%s6186 + $0x98] sm:$0xff]
        %v6207 = vld [vmem:[%s6186 + $0xa0] sm:$0xff]
        %v6208 = vld [vmem:[%s6186 + $0xa8] sm:$0xff]
        %v6209 = vld [vmem:[%s6186 + $0xb0] sm:$0xff]
        %v6210 = vld [vmem:[%s6186 + $0xb8] sm:$0xff]
        %v6211 = vld [vmem:[%s6186 + $0xc0] sm:$0xff]
        %v6212 = vld [vmem:[%s6186 + $0xc8] sm:$0xff]
        %v6213 = vld [vmem:[%s6186 + $0xd0] sm:$0xff]
        %v6214 = vld [vmem:[%s6186 + $0xd8] sm:$0xff]
        %v6215 = vld [vmem:[%s6186 + $0xe0] sm:$0xff]
        %v6216 = vld [vmem:[%s6186 + $0xe8] sm:$0xff]
        %v6217 = vld [vmem:[%s6186 + $0xf0] sm:$0xff]
        %v6218 = vld [vmem:[%s6186 + $0xf8] sm:$0xff]
        %v6219 = vld [vmem:[%s6186 + $0x100] sm:$0xff]
        %v6220 = vld [vmem:[%s6186 + $0x108] sm:$0xff]
        %v6221 = vld [vmem:[%s6186 + $0x110] sm:$0xff]
        %v6222 = vld [vmem:[%s6186 + $0x118] sm:$0xff]
        %v6223 = vld [vmem:[%s6186 + $0x120] sm:$0xff]
        %v6224 = vld [vmem:[%s6186 + $0x128] sm:$0xff]
        %v6225 = vld [vmem:[%s6186 + $0x130] sm:$0xff]
        %v6226 = vld [vmem:[%s6186 + $0x138] sm:$0xff]
        %v6227 = vld [vmem:[%s6186 + $0x140] sm:$0xff]
        %v6228 = vld [vmem:[%s6186 + $0x148] sm:$0xff]
        %v6229 = vld [vmem:[%s6186 + $0x150] sm:$0xff]
        %v6230 = vld [vmem:[%s6186 + $0x158] sm:$0xff]
        %v6231 = vld [vmem:[%s6186 + $0x160] sm:$0xff]
        %v6232 = vld [vmem:[%s6186 + $0x168] sm:$0xff]
        %v6233 = vld [vmem:[%s6186 + $0x170] sm:$0xff]
        %v6234 = vld [vmem:[%s6186 + $0x178] sm:$0xff]
        %v6235 = vld [vmem:[%s6186 + $0x180] sm:$0xff]
        %v6236 = vld [vmem:[%s6186 + $0x188] sm:$0xff]
        %v6237 = vld [vmem:[%s6186 + $0x190] sm:$0xff]
        %v6238 = vld [vmem:[%s6186 + $0x198] sm:$0xff]
        %v6239 = vld [vmem:[%s6186 + $0x1a0] sm:$0xff]
        %v6240 = vld [vmem:[%s6186 + $0x1a8] sm:$0xff]
        %v6241 = vld [vmem:[%s6186 + $0x1b0] sm:$0xff]
        %v6242 = vld [vmem:[%s6186 + $0x1b8] sm:$0xff]
        %v6243 = vld [vmem:[%s6186 + $0x1c0] sm:$0xff]
        %v6244 = vld [vmem:[%s6186 + $0x1c8] sm:$0xff]
        %v6245 = vld [vmem:[%s6186 + $0x1d0] sm:$0xff]
        %v6246 = vld [vmem:[%s6186 + $0x1d8] sm:$0xff]
        %v6247 = vld [vmem:[%s6186 + $0x1e0] sm:$0xff]
        %v6248 = vld [vmem:[%s6186 + $0x1e8] sm:$0xff]
        %v6249 = vld [vmem:[%s6186 + $0x1f0] sm:$0xff]
        %v6250 = vld [vmem:[%s6186 + $0x1f8] sm:$0xff]
        %6251 = vmatprep.subr.mxu0 %v6188
        %6252 = vmatpush1.msra.mxu0 %v6187
        %6253 = vmatprep.subr.mxu0 %v6190
        %6254 = vmatpush1.msra.mxu0 %v6189
        %6255 = vmatprep.subr.mxu0 %v6192
        %6256 = vmatpush1.msra.mxu0 %v6191
        %6257 = vmatprep.subr.mxu0 %v6194
        %6258 = vmatpush1.msra.mxu0 %v6193
        %6259 = vmatprep.subr.mxu0 %v6196
        %6260 = vmatpush1.msra.mxu0 %v6195
        %6261 = vmatprep.subr.mxu0 %v6198
        %6262 = vmatpush1.msra.mxu0 %v6197
        %6263 = vmatprep.subr.mxu0 %v6200
        %6264 = vmatpush1.msra.mxu0 %v6199
        %6265 = vmatprep.subr.mxu0 %v6202
        %6266 = vmatpush1.msra.mxu0 %v6201
        %6267 = vmatprep.subr.mxu0 %v6204
        %6268 = vmatpush1.msra.mxu0 %v6203
        %6269 = vmatprep.subr.mxu0 %v6206
        %6270 = vmatpush1.msra.mxu0 %v6205
        %6271 = vmatprep.subr.mxu0 %v6208
        %6272 = vmatpush1.msra.mxu0 %v6207
        %6273 = vmatprep.subr.mxu0 %v6210
        %6274 = vmatpush1.msra.mxu0 %v6209
        %6275 = vmatprep.subr.mxu0 %v6212
        %6276 = vmatpush1.msra.mxu0 %v6211
        %6277 = vmatprep.subr.mxu0 %v6214
        %6278 = vmatpush1.msra.mxu0 %v6213
        %6279 = vmatprep.subr.mxu0 %v6216
        %6280 = vmatpush1.msra.mxu0 %v6215
        %6281 = vmatprep.subr.mxu0 %v6218
        %6282 = vmatpush1.msra.mxu0 %v6217
        %6283 = vmatprep.subr.mxu0 %v6220
        %6284 = vmatpush1.msra.mxu0 %v6219
        %6285 = vmatprep.subr.mxu0 %v6222
        %6286 = vmatpush1.msra.mxu0 %v6221
        %6287 = vmatprep.subr.mxu0 %v6224
        %6288 = vmatpush1.msra.mxu0 %v6223
        %6289 = vmatprep.subr.mxu0 %v6226
        %6290 = vmatpush1.msra.mxu0 %v6225
        %6291 = vmatprep.subr.mxu0 %v6228
        %6292 = vmatpush1.msra.mxu0 %v6227
        %6293 = vmatprep.subr.mxu0 %v6230
        %6294 = vmatpush1.msra.mxu0 %v6229
        %6295 = vmatprep.subr.mxu0 %v6232
        %6296 = vmatpush1.msra.mxu0 %v6231
        %6297 = vmatprep.subr.mxu0 %v6234
        %6298 = vmatpush1.msra.mxu0 %v6233
        %6299 = vmatprep.subr.mxu0 %v6236
        %6300 = vmatpush1.msra.mxu0 %v6235
        %6301 = vmatprep.subr.mxu0 %v6238
        %6302 = vmatpush1.msra.mxu0 %v6237
        %6303 = vmatprep.subr.mxu0 %v6240
        %6304 = vmatpush1.msra.mxu0 %v6239
        %6305 = vmatprep.subr.mxu0 %v6242
        %6306 = vmatpush1.msra.mxu0 %v6241
        %6307 = vmatprep.subr.mxu0 %v6244
        %6308 = vmatpush1.msra.mxu0 %v6243
        %6309 = vmatprep.subr.mxu0 %v6246
        %6310 = vmatpush1.msra.mxu0 %v6245
        %6311 = vmatprep.subr.mxu0 %v6248
        %6312 = vmatpush1.msra.mxu0 %v6247
        %6313 = vmatprep.subr.mxu0 %v6250
        %6314 = vmatpush1.msra.mxu0 %v6249
        %6315 = vmatprep.mubr.f32.mxu0 %v5965
        %6316 = vmatmul.mubr.f32.gmra.mrb[0].mxu0 %v5964
        %v6317 = vpop.f32.mrb[0].mxu0
        %v6318 = vadd.f32 0.0, %v6317
        %v6319 = vpop.f32.mrb[0].mxu0
        %v6320 = vadd.f32 0.0, %v6319
        %6321 = vmatprep.mubr.f32.mxu0 %v5967
        %6322 = vmatmul.mubr.f32.gmra.mrb[0].mxu0 %v5966
        %v6323 = vpop.f32.mrb[0].mxu0
        %v6324 = vadd.f32 0.0, %v6323
        %v6325 = vpop.f32.mrb[0].mxu0
        %v6326 = vadd.f32 0.0, %v6325
        %6327 = vdwg.mxu0
        %6328 = vmatprep.subr.mxu0 %v6123
        %6329 = vmatpush1.msra.mxu0 %v6122
        %6330 = vmatprep.subr.mxu0 %v6125
        %6331 = vmatpush1.msra.mxu0 %v6124
        %6332 = vmatprep.subr.mxu0 %v6127
        %6333 = vmatpush1.msra.mxu0 %v6126
        %6334 = vmatprep.subr.mxu0 %v6129
        %6335 = vmatpush1.msra.mxu0 %v6128
        %6336 = vmatprep.subr.mxu0 %v6131
        %6337 = vmatpush1.msra.mxu0 %v6130
        %6338 = vmatprep.subr.mxu0 %v6133
        %6339 = vmatpush1.msra.mxu0 %v6132
        %6340 = vmatprep.subr.mxu0 %v6135
        %6341 = vmatpush1.msra.mxu0 %v6134
        %6342 = vmatprep.subr.mxu0 %v6137
        %6343 = vmatpush1.msra.mxu0 %v6136
        %6344 = vmatprep.subr.mxu0 %v6139
        %6345 = vmatpush1.msra.mxu0 %v6138
        %6346 = vmatprep.subr.mxu0 %v6141
        %6347 = vmatpush1.msra.mxu0 %v6140
        %6348 = vmatprep.subr.mxu0 %v6143
        %6349 = vmatpush1.msra.mxu0 %v6142
        %6350 = vmatprep.subr.mxu0 %v6145
        %6351 = vmatpush1.msra.mxu0 %v6144
        %6352 = vmatprep.subr.mxu0 %v6147
        %6353 = vmatpush1.msra.mxu0 %v6146
        %6354 = vmatprep.subr.mxu0 %v6149
        %6355 = vmatpush1.msra.mxu0 %v6148
        %6356 = vmatprep.subr.mxu0 %v6151
        %6357 = vmatpush1.msra.mxu0 %v6150
        %6358 = vmatprep.subr.mxu0 %v6153
        %6359 = vmatpush1.msra.mxu0 %v6152
        %6360 = vmatprep.subr.mxu0 %v6155
        %6361 = vmatpush1.msra.mxu0 %v6154
        %6362 = vmatprep.subr.mxu0 %v6157
        %6363 = vmatpush1.msra.mxu0 %v6156
        %6364 = vmatprep.subr.mxu0 %v6159
        %6365 = vmatpush1.msra.mxu0 %v6158
        %6366 = vmatprep.subr.mxu0 %v6161
        %6367 = vmatpush1.msra.mxu0 %v6160
        %6368 = vmatprep.subr.mxu0 %v6163
        %6369 = vmatpush1.msra.mxu0 %v6162
        %6370 = vmatprep.subr.mxu0 %v6165
        %6371 = vmatpush1.msra.mxu0 %v6164
        %6372 = vmatprep.subr.mxu0 %v6167
        %6373 = vmatpush1.msra.mxu0 %v6166
        %6374 = vmatprep.subr.mxu0 %v6169
        %6375 = vmatpush1.msra.mxu0 %v6168
        %6376 = vmatprep.subr.mxu0 %v6171
        %6377 = vmatpush1.msra.mxu0 %v6170
        %6378 = vmatprep.subr.mxu0 %v6173
        %6379 = vmatpush1.msra.mxu0 %v6172
        %6380 = vmatprep.subr.mxu0 %v6175
        %6381 = vmatpush1.msra.mxu0 %v6174
        %6382 = vmatprep.subr.mxu0 %v6177
        %6383 = vmatpush1.msra.mxu0 %v6176
        %6384 = vmatprep.subr.mxu0 %v6179
        %6385 = vmatpush1.msra.mxu0 %v6178
        %6386 = vmatprep.subr.mxu0 %v6181
        %6387 = vmatpush1.msra.mxu0 %v6180
        %6388 = vmatprep.subr.mxu0 %v6183
        %6389 = vmatpush1.msra.mxu0 %v6182
        %6390 = vmatprep.subr.mxu0 %v6185
        %6391 = vmatpush1.msra.mxu0 %v6184
        %6392 = vmatprep.mubr.f32.mxu0 %v6037
        %6393 = vmatmul.mubr.f32.gmra.mrb[0].mxu0 %v6035
        %v6394 = vpop.f32.mrb[0].mxu0
        %v6395 = vadd.f32 %v6318, %v6394
        %v6396 = vpop.f32.mrb[0].mxu0
        %v6397 = vadd.f32 %v6320, %v6396
        %6398 = vmatprep.mubr.f32.mxu0 %v6043
        %6399 = vmatmul.mubr.f32.gmra.mrb[0].mxu0 %v6041
        %v6400 = vpop.f32.mrb[0].mxu0
        %v6401 = vadd.f32 %v6324, %v6400
        %v6402 = vpop.f32.mrb[0].mxu0
        %v6403 = vadd.f32 %v6326, %v6402
        %6404 = vdwg.mxu0
        %s6405 = scalar_lea.vmem [#allocation23], 1024
        %v6406 = vld [vmem:[%s6405] sm:$0xff]
        %v6407 = vld [vmem:[%s6405 + $0x8] sm:$0xff]
        %v6408 = vld [vmem:[%s6405 + $0x10] sm:$0xff]
        %v6409 = vld [vmem:[%s6405 + $0x18] sm:$0xff]
        %v6410 = vld [vmem:[%s6405 + $0x20] sm:$0xff]
        %v6411 = vld [vmem:[%s6405 + $0x28] sm:$0xff]
        %v6412 = vld [vmem:[%s6405 + $0x30] sm:$0xff]
        %v6413 = vld [vmem:[%s6405 + $0x38] sm:$0xff]
        %v6414 = vld [vmem:[%s6405 + $0x40] sm:$0xff]
        %v6415 = vld [vmem:[%s6405 + $0x48] sm:$0xff]
        %v6416 = vld [vmem:[%s6405 + $0x50] sm:$0xff]
        %v6417 = vld [vmem:[%s6405 + $0x58] sm:$0xff]
        %v6418 = vld [vmem:[%s6405 + $0x60] sm:$0xff]
        %v6419 = vld [vmem:[%s6405 + $0x68] sm:$0xff]
        %v6420 = vld [vmem:[%s6405 + $0x70] sm:$0xff]
        %v6421 = vld [vmem:[%s6405 + $0x78] sm:$0xff]
        %v6422 = vld [vmem:[%s6405 + $0x80] sm:$0xff]
        %v6423 = vld [vmem:[%s6405 + $0x88] sm:$0xff]
        %v6424 = vld [vmem:[%s6405 + $0x90] sm:$0xff]
        %v6425 = vld [vmem:[%s6405 + $0x98] sm:$0xff]
        %v6426 = vld [vmem:[%s6405 + $0xa0] sm:$0xff]
        %v6427 = vld [vmem:[%s6405 + $0xa8] sm:$0xff]
        %v6428 = vld [vmem:[%s6405 + $0xb0] sm:$0xff]
        %v6429 = vld [vmem:[%s6405 + $0xb8] sm:$0xff]
        %v6430 = vld [vmem:[%s6405 + $0xc0] sm:$0xff]
        %v6431 = vld [vmem:[%s6405 + $0xc8] sm:$0xff]
        %v6432 = vld [vmem:[%s6405 + $0xd0] sm:$0xff]
        %v6433 = vld [vmem:[%s6405 + $0xd8] sm:$0xff]
        %v6434 = vld [vmem:[%s6405 + $0xe0] sm:$0xff]
        %v6435 = vld [vmem:[%s6405 + $0xe8] sm:$0xff]
        %v6436 = vld [vmem:[%s6405 + $0xf0] sm:$0xff]
        %v6437 = vld [vmem:[%s6405 + $0xf8] sm:$0xff]
        %v6438 = vld [vmem:[%s6405 + $0x100] sm:$0xff]
        %v6439 = vld [vmem:[%s6405 + $0x108] sm:$0xff]
        %v6440 = vld [vmem:[%s6405 + $0x110] sm:$0xff]
        %v6441 = vld [vmem:[%s6405 + $0x118] sm:$0xff]
        %v6442 = vld [vmem:[%s6405 + $0x120] sm:$0xff]
        %v6443 = vld [vmem:[%s6405 + $0x128] sm:$0xff]
        %v6444 = vld [vmem:[%s6405 + $0x130] sm:$0xff]
        %v6445 = vld [vmem:[%s6405 + $0x138] sm:$0xff]
        %v6446 = vld [vmem:[%s6405 + $0x140] sm:$0xff]
        %v6447 = vld [vmem:[%s6405 + $0x148] sm:$0xff]
        %v6448 = vld [vmem:[%s6405 + $0x150] sm:$0xff]
        %v6449 = vld [vmem:[%s6405 + $0x158] sm:$0xff]
        %v6450 = vld [vmem:[%s6405 + $0x160] sm:$0xff]
        %v6451 = vld [vmem:[%s6405 + $0x168] sm:$0xff]
        %v6452 = vld [vmem:[%s6405 + $0x170] sm:$0xff]
        %v6453 = vld [vmem:[%s6405 + $0x178] sm:$0xff]
        %v6454 = vld [vmem:[%s6405 + $0x180] sm:$0xff]
        %v6455 = vld [vmem:[%s6405 + $0x188] sm:$0xff]
        %v6456 = vld [vmem:[%s6405 + $0x190] sm:$0xff]
        %v6457 = vld [vmem:[%s6405 + $0x198] sm:$0xff]
        %v6458 = vld [vmem:[%s6405 + $0x1a0] sm:$0xff]
        %v6459 = vld [vmem:[%s6405 + $0x1a8] sm:$0xff]
        %v6460 = vld [vmem:[%s6405 + $0x1b0] sm:$0xff]
        %v6461 = vld [vmem:[%s6405 + $0x1b8] sm:$0xff]
        %v6462 = vld [vmem:[%s6405 + $0x1c0] sm:$0xff]
        %v6463 = vld [vmem:[%s6405 + $0x1c8] sm:$0xff]
        %v6464 = vld [vmem:[%s6405 + $0x1d0] sm:$0xff]
        %v6465 = vld [vmem:[%s6405 + $0x1d8] sm:$0xff]
        %v6466 = vld [vmem:[%s6405 + $0x1e0] sm:$0xff]
        %v6467 = vld [vmem:[%s6405 + $0x1e8] sm:$0xff]
        %v6468 = vld [vmem:[%s6405 + $0x1f0] sm:$0xff]
        %v6469 = vld [vmem:[%s6405 + $0x1f8] sm:$0xff]
        %6470 = vmatprep.subr.mxu0 %v6407
        %6471 = vmatpush1.msra.mxu0 %v6406
        %6472 = vmatprep.subr.mxu0 %v6409
        %6473 = vmatpush1.msra.mxu0 %v6408
        %6474 = vmatprep.subr.mxu0 %v6411
        %6475 = vmatpush1.msra.mxu0 %v6410
        %6476 = vmatprep.subr.mxu0 %v6413
        %6477 = vmatpush1.msra.mxu0 %v6412
        %6478 = vmatprep.subr.mxu0 %v6415
        %6479 = vmatpush1.msra.mxu0 %v6414
        %6480 = vmatprep.subr.mxu0 %v6417
        %6481 = vmatpush1.msra.mxu0 %v6416
        %6482 = vmatprep.subr.mxu0 %v6419
        %6483 = vmatpush1.msra.mxu0 %v6418
        %6484 = vmatprep.subr.mxu0 %v6421
        %6485 = vmatpush1.msra.mxu0 %v6420
        %6486 = vmatprep.subr.mxu0 %v6423
        %6487 = vmatpush1.msra.mxu0 %v6422
        %6488 = vmatprep.subr.mxu0 %v6425
        %6489 = vmatpush1.msra.mxu0 %v6424
        %6490 = vmatprep.subr.mxu0 %v6427
        %6491 = vmatpush1.msra.mxu0 %v6426
        %6492 = vmatprep.subr.mxu0 %v6429
        %6493 = vmatpush1.msra.mxu0 %v6428
        %6494 = vmatprep.subr.mxu0 %v6431
        %6495 = vmatpush1.msra.mxu0 %v6430
        %6496 = vmatprep.subr.mxu0 %v6433
        %6497 = vmatpush1.msra.mxu0 %v6432
        %6498 = vmatprep.subr.mxu0 %v6435
        %6499 = vmatpush1.msra.mxu0 %v6434
        %6500 = vmatprep.subr.mxu0 %v6437
        %6501 = vmatpush1.msra.mxu0 %v6436
        %6502 = vmatprep.subr.mxu0 %v6439
        %6503 = vmatpush1.msra.mxu0 %v6438
        %6504 = vmatprep.subr.mxu0 %v6441
        %6505 = vmatpush1.msra.mxu0 %v6440
        %6506 = vmatprep.subr.mxu0 %v6443
        %6507 = vmatpush1.msra.mxu0 %v6442
        %6508 = vmatprep.subr.mxu0 %v6445
        %6509 = vmatpush1.msra.mxu0 %v6444
        %6510 = vmatprep.subr.mxu0 %v6447
        %6511 = vmatpush1.msra.mxu0 %v6446
        %6512 = vmatprep.subr.mxu0 %v6449
        %6513 = vmatpush1.msra.mxu0 %v6448
        %6514 = vmatprep.subr.mxu0 %v6451
        %6515 = vmatpush1.msra.mxu0 %v6450
        %6516 = vmatprep.subr.mxu0 %v6453
        %6517 = vmatpush1.msra.mxu0 %v6452
        %6518 = vmatprep.subr.mxu0 %v6455
        %6519 = vmatpush1.msra.mxu0 %v6454
        %6520 = vmatprep.subr.mxu0 %v6457
        %6521 = vmatpush1.msra.mxu0 %v6456
        %6522 = vmatprep.subr.mxu0 %v6459
        %6523 = vmatpush1.msra.mxu0 %v6458
        %6524 = vmatprep.subr.mxu0 %v6461
        %6525 = vmatpush1.msra.mxu0 %v6460
        %6526 = vmatprep.subr.mxu0 %v6463
        %6527 = vmatpush1.msra.mxu0 %v6462
        %6528 = vmatprep.subr.mxu0 %v6465
        %6529 = vmatpush1.msra.mxu0 %v6464
        %6530 = vmatprep.subr.mxu0 %v6467
        %6531 = vmatpush1.msra.mxu0 %v6466
        %6532 = vmatprep.subr.mxu0 %v6469
        %6533 = vmatpush1.msra.mxu0 %v6468
        %6534 = vmatprep.mubr.f32.mxu0 %v6114
        %6535 = vmatmul.mubr.f32.gmra.mrb[0].mxu0 %v6112
        %v6536 = vpop.f32.mrb[0].mxu0
        %v6537 = vadd.f32 0.0, %v6536
        %v6538 = vpop.f32.mrb[0].mxu0
        %v6539 = vadd.f32 0.0, %v6538
        %6540 = vmatprep.mubr.f32.mxu0 %v6120
        %6541 = vmatmul.mubr.f32.gmra.mrb[0].mxu0 %v6118
        %v6542 = vpop.f32.mrb[0].mxu0
        %v6543 = vadd.f32 0.0, %v6542
        %v6544 = vpop.f32.mrb[0].mxu0
        %v6545 = vadd.f32 0.0, %v6544
        %6546 = vdwg.mxu0
        %v6547 = vadd.f32 %v6395, %v6537
        %v6548 = vadd.f32 %v6397, %v6539
        %v6549 = vadd.f32 %v6401, %v6543
        %v6550 = vadd.f32 %v6403, %v6545
        %v6551 = vld [vmem:[#allocation25] sm:$0x3]
        %v6553 = vlaneseq
        %v6554 = vshrl.u32 %v6553, 7
        %v6555 = vsub.s32 0, %v6554
        %v6556 = vrot.slane %v6551, %v6555
        %v6557 = vlaneseq
        %v6558 = vshrl.u32 %v6557, 7
        %v6559 = vsub.s32 1, %v6558
        %v6560 = vrot.slane %v6551, %v6559
        %v6563 = vadd.f32 %v6547, %v6556
        %v6564 = vadd.f32 %v6548, %v6560
        %v6565 = vadd.f32 %v6549, %v6556
        %v6566 = vadd.f32 %v6550, %v6560
        %v6567 = vmax.f32 %v6563, 0.0
        %v6568 = vmax.f32 %v6564, 0.0
        %v6569 = vmax.f32 %v6565, 0.0
        %v6570 = vmax.f32 %v6566, 0.0
        %v6571 = vld [vmem:[#allocation26] sm:$0xff]
        %v6572 = vld [vmem:[#allocation26 + $0x8] sm:$0xff]
        %v6573 = vld [vmem:[#allocation26 + $0x10] sm:$0xff]
        %v6574 = vld [vmem:[#allocation26 + $0x18] sm:$0xff]
        %v6575 = vld [vmem:[#allocation26 + $0x20] sm:$0xff]
        %v6576 = vld [vmem:[#allocation26 + $0x28] sm:$0xff]
        %v6577 = vld [vmem:[#allocation26 + $0x30] sm:$0xff]
        %v6578 = vld [vmem:[#allocation26 + $0x38] sm:$0xff]
        %v6579 = vld [vmem:[#allocation26 + $0x40] sm:$0xff]
        %v6580 = vld [vmem:[#allocation26 + $0x48] sm:$0xff]
        %v6581 = vld [vmem:[#allocation26 + $0x50] sm:$0xff]
        %v6582 = vld [vmem:[#allocation26 + $0x58] sm:$0xff]
        %v6583 = vld [vmem:[#allocation26 + $0x60] sm:$0xff]
        %v6584 = vld [vmem:[#allocation26 + $0x68] sm:$0xff]
        %v6585 = vld [vmem:[#allocation26 + $0x70] sm:$0xff]
        %v6586 = vld [vmem:[#allocation26 + $0x78] sm:$0xff]
        %v6587 = vld [vmem:[#allocation26 + $0x80] sm:$0xff]
        %v6588 = vld [vmem:[#allocation26 + $0x88] sm:$0xff]
        %v6589 = vld [vmem:[#allocation26 + $0x90] sm:$0xff]
        %v6590 = vld [vmem:[#allocation26 + $0x98] sm:$0xff]
        %v6591 = vld [vmem:[#allocation26 + $0xa0] sm:$0xff]
        %v6592 = vld [vmem:[#allocation26 + $0xa8] sm:$0xff]
        %v6593 = vld [vmem:[#allocation26 + $0xb0] sm:$0xff]
        %v6594 = vld [vmem:[#allocation26 + $0xb8] sm:$0xff]
        %v6595 = vld [vmem:[#allocation26 + $0xc0] sm:$0xff]
        %v6596 = vld [vmem:[#allocation26 + $0xc8] sm:$0xff]
        %v6597 = vld [vmem:[#allocation26 + $0xd0] sm:$0xff]
        %v6598 = vld [vmem:[#allocation26 + $0xd8] sm:$0xff]
        %v6599 = vld [vmem:[#allocation26 + $0xe0] sm:$0xff]
        %v6600 = vld [vmem:[#allocation26 + $0xe8] sm:$0xff]
        %v6601 = vld [vmem:[#allocation26 + $0xf0] sm:$0xff]
        %v6602 = vld [vmem:[#allocation26 + $0xf8] sm:$0xff]
        %v6603 = vld [vmem:[#allocation2] sm:$0x1]
        %v6605 = vlaneseq
        %v6606 = vshrl.u32 %v6605, 7
        %v6607 = vsub.s32 0, %v6606
        %v6608 = vrot.slane %v6603, %v6607
        %6609 = vset.pattern.permute.xlu0 0
        %6610 = vperm.xlu0 %6609, %v6608
        %v6611 = vpop.permute.xlu0 %6610
        %6613 = vmatprep.subr.mxu0 0.0
        %6614 = vmatpush1.msra.mxu0 %v6571
        %6615 = vmatprep.subr.mxu0 0.0
        %6616 = vmatpush1.msra.mxu0 %v6572
        %6617 = vmatprep.subr.mxu0 0.0
        %6618 = vmatpush1.msra.mxu0 %v6573
        %6619 = vmatprep.subr.mxu0 0.0
        %6620 = vmatpush1.msra.mxu0 %v6574
        %6621 = vmatprep.subr.mxu0 0.0
        %6622 = vmatpush1.msra.mxu0 %v6575
        %6623 = vmatprep.subr.mxu0 0.0
        %6624 = vmatpush1.msra.mxu0 %v6576
        %6625 = vmatprep.subr.mxu0 0.0
        %6626 = vmatpush1.msra.mxu0 %v6577
        %6627 = vmatprep.subr.mxu0 0.0
        %6628 = vmatpush1.msra.mxu0 %v6578
        %6629 = vmatprep.subr.mxu0 0.0
        %6630 = vmatpush1.msra.mxu0 %v6579
        %6631 = vmatprep.subr.mxu0 0.0
        %6632 = vmatpush1.msra.mxu0 %v6580
        %6633 = vmatprep.subr.mxu0 0.0
        %6634 = vmatpush1.msra.mxu0 %v6581
        %6635 = vmatprep.subr.mxu0 0.0
        %6636 = vmatpush1.msra.mxu0 %v6582
        %6637 = vmatprep.subr.mxu0 0.0
        %6638 = vmatpush1.msra.mxu0 %v6583
        %6639 = vmatprep.subr.mxu0 0.0
        %6640 = vmatpush1.msra.mxu0 %v6584
        %6641 = vmatprep.subr.mxu0 0.0
        %6642 = vmatpush1.msra.mxu0 %v6585
        %6643 = vmatprep.subr.mxu0 0.0
        %6644 = vmatpush1.msra.mxu0 %v6586
        %6645 = vmatprep.subr.mxu0 0.0
        %6646 = vmatpush1.msra.mxu0 %v6587
        %6647 = vmatprep.subr.mxu0 0.0
        %6648 = vmatpush1.msra.mxu0 %v6588
        %6649 = vmatprep.subr.mxu0 0.0
        %6650 = vmatpush1.msra.mxu0 %v6589
        %6651 = vmatprep.subr.mxu0 0.0
        %6652 = vmatpush1.msra.mxu0 %v6590
        %6653 = vmatprep.subr.mxu0 0.0
        %6654 = vmatpush1.msra.mxu0 %v6591
        %6655 = vmatprep.subr.mxu0 0.0
        %6656 = vmatpush1.msra.mxu0 %v6592
        %6657 = vmatprep.subr.mxu0 0.0
        %6658 = vmatpush1.msra.mxu0 %v6593
        %6659 = vmatprep.subr.mxu0 0.0
        %6660 = vmatpush1.msra.mxu0 %v6594
        %6661 = vmatprep.subr.mxu0 0.0
        %6662 = vmatpush1.msra.mxu0 %v6595
        %6663 = vmatprep.subr.mxu0 0.0
        %6664 = vmatpush1.msra.mxu0 %v6596
        %6665 = vmatprep.subr.mxu0 0.0
        %6666 = vmatpush1.msra.mxu0 %v6597
        %6667 = vmatprep.subr.mxu0 0.0
        %6668 = vmatpush1.msra.mxu0 %v6598
        %6669 = vmatprep.subr.mxu0 0.0
        %6670 = vmatpush1.msra.mxu0 %v6599
        %6671 = vmatprep.subr.mxu0 0.0
        %6672 = vmatpush1.msra.mxu0 %v6600
        %6673 = vmatprep.subr.mxu0 0.0
        %6674 = vmatpush1.msra.mxu0 %v6601
        %6675 = vmatprep.subr.mxu0 0.0
        %6676 = vmatpush1.msra.mxu0 %v6602
        %6677 = vmatprep.mubr.f32.mxu0 %v6568
        %6678 = vmatmul.mubr.f32.gmra.mrb[0].mxu0 %v6567
        %v6679 = vpop.f32.mrb[0].mxu0
        %v6680 = vadd.f32 %v6611, %v6679
        %v6681 = vpop.f32.mrb[0].mxu0
        %6682 = vmatprep.mubr.f32.mxu0 %v6570
        %6683 = vmatmul.mubr.f32.gmra.mrb[0].mxu0 %v6569
        %v6684 = vpop.f32.mrb[0].mxu0
        %v6685 = vadd.f32 %v6611, %v6684
        %v6686 = vpop.f32.mrb[0].mxu0
        %6687 = vdwg.mxu0
        %6688 = vst [vmem:[%s1178] sm:$0xff] %v6680
        %6689 = vst [vmem:[%s1178 + $0x8] sm:$0xff] %v6685
        %p6690 = scmp.lt.s32.totalorder %s81, 1
        %s6691 = scalar_select %p6690, %s81, 1
        %s6692 = smul.addr %s6691, 2
        %s6693 = smul.addr %s6692, 8
        %s6694 = scalar_lea.vmem %s59, %s6693
        // Predicated region
        $region201: #{concat_output_forward.1} parent=135 // pred_check
          %p6695 = pneg %p728
        $region202: #{concat_output_forward.1} parent=135 // pred_check_branch
          %6697 = sbr.rel (%p6695) target = $region204
        $region203: #{concat_output_forward.1} parent=135 // pred_region
          _
        $region204: #{concat_output_forward.1} parent=135 // pred_fallthru
          _
      $region136: #{concat_output_forward.1} parent=5 // pred_fallthru
        _
      %p6698 = scmp.le.s32.totalorder 2, %s76
      // Predicated region
      $region205: #{concat_output_forward.1} parent=5 // pred_check
        %p6699 = pneg %p6698
      $region206: #{concat_output_forward.1} parent=5 // pred_check_branch
        %6701 = sbr.rel (%p6699) target = $region208
      $region207: #{concat_output_forward.1} parent=5 // pred_region
        %s6702 = ssub.s32 %s76, 2
        // Predicated region
        $region209: #{concat_output_forward.1} parent=207 // pred_check
          %p6703 = pneg %p734
        $region210: #{concat_output_forward.1} parent=207 // pred_check_branch
          %6705 = sbr.rel (%p6703) target = $region212
        $region211: #{concat_output_forward.1} parent=207 // pred_region
          %p6706 = scmp.lt.s32.totalorder %s82, 1
          %s6707 = scalar_select %p6706, %s82, 1
          %s6708 = smul.addr %s6707, 2
          %s6709 = smul.addr %s6708, 8
          %s6710 = scalar_lea.vmem %s59, %s6709
        $region212: #{concat_output_forward.1} parent=207 // pred_fallthru
          _
      $region208: #{concat_output_forward.1} parent=5 // pred_fallthru
        _
    $region6: #{concat_output_forward.1} parent=1 // loop_footer
      %s80 = sadd.s32 1, %s76
    $region7: #{concat_output_forward.1} parent=1 // loop_footer_branch
      %75 = sbr.rel target = $region3
    $region8: #{concat_output_forward.1} parent=1 // loop_exit
      _
    %6711 = vsyncpa [#allocation4], 1
    %s6712 = scalar_lea.sflag [#allocation4], 1
    %6713 = vsyncpa %s6712, 1
    %6714 = vsyncpa [#allocation6], 1
    %6715 = vsyncpa [#allocation9], 1
    %6716 = vsyncpa [#allocation12], 1
    %6717 = vsyncpa [#allocation15], 1
    %6718 = vsyncpa [#allocation18], 1
    %6719 = vsyncpa [#allocation21], 1
    %6720 = vsyncpa [#allocation24], 1
    %6721 = vsyncpa [#allocation27], 1

</llo_original>
